<compile_context>
chip_gen: v7x
topology: tpu7x:2x2x1
jax: 0.10.0
libtpu: 0.0.40
codegen_flags: <defaults>
</compile_context>

<pallas_src>
import jax
import jax.numpy as jnp
from jax.experimental import pallas as pl
from jax.experimental.pallas import tpu as pltpu

D = 8                         # number of feature_out Linear layers
W = 256                       # hidden width
SEM_DIM = 128                 # semantic feature dim
HEAD_OUT = 4 * W + SEM_DIM    # 1152 = fused head first-layer output width
NARROW = 128                  # narrow slab width (lane-dense)

# column layout of the narrow in/out slabs
PTS = slice(0, 3)
T1 = slice(3, 4)
SCA = slice(4, 7)
ROT = slice(7, 11)
OP = slice(11, 12)


def _choose_tile(n):
    """Largest tile (<=1024) that still gives >= 2 grid steps (v7x megacore)."""
    for t in (1024, 512, 256):
        if n >= 2 * t:
            return t
    return 256


def _deformation_kernel(
    xn_ref,                                  # (TILE_N, 128) narrow input slab
    xs_ref,                                  # (TILE_N, 128) semantic feature
    fw0_ref, fb0_ref, fwh_ref, fbh_ref,      # feature_out backbone
    hw1_ref, hb1_ref,                        # fused head first layers
    w2p_ref, b2p_ref,                        # block-diag fused narrow 2nd layers
    mw2_ref, mb2_ref,                        # semantic head second layer
    on_ref,                                  # (TILE_N, 128) narrow output slab
    os_ref,                                  # (TILE_N, 128) semantic output
):
    bf16 = jnp.bfloat16
    xn = xn_ref[...]                         # (TILE_N, 128) f32

    # ---- feature_out: Linear(4, W) then (D-1) x [ReLU, Linear(W, W)] ----
    # fw0 is zero-padded to (128, W); only rows 0:4 ([pts3|t1]) are live.
    h = jnp.dot(xn.astype(bf16), fw0_ref[...],
                preferred_element_type=jnp.float32) + fb0_ref[...]
    for i in range(D - 1):                   # static unroll
        h = jnp.dot(jnp.maximum(h, 0.0).astype(bf16), fwh_ref[i],
                    preferred_element_type=jnp.float32) + fbh_ref[i]

    # ---- heads: fused first layers (one wide MXU pass), ReLU+cast fused ----
    a = jnp.dot(jnp.maximum(h, 0.0).astype(bf16), hw1_ref[...],
                preferred_element_type=jnp.float32) + hb1_ref[...]
    a = jnp.maximum(a, 0.0).astype(bf16)     # (TILE_N, 1152) bf16 only

    # pos/scales/rot/opacity second layers fused into one block-diagonal
    # (1024, 128) matmul whose live columns match the narrow slab layout.
    d_small = jnp.dot(a[:, :4 * W], w2p_ref[...],
                      preferred_element_type=jnp.float32) + b2p_ref[...]
    # semantic head second layer (128 x 128)
    d_sem = jnp.dot(a[:, 4 * W:], mw2_ref[...],
                    preferred_element_type=jnp.float32) + mb2_ref[...]

    # two lane-aligned 128-wide residual stores (no concat materialization)
    on_ref[...] = xn + d_small
    os_ref[...] = xs_ref[...] + d_sem


def init_params(key):
    """Deterministic synthetic weights (PyTorch-Linear-style uniform init)."""
    keys = iter(jax.random.split(key, 64))

    def linear(fan_in, fan_out):
        kw, kb = jax.random.split(next(keys))
        bound = 1.0 / (fan_in ** 0.5)
        w = jax.random.uniform(kw, (fan_in, fan_out), jnp.float32, -bound, bound)
        b = jax.random.uniform(kb, (1, fan_out), jnp.float32, -bound, bound)
        return w, b

    fw0, fb0 = linear(4, W)
    whs, bhs = [], []
    for _ in range(D - 1):
        w, b = linear(W, W)
        whs.append(w)
        bhs.append(b)
    fwh = jnp.stack(whs)     # (D-1, W, W)
    fbh = jnp.stack(bhs)     # (D-1, 1, W)

    pw1, pb1 = linear(W, W); pw2, pb2 = linear(W, 3)
    sw1, sb1 = linear(W, W); sw2, sb2 = linear(W, 3)
    rw1, rb1 = linear(W, W); rw2, rb2 = linear(W, 4)
    ow1, ob1 = linear(W, W); ow2, ob2 = linear(W, 1)
    mw1, mb1 = linear(W, SEM_DIM); mw2, mb2 = linear(SEM_DIM, SEM_DIM)

    return (fw0, fb0, fwh, fbh,
            pw1, pb1, pw2, pb2,
            sw1, sb1, sw2, sb2,
            rw1, rb1, rw2, rb2,
            ow1, ob1, ow2, ob2,
            mw1, mb1, mw2, mb2)


def pack_params(params):
    """Fuse/pad/cast raw per-layer params into kernel-ready form."""
    (fw0, fb0, fwh, fbh,
     pw1, pb1, pw2, pb2,
     sw1, sb1, sw2, sb2,
     rw1, rb1, rw2, rb2,
     ow1, ob1, ow2, ob2,
     mw1, mb1, mw2, mb2) = params
    f32, bf16 = jnp.float32, jnp.bfloat16

    # first backbone layer, zero-padded to consume the 128-wide narrow slab
    # (keep K=128: exact zeros, and no K=256 regression on v5e's 128x128 MXU)
    fw0p = jnp.zeros((NARROW, W), f32).at[:4, :].set(fw0).astype(bf16)

    # fused head first layers: (W, 4W+128)
    hw1 = jnp.concatenate([pw1, sw1, rw1, ow1, mw1], axis=1).astype(bf16)
    hb1 = jnp.concatenate([pb1, sb1, rb1, ob1, mb1], axis=1).astype(f32)

    # block-diagonal fused second layer for the four narrow heads; live
    # columns match the narrow slab layout (padding is exact zero).
    w2p = jnp.zeros((4 * W, NARROW), f32)
    w2p = w2p.at[0 * W:1 * W, PTS].set(pw2)
    w2p = w2p.at[1 * W:2 * W, SCA].set(sw2)
    w2p = w2p.at[2 * W:3 * W, ROT].set(rw2)
    w2p = w2p.at[3 * W:4 * W, OP].set(ow2)
    b2p = jnp.zeros((1, NARROW), f32)
    b2p = b2p.at[:, PTS].set(pb2).at[:, SCA].set(sb2)
    b2p = b2p.at[:, ROT].set(rb2).at[:, OP].set(ob2)

    return (fw0p, fb0.astype(f32),
            fwh.astype(bf16), fbh.astype(f32),
            hw1, hb1,
            w2p.astype(bf16), b2p,
            mw2.astype(bf16), mb2.astype(f32))


@jax.jit
def deformation_forward(packed_params, rays_pts_emb, scales_emb,
                        rotations_emb, opacity_emb, time_emb,
                        semantic_feature):
    """forward_dynamic with args.no_grid=True and all no_* flags False."""
    N = rays_pts_emb.shape[0]
    f32 = jnp.float32

    # glue: slicing / packing of the narrow (<=12 live lanes) slab only; the
    # 128-wide semantic feature is passed through as its own operand.
    pts3 = rays_pts_emb[:, :3].astype(f32)
    t1 = time_emb[:, :1].astype(f32)
    scales3 = scales_emb[:, :3].astype(f32)
    rot4 = rotations_emb[:, :4].astype(f32)
    op1 = opacity_emb[:, :1].astype(f32)
    sem = semantic_feature.reshape(N, SEM_DIM).astype(f32)

    narrow = jnp.concatenate(
        [pts3, t1, scales3, rot4, op1, jnp.zeros((N, NARROW - 12), f32)],
        axis=-1)                                             # (N, 128)

    # pad rows to a multiple of the tile (pad rows produce junk, sliced off)
    tile = _choose_tile(N)
    n_pad = (-N) % tile
    if n_pad:
        narrow = jnp.pad(narrow, ((0, n_pad), (0, 0)))
        sem = jnp.pad(sem, ((0, n_pad), (0, 0)))
    N_pad = N + n_pad
    grid = (N_pad // tile,)

    row_spec = pl.BlockSpec((tile, NARROW), lambda i: (i, 0))

    def full_spec(arr):
        nd = arr.ndim
        return pl.BlockSpec(arr.shape, lambda i, _nd=nd: (0,) * _nd)

    in_specs = [row_spec, row_spec] + [full_spec(p) for p in packed_params]

    flops = 2 * N_pad * (NARROW * W + (D - 1) * W * W + W * HEAD_OUT
                         + 4 * W * NARROW + SEM_DIM * SEM_DIM)
    param_bytes = sum(int(p.size) * p.dtype.itemsize for p in packed_params)
    bytes_accessed = 4 * N_pad * NARROW * 4 + param_bytes

    out_narrow, out_sem = pl.pallas_call(
        _deformation_kernel,
        out_shape=(jax.ShapeDtypeStruct((N_pad, NARROW), f32),
                   jax.ShapeDtypeStruct((N_pad, SEM_DIM), f32)),
        grid=grid,
        in_specs=in_specs,
        out_specs=(row_spec, row_spec),
        compiler_params=pltpu.CompilerParams(
            dimension_semantics=("parallel",),
            vmem_limit_bytes=32 * 1024 * 1024),
        cost_estimate=pl.CostEstimate(
            flops=flops, transcendentals=0, bytes_accessed=bytes_accessed),
    )(narrow, sem, *packed_params)

    pts = out_narrow[:N, PTS]
    scales = out_narrow[:N, SCA]
    rotations = out_narrow[:N, ROT]
    opacity = out_narrow[:N, OP]
    sem_out = out_sem[:N].reshape(N, 1, SEM_DIM)
    return pts, scales, rotations, opacity, sem_out


def deformation_reference(params, rays_pts_emb, scales_emb, rotations_emb,
                          opacity_emb, time_emb, semantic_feature):
    """Pure-JAX reference mimicking the bf16-matmul / f32-accumulate kernel."""
    (fw0, fb0, fwh, fbh,
     pw1, pb1, pw2, pb2,
     sw1, sb1, sw2, sb2,
     rw1, rb1, rw2, rb2,
     ow1, ob1, ow2, ob2,
     mw1, mb1, mw2, mb2) = params

    def bdot(x, w):
        return jnp.dot(x.astype(jnp.bfloat16), w.astype(jnp.bfloat16),
                       preferred_element_type=jnp.float32)

    h = jnp.concatenate([rays_pts_emb[:, :3], time_emb[:, :1]], axis=-1)
    h = bdot(h, fw0) + fb0
    for i in range(D - 1):
        h = bdot(jnp.maximum(h, 0.0), fwh[i]) + fbh[i]

    def head(w1, b1, w2, b2):
        a = bdot(jnp.maximum(h, 0.0), w1) + b1
        return bdot(jnp.maximum(a, 0.0), w2) + b2

    pts = rays_pts_emb[:, :3] + head(pw1, pb1, pw2, pb2)
    scales = scales_emb[:, :3] + head(sw1, sb1, sw2, sb2)
    rotations = rotations_emb[:, :4] + head(rw1, rb1, rw2, rb2)
    opacity = opacity_emb[:, :1] + head(ow1, ob1, ow2, ob2)
    sem = semantic_feature[:, 0, :256] + head(mw1, mb1, mw2, mb2)
    return pts, scales, rotations, opacity, sem[:, None, :]


if __name__ == "__main__":
    key = jax.random.PRNGKey(0)
    k_par, k_p, k_s, k_r, k_o, k_t, k_f = jax.random.split(key, 7)

    N = 600               # NOT a multiple of the tile (tests padding, 3 tiles)
    INPUT_CH = 27
    INPUT_CH_TIME = 9

    raw_params = init_params(k_par)
    packed_params = pack_params(raw_params)

    rays_pts_emb = jax.random.normal(k_p, (N, INPUT_CH), jnp.float32)
    scales_emb = jax.random.normal(k_s, (N, 3), jnp.float32)
    rotations_emb = jax.random.normal(k_r, (N, 4), jnp.float32)
    opacity_emb = jax.random.normal(k_o, (N, 1), jnp.float32)
    time_emb = jax.random.normal(k_t, (N, INPUT_CH_TIME), jnp.float32)
    semantic_feature = jax.random.normal(k_f, (N, 1, SEM_DIM), jnp.float32)

    outs = deformation_forward(packed_params, rays_pts_emb, scales_emb,
                               rotations_emb, opacity_emb, time_emb,
                               semantic_feature)
    outs = jax.block_until_ready(outs)

    refs = deformation_reference(raw_params, rays_pts_emb, scales_emb,
                                 rotations_emb, opacity_emb, time_emb,
                                 semantic_feature)
    for o, r in zip(outs, refs):
        assert o.shape == r.shape, (o.shape, r.shape)
        err = float(jnp.max(jnp.abs(o - r)))
        assert jnp.allclose(o, r, rtol=2e-3, atol=2e-3), err

    print("KERNEL_OK")
</pallas_src>

<mosaic_0001>
module attributes {stable_mosaic.version = 11 : i64} {
  func.func @_deformation_kernel(%arg0: i32, %arg1: memref<256x128xf32, #tpu.memory_space<vmem>>, %arg2: memref<256x128xf32, #tpu.memory_space<vmem>>, %arg3: memref<128x256xbf16, #tpu.memory_space<vmem>>, %arg4: memref<1x256xf32, #tpu.memory_space<vmem>>, %arg5: memref<7x256x256xbf16, #tpu.memory_space<vmem>>, %arg6: memref<7x1x256xf32, #tpu.memory_space<vmem>>, %arg7: memref<256x1152xbf16, #tpu.memory_space<vmem>>, %arg8: memref<1x1152xf32, #tpu.memory_space<vmem>>, %arg9: memref<1024x128xbf16, #tpu.memory_space<vmem>>, %arg10: memref<1x128xf32, #tpu.memory_space<vmem>>, %arg11: memref<128x128xbf16, #tpu.memory_space<vmem>>, %arg12: memref<1x128xf32, #tpu.memory_space<vmem>>, %arg13: memref<256x128xf32, #tpu.memory_space<vmem>>, %arg14: memref<256x128xf32, #tpu.memory_space<vmem>>) attributes {dimension_semantics = [#tpu.dimension_semantics<parallel>], iteration_bounds = array<i64: 3>, scalar_prefetch = 0 : i64, scratch_operands = 0 : i64, tpu.core_type = #tpu.core_type<tc>, window_params = [{transform_indices = @transform_0, window_bounds = array<i64: 256, 128>}, {transform_indices = @transform_1, window_bounds = array<i64: 256, 128>}, {pipeline_mode = #tpu.pipeline_mode<synchronous>, transform_indices = @transform_2, window_bounds = array<i64: 128, 256>}, {pipeline_mode = #tpu.pipeline_mode<synchronous>, transform_indices = @transform_3, window_bounds = array<i64: 1, 256>}, {pipeline_mode = #tpu.pipeline_mode<synchronous>, transform_indices = @transform_4, window_bounds = array<i64: 7, 256, 256>}, {pipeline_mode = #tpu.pipeline_mode<synchronous>, transform_indices = @transform_5, window_bounds = array<i64: 7, 1, 256>}, {pipeline_mode = #tpu.pipeline_mode<synchronous>, transform_indices = @transform_6, window_bounds = array<i64: 256, 1152>}, {pipeline_mode = #tpu.pipeline_mode<synchronous>, transform_indices = @transform_7, window_bounds = array<i64: 1, 1152>}, {pipeline_mode = #tpu.pipeline_mode<synchronous>, transform_indices = @transform_8, window_bounds = array<i64: 1024, 128>}, {pipeline_mode = #tpu.pipeline_mode<synchronous>, transform_indices = @transform_9, window_bounds = array<i64: 1, 128>}, {pipeline_mode = #tpu.pipeline_mode<synchronous>, transform_indices = @transform_10, window_bounds = array<i64: 128, 128>}, {pipeline_mode = #tpu.pipeline_mode<synchronous>, transform_indices = @transform_11, window_bounds = array<i64: 1, 128>}, {transform_indices = @transform_12, window_bounds = array<i64: 256, 128>}, {transform_indices = @transform_13, window_bounds = array<i64: 256, 128>}]} {
    %c0 = arith.constant 0 : index
    %c0_0 = arith.constant 0 : index
    %0 = vector.load %arg1[%c0, %c0_0] : memref<256x128xf32, #tpu.memory_space<vmem>>, vector<256x128xf32>
    %1 = arith.truncf %0 : vector<256x128xf32> to vector<256x128xbf16>
    %c0_1 = arith.constant 0 : index
    %c0_2 = arith.constant 0 : index
    %2 = vector.load %arg3[%c0_1, %c0_2] : memref<128x256xbf16, #tpu.memory_space<vmem>>, vector<128x256xbf16>
    %cst = arith.constant dense<0.000000e+00> : vector<256x256xf32>
    %3 = tpu.matmul %1, %2, %cst {dimension_numbers = #tpu.dot_dimension_numbers<[1], [0], [0], [1], [0, 0, 1, 1], [], []>} : vector<256x128xbf16>, vector<128x256xbf16>, vector<256x256xf32> -> vector<256x256xf32>
    %c0_3 = arith.constant 0 : index
    %c0_4 = arith.constant 0 : index
    %4 = vector.load %arg4[%c0_3, %c0_4] : memref<1x256xf32, #tpu.memory_space<vmem>>, vector<1x256xf32>
    %5 = vector.broadcast %4 : vector<1x256xf32> to vector<256x256xf32>
    %6 = arith.addf %3, %5 : vector<256x256xf32>
    %cst_5 = arith.constant 0.000000e+00 : f32
    %7 = vector.broadcast %cst_5 : f32 to vector<256x256xf32>
    %8 = arith.maximumf %6, %7 : vector<256x256xf32>
    %9 = arith.truncf %8 : vector<256x256xf32> to vector<256x256xbf16>
    %c0_6 = arith.constant 0 : index
    %c0_7 = arith.constant 0 : index
    %c0_8 = arith.constant 0 : index
    %10 = vector.load %arg5[%c0_6, %c0_7, %c0_8] : memref<7x256x256xbf16, #tpu.memory_space<vmem>>, vector<1x256x256xbf16>
    %11 = vector.shape_cast %10 : vector<1x256x256xbf16> to vector<256x256xbf16>
    %cst_9 = arith.constant dense<0.000000e+00> : vector<256x256xf32>
    %12 = tpu.matmul %9, %11, %cst_9 {dimension_numbers = #tpu.dot_dimension_numbers<[1], [0], [0], [1], [0, 0, 1, 1], [], []>} : vector<256x256xbf16>, vector<256x256xbf16>, vector<256x256xf32> -> vector<256x256xf32>
    %c0_10 = arith.constant 0 : index
    %c0_11 = arith.constant 0 : index
    %c0_12 = arith.constant 0 : index
    %13 = vector.load %arg6[%c0_10, %c0_11, %c0_12] : memref<7x1x256xf32, #tpu.memory_space<vmem>>, vector<1x1x256xf32>
    %14 = vector.shape_cast %13 : vector<1x1x256xf32> to vector<1x256xf32>
    %15 = vector.broadcast %14 : vector<1x256xf32> to vector<256x256xf32>
    %16 = arith.addf %12, %15 : vector<256x256xf32>
    %cst_13 = arith.constant 0.000000e+00 : f32
    %17 = vector.broadcast %cst_13 : f32 to vector<256x256xf32>
    %18 = arith.maximumf %16, %17 : vector<256x256xf32>
    %19 = arith.truncf %18 : vector<256x256xf32> to vector<256x256xbf16>
    %c1 = arith.constant 1 : index
    %c0_14 = arith.constant 0 : index
    %c0_15 = arith.constant 0 : index
    %20 = vector.load %arg5[%c1, %c0_14, %c0_15] : memref<7x256x256xbf16, #tpu.memory_space<vmem>>, vector<1x256x256xbf16>
    %21 = vector.shape_cast %20 : vector<1x256x256xbf16> to vector<256x256xbf16>
    %cst_16 = arith.constant dense<0.000000e+00> : vector<256x256xf32>
    %22 = tpu.matmul %19, %21, %cst_16 {dimension_numbers = #tpu.dot_dimension_numbers<[1], [0], [0], [1], [0, 0, 1, 1], [], []>} : vector<256x256xbf16>, vector<256x256xbf16>, vector<256x256xf32> -> vector<256x256xf32>
    %c1_17 = arith.constant 1 : index
    %c0_18 = arith.constant 0 : index
    %c0_19 = arith.constant 0 : index
    %23 = vector.load %arg6[%c1_17, %c0_18, %c0_19] : memref<7x1x256xf32, #tpu.memory_space<vmem>>, vector<1x1x256xf32>
    %24 = vector.shape_cast %23 : vector<1x1x256xf32> to vector<1x256xf32>
    %25 = vector.broadcast %24 : vector<1x256xf32> to vector<256x256xf32>
    %26 = arith.addf %22, %25 : vector<256x256xf32>
    %cst_20 = arith.constant 0.000000e+00 : f32
    %27 = vector.broadcast %cst_20 : f32 to vector<256x256xf32>
    %28 = arith.maximumf %26, %27 : vector<256x256xf32>
    %29 = arith.truncf %28 : vector<256x256xf32> to vector<256x256xbf16>
    %c2 = arith.constant 2 : index
    %c0_21 = arith.constant 0 : index
    %c0_22 = arith.constant 0 : index
    %30 = vector.load %arg5[%c2, %c0_21, %c0_22] : memref<7x256x256xbf16, #tpu.memory_space<vmem>>, vector<1x256x256xbf16>
    %31 = vector.shape_cast %30 : vector<1x256x256xbf16> to vector<256x256xbf16>
    %cst_23 = arith.constant dense<0.000000e+00> : vector<256x256xf32>
    %32 = tpu.matmul %29, %31, %cst_23 {dimension_numbers = #tpu.dot_dimension_numbers<[1], [0], [0], [1], [0, 0, 1, 1], [], []>} : vector<256x256xbf16>, vector<256x256xbf16>, vector<256x256xf32> -> vector<256x256xf32>
    %c2_24 = arith.constant 2 : index
    %c0_25 = arith.constant 0 : index
    %c0_26 = arith.constant 0 : index
    %33 = vector.load %arg6[%c2_24, %c0_25, %c0_26] : memref<7x1x256xf32, #tpu.memory_space<vmem>>, vector<1x1x256xf32>
    %34 = vector.shape_cast %33 : vector<1x1x256xf32> to vector<1x256xf32>
    %35 = vector.broadcast %34 : vector<1x256xf32> to vector<256x256xf32>
    %36 = arith.addf %32, %35 : vector<256x256xf32>
    %cst_27 = arith.constant 0.000000e+00 : f32
    %37 = vector.broadcast %cst_27 : f32 to vector<256x256xf32>
    %38 = arith.maximumf %36, %37 : vector<256x256xf32>
    %39 = arith.truncf %38 : vector<256x256xf32> to vector<256x256xbf16>
    %c3 = arith.constant 3 : index
    %c0_28 = arith.constant 0 : index
    %c0_29 = arith.constant 0 : index
    %40 = vector.load %arg5[%c3, %c0_28, %c0_29] : memref<7x256x256xbf16, #tpu.memory_space<vmem>>, vector<1x256x256xbf16>
    %41 = vector.shape_cast %40 : vector<1x256x256xbf16> to vector<256x256xbf16>
    %cst_30 = arith.constant dense<0.000000e+00> : vector<256x256xf32>
    %42 = tpu.matmul %39, %41, %cst_30 {dimension_numbers = #tpu.dot_dimension_numbers<[1], [0], [0], [1], [0, 0, 1, 1], [], []>} : vector<256x256xbf16>, vector<256x256xbf16>, vector<256x256xf32> -> vector<256x256xf32>
    %c3_31 = arith.constant 3 : index
    %c0_32 = arith.constant 0 : index
    %c0_33 = arith.constant 0 : index
    %43 = vector.load %arg6[%c3_31, %c0_32, %c0_33] : memref<7x1x256xf32, #tpu.memory_space<vmem>>, vector<1x1x256xf32>
    %44 = vector.shape_cast %43 : vector<1x1x256xf32> to vector<1x256xf32>
    %45 = vector.broadcast %44 : vector<1x256xf32> to vector<256x256xf32>
    %46 = arith.addf %42, %45 : vector<256x256xf32>
    %cst_34 = arith.constant 0.000000e+00 : f32
    %47 = vector.broadcast %cst_34 : f32 to vector<256x256xf32>
    %48 = arith.maximumf %46, %47 : vector<256x256xf32>
    %49 = arith.truncf %48 : vector<256x256xf32> to vector<256x256xbf16>
    %c4 = arith.constant 4 : index
    %c0_35 = arith.constant 0 : index
    %c0_36 = arith.constant 0 : index
    %50 = vector.load %arg5[%c4, %c0_35, %c0_36] : memref<7x256x256xbf16, #tpu.memory_space<vmem>>, vector<1x256x256xbf16>
    %51 = vector.shape_cast %50 : vector<1x256x256xbf16> to vector<256x256xbf16>
    %cst_37 = arith.constant dense<0.000000e+00> : vector<256x256xf32>
    %52 = tpu.matmul %49, %51, %cst_37 {dimension_numbers = #tpu.dot_dimension_numbers<[1], [0], [0], [1], [0, 0, 1, 1], [], []>} : vector<256x256xbf16>, vector<256x256xbf16>, vector<256x256xf32> -> vector<256x256xf32>
    %c4_38 = arith.constant 4 : index
    %c0_39 = arith.constant 0 : index
    %c0_40 = arith.constant 0 : index
    %53 = vector.load %arg6[%c4_38, %c0_39, %c0_40] : memref<7x1x256xf32, #tpu.memory_space<vmem>>, vector<1x1x256xf32>
    %54 = vector.shape_cast %53 : vector<1x1x256xf32> to vector<1x256xf32>
    %55 = vector.broadcast %54 : vector<1x256xf32> to vector<256x256xf32>
    %56 = arith.addf %52, %55 : vector<256x256xf32>
    %cst_41 = arith.constant 0.000000e+00 : f32
    %57 = vector.broadcast %cst_41 : f32 to vector<256x256xf32>
    %58 = arith.maximumf %56, %57 : vector<256x256xf32>
    %59 = arith.truncf %58 : vector<256x256xf32> to vector<256x256xbf16>
    %c5 = arith.constant 5 : index
    %c0_42 = arith.constant 0 : index
    %c0_43 = arith.constant 0 : index
    %60 = vector.load %arg5[%c5, %c0_42, %c0_43] : memref<7x256x256xbf16, #tpu.memory_space<vmem>>, vector<1x256x256xbf16>
    %61 = vector.shape_cast %60 : vector<1x256x256xbf16> to vector<256x256xbf16>
    %cst_44 = arith.constant dense<0.000000e+00> : vector<256x256xf32>
    %62 = tpu.matmul %59, %61, %cst_44 {dimension_numbers = #tpu.dot_dimension_numbers<[1], [0], [0], [1], [0, 0, 1, 1], [], []>} : vector<256x256xbf16>, vector<256x256xbf16>, vector<256x256xf32> -> vector<256x256xf32>
    %c5_45 = arith.constant 5 : index
    %c0_46 = arith.constant 0 : index
    %c0_47 = arith.constant 0 : index
    %63 = vector.load %arg6[%c5_45, %c0_46, %c0_47] : memref<7x1x256xf32, #tpu.memory_space<vmem>>, vector<1x1x256xf32>
    %64 = vector.shape_cast %63 : vector<1x1x256xf32> to vector<1x256xf32>
    %65 = vector.broadcast %64 : vector<1x256xf32> to vector<256x256xf32>
    %66 = arith.addf %62, %65 : vector<256x256xf32>
    %cst_48 = arith.constant 0.000000e+00 : f32
    %67 = vector.broadcast %cst_48 : f32 to vector<256x256xf32>
    %68 = arith.maximumf %66, %67 : vector<256x256xf32>
    %69 = arith.truncf %68 : vector<256x256xf32> to vector<256x256xbf16>
    %c6 = arith.constant 6 : index
    %c0_49 = arith.constant 0 : index
    %c0_50 = arith.constant 0 : index
    %70 = vector.load %arg5[%c6, %c0_49, %c0_50] : memref<7x256x256xbf16, #tpu.memory_space<vmem>>, vector<1x256x256xbf16>
    %71 = vector.shape_cast %70 : vector<1x256x256xbf16> to vector<256x256xbf16>
    %cst_51 = arith.constant dense<0.000000e+00> : vector<256x256xf32>
    %72 = tpu.matmul %69, %71, %cst_51 {dimension_numbers = #tpu.dot_dimension_numbers<[1], [0], [0], [1], [0, 0, 1, 1], [], []>} : vector<256x256xbf16>, vector<256x256xbf16>, vector<256x256xf32> -> vector<256x256xf32>
    %c6_52 = arith.constant 6 : index
    %c0_53 = arith.constant 0 : index
    %c0_54 = arith.constant 0 : index
    %73 = vector.load %arg6[%c6_52, %c0_53, %c0_54] : memref<7x1x256xf32, #tpu.memory_space<vmem>>, vector<1x1x256xf32>
    %74 = vector.shape_cast %73 : vector<1x1x256xf32> to vector<1x256xf32>
    %75 = vector.broadcast %74 : vector<1x256xf32> to vector<256x256xf32>
    %76 = arith.addf %72, %75 : vector<256x256xf32>
    %cst_55 = arith.constant 0.000000e+00 : f32
    %77 = vector.broadcast %cst_55 : f32 to vector<256x256xf32>
    %78 = arith.maximumf %76, %77 : vector<256x256xf32>
    %79 = arith.truncf %78 : vector<256x256xf32> to vector<256x256xbf16>
    %c0_56 = arith.constant 0 : index
    %c0_57 = arith.constant 0 : index
    %80 = vector.load %arg7[%c0_56, %c0_57] : memref<256x1152xbf16, #tpu.memory_space<vmem>>, vector<256x1152xbf16>
    %cst_58 = arith.constant dense<0.000000e+00> : vector<256x1152xf32>
    %81 = tpu.matmul %79, %80, %cst_58 {dimension_numbers = #tpu.dot_dimension_numbers<[1], [0], [0], [1], [0, 0, 1, 1], [], []>} : vector<256x256xbf16>, vector<256x1152xbf16>, vector<256x1152xf32> -> vector<256x1152xf32>
    %c0_59 = arith.constant 0 : index
    %c0_60 = arith.constant 0 : index
    %82 = vector.load %arg8[%c0_59, %c0_60] : memref<1x1152xf32, #tpu.memory_space<vmem>>, vector<1x1152xf32>
    %83 = vector.broadcast %82 : vector<1x1152xf32> to vector<256x1152xf32>
    %84 = arith.addf %81, %83 : vector<256x1152xf32>
    %cst_61 = arith.constant 0.000000e+00 : f32
    %85 = vector.broadcast %cst_61 : f32 to vector<256x1152xf32>
    %86 = arith.maximumf %84, %85 : vector<256x1152xf32>
    %87 = arith.truncf %86 : vector<256x1152xf32> to vector<256x1152xbf16>
    %88 = vector.extract_strided_slice %87 {offsets = [0, 0], sizes = [256, 1024], strides = [1, 1]} : vector<256x1152xbf16> to vector<256x1024xbf16>
    %c0_62 = arith.constant 0 : index
    %c0_63 = arith.constant 0 : index
    %89 = vector.load %arg9[%c0_62, %c0_63] : memref<1024x128xbf16, #tpu.memory_space<vmem>>, vector<1024x128xbf16>
    %cst_64 = arith.constant dense<0.000000e+00> : vector<256x128xf32>
    %90 = tpu.matmul %88, %89, %cst_64 {dimension_numbers = #tpu.dot_dimension_numbers<[1], [0], [0], [1], [0, 0, 1, 1], [], []>} : vector<256x1024xbf16>, vector<1024x128xbf16>, vector<256x128xf32> -> vector<256x128xf32>
    %c0_65 = arith.constant 0 : index
    %c0_66 = arith.constant 0 : index
    %91 = vector.load %arg10[%c0_65, %c0_66] : memref<1x128xf32, #tpu.memory_space<vmem>>, vector<1x128xf32>
    %92 = vector.broadcast %91 : vector<1x128xf32> to vector<256x128xf32>
    %93 = arith.addf %90, %92 : vector<256x128xf32>
    %94 = vector.extract_strided_slice %87 {offsets = [0, 1024], sizes = [256, 128], strides = [1, 1]} : vector<256x1152xbf16> to vector<256x128xbf16>
    %c0_67 = arith.constant 0 : index
    %c0_68 = arith.constant 0 : index
    %95 = vector.load %arg11[%c0_67, %c0_68] : memref<128x128xbf16, #tpu.memory_space<vmem>>, vector<128x128xbf16>
    %cst_69 = arith.constant dense<0.000000e+00> : vector<256x128xf32>
    %96 = tpu.matmul %94, %95, %cst_69 {dimension_numbers = #tpu.dot_dimension_numbers<[1], [0], [0], [1], [0, 0, 1, 1], [], []>} : vector<256x128xbf16>, vector<128x128xbf16>, vector<256x128xf32> -> vector<256x128xf32>
    %c0_70 = arith.constant 0 : index
    %c0_71 = arith.constant 0 : index
    %97 = vector.load %arg12[%c0_70, %c0_71] : memref<1x128xf32, #tpu.memory_space<vmem>>, vector<1x128xf32>
    %98 = vector.broadcast %97 : vector<1x128xf32> to vector<256x128xf32>
    %99 = arith.addf %96, %98 : vector<256x128xf32>
    %100 = arith.addf %0, %93 : vector<256x128xf32>
    %c0_72 = arith.constant 0 : index
    %c0_73 = arith.constant 0 : index
    %101 = vector.load %arg13[%c0_72, %c0_73] : memref<256x128xf32, #tpu.memory_space<vmem>>, vector<256x128xf32>
    tpu.vector_store %arg13[%c0_72, %c0_73], %100 {strides = array<i32>} : memref<256x128xf32, #tpu.memory_space<vmem>>, vector<256x128xf32>,
    %c0_74 = arith.constant 0 : index
    %c0_75 = arith.constant 0 : index
    %102 = vector.load %arg2[%c0_74, %c0_75] : memref<256x128xf32, #tpu.memory_space<vmem>>, vector<256x128xf32>
    %103 = arith.addf %102, %99 : vector<256x128xf32>
    %c0_76 = arith.constant 0 : index
    %c0_77 = arith.constant 0 : index
    %104 = vector.load %arg14[%c0_76, %c0_77] : memref<256x128xf32, #tpu.memory_space<vmem>>, vector<256x128xf32>
    tpu.vector_store %arg14[%c0_76, %c0_77], %103 {strides = array<i32>} : memref<256x128xf32, #tpu.memory_space<vmem>>, vector<256x128xf32>,
    return
  }
  func.func @transform_0(%arg0: i32) -> (i32, i32) {
    %c0_i32 = arith.constant 0 : i32
    %c0_i32_0 = arith.constant 0 : i32
    return %arg0, %c0_i32 : i32, i32
  }
  func.func @transform_1(%arg0: i32) -> (i32, i32) {
    %c0_i32 = arith.constant 0 : i32
    %c0_i32_0 = arith.constant 0 : i32
    return %arg0, %c0_i32 : i32, i32
  }
  func.func @transform_2(%arg0: i32) -> (i32, i32) {
    %c0_i32 = arith.constant 0 : i32
    %c0_i32_0 = arith.constant 0 : i32
    %c0_i32_1 = arith.constant 0 : i32
    return %c0_i32, %c0_i32_0 : i32, i32
  }
  func.func @transform_3(%arg0: i32) -> (i32, i32) {
    %c0_i32 = arith.constant 0 : i32
    %c0_i32_0 = arith.constant 0 : i32
    %c0_i32_1 = arith.constant 0 : i32
    return %c0_i32, %c0_i32_0 : i32, i32
  }
  func.func @transform_4(%arg0: i32) -> (i32, i32, i32) {
    %c0_i32 = arith.constant 0 : i32
    %c0_i32_0 = arith.constant 0 : i32
    %c0_i32_1 = arith.constant 0 : i32
    %c0_i32_2 = arith.constant 0 : i32
    return %c0_i32, %c0_i32_0, %c0_i32_1 : i32, i32, i32
  }
  func.func @transform_5(%arg0: i32) -> (i32, i32, i32) {
    %c0_i32 = arith.constant 0 : i32
    %c0_i32_0 = arith.constant 0 : i32
    %c0_i32_1 = arith.constant 0 : i32
    %c0_i32_2 = arith.constant 0 : i32
    return %c0_i32, %c0_i32_0, %c0_i32_1 : i32, i32, i32
  }
  func.func @transform_6(%arg0: i32) -> (i32, i32) {
    %c0_i32 = arith.constant 0 : i32
    %c0_i32_0 = arith.constant 0 : i32
    %c0_i32_1 = arith.constant 0 : i32
    return %c0_i32, %c0_i32_0 : i32, i32
  }
  func.func @transform_7(%arg0: i32) -> (i32, i32) {
    %c0_i32 = arith.constant 0 : i32
    %c0_i32_0 = arith.constant 0 : i32
    %c0_i32_1 = arith.constant 0 : i32
    return %c0_i32, %c0_i32_0 : i32, i32
  }
  func.func @transform_8(%arg0: i32) -> (i32, i32) {
    %c0_i32 = arith.constant 0 : i32
    %c0_i32_0 = arith.constant 0 : i32
    %c0_i32_1 = arith.constant 0 : i32
    return %c0_i32, %c0_i32_0 : i32, i32
  }
  func.func @transform_9(%arg0: i32) -> (i32, i32) {
    %c0_i32 = arith.constant 0 : i32
    %c0_i32_0 = arith.constant 0 : i32
    %c0_i32_1 = arith.constant 0 : i32
    return %c0_i32, %c0_i32_0 : i32, i32
  }
  func.func @transform_10(%arg0: i32) -> (i32, i32) {
    %c0_i32 = arith.constant 0 : i32
    %c0_i32_0 = arith.constant 0 : i32
    %c0_i32_1 = arith.constant 0 : i32
    return %c0_i32, %c0_i32_0 : i32, i32
  }
  func.func @transform_11(%arg0: i32) -> (i32, i32) {
    %c0_i32 = arith.constant 0 : i32
    %c0_i32_0 = arith.constant 0 : i32
    %c0_i32_1 = arith.constant 0 : i32
    return %c0_i32, %c0_i32_0 : i32, i32
  }
  func.func @transform_12(%arg0: i32) -> (i32, i32) {
    %c0_i32 = arith.constant 0 : i32
    %c0_i32_0 = arith.constant 0 : i32
    return %arg0, %c0_i32 : i32, i32
  }
  func.func @transform_13(%arg0: i32) -> (i32, i32) {
    %c0_i32 = arith.constant 0 : i32
    %c0_i32_0 = arith.constant 0 : i32
    return %arg0, %c0_i32 : i32, i32
  }
}

</mosaic_0001>

<llo_original>
// kernel: deformation_forward.1
$region0: #{deformation_forward.1}
  #allocation0 [shape = 'u32[]', space=smem, size = 0x4, offset = 0x4, fixed_abs, tag = 'smem constant byte address 0x4 - core index']
  #allocation1 [shape = 'u32[144,128]{1,0:T(1,128)}', space=vmem, size = 0x12000, scoped, tag = 'internal scratch']
  %s0 = inlined_call_operand.vmem [shape: f32[768,128], index: 0, kind: input, shape index: {}]
  %s1 = inlined_call_operand.vmem [shape: f32[768,128], index: 1, kind: input, shape index: {}]
  %s2 = inlined_call_operand.vmem [shape: bf16[128,256], index: 2, kind: input, shape index: {}]
  %s3 = inlined_call_operand.vmem [shape: f32[1,256], index: 3, kind: input, shape index: {}]
  %s4 = inlined_call_operand.vmem [shape: bf16[7,256,256], index: 4, kind: input, shape index: {}]
  %s5 = inlined_call_operand.vmem [shape: f32[7,1,256], index: 5, kind: input, shape index: {}]
  %s6 = inlined_call_operand.vmem [shape: bf16[256,1152], index: 6, kind: input, shape index: {}]
  %s7 = inlined_call_operand.vmem [shape: f32[1,1152], index: 7, kind: input, shape index: {}]
  %s8 = inlined_call_operand.vmem [shape: bf16[1024,128], index: 8, kind: input, shape index: {}]
  %s9 = inlined_call_operand.vmem [shape: f32[1,128], index: 9, kind: input, shape index: {}]
  %s10 = inlined_call_operand.vmem [shape: bf16[128,128], index: 10, kind: input, shape index: {}]
  %s11 = inlined_call_operand.vmem [shape: f32[1,128], index: 11, kind: input, shape index: {}]
  %s12 = inlined_call_operand.vmem [shape: f32[768,128], index: 12, kind: output, shape index: {0}]
  %s13 = inlined_call_operand.vmem [shape: f32[768,128], index: 13, kind: output, shape index: {1}]
  %14 = xla_tuple %s12, %s13
  %s15 = sld [smem:[#allocation0]]
  $region89: #{deformation_forward.1} parent=0
    _
  %s17 = ssub.s32 1, %s15
  %s18 = scalar_select 0, %s17, %s15
  loop: start=0, step=1, limit=5
  $region2: #{deformation_forward.1} parent=0 // loop_pre_header
    _
  $region3: #{deformation_forward.1} parent=0 // loop_header
    %s20 = sphi 0, %s24
    %p21 = scmp.ge.s32.totalorder %s20, 5
    %s30 = sphi 0, %s32
    %s33 = sphi 0, %s30
    %s34 = sphi 0, %s33
    %s50 = sphi 0, %s34
    %s56 = sphi 0, %s58
    %s59 = sphi 0, %s56
    %s60 = sphi 0, %s59
    %s76 = sphi 0, %s60
    %s80 = sphi 0, %s80
    %s82 = sphi 0, %s80
    %s83 = sphi 0, %s82
    %s97 = sphi 0, %s83
    %s101 = sphi 0, %s101
    %s103 = sphi 0, %s101
    %s104 = sphi 0, %s103
    %s118 = sphi 0, %s104
    %s122 = sphi 0, %s122
    %s124 = sphi 0, %s122
    %s125 = sphi 0, %s124
    %s139 = sphi 0, %s125
    %s143 = sphi 0, %s143
    %s145 = sphi 0, %s143
    %s146 = sphi 0, %s145
    %s160 = sphi 0, %s146
    %s164 = sphi 0, %s164
    %s166 = sphi 0, %s164
    %s167 = sphi 0, %s166
    %s181 = sphi 0, %s167
    %s185 = sphi 0, %s185
    %s187 = sphi 0, %s185
    %s188 = sphi 0, %s187
    %s202 = sphi 0, %s188
    %s206 = sphi 0, %s206
    %s208 = sphi 0, %s206
    %s209 = sphi 0, %s208
    %s223 = sphi 0, %s209
    %s227 = sphi 0, %s227
    %s229 = sphi 0, %s227
    %s230 = sphi 0, %s229
    %s244 = sphi 0, %s230
    %s248 = sphi 0, %s248
    %s250 = sphi 0, %s248
    %s251 = sphi 0, %s250
    %s265 = sphi 0, %s251
    %s269 = sphi 0, %s269
    %s271 = sphi 0, %s269
    %s272 = sphi 0, %s271
    %s286 = sphi 0, %s272
    %s292 = sphi 0, %s294
    %s295 = sphi 0, %s292
    %s296 = sphi 0, %s295
    %s312 = sphi 0, %s296
    %s318 = sphi 0, %s320
    %s321 = sphi 0, %s318
    %s322 = sphi 0, %s321
    %s338 = sphi 0, %s322
  $region4: #{deformation_forward.1} parent=0 // loop_header_branch
    %23 = sbr.rel (%p21) target = $region8
  $region5: #{deformation_forward.1} parent=0 // loop_body
    %s25 = ssub.s32 %s20, 1
    %s26 = ssub.s32 %s20, 2
    %s27 = sadd.s32 %s20, 1
    %s28 = ssub.s32 %s20, %s27
    %p29 = scmp.eq.s32.totalorder %s28, 0
    %s31 = sadd.s32 %s30, 1
    %s32 = scalar_select %p29, %s30, %s31
    %p35 = pneg %p29
    %p36 = scmp.eq.s32.totalorder %s20, 2
    %p37 = por %p35, %p36
    %p38 = scmp.ne.s32.totalorder %s30, %s33
    %p39 = scmp.eq.s32.totalorder %s20, 0
    %p40 = por %p38, %p39
    %p41 = scmp.ne.s32.totalorder %s30, %s33
    %p42 = scmp.eq.s32.totalorder %s25, 2
    %p43 = por %p41, %p42
    %p44 = scmp.ne.s32.totalorder %s33, %s34
    %p45 = scmp.eq.s32.totalorder %s25, 0
    %p46 = por %p44, %p45
    %p47 = scmp.ne.s32.totalorder %s33, %s34
    %p48 = scmp.eq.s32.totalorder %s26, 2
    %p49 = por %p47, %p48
    %p51 = scmp.ne.s32.totalorder %s34, %s50
    %p52 = scmp.eq.s32.totalorder %s26, 0
    %p53 = por %p51, %p52
    %s54 = ssub.s32 %s20, %s27
    %p55 = scmp.eq.s32.totalorder %s54, 0
    %s57 = sadd.s32 %s56, 1
    %s58 = scalar_select %p55, %s56, %s57
    %p61 = pneg %p55
    %p62 = scmp.eq.s32.totalorder %s20, 2
    %p63 = por %p61, %p62
    %p64 = scmp.ne.s32.totalorder %s56, %s59
    %p65 = scmp.eq.s32.totalorder %s20, 0
    %p66 = por %p64, %p65
    %p67 = scmp.ne.s32.totalorder %s56, %s59
    %p68 = scmp.eq.s32.totalorder %s25, 2
    %p69 = por %p67, %p68
    %p70 = scmp.ne.s32.totalorder %s59, %s60
    %p71 = scmp.eq.s32.totalorder %s25, 0
    %p72 = por %p70, %p71
    %p73 = scmp.ne.s32.totalorder %s59, %s60
    %p74 = scmp.eq.s32.totalorder %s26, 2
    %p75 = por %p73, %p74
    %p77 = scmp.ne.s32.totalorder %s60, %s76
    %p78 = scmp.eq.s32.totalorder %s26, 0
    %p79 = por %p77, %p78
    %s81 = sadd.s32 %s80, 1
    %p84 = scmp.eq.s32.totalorder %s20, 2
    %p85 = scmp.ne.s32.totalorder %s80, %s82
    %p86 = scmp.eq.s32.totalorder %s20, 0
    %p87 = por %p85, %p86
    %p88 = scmp.ne.s32.totalorder %s80, %s82
    %p89 = scmp.eq.s32.totalorder %s25, 2
    %p90 = por %p88, %p89
    %p91 = scmp.ne.s32.totalorder %s82, %s83
    %p92 = scmp.eq.s32.totalorder %s25, 0
    %p93 = por %p91, %p92
    %p94 = scmp.ne.s32.totalorder %s82, %s83
    %p95 = scmp.eq.s32.totalorder %s26, 2
    %p96 = por %p94, %p95
    %p98 = scmp.ne.s32.totalorder %s83, %s97
    %p99 = scmp.eq.s32.totalorder %s26, 0
    %p100 = por %p98, %p99
    %s102 = sadd.s32 %s101, 1
    %p105 = scmp.eq.s32.totalorder %s20, 2
    %p106 = scmp.ne.s32.totalorder %s101, %s103
    %p107 = scmp.eq.s32.totalorder %s20, 0
    %p108 = por %p106, %p107
    %p109 = scmp.ne.s32.totalorder %s101, %s103
    %p110 = scmp.eq.s32.totalorder %s25, 2
    %p111 = por %p109, %p110
    %p112 = scmp.ne.s32.totalorder %s103, %s104
    %p113 = scmp.eq.s32.totalorder %s25, 0
    %p114 = por %p112, %p113
    %p115 = scmp.ne.s32.totalorder %s103, %s104
    %p116 = scmp.eq.s32.totalorder %s26, 2
    %p117 = por %p115, %p116
    %p119 = scmp.ne.s32.totalorder %s104, %s118
    %p120 = scmp.eq.s32.totalorder %s26, 0
    %p121 = por %p119, %p120
    %s123 = sadd.s32 %s122, 1
    %p126 = scmp.eq.s32.totalorder %s20, 2
    %p127 = scmp.ne.s32.totalorder %s122, %s124
    %p128 = scmp.eq.s32.totalorder %s20, 0
    %p129 = por %p127, %p128
    %p130 = scmp.ne.s32.totalorder %s122, %s124
    %p131 = scmp.eq.s32.totalorder %s25, 2
    %p132 = por %p130, %p131
    %p133 = scmp.ne.s32.totalorder %s124, %s125
    %p134 = scmp.eq.s32.totalorder %s25, 0
    %p135 = por %p133, %p134
    %p136 = scmp.ne.s32.totalorder %s124, %s125
    %p137 = scmp.eq.s32.totalorder %s26, 2
    %p138 = por %p136, %p137
    %p140 = scmp.ne.s32.totalorder %s125, %s139
    %p141 = scmp.eq.s32.totalorder %s26, 0
    %p142 = por %p140, %p141
    %s144 = sadd.s32 %s143, 1
    %p147 = scmp.eq.s32.totalorder %s20, 2
    %p148 = scmp.ne.s32.totalorder %s143, %s145
    %p149 = scmp.eq.s32.totalorder %s20, 0
    %p150 = por %p148, %p149
    %p151 = scmp.ne.s32.totalorder %s143, %s145
    %p152 = scmp.eq.s32.totalorder %s25, 2
    %p153 = por %p151, %p152
    %p154 = scmp.ne.s32.totalorder %s145, %s146
    %p155 = scmp.eq.s32.totalorder %s25, 0
    %p156 = por %p154, %p155
    %p157 = scmp.ne.s32.totalorder %s145, %s146
    %p158 = scmp.eq.s32.totalorder %s26, 2
    %p159 = por %p157, %p158
    %p161 = scmp.ne.s32.totalorder %s146, %s160
    %p162 = scmp.eq.s32.totalorder %s26, 0
    %p163 = por %p161, %p162
    %s165 = sadd.s32 %s164, 1
    %p168 = scmp.eq.s32.totalorder %s20, 2
    %p169 = scmp.ne.s32.totalorder %s164, %s166
    %p170 = scmp.eq.s32.totalorder %s20, 0
    %p171 = por %p169, %p170
    %p172 = scmp.ne.s32.totalorder %s164, %s166
    %p173 = scmp.eq.s32.totalorder %s25, 2
    %p174 = por %p172, %p173
    %p175 = scmp.ne.s32.totalorder %s166, %s167
    %p176 = scmp.eq.s32.totalorder %s25, 0
    %p177 = por %p175, %p176
    %p178 = scmp.ne.s32.totalorder %s166, %s167
    %p179 = scmp.eq.s32.totalorder %s26, 2
    %p180 = por %p178, %p179
    %p182 = scmp.ne.s32.totalorder %s167, %s181
    %p183 = scmp.eq.s32.totalorder %s26, 0
    %p184 = por %p182, %p183
    %s186 = sadd.s32 %s185, 1
    %p189 = scmp.eq.s32.totalorder %s20, 2
    %p190 = scmp.ne.s32.totalorder %s185, %s187
    %p191 = scmp.eq.s32.totalorder %s20, 0
    %p192 = por %p190, %p191
    %p193 = scmp.ne.s32.totalorder %s185, %s187
    %p194 = scmp.eq.s32.totalorder %s25, 2
    %p195 = por %p193, %p194
    %p196 = scmp.ne.s32.totalorder %s187, %s188
    %p197 = scmp.eq.s32.totalorder %s25, 0
    %p198 = por %p196, %p197
    %p199 = scmp.ne.s32.totalorder %s187, %s188
    %p200 = scmp.eq.s32.totalorder %s26, 2
    %p201 = por %p199, %p200
    %p203 = scmp.ne.s32.totalorder %s188, %s202
    %p204 = scmp.eq.s32.totalorder %s26, 0
    %p205 = por %p203, %p204
    %s207 = sadd.s32 %s206, 1
    %p210 = scmp.eq.s32.totalorder %s20, 2
    %p211 = scmp.ne.s32.totalorder %s206, %s208
    %p212 = scmp.eq.s32.totalorder %s20, 0
    %p213 = por %p211, %p212
    %p214 = scmp.ne.s32.totalorder %s206, %s208
    %p215 = scmp.eq.s32.totalorder %s25, 2
    %p216 = por %p214, %p215
    %p217 = scmp.ne.s32.totalorder %s208, %s209
    %p218 = scmp.eq.s32.totalorder %s25, 0
    %p219 = por %p217, %p218
    %p220 = scmp.ne.s32.totalorder %s208, %s209
    %p221 = scmp.eq.s32.totalorder %s26, 2
    %p222 = por %p220, %p221
    %p224 = scmp.ne.s32.totalorder %s209, %s223
    %p225 = scmp.eq.s32.totalorder %s26, 0
    %p226 = por %p224, %p225
    %s228 = sadd.s32 %s227, 1
    %p231 = scmp.eq.s32.totalorder %s20, 2
    %p232 = scmp.ne.s32.totalorder %s227, %s229
    %p233 = scmp.eq.s32.totalorder %s20, 0
    %p234 = por %p232, %p233
    %p235 = scmp.ne.s32.totalorder %s227, %s229
    %p236 = scmp.eq.s32.totalorder %s25, 2
    %p237 = por %p235, %p236
    %p238 = scmp.ne.s32.totalorder %s229, %s230
    %p239 = scmp.eq.s32.totalorder %s25, 0
    %p240 = por %p238, %p239
    %p241 = scmp.ne.s32.totalorder %s229, %s230
    %p242 = scmp.eq.s32.totalorder %s26, 2
    %p243 = por %p241, %p242
    %p245 = scmp.ne.s32.totalorder %s230, %s244
    %p246 = scmp.eq.s32.totalorder %s26, 0
    %p247 = por %p245, %p246
    %s249 = sadd.s32 %s248, 1
    %p252 = scmp.eq.s32.totalorder %s20, 2
    %p253 = scmp.ne.s32.totalorder %s248, %s250
    %p254 = scmp.eq.s32.totalorder %s20, 0
    %p255 = por %p253, %p254
    %p256 = scmp.ne.s32.totalorder %s248, %s250
    %p257 = scmp.eq.s32.totalorder %s25, 2
    %p258 = por %p256, %p257
    %p259 = scmp.ne.s32.totalorder %s250, %s251
    %p260 = scmp.eq.s32.totalorder %s25, 0
    %p261 = por %p259, %p260
    %p262 = scmp.ne.s32.totalorder %s250, %s251
    %p263 = scmp.eq.s32.totalorder %s26, 2
    %p264 = por %p262, %p263
    %p266 = scmp.ne.s32.totalorder %s251, %s265
    %p267 = scmp.eq.s32.totalorder %s26, 0
    %p268 = por %p266, %p267
    %s270 = sadd.s32 %s269, 1
    %p273 = scmp.eq.s32.totalorder %s20, 2
    %p274 = scmp.ne.s32.totalorder %s269, %s271
    %p275 = scmp.eq.s32.totalorder %s20, 0
    %p276 = por %p274, %p275
    %p277 = scmp.ne.s32.totalorder %s269, %s271
    %p278 = scmp.eq.s32.totalorder %s25, 2
    %p279 = por %p277, %p278
    %p280 = scmp.ne.s32.totalorder %s271, %s272
    %p281 = scmp.eq.s32.totalorder %s25, 0
    %p282 = por %p280, %p281
    %p283 = scmp.ne.s32.totalorder %s271, %s272
    %p284 = scmp.eq.s32.totalorder %s26, 2
    %p285 = por %p283, %p284
    %p287 = scmp.ne.s32.totalorder %s272, %s286
    %p288 = scmp.eq.s32.totalorder %s26, 0
    %p289 = por %p287, %p288
    %s290 = ssub.s32 %s20, %s27
    %p291 = scmp.eq.s32.totalorder %s290, 0
    %s293 = sadd.s32 %s292, 1
    %s294 = scalar_select %p291, %s292, %s293
    %p297 = pneg %p291
    %p298 = scmp.eq.s32.totalorder %s20, 2
    %p299 = por %p297, %p298
    %p300 = scmp.ne.s32.totalorder %s292, %s295
    %p301 = scmp.eq.s32.totalorder %s20, 0
    %p302 = por %p300, %p301
    %p303 = scmp.ne.s32.totalorder %s292, %s295
    %p304 = scmp.eq.s32.totalorder %s25, 2
    %p305 = por %p303, %p304
    %p306 = scmp.ne.s32.totalorder %s295, %s296
    %p307 = scmp.eq.s32.totalorder %s25, 0
    %p308 = por %p306, %p307
    %p309 = scmp.ne.s32.totalorder %s295, %s296
    %p310 = scmp.eq.s32.totalorder %s26, 2
    %p311 = por %p309, %p310
    %p313 = scmp.ne.s32.totalorder %s296, %s312
    %p314 = scmp.eq.s32.totalorder %s26, 0
    %p315 = por %p313, %p314
    %s316 = ssub.s32 %s20, %s27
    %p317 = scmp.eq.s32.totalorder %s316, 0
    %s319 = sadd.s32 %s318, 1
    %s320 = scalar_select %p317, %s318, %s319
    %p323 = pneg %p317
    %p324 = scmp.eq.s32.totalorder %s20, 2
    %p325 = por %p323, %p324
    %p326 = scmp.ne.s32.totalorder %s318, %s321
    %p327 = scmp.eq.s32.totalorder %s20, 0
    %p328 = por %p326, %p327
    %p329 = scmp.ne.s32.totalorder %s318, %s321
    %p330 = scmp.eq.s32.totalorder %s25, 2
    %p331 = por %p329, %p330
    %p332 = scmp.ne.s32.totalorder %s321, %s322
    %p333 = scmp.eq.s32.totalorder %s25, 0
    %p334 = por %p332, %p333
    %p335 = scmp.ne.s32.totalorder %s321, %s322
    %p336 = scmp.eq.s32.totalorder %s26, 2
    %p337 = por %p335, %p336
    %p339 = scmp.ne.s32.totalorder %s322, %s338
    %p340 = scmp.eq.s32.totalorder %s26, 0
    %p341 = por %p339, %p340
    %p342 = scmp.le.s32.totalorder 1, %s20
    %p343 = scmp.lt.s32.totalorder %s20, 4
    %p344 = pnand %p342, %p343
    %p345 = pneg %p344
    // Predicated region
    $region9: #{deformation_forward.1} parent=5 // pred_check
      _
    $region10: #{deformation_forward.1} parent=5 // pred_check_branch
      %347 = sbr.rel (%p344) target = $region12
    $region11: #{deformation_forward.1} parent=5 // pred_region
      %s348 = ssub.s32 %s20, 1
      // Predicated region
      $region13: #{deformation_forward.1} parent=11 // pred_check
        %p349 = pneg %p93
      $region14: #{deformation_forward.1} parent=11 // pred_check_branch
        %351 = sbr.rel (%p349) target = $region16
      $region15: #{deformation_forward.1} parent=11 // pred_region
        _
      $region16: #{deformation_forward.1} parent=11 // pred_fallthru
        _
      // Predicated region
      $region17: #{deformation_forward.1} parent=11 // pred_check
        %p352 = pneg %p114
      $region18: #{deformation_forward.1} parent=11 // pred_check_branch
        %354 = sbr.rel (%p352) target = $region20
      $region19: #{deformation_forward.1} parent=11 // pred_region
        _
      $region20: #{deformation_forward.1} parent=11 // pred_fallthru
        _
      // Predicated region
      $region21: #{deformation_forward.1} parent=11 // pred_check
        %p355 = pneg %p135
      $region22: #{deformation_forward.1} parent=11 // pred_check_branch
        %357 = sbr.rel (%p355) target = $region24
      $region23: #{deformation_forward.1} parent=11 // pred_region
        _
      $region24: #{deformation_forward.1} parent=11 // pred_fallthru
        _
      // Predicated region
      $region25: #{deformation_forward.1} parent=11 // pred_check
        %p358 = pneg %p156
      $region26: #{deformation_forward.1} parent=11 // pred_check_branch
        %360 = sbr.rel (%p358) target = $region28
      $region27: #{deformation_forward.1} parent=11 // pred_region
        _
      $region28: #{deformation_forward.1} parent=11 // pred_fallthru
        _
      // Predicated region
      $region29: #{deformation_forward.1} parent=11 // pred_check
        %p361 = pneg %p177
      $region30: #{deformation_forward.1} parent=11 // pred_check_branch
        %363 = sbr.rel (%p361) target = $region32
      $region31: #{deformation_forward.1} parent=11 // pred_region
        _
      $region32: #{deformation_forward.1} parent=11 // pred_fallthru
        _
      // Predicated region
      $region33: #{deformation_forward.1} parent=11 // pred_check
        %p364 = pneg %p198
      $region34: #{deformation_forward.1} parent=11 // pred_check_branch
        %366 = sbr.rel (%p364) target = $region36
      $region35: #{deformation_forward.1} parent=11 // pred_region
        _
      $region36: #{deformation_forward.1} parent=11 // pred_fallthru
        _
      // Predicated region
      $region37: #{deformation_forward.1} parent=11 // pred_check
        %p367 = pneg %p219
      $region38: #{deformation_forward.1} parent=11 // pred_check_branch
        %369 = sbr.rel (%p367) target = $region40
      $region39: #{deformation_forward.1} parent=11 // pred_region
        _
      $region40: #{deformation_forward.1} parent=11 // pred_fallthru
        _
      // Predicated region
      $region41: #{deformation_forward.1} parent=11 // pred_check
        %p370 = pneg %p240
      $region42: #{deformation_forward.1} parent=11 // pred_check_branch
        %372 = sbr.rel (%p370) target = $region44
      $region43: #{deformation_forward.1} parent=11 // pred_region
        _
      $region44: #{deformation_forward.1} parent=11 // pred_fallthru
        _
      // Predicated region
      $region45: #{deformation_forward.1} parent=11 // pred_check
        %p373 = pneg %p261
      $region46: #{deformation_forward.1} parent=11 // pred_check_branch
        %375 = sbr.rel (%p373) target = $region48
      $region47: #{deformation_forward.1} parent=11 // pred_region
        _
      $region48: #{deformation_forward.1} parent=11 // pred_fallthru
        _
      // Predicated region
      $region49: #{deformation_forward.1} parent=11 // pred_check
        %p376 = pneg %p282
      $region50: #{deformation_forward.1} parent=11 // pred_check_branch
        %378 = sbr.rel (%p376) target = $region52
      $region51: #{deformation_forward.1} parent=11 // pred_region
        _
      $region52: #{deformation_forward.1} parent=11 // pred_fallthru
        _
    $region12: #{deformation_forward.1} parent=5 // pred_fallthru
      _
    %p379 = scmp.lt.s32.totalorder %s20, 3
    // Predicated region
    $region53: #{deformation_forward.1} parent=5 // pred_check
      %p380 = pneg %p379
    $region54: #{deformation_forward.1} parent=5 // pred_check_branch
      %382 = sbr.rel (%p380) target = $region56
    $region55: #{deformation_forward.1} parent=5 // pred_region
      // Predicated region
      $region57: #{deformation_forward.1} parent=55 // pred_check
        %p383 = pneg %p40
      $region58: #{deformation_forward.1} parent=55 // pred_check_branch
        %385 = sbr.rel (%p383) target = $region60
      $region59: #{deformation_forward.1} parent=55 // pred_region
        %s386 = smul.u32 32, %s20
        %p387 = scmp.lt.s32.totalorder %s386, 95
        %s388 = scalar_select %p387, %s386, 95
        %s389 = smul.addr %s388, 8
        %s390 = scalar_lea.vmem %s0, %s389
        %s391 = smul.u32 32, %s20
      $region60: #{deformation_forward.1} parent=55 // pred_fallthru
        _
      // Predicated region
      $region61: #{deformation_forward.1} parent=55 // pred_check
        %p392 = pneg %p66
      $region62: #{deformation_forward.1} parent=55 // pred_check_branch
        %394 = sbr.rel (%p392) target = $region64
      $region63: #{deformation_forward.1} parent=55 // pred_region
        %s395 = smul.u32 32, %s20
        %p396 = scmp.lt.s32.totalorder %s395, 95
        %s397 = scalar_select %p396, %s395, 95
        %s398 = smul.addr %s397, 8
        %s399 = scalar_lea.vmem %s1, %s398
        %s400 = smul.u32 32, %s20
      $region64: #{deformation_forward.1} parent=55 // pred_fallthru
        _
    $region56: #{deformation_forward.1} parent=5 // pred_fallthru
      _
    %p401 = scmp.le.s32.totalorder 1, %s20
    %p402 = scmp.lt.s32.totalorder %s20, 4
    %p403 = pnand %p401, %p402
    %p404 = pneg %p403
    // Predicated region
    $region65: #{deformation_forward.1} parent=5 // pred_check
      _
    $region66: #{deformation_forward.1} parent=5 // pred_check_branch
      %406 = sbr.rel (%p403) target = $region68
    $region67: #{deformation_forward.1} parent=5 // pred_region
      %s407 = ssub.s32 %s20, 1
      %s408 = smul.u32 32, %s25
      %p409 = scmp.lt.s32.totalorder %s408, 95
      %s410 = scalar_select %p409, %s408, 95
      %s411 = smul.addr %s410, 8
      %s412 = scalar_lea.vmem %s0, %s411
      %p413 = pneg %p46
      %p414 = pneg %p43
      %s415 = smul.u32 32, %s25
      %p416 = scmp.lt.s32.totalorder %s415, 95
      %s417 = scalar_select %p416, %s415, 95
      %s418 = smul.addr %s417, 8
      %s419 = scalar_lea.vmem %s1, %s418
      %p420 = pneg %p72
      %p421 = pneg %p69
      %p422 = pneg %p93
      %p423 = pneg %p90
      %p424 = pneg %p114
      %p425 = pneg %p111
      %p426 = pneg %p135
      %p427 = pneg %p132
      %p428 = pneg %p156
      %p429 = pneg %p153
      %p430 = pneg %p177
      %p431 = pneg %p174
      %p432 = pneg %p198
      %p433 = pneg %p195
      %p434 = pneg %p219
      %p435 = pneg %p216
      %p436 = pneg %p240
      %p437 = pneg %p237
      %p438 = pneg %p261
      %p439 = pneg %p258
      %p440 = pneg %p282
      %p441 = pneg %p279
      %p442 = pneg %p308
      %p443 = pneg %p305
      %s444 = smul.u32 32, %s25
      %p445 = scmp.lt.s32.totalorder %s444, 95
      %s446 = scalar_select %p445, %s444, 95
      %s447 = smul.addr %s446, 8
      %s448 = scalar_lea.vmem %s12, %s447
      %p449 = pneg %p334
      %p450 = pneg %p331
      %s451 = smul.u32 32, %s25
      %p452 = scmp.lt.s32.totalorder %s451, 95
      %s453 = scalar_select %p452, %s451, 95
      %s454 = smul.addr %s453, 8
      %s455 = scalar_lea.vmem %s13, %s454
      %s456 = smul.u32 32, %s25
      %p457 = scmp.lt.s32.totalorder %s456, 95
      %s458 = scalar_select %p457, %s456, 95
      %s459 = smul.addr %s458, 8
      %s460 = scalar_lea.vmem %s0, %s459
      %s461 = smul.u32 32, %s25
      %s462 = smul.u32 32, %s25
      %p463 = scmp.lt.s32.totalorder %s462, 95
      %s464 = scalar_select %p463, %s462, 95
      %s465 = smul.addr %s464, 8
      %s466 = scalar_lea.vmem %s1, %s465
      %s467 = smul.u32 32, %s25
      %s468 = smul.u32 32, %s25
      %p469 = scmp.lt.s32.totalorder %s468, 95
      %s470 = scalar_select %p469, %s468, 95
      %s471 = smul.addr %s470, 8
      %s472 = scalar_lea.vmem %s12, %s471
      %s473 = smul.u32 32, %s25
      %s474 = smul.u32 32, %s25
      %p475 = scmp.lt.s32.totalorder %s474, 95
      %s476 = scalar_select %p475, %s474, 95
      %s477 = smul.addr %s476, 8
      %s478 = scalar_lea.vmem %s13, %s477
      %s479 = smul.u32 32, %s25
      %v481 = vld [vmem:[%s460] sm:$0xff]
      %v482 = vld [vmem:[%s460 + $0x8] sm:$0xff]
      %v483 = vld [vmem:[%s460 + $0x10] sm:$0xff]
      %v484 = vld [vmem:[%s460 + $0x18] sm:$0xff]
      %v485 = vld [vmem:[%s460 + $0x20] sm:$0xff]
      %v486 = vld [vmem:[%s460 + $0x28] sm:$0xff]
      %v487 = vld [vmem:[%s460 + $0x30] sm:$0xff]
      %v488 = vld [vmem:[%s460 + $0x38] sm:$0xff]
      %v489 = vld [vmem:[%s460 + $0x40] sm:$0xff]
      %v490 = vld [vmem:[%s460 + $0x48] sm:$0xff]
      %v491 = vld [vmem:[%s460 + $0x50] sm:$0xff]
      %v492 = vld [vmem:[%s460 + $0x58] sm:$0xff]
      %v493 = vld [vmem:[%s460 + $0x60] sm:$0xff]
      %v494 = vld [vmem:[%s460 + $0x68] sm:$0xff]
      %v495 = vld [vmem:[%s460 + $0x70] sm:$0xff]
      %v496 = vld [vmem:[%s460 + $0x78] sm:$0xff]
      %v497 = vld [vmem:[%s460 + $0x80] sm:$0xff]
      %v498 = vld [vmem:[%s460 + $0x88] sm:$0xff]
      %v499 = vld [vmem:[%s460 + $0x90] sm:$0xff]
      %v500 = vld [vmem:[%s460 + $0x98] sm:$0xff]
      %v501 = vld [vmem:[%s460 + $0xa0] sm:$0xff]
      %v502 = vld [vmem:[%s460 + $0xa8] sm:$0xff]
      %v503 = vld [vmem:[%s460 + $0xb0] sm:$0xff]
      %v504 = vld [vmem:[%s460 + $0xb8] sm:$0xff]
      %v505 = vld [vmem:[%s460 + $0xc0] sm:$0xff]
      %v506 = vld [vmem:[%s460 + $0xc8] sm:$0xff]
      %v507 = vld [vmem:[%s460 + $0xd0] sm:$0xff]
      %v508 = vld [vmem:[%s460 + $0xd8] sm:$0xff]
      %v509 = vld [vmem:[%s460 + $0xe0] sm:$0xff]
      %v510 = vld [vmem:[%s460 + $0xe8] sm:$0xff]
      %v511 = vld [vmem:[%s460 + $0xf0] sm:$0xff]
      %v512 = vld [vmem:[%s460 + $0xf8] sm:$0xff]
      %v513 = vpack.c.bf16 %v482, %v481
      %v514 = vpack.c.bf16 %v484, %v483
      %v515 = vpack.c.bf16 %v486, %v485
      %v516 = vpack.c.bf16 %v488, %v487
      %v517 = vpack.c.bf16 %v490, %v489
      %v518 = vpack.c.bf16 %v492, %v491
      %v519 = vpack.c.bf16 %v494, %v493
      %v520 = vpack.c.bf16 %v496, %v495
      %v521 = vpack.c.bf16 %v498, %v497
      %v522 = vpack.c.bf16 %v500, %v499
      %v523 = vpack.c.bf16 %v502, %v501
      %v524 = vpack.c.bf16 %v504, %v503
      %v525 = vpack.c.bf16 %v506, %v505
      %v526 = vpack.c.bf16 %v508, %v507
      %v527 = vpack.c.bf16 %v510, %v509
      %v528 = vpack.c.bf16 %v512, %v511
      %v529 = vld [vmem:[%s2] sm:$0xff]
      %v530 = vld [vmem:[%s2 + $0x8] sm:$0xff]
      %v531 = vld [vmem:[%s2 + $0x10] sm:$0xff]
      %v532 = vld [vmem:[%s2 + $0x18] sm:$0xff]
      %v533 = vld [vmem:[%s2 + $0x20] sm:$0xff]
      %v534 = vld [vmem:[%s2 + $0x28] sm:$0xff]
      %v535 = vld [vmem:[%s2 + $0x30] sm:$0xff]
      %v536 = vld [vmem:[%s2 + $0x38] sm:$0xff]
      %v537 = vld [vmem:[%s2 + $0x40] sm:$0xff]
      %v538 = vld [vmem:[%s2 + $0x48] sm:$0xff]
      %v539 = vld [vmem:[%s2 + $0x50] sm:$0xff]
      %v540 = vld [vmem:[%s2 + $0x58] sm:$0xff]
      %v541 = vld [vmem:[%s2 + $0x60] sm:$0xff]
      %v542 = vld [vmem:[%s2 + $0x68] sm:$0xff]
      %v543 = vld [vmem:[%s2 + $0x70] sm:$0xff]
      %v544 = vld [vmem:[%s2 + $0x78] sm:$0xff]
      %v545 = vld [vmem:[%s3] sm:$0x3]
      %v547 = vlaneseq
      %v548 = vshrl.u32 %v547, 7
      %v549 = vsub.s32 0, %v548
      %v550 = vrot.slane %v545, %v549
      %v551 = vlaneseq
      %v552 = vshrl.u32 %v551, 7
      %v553 = vsub.s32 1, %v552
      %v554 = vrot.slane %v545, %v553
      %v573 = vunpack.c.l.b16 %v529
      %v574 = vunpack.c.h.b16 %v529
      %v575 = vunpack.c.l.b16 %v530
      %v576 = vunpack.c.h.b16 %v530
      %v577 = vunpack.c.l.b16 %v531
      %v578 = vunpack.c.h.b16 %v531
      %v579 = vunpack.c.l.b16 %v532
      %v580 = vunpack.c.h.b16 %v532
      %v581 = vunpack.c.l.b16 %v533
      %v582 = vunpack.c.h.b16 %v533
      %v583 = vunpack.c.l.b16 %v534
      %v584 = vunpack.c.h.b16 %v534
      %v585 = vunpack.c.l.b16 %v535
      %v586 = vunpack.c.h.b16 %v535
      %v587 = vunpack.c.l.b16 %v536
      %v588 = vunpack.c.h.b16 %v536
      %v589 = vunpack.c.l.b16 %v537
      %v590 = vunpack.c.h.b16 %v537
      %v591 = vunpack.c.l.b16 %v538
      %v592 = vunpack.c.h.b16 %v538
      %v593 = vunpack.c.l.b16 %v539
      %v594 = vunpack.c.h.b16 %v539
      %v595 = vunpack.c.l.b16 %v540
      %v596 = vunpack.c.h.b16 %v540
      %v597 = vunpack.c.l.b16 %v541
      %v598 = vunpack.c.h.b16 %v541
      %v599 = vunpack.c.l.b16 %v542
      %v600 = vunpack.c.h.b16 %v542
      %v601 = vunpack.c.l.b16 %v543
      %v602 = vunpack.c.h.b16 %v543
      %v603 = vunpack.c.l.b16 %v544
      %v604 = vunpack.c.h.b16 %v544
      %v605 = vpack.c.b16 %v575, %v573
      %v606 = vpack.c.b16 %v576, %v574
      %v607 = vpack.c.b16 %v579, %v577
      %v608 = vpack.c.b16 %v580, %v578
      %v609 = vpack.c.b16 %v583, %v581
      %v610 = vpack.c.b16 %v584, %v582
      %v611 = vpack.c.b16 %v587, %v585
      %v612 = vpack.c.b16 %v588, %v586
      %v613 = vpack.c.b16 %v591, %v589
      %v614 = vpack.c.b16 %v592, %v590
      %v615 = vpack.c.b16 %v595, %v593
      %v616 = vpack.c.b16 %v596, %v594
      %v617 = vpack.c.b16 %v599, %v597
      %v618 = vpack.c.b16 %v600, %v598
      %v619 = vpack.c.b16 %v603, %v601
      %v620 = vpack.c.b16 %v604, %v602
      %637 = vmatprep.subr.bf16.mxu0 %v606
      %638 = vmatpush1.bf16.msra.mxu0 %v605
      %639 = vmatprep.subr.bf16.mxu0 %v608
      %640 = vmatpush1.bf16.msra.mxu0 %v607
      %641 = vmatprep.subr.bf16.mxu0 %v610
      %642 = vmatpush1.bf16.msra.mxu0 %v609
      %643 = vmatprep.subr.bf16.mxu0 %v612
      %644 = vmatpush1.bf16.msra.mxu0 %v611
      %645 = vmatprep.subr.bf16.mxu0 %v614
      %646 = vmatpush1.bf16.msra.mxu0 %v613
      %647 = vmatprep.subr.bf16.mxu0 %v616
      %648 = vmatpush1.bf16.msra.mxu0 %v615
      %649 = vmatprep.subr.bf16.mxu0 %v618
      %650 = vmatpush1.bf16.msra.mxu0 %v617
      %651 = vmatprep.subr.bf16.mxu0 %v620
      %652 = vmatpush1.bf16.msra.mxu0 %v619
      %653 = vmatprep.subr.bf16.mxu0 0
      %654 = vmatpush1.bf16.msra.mxu0 0
      %655 = vmatprep.subr.bf16.mxu0 0
      %656 = vmatpush1.bf16.msra.mxu0 0
      %657 = vmatprep.subr.bf16.mxu0 0
      %658 = vmatpush1.bf16.msra.mxu0 0
      %659 = vmatprep.subr.bf16.mxu0 0
      %660 = vmatpush1.bf16.msra.mxu0 0
      %661 = vmatprep.subr.bf16.mxu0 0
      %662 = vmatpush1.bf16.msra.mxu0 0
      %663 = vmatprep.subr.bf16.mxu0 0
      %664 = vmatpush1.bf16.msra.mxu0 0
      %665 = vmatprep.subr.bf16.mxu0 0
      %666 = vmatpush1.bf16.msra.mxu0 0
      %667 = vmatprep.subr.bf16.mxu0 0
      %668 = vmatpush1.bf16.msra.mxu0 0
      %669 = vmatprep.mubr.bf16.mxu0 0
      %670 = vmatmul.mubr.bf16.gmra.mrb[0].mxu0 %v513
      %v671 = vpop.f32.mrb[0].mxu0
      %v672 = vadd.f32 %v550, %v671
      %v673 = vpop.f32.mrb[0].mxu0
      %v674 = vadd.f32 %v554, %v673
      %v675 = vpop.f32.mrb[0].mxu0
      %v676 = vadd.f32 %v550, %v675
      %v677 = vpop.f32.mrb[0].mxu0
      %v678 = vadd.f32 %v554, %v677
      %679 = vmatprep.mubr.bf16.mxu0 0
      %680 = vmatmul.mubr.bf16.gmra.mrb[0].mxu0 %v514
      %v681 = vpop.f32.mrb[0].mxu0
      %v682 = vadd.f32 %v550, %v681
      %v683 = vpop.f32.mrb[0].mxu0
      %v684 = vadd.f32 %v554, %v683
      %v685 = vpop.f32.mrb[0].mxu0
      %v686 = vadd.f32 %v550, %v685
      %v687 = vpop.f32.mrb[0].mxu0
      %v688 = vadd.f32 %v554, %v687
      %689 = vmatprep.mubr.bf16.mxu0 0
      %690 = vmatmul.mubr.bf16.gmra.mrb[0].mxu0 %v515
      %v691 = vpop.f32.mrb[0].mxu0
      %v692 = vadd.f32 %v550, %v691
      %v693 = vpop.f32.mrb[0].mxu0
      %v694 = vadd.f32 %v554, %v693
      %v695 = vpop.f32.mrb[0].mxu0
      %v696 = vadd.f32 %v550, %v695
      %v697 = vpop.f32.mrb[0].mxu0
      %v698 = vadd.f32 %v554, %v697
      %699 = vmatprep.mubr.bf16.mxu0 0
      %700 = vmatmul.mubr.bf16.gmra.mrb[0].mxu0 %v516
      %v701 = vpop.f32.mrb[0].mxu0
      %v702 = vadd.f32 %v550, %v701
      %v703 = vpop.f32.mrb[0].mxu0
      %v704 = vadd.f32 %v554, %v703
      %v705 = vpop.f32.mrb[0].mxu0
      %v706 = vadd.f32 %v550, %v705
      %v707 = vpop.f32.mrb[0].mxu0
      %v708 = vadd.f32 %v554, %v707
      %709 = vmatprep.mubr.bf16.mxu0 0
      %710 = vmatmul.mubr.bf16.gmra.mrb[0].mxu0 %v517
      %v711 = vpop.f32.mrb[0].mxu0
      %v712 = vadd.f32 %v550, %v711
      %v713 = vpop.f32.mrb[0].mxu0
      %v714 = vadd.f32 %v554, %v713
      %v715 = vpop.f32.mrb[0].mxu0
      %v716 = vadd.f32 %v550, %v715
      %v717 = vpop.f32.mrb[0].mxu0
      %v718 = vadd.f32 %v554, %v717
      %719 = vmatprep.mubr.bf16.mxu0 0
      %720 = vmatmul.mubr.bf16.gmra.mrb[0].mxu0 %v518
      %v721 = vpop.f32.mrb[0].mxu0
      %v722 = vadd.f32 %v550, %v721
      %v723 = vpop.f32.mrb[0].mxu0
      %v724 = vadd.f32 %v554, %v723
      %v725 = vpop.f32.mrb[0].mxu0
      %v726 = vadd.f32 %v550, %v725
      %v727 = vpop.f32.mrb[0].mxu0
      %v728 = vadd.f32 %v554, %v727
      %729 = vmatprep.mubr.bf16.mxu0 0
      %730 = vmatmul.mubr.bf16.gmra.mrb[0].mxu0 %v519
      %v731 = vpop.f32.mrb[0].mxu0
      %v732 = vadd.f32 %v550, %v731
      %v733 = vpop.f32.mrb[0].mxu0
      %v734 = vadd.f32 %v554, %v733
      %v735 = vpop.f32.mrb[0].mxu0
      %v736 = vadd.f32 %v550, %v735
      %v737 = vpop.f32.mrb[0].mxu0
      %v738 = vadd.f32 %v554, %v737
      %739 = vmatprep.mubr.bf16.mxu0 0
      %740 = vmatmul.mubr.bf16.gmra.mrb[0].mxu0 %v520
      %v741 = vpop.f32.mrb[0].mxu0
      %v742 = vadd.f32 %v550, %v741
      %v743 = vpop.f32.mrb[0].mxu0
      %v744 = vadd.f32 %v554, %v743
      %v745 = vpop.f32.mrb[0].mxu0
      %v746 = vadd.f32 %v550, %v745
      %v747 = vpop.f32.mrb[0].mxu0
      %v748 = vadd.f32 %v554, %v747
      %749 = vmatprep.mubr.bf16.mxu0 0
      %750 = vmatmul.mubr.bf16.gmra.mrb[0].mxu0 %v521
      %v751 = vpop.f32.mrb[0].mxu0
      %v752 = vadd.f32 %v550, %v751
      %v753 = vpop.f32.mrb[0].mxu0
      %v754 = vadd.f32 %v554, %v753
      %v755 = vpop.f32.mrb[0].mxu0
      %v756 = vadd.f32 %v550, %v755
      %v757 = vpop.f32.mrb[0].mxu0
      %v758 = vadd.f32 %v554, %v757
      %759 = vmatprep.mubr.bf16.mxu0 0
      %760 = vmatmul.mubr.bf16.gmra.mrb[0].mxu0 %v522
      %v761 = vpop.f32.mrb[0].mxu0
      %v762 = vadd.f32 %v550, %v761
      %v763 = vpop.f32.mrb[0].mxu0
      %v764 = vadd.f32 %v554, %v763
      %v765 = vpop.f32.mrb[0].mxu0
      %v766 = vadd.f32 %v550, %v765
      %v767 = vpop.f32.mrb[0].mxu0
      %v768 = vadd.f32 %v554, %v767
      %769 = vmatprep.mubr.bf16.mxu0 0
      %770 = vmatmul.mubr.bf16.gmra.mrb[0].mxu0 %v523
      %v771 = vpop.f32.mrb[0].mxu0
      %v772 = vadd.f32 %v550, %v771
      %v773 = vpop.f32.mrb[0].mxu0
      %v774 = vadd.f32 %v554, %v773
      %v775 = vpop.f32.mrb[0].mxu0
      %v776 = vadd.f32 %v550, %v775
      %v777 = vpop.f32.mrb[0].mxu0
      %v778 = vadd.f32 %v554, %v777
      %779 = vmatprep.mubr.bf16.mxu0 0
      %780 = vmatmul.mubr.bf16.gmra.mrb[0].mxu0 %v524
      %v781 = vpop.f32.mrb[0].mxu0
      %v782 = vadd.f32 %v550, %v781
      %v783 = vpop.f32.mrb[0].mxu0
      %v784 = vadd.f32 %v554, %v783
      %v785 = vpop.f32.mrb[0].mxu0
      %v786 = vadd.f32 %v550, %v785
      %v787 = vpop.f32.mrb[0].mxu0
      %v788 = vadd.f32 %v554, %v787
      %789 = vmatprep.mubr.bf16.mxu0 0
      %790 = vmatmul.mubr.bf16.gmra.mrb[0].mxu0 %v525
      %v791 = vpop.f32.mrb[0].mxu0
      %v792 = vadd.f32 %v550, %v791
      %v793 = vpop.f32.mrb[0].mxu0
      %v794 = vadd.f32 %v554, %v793
      %v795 = vpop.f32.mrb[0].mxu0
      %v796 = vadd.f32 %v550, %v795
      %v797 = vpop.f32.mrb[0].mxu0
      %v798 = vadd.f32 %v554, %v797
      %799 = vmatprep.mubr.bf16.mxu0 0
      %800 = vmatmul.mubr.bf16.gmra.mrb[0].mxu0 %v526
      %v801 = vpop.f32.mrb[0].mxu0
      %v802 = vadd.f32 %v550, %v801
      %v803 = vpop.f32.mrb[0].mxu0
      %v804 = vadd.f32 %v554, %v803
      %v805 = vpop.f32.mrb[0].mxu0
      %v806 = vadd.f32 %v550, %v805
      %v807 = vpop.f32.mrb[0].mxu0
      %v808 = vadd.f32 %v554, %v807
      %809 = vmatprep.mubr.bf16.mxu0 0
      %810 = vmatmul.mubr.bf16.gmra.mrb[0].mxu0 %v527
      %v811 = vpop.f32.mrb[0].mxu0
      %v812 = vadd.f32 %v550, %v811
      %v813 = vpop.f32.mrb[0].mxu0
      %v814 = vadd.f32 %v554, %v813
      %v815 = vpop.f32.mrb[0].mxu0
      %v816 = vadd.f32 %v550, %v815
      %v817 = vpop.f32.mrb[0].mxu0
      %v818 = vadd.f32 %v554, %v817
      %819 = vmatprep.mubr.bf16.mxu0 0
      %820 = vmatmul.mubr.bf16.gmra.mrb[0].mxu0 %v528
      %v821 = vpop.f32.mrb[0].mxu0
      %v822 = vadd.f32 %v550, %v821
      %v823 = vpop.f32.mrb[0].mxu0
      %v824 = vadd.f32 %v554, %v823
      %v825 = vpop.f32.mrb[0].mxu0
      %v826 = vadd.f32 %v550, %v825
      %v827 = vpop.f32.mrb[0].mxu0
      %v828 = vadd.f32 %v554, %v827
      %829 = vdwg.mxu0
      %v830 = vmax.f32 %v672, 0.0
      %v831 = vmax.f32 %v674, 0.0
      %v832 = vmax.f32 %v676, 0.0
      %v833 = vmax.f32 %v678, 0.0
      %v834 = vmax.f32 %v682, 0.0
      %v835 = vmax.f32 %v684, 0.0
      %v836 = vmax.f32 %v686, 0.0
      %v837 = vmax.f32 %v688, 0.0
      %v838 = vmax.f32 %v692, 0.0
      %v839 = vmax.f32 %v694, 0.0
      %v840 = vmax.f32 %v696, 0.0
      %v841 = vmax.f32 %v698, 0.0
      %v842 = vmax.f32 %v702, 0.0
      %v843 = vmax.f32 %v704, 0.0
      %v844 = vmax.f32 %v706, 0.0
      %v845 = vmax.f32 %v708, 0.0
      %v846 = vmax.f32 %v712, 0.0
      %v847 = vmax.f32 %v714, 0.0
      %v848 = vmax.f32 %v716, 0.0
      %v849 = vmax.f32 %v718, 0.0
      %v850 = vmax.f32 %v722, 0.0
      %v851 = vmax.f32 %v724, 0.0
      %v852 = vmax.f32 %v726, 0.0
      %v853 = vmax.f32 %v728, 0.0
      %v854 = vmax.f32 %v732, 0.0
      %v855 = vmax.f32 %v734, 0.0
      %v856 = vmax.f32 %v736, 0.0
      %v857 = vmax.f32 %v738, 0.0
      %v858 = vmax.f32 %v742, 0.0
      %v859 = vmax.f32 %v744, 0.0
      %v860 = vmax.f32 %v746, 0.0
      %v861 = vmax.f32 %v748, 0.0
      %v862 = vmax.f32 %v752, 0.0
      %v863 = vmax.f32 %v754, 0.0
      %v864 = vmax.f32 %v756, 0.0
      %v865 = vmax.f32 %v758, 0.0
      %v866 = vmax.f32 %v762, 0.0
      %v867 = vmax.f32 %v764, 0.0
      %v868 = vmax.f32 %v766, 0.0
      %v869 = vmax.f32 %v768, 0.0
      %v870 = vmax.f32 %v772, 0.0
      %v871 = vmax.f32 %v774, 0.0
      %v872 = vmax.f32 %v776, 0.0
      %v873 = vmax.f32 %v778, 0.0
      %v874 = vmax.f32 %v782, 0.0
      %v875 = vmax.f32 %v784, 0.0
      %v876 = vmax.f32 %v786, 0.0
      %v877 = vmax.f32 %v788, 0.0
      %v878 = vmax.f32 %v792, 0.0
      %v879 = vmax.f32 %v794, 0.0
      %v880 = vmax.f32 %v796, 0.0
      %v881 = vmax.f32 %v798, 0.0
      %v882 = vmax.f32 %v802, 0.0
      %v883 = vmax.f32 %v804, 0.0
      %v884 = vmax.f32 %v806, 0.0
      %v885 = vmax.f32 %v808, 0.0
      %v886 = vmax.f32 %v812, 0.0
      %v887 = vmax.f32 %v814, 0.0
      %v888 = vmax.f32 %v816, 0.0
      %v889 = vmax.f32 %v818, 0.0
      %v890 = vmax.f32 %v822, 0.0
      %v891 = vmax.f32 %v824, 0.0
      %v892 = vmax.f32 %v826, 0.0
      %v893 = vmax.f32 %v828, 0.0
      %v894 = vpack.c.bf16 %v832, %v830
      %v895 = vpack.c.bf16 %v833, %v831
      %v896 = vpack.c.bf16 %v836, %v834
      %v897 = vpack.c.bf16 %v837, %v835
      %v898 = vpack.c.bf16 %v840, %v838
      %v899 = vpack.c.bf16 %v841, %v839
      %v900 = vpack.c.bf16 %v844, %v842
      %v901 = vpack.c.bf16 %v845, %v843
      %v902 = vpack.c.bf16 %v848, %v846
      %v903 = vpack.c.bf16 %v849, %v847
      %v904 = vpack.c.bf16 %v852, %v850
      %v905 = vpack.c.bf16 %v853, %v851
      %v906 = vpack.c.bf16 %v856, %v854
      %v907 = vpack.c.bf16 %v857, %v855
      %v908 = vpack.c.bf16 %v860, %v858
      %v909 = vpack.c.bf16 %v861, %v859
      %v910 = vpack.c.bf16 %v864, %v862
      %v911 = vpack.c.bf16 %v865, %v863
      %v912 = vpack.c.bf16 %v868, %v866
      %v913 = vpack.c.bf16 %v869, %v867
      %v914 = vpack.c.bf16 %v872, %v870
      %v915 = vpack.c.bf16 %v873, %v871
      %v916 = vpack.c.bf16 %v876, %v874
      %v917 = vpack.c.bf16 %v877, %v875
      %v918 = vpack.c.bf16 %v880, %v878
      %v919 = vpack.c.bf16 %v881, %v879
      %v920 = vpack.c.bf16 %v884, %v882
      %v921 = vpack.c.bf16 %v885, %v883
      %v922 = vpack.c.bf16 %v888, %v886
      %v923 = vpack.c.bf16 %v889, %v887
      %v924 = vpack.c.bf16 %v892, %v890
      %v925 = vpack.c.bf16 %v893, %v891
      %v926 = vld [vmem:[%s4] sm:$0xff]
      %v927 = vld [vmem:[%s4 + $0x8] sm:$0xff]
      %v928 = vld [vmem:[%s4 + $0x10] sm:$0xff]
      %v929 = vld [vmem:[%s4 + $0x18] sm:$0xff]
      %v930 = vld [vmem:[%s4 + $0x20] sm:$0xff]
      %v931 = vld [vmem:[%s4 + $0x28] sm:$0xff]
      %v932 = vld [vmem:[%s4 + $0x30] sm:$0xff]
      %v933 = vld [vmem:[%s4 + $0x38] sm:$0xff]
      %v934 = vld [vmem:[%s4 + $0x40] sm:$0xff]
      %v935 = vld [vmem:[%s4 + $0x48] sm:$0xff]
      %v936 = vld [vmem:[%s4 + $0x50] sm:$0xff]
      %v937 = vld [vmem:[%s4 + $0x58] sm:$0xff]
      %v938 = vld [vmem:[%s4 + $0x60] sm:$0xff]
      %v939 = vld [vmem:[%s4 + $0x68] sm:$0xff]
      %v940 = vld [vmem:[%s4 + $0x70] sm:$0xff]
      %v941 = vld [vmem:[%s4 + $0x78] sm:$0xff]
      %v942 = vld [vmem:[%s4 + $0x80] sm:$0xff]
      %v943 = vld [vmem:[%s4 + $0x88] sm:$0xff]
      %v944 = vld [vmem:[%s4 + $0x90] sm:$0xff]
      %v945 = vld [vmem:[%s4 + $0x98] sm:$0xff]
      %v946 = vld [vmem:[%s4 + $0xa0] sm:$0xff]
      %v947 = vld [vmem:[%s4 + $0xa8] sm:$0xff]
      %v948 = vld [vmem:[%s4 + $0xb0] sm:$0xff]
      %v949 = vld [vmem:[%s4 + $0xb8] sm:$0xff]
      %v950 = vld [vmem:[%s4 + $0xc0] sm:$0xff]
      %v951 = vld [vmem:[%s4 + $0xc8] sm:$0xff]
      %v952 = vld [vmem:[%s4 + $0xd0] sm:$0xff]
      %v953 = vld [vmem:[%s4 + $0xd8] sm:$0xff]
      %v954 = vld [vmem:[%s4 + $0xe0] sm:$0xff]
      %v955 = vld [vmem:[%s4 + $0xe8] sm:$0xff]
      %v956 = vld [vmem:[%s4 + $0xf0] sm:$0xff]
      %v957 = vld [vmem:[%s4 + $0xf8] sm:$0xff]
      %v958 = vld [vmem:[%s5] sm:$0x3]
      %v960 = vlaneseq
      %v961 = vshrl.u32 %v960, 7
      %v962 = vsub.s32 0, %v961
      %v963 = vrot.slane %v958, %v962
      %v964 = vlaneseq
      %v965 = vshrl.u32 %v964, 7
      %v966 = vsub.s32 1, %v965
      %v967 = vrot.slane %v958, %v966
      %v1002 = vunpack.c.l.b16 %v926
      %v1003 = vunpack.c.h.b16 %v926
      %v1004 = vunpack.c.l.b16 %v927
      %v1005 = vunpack.c.h.b16 %v927
      %v1006 = vunpack.c.l.b16 %v928
      %v1007 = vunpack.c.h.b16 %v928
      %v1008 = vunpack.c.l.b16 %v929
      %v1009 = vunpack.c.h.b16 %v929
      %v1010 = vunpack.c.l.b16 %v930
      %v1011 = vunpack.c.h.b16 %v930
      %v1012 = vunpack.c.l.b16 %v931
      %v1013 = vunpack.c.h.b16 %v931
      %v1014 = vunpack.c.l.b16 %v932
      %v1015 = vunpack.c.h.b16 %v932
      %v1016 = vunpack.c.l.b16 %v933
      %v1017 = vunpack.c.h.b16 %v933
      %v1018 = vunpack.c.l.b16 %v934
      %v1019 = vunpack.c.h.b16 %v934
      %v1020 = vunpack.c.l.b16 %v935
      %v1021 = vunpack.c.h.b16 %v935
      %v1022 = vunpack.c.l.b16 %v936
      %v1023 = vunpack.c.h.b16 %v936
      %v1024 = vunpack.c.l.b16 %v937
      %v1025 = vunpack.c.h.b16 %v937
      %v1026 = vunpack.c.l.b16 %v938
      %v1027 = vunpack.c.h.b16 %v938
      %v1028 = vunpack.c.l.b16 %v939
      %v1029 = vunpack.c.h.b16 %v939
      %v1030 = vunpack.c.l.b16 %v940
      %v1031 = vunpack.c.h.b16 %v940
      %v1032 = vunpack.c.l.b16 %v941
      %v1033 = vunpack.c.h.b16 %v941
      %v1034 = vunpack.c.l.b16 %v942
      %v1035 = vunpack.c.h.b16 %v942
      %v1036 = vunpack.c.l.b16 %v943
      %v1037 = vunpack.c.h.b16 %v943
      %v1038 = vunpack.c.l.b16 %v944
      %v1039 = vunpack.c.h.b16 %v944
      %v1040 = vunpack.c.l.b16 %v945
      %v1041 = vunpack.c.h.b16 %v945
      %v1042 = vunpack.c.l.b16 %v946
      %v1043 = vunpack.c.h.b16 %v946
      %v1044 = vunpack.c.l.b16 %v947
      %v1045 = vunpack.c.h.b16 %v947
      %v1046 = vunpack.c.l.b16 %v948
      %v1047 = vunpack.c.h.b16 %v948
      %v1048 = vunpack.c.l.b16 %v949
      %v1049 = vunpack.c.h.b16 %v949
      %v1050 = vunpack.c.l.b16 %v950
      %v1051 = vunpack.c.h.b16 %v950
      %v1052 = vunpack.c.l.b16 %v951
      %v1053 = vunpack.c.h.b16 %v951
      %v1054 = vunpack.c.l.b16 %v952
      %v1055 = vunpack.c.h.b16 %v952
      %v1056 = vunpack.c.l.b16 %v953
      %v1057 = vunpack.c.h.b16 %v953
      %v1058 = vunpack.c.l.b16 %v954
      %v1059 = vunpack.c.h.b16 %v954
      %v1060 = vunpack.c.l.b16 %v955
      %v1061 = vunpack.c.h.b16 %v955
      %v1062 = vunpack.c.l.b16 %v956
      %v1063 = vunpack.c.h.b16 %v956
      %v1064 = vunpack.c.l.b16 %v957
      %v1065 = vunpack.c.h.b16 %v957
      %v1066 = vpack.c.b16 %v1004, %v1002
      %v1067 = vpack.c.b16 %v1005, %v1003
      %v1068 = vpack.c.b16 %v1008, %v1006
      %v1069 = vpack.c.b16 %v1009, %v1007
      %v1070 = vpack.c.b16 %v1012, %v1010
      %v1071 = vpack.c.b16 %v1013, %v1011
      %v1072 = vpack.c.b16 %v1016, %v1014
      %v1073 = vpack.c.b16 %v1017, %v1015
      %v1074 = vpack.c.b16 %v1020, %v1018
      %v1075 = vpack.c.b16 %v1021, %v1019
      %v1076 = vpack.c.b16 %v1024, %v1022
      %v1077 = vpack.c.b16 %v1025, %v1023
      %v1078 = vpack.c.b16 %v1028, %v1026
      %v1079 = vpack.c.b16 %v1029, %v1027
      %v1080 = vpack.c.b16 %v1032, %v1030
      %v1081 = vpack.c.b16 %v1033, %v1031
      %v1082 = vpack.c.b16 %v1036, %v1034
      %v1083 = vpack.c.b16 %v1037, %v1035
      %v1084 = vpack.c.b16 %v1040, %v1038
      %v1085 = vpack.c.b16 %v1041, %v1039
      %v1086 = vpack.c.b16 %v1044, %v1042
      %v1087 = vpack.c.b16 %v1045, %v1043
      %v1088 = vpack.c.b16 %v1048, %v1046
      %v1089 = vpack.c.b16 %v1049, %v1047
      %v1090 = vpack.c.b16 %v1052, %v1050
      %v1091 = vpack.c.b16 %v1053, %v1051
      %v1092 = vpack.c.b16 %v1056, %v1054
      %v1093 = vpack.c.b16 %v1057, %v1055
      %v1094 = vpack.c.b16 %v1060, %v1058
      %v1095 = vpack.c.b16 %v1061, %v1059
      %v1096 = vpack.c.b16 %v1064, %v1062
      %v1097 = vpack.c.b16 %v1065, %v1063
      %1130 = vmatprep.subr.bf16.mxu0 %v1067
      %1131 = vmatpush1.bf16.msra.mxu0 %v1066
      %1132 = vmatprep.subr.bf16.mxu0 %v1069
      %1133 = vmatpush1.bf16.msra.mxu0 %v1068
      %1134 = vmatprep.subr.bf16.mxu0 %v1071
      %1135 = vmatpush1.bf16.msra.mxu0 %v1070
      %1136 = vmatprep.subr.bf16.mxu0 %v1073
      %1137 = vmatpush1.bf16.msra.mxu0 %v1072
      %1138 = vmatprep.subr.bf16.mxu0 %v1075
      %1139 = vmatpush1.bf16.msra.mxu0 %v1074
      %1140 = vmatprep.subr.bf16.mxu0 %v1077
      %1141 = vmatpush1.bf16.msra.mxu0 %v1076
      %1142 = vmatprep.subr.bf16.mxu0 %v1079
      %1143 = vmatpush1.bf16.msra.mxu0 %v1078
      %1144 = vmatprep.subr.bf16.mxu0 %v1081
      %1145 = vmatpush1.bf16.msra.mxu0 %v1080
      %1146 = vmatprep.subr.bf16.mxu0 %v1083
      %1147 = vmatpush1.bf16.msra.mxu0 %v1082
      %1148 = vmatprep.subr.bf16.mxu0 %v1085
      %1149 = vmatpush1.bf16.msra.mxu0 %v1084
      %1150 = vmatprep.subr.bf16.mxu0 %v1087
      %1151 = vmatpush1.bf16.msra.mxu0 %v1086
      %1152 = vmatprep.subr.bf16.mxu0 %v1089
      %1153 = vmatpush1.bf16.msra.mxu0 %v1088
      %1154 = vmatprep.subr.bf16.mxu0 %v1091
      %1155 = vmatpush1.bf16.msra.mxu0 %v1090
      %1156 = vmatprep.subr.bf16.mxu0 %v1093
      %1157 = vmatpush1.bf16.msra.mxu0 %v1092
      %1158 = vmatprep.subr.bf16.mxu0 %v1095
      %1159 = vmatpush1.bf16.msra.mxu0 %v1094
      %1160 = vmatprep.subr.bf16.mxu0 %v1097
      %1161 = vmatpush1.bf16.msra.mxu0 %v1096
      %1162 = vmatprep.mubr.bf16.mxu0 %v895
      %1163 = vmatmul.mubr.bf16.gmra.mrb[0].mxu0 %v894
      %v1164 = vpop.f32.mrb[0].mxu0
      %v1165 = vadd.f32 %v963, %v1164
      %v1166 = vpop.f32.mrb[0].mxu0
      %v1167 = vadd.f32 %v967, %v1166
      %v1168 = vpop.f32.mrb[0].mxu0
      %v1169 = vadd.f32 %v963, %v1168
      %v1170 = vpop.f32.mrb[0].mxu0
      %v1171 = vadd.f32 %v967, %v1170
      %1172 = vmatprep.mubr.bf16.mxu0 %v897
      %1173 = vmatmul.mubr.bf16.gmra.mrb[0].mxu0 %v896
      %v1174 = vpop.f32.mrb[0].mxu0
      %v1175 = vadd.f32 %v963, %v1174
      %v1176 = vpop.f32.mrb[0].mxu0
      %v1177 = vadd.f32 %v967, %v1176
      %v1178 = vpop.f32.mrb[0].mxu0
      %v1179 = vadd.f32 %v963, %v1178
      %v1180 = vpop.f32.mrb[0].mxu0
      %v1181 = vadd.f32 %v967, %v1180
      %1182 = vmatprep.mubr.bf16.mxu0 %v899
      %1183 = vmatmul.mubr.bf16.gmra.mrb[0].mxu0 %v898
      %v1184 = vpop.f32.mrb[0].mxu0
      %v1185 = vadd.f32 %v963, %v1184
      %v1186 = vpop.f32.mrb[0].mxu0
      %v1187 = vadd.f32 %v967, %v1186
      %v1188 = vpop.f32.mrb[0].mxu0
      %v1189 = vadd.f32 %v963, %v1188
      %v1190 = vpop.f32.mrb[0].mxu0
      %v1191 = vadd.f32 %v967, %v1190
      %1192 = vmatprep.mubr.bf16.mxu0 %v901
      %1193 = vmatmul.mubr.bf16.gmra.mrb[0].mxu0 %v900
      %v1194 = vpop.f32.mrb[0].mxu0
      %v1195 = vadd.f32 %v963, %v1194
      %v1196 = vpop.f32.mrb[0].mxu0
      %v1197 = vadd.f32 %v967, %v1196
      %v1198 = vpop.f32.mrb[0].mxu0
      %v1199 = vadd.f32 %v963, %v1198
      %v1200 = vpop.f32.mrb[0].mxu0
      %v1201 = vadd.f32 %v967, %v1200
      %1202 = vmatprep.mubr.bf16.mxu0 %v903
      %1203 = vmatmul.mubr.bf16.gmra.mrb[0].mxu0 %v902
      %v1204 = vpop.f32.mrb[0].mxu0
      %v1205 = vadd.f32 %v963, %v1204
      %v1206 = vpop.f32.mrb[0].mxu0
      %v1207 = vadd.f32 %v967, %v1206
      %v1208 = vpop.f32.mrb[0].mxu0
      %v1209 = vadd.f32 %v963, %v1208
      %v1210 = vpop.f32.mrb[0].mxu0
      %v1211 = vadd.f32 %v967, %v1210
      %1212 = vmatprep.mubr.bf16.mxu0 %v905
      %1213 = vmatmul.mubr.bf16.gmra.mrb[0].mxu0 %v904
      %v1214 = vpop.f32.mrb[0].mxu0
      %v1215 = vadd.f32 %v963, %v1214
      %v1216 = vpop.f32.mrb[0].mxu0
      %v1217 = vadd.f32 %v967, %v1216
      %v1218 = vpop.f32.mrb[0].mxu0
      %v1219 = vadd.f32 %v963, %v1218
      %v1220 = vpop.f32.mrb[0].mxu0
      %v1221 = vadd.f32 %v967, %v1220
      %1222 = vmatprep.mubr.bf16.mxu0 %v907
      %1223 = vmatmul.mubr.bf16.gmra.mrb[0].mxu0 %v906
      %v1224 = vpop.f32.mrb[0].mxu0
      %v1225 = vadd.f32 %v963, %v1224
      %v1226 = vpop.f32.mrb[0].mxu0
      %v1227 = vadd.f32 %v967, %v1226
      %v1228 = vpop.f32.mrb[0].mxu0
      %v1229 = vadd.f32 %v963, %v1228
      %v1230 = vpop.f32.mrb[0].mxu0
      %v1231 = vadd.f32 %v967, %v1230
      %1232 = vmatprep.mubr.bf16.mxu0 %v909
      %1233 = vmatmul.mubr.bf16.gmra.mrb[0].mxu0 %v908
      %v1234 = vpop.f32.mrb[0].mxu0
      %v1235 = vadd.f32 %v963, %v1234
      %v1236 = vpop.f32.mrb[0].mxu0
      %v1237 = vadd.f32 %v967, %v1236
      %v1238 = vpop.f32.mrb[0].mxu0
      %v1239 = vadd.f32 %v963, %v1238
      %v1240 = vpop.f32.mrb[0].mxu0
      %v1241 = vadd.f32 %v967, %v1240
      %1242 = vmatprep.mubr.bf16.mxu0 %v911
      %1243 = vmatmul.mubr.bf16.gmra.mrb[0].mxu0 %v910
      %v1244 = vpop.f32.mrb[0].mxu0
      %v1245 = vadd.f32 %v963, %v1244
      %v1246 = vpop.f32.mrb[0].mxu0
      %v1247 = vadd.f32 %v967, %v1246
      %v1248 = vpop.f32.mrb[0].mxu0
      %v1249 = vadd.f32 %v963, %v1248
      %v1250 = vpop.f32.mrb[0].mxu0
      %v1251 = vadd.f32 %v967, %v1250
      %1252 = vmatprep.mubr.bf16.mxu0 %v913
      %1253 = vmatmul.mubr.bf16.gmra.mrb[0].mxu0 %v912
      %v1254 = vpop.f32.mrb[0].mxu0
      %v1255 = vadd.f32 %v963, %v1254
      %v1256 = vpop.f32.mrb[0].mxu0
      %v1257 = vadd.f32 %v967, %v1256
      %v1258 = vpop.f32.mrb[0].mxu0
      %v1259 = vadd.f32 %v963, %v1258
      %v1260 = vpop.f32.mrb[0].mxu0
      %v1261 = vadd.f32 %v967, %v1260
      %1262 = vmatprep.mubr.bf16.mxu0 %v915
      %1263 = vmatmul.mubr.bf16.gmra.mrb[0].mxu0 %v914
      %v1264 = vpop.f32.mrb[0].mxu0
      %v1265 = vadd.f32 %v963, %v1264
      %v1266 = vpop.f32.mrb[0].mxu0
      %v1267 = vadd.f32 %v967, %v1266
      %v1268 = vpop.f32.mrb[0].mxu0
      %v1269 = vadd.f32 %v963, %v1268
      %v1270 = vpop.f32.mrb[0].mxu0
      %v1271 = vadd.f32 %v967, %v1270
      %1272 = vmatprep.mubr.bf16.mxu0 %v917
      %1273 = vmatmul.mubr.bf16.gmra.mrb[0].mxu0 %v916
      %v1274 = vpop.f32.mrb[0].mxu0
      %v1275 = vadd.f32 %v963, %v1274
      %v1276 = vpop.f32.mrb[0].mxu0
      %v1277 = vadd.f32 %v967, %v1276
      %v1278 = vpop.f32.mrb[0].mxu0
      %v1279 = vadd.f32 %v963, %v1278
      %v1280 = vpop.f32.mrb[0].mxu0
      %v1281 = vadd.f32 %v967, %v1280
      %1282 = vmatprep.mubr.bf16.mxu0 %v919
      %1283 = vmatmul.mubr.bf16.gmra.mrb[0].mxu0 %v918
      %v1284 = vpop.f32.mrb[0].mxu0
      %v1285 = vadd.f32 %v963, %v1284
      %v1286 = vpop.f32.mrb[0].mxu0
      %v1287 = vadd.f32 %v967, %v1286
      %v1288 = vpop.f32.mrb[0].mxu0
      %v1289 = vadd.f32 %v963, %v1288
      %v1290 = vpop.f32.mrb[0].mxu0
      %v1291 = vadd.f32 %v967, %v1290
      %1292 = vmatprep.mubr.bf16.mxu0 %v921
      %1293 = vmatmul.mubr.bf16.gmra.mrb[0].mxu0 %v920
      %v1294 = vpop.f32.mrb[0].mxu0
      %v1295 = vadd.f32 %v963, %v1294
      %v1296 = vpop.f32.mrb[0].mxu0
      %v1297 = vadd.f32 %v967, %v1296
      %v1298 = vpop.f32.mrb[0].mxu0
      %v1299 = vadd.f32 %v963, %v1298
      %v1300 = vpop.f32.mrb[0].mxu0
      %v1301 = vadd.f32 %v967, %v1300
      %1302 = vmatprep.mubr.bf16.mxu0 %v923
      %1303 = vmatmul.mubr.bf16.gmra.mrb[0].mxu0 %v922
      %v1304 = vpop.f32.mrb[0].mxu0
      %v1305 = vadd.f32 %v963, %v1304
      %v1306 = vpop.f32.mrb[0].mxu0
      %v1307 = vadd.f32 %v967, %v1306
      %v1308 = vpop.f32.mrb[0].mxu0
      %v1309 = vadd.f32 %v963, %v1308
      %v1310 = vpop.f32.mrb[0].mxu0
      %v1311 = vadd.f32 %v967, %v1310
      %1312 = vmatprep.mubr.bf16.mxu0 %v925
      %1313 = vmatmul.mubr.bf16.gmra.mrb[0].mxu0 %v924
      %v1314 = vpop.f32.mrb[0].mxu0
      %v1315 = vadd.f32 %v963, %v1314
      %v1316 = vpop.f32.mrb[0].mxu0
      %v1317 = vadd.f32 %v967, %v1316
      %v1318 = vpop.f32.mrb[0].mxu0
      %v1319 = vadd.f32 %v963, %v1318
      %v1320 = vpop.f32.mrb[0].mxu0
      %v1321 = vadd.f32 %v967, %v1320
      %1322 = vdwg.mxu0
      %v1323 = vmax.f32 %v1165, 0.0
      %v1324 = vmax.f32 %v1167, 0.0
      %v1325 = vmax.f32 %v1169, 0.0
      %v1326 = vmax.f32 %v1171, 0.0
      %v1327 = vmax.f32 %v1175, 0.0
      %v1328 = vmax.f32 %v1177, 0.0
      %v1329 = vmax.f32 %v1179, 0.0
      %v1330 = vmax.f32 %v1181, 0.0
      %v1331 = vmax.f32 %v1185, 0.0
      %v1332 = vmax.f32 %v1187, 0.0
      %v1333 = vmax.f32 %v1189, 0.0
      %v1334 = vmax.f32 %v1191, 0.0
      %v1335 = vmax.f32 %v1195, 0.0
      %v1336 = vmax.f32 %v1197, 0.0
      %v1337 = vmax.f32 %v1199, 0.0
      %v1338 = vmax.f32 %v1201, 0.0
      %v1339 = vmax.f32 %v1205, 0.0
      %v1340 = vmax.f32 %v1207, 0.0
      %v1341 = vmax.f32 %v1209, 0.0
      %v1342 = vmax.f32 %v1211, 0.0
      %v1343 = vmax.f32 %v1215, 0.0
      %v1344 = vmax.f32 %v1217, 0.0
      %v1345 = vmax.f32 %v1219, 0.0
      %v1346 = vmax.f32 %v1221, 0.0
      %v1347 = vmax.f32 %v1225, 0.0
      %v1348 = vmax.f32 %v1227, 0.0
      %v1349 = vmax.f32 %v1229, 0.0
      %v1350 = vmax.f32 %v1231, 0.0
      %v1351 = vmax.f32 %v1235, 0.0
      %v1352 = vmax.f32 %v1237, 0.0
      %v1353 = vmax.f32 %v1239, 0.0
      %v1354 = vmax.f32 %v1241, 0.0
      %v1355 = vmax.f32 %v1245, 0.0
      %v1356 = vmax.f32 %v1247, 0.0
      %v1357 = vmax.f32 %v1249, 0.0
      %v1358 = vmax.f32 %v1251, 0.0
      %v1359 = vmax.f32 %v1255, 0.0
      %v1360 = vmax.f32 %v1257, 0.0
      %v1361 = vmax.f32 %v1259, 0.0
      %v1362 = vmax.f32 %v1261, 0.0
      %v1363 = vmax.f32 %v1265, 0.0
      %v1364 = vmax.f32 %v1267, 0.0
      %v1365 = vmax.f32 %v1269, 0.0
      %v1366 = vmax.f32 %v1271, 0.0
      %v1367 = vmax.f32 %v1275, 0.0
      %v1368 = vmax.f32 %v1277, 0.0
      %v1369 = vmax.f32 %v1279, 0.0
      %v1370 = vmax.f32 %v1281, 0.0
      %v1371 = vmax.f32 %v1285, 0.0
      %v1372 = vmax.f32 %v1287, 0.0
      %v1373 = vmax.f32 %v1289, 0.0
      %v1374 = vmax.f32 %v1291, 0.0
      %v1375 = vmax.f32 %v1295, 0.0
      %v1376 = vmax.f32 %v1297, 0.0
      %v1377 = vmax.f32 %v1299, 0.0
      %v1378 = vmax.f32 %v1301, 0.0
      %v1379 = vmax.f32 %v1305, 0.0
      %v1380 = vmax.f32 %v1307, 0.0
      %v1381 = vmax.f32 %v1309, 0.0
      %v1382 = vmax.f32 %v1311, 0.0
      %v1383 = vmax.f32 %v1315, 0.0
      %v1384 = vmax.f32 %v1317, 0.0
      %v1385 = vmax.f32 %v1319, 0.0
      %v1386 = vmax.f32 %v1321, 0.0
      %v1387 = vpack.c.bf16 %v1325, %v1323
      %v1388 = vpack.c.bf16 %v1326, %v1324
      %v1389 = vpack.c.bf16 %v1329, %v1327
      %v1390 = vpack.c.bf16 %v1330, %v1328
      %v1391 = vpack.c.bf16 %v1333, %v1331
      %v1392 = vpack.c.bf16 %v1334, %v1332
      %v1393 = vpack.c.bf16 %v1337, %v1335
      %v1394 = vpack.c.bf16 %v1338, %v1336
      %v1395 = vpack.c.bf16 %v1341, %v1339
      %v1396 = vpack.c.bf16 %v1342, %v1340
      %v1397 = vpack.c.bf16 %v1345, %v1343
      %v1398 = vpack.c.bf16 %v1346, %v1344
      %v1399 = vpack.c.bf16 %v1349, %v1347
      %v1400 = vpack.c.bf16 %v1350, %v1348
      %v1401 = vpack.c.bf16 %v1353, %v1351
      %v1402 = vpack.c.bf16 %v1354, %v1352
      %v1403 = vpack.c.bf16 %v1357, %v1355
      %v1404 = vpack.c.bf16 %v1358, %v1356
      %v1405 = vpack.c.bf16 %v1361, %v1359
      %v1406 = vpack.c.bf16 %v1362, %v1360
      %v1407 = vpack.c.bf16 %v1365, %v1363
      %v1408 = vpack.c.bf16 %v1366, %v1364
      %v1409 = vpack.c.bf16 %v1369, %v1367
      %v1410 = vpack.c.bf16 %v1370, %v1368
      %v1411 = vpack.c.bf16 %v1373, %v1371
      %v1412 = vpack.c.bf16 %v1374, %v1372
      %v1413 = vpack.c.bf16 %v1377, %v1375
      %v1414 = vpack.c.bf16 %v1378, %v1376
      %v1415 = vpack.c.bf16 %v1381, %v1379
      %v1416 = vpack.c.bf16 %v1382, %v1380
      %v1417 = vpack.c.bf16 %v1385, %v1383
      %v1418 = vpack.c.bf16 %v1386, %v1384
      %s1419 = scalar_lea.vmem %s4, 256
      %v1420 = vld [vmem:[%s1419] sm:$0xff]
      %v1421 = vld [vmem:[%s1419 + $0x8] sm:$0xff]
      %v1422 = vld [vmem:[%s1419 + $0x10] sm:$0xff]
      %v1423 = vld [vmem:[%s1419 + $0x18] sm:$0xff]
      %v1424 = vld [vmem:[%s1419 + $0x20] sm:$0xff]
      %v1425 = vld [vmem:[%s1419 + $0x28] sm:$0xff]
      %v1426 = vld [vmem:[%s1419 + $0x30] sm:$0xff]
      %v1427 = vld [vmem:[%s1419 + $0x38] sm:$0xff]
      %v1428 = vld [vmem:[%s1419 + $0x40] sm:$0xff]
      %v1429 = vld [vmem:[%s1419 + $0x48] sm:$0xff]
      %v1430 = vld [vmem:[%s1419 + $0x50] sm:$0xff]
      %v1431 = vld [vmem:[%s1419 + $0x58] sm:$0xff]
      %v1432 = vld [vmem:[%s1419 + $0x60] sm:$0xff]
      %v1433 = vld [vmem:[%s1419 + $0x68] sm:$0xff]
      %v1434 = vld [vmem:[%s1419 + $0x70] sm:$0xff]
      %v1435 = vld [vmem:[%s1419 + $0x78] sm:$0xff]
      %v1436 = vld [vmem:[%s1419 + $0x80] sm:$0xff]
      %v1437 = vld [vmem:[%s1419 + $0x88] sm:$0xff]
      %v1438 = vld [vmem:[%s1419 + $0x90] sm:$0xff]
      %v1439 = vld [vmem:[%s1419 + $0x98] sm:$0xff]
      %v1440 = vld [vmem:[%s1419 + $0xa0] sm:$0xff]
      %v1441 = vld [vmem:[%s1419 + $0xa8] sm:$0xff]
      %v1442 = vld [vmem:[%s1419 + $0xb0] sm:$0xff]
      %v1443 = vld [vmem:[%s1419 + $0xb8] sm:$0xff]
      %v1444 = vld [vmem:[%s1419 + $0xc0] sm:$0xff]
      %v1445 = vld [vmem:[%s1419 + $0xc8] sm:$0xff]
      %v1446 = vld [vmem:[%s1419 + $0xd0] sm:$0xff]
      %v1447 = vld [vmem:[%s1419 + $0xd8] sm:$0xff]
      %v1448 = vld [vmem:[%s1419 + $0xe0] sm:$0xff]
      %v1449 = vld [vmem:[%s1419 + $0xe8] sm:$0xff]
      %v1450 = vld [vmem:[%s1419 + $0xf0] sm:$0xff]
      %v1451 = vld [vmem:[%s1419 + $0xf8] sm:$0xff]
      %s1452 = scalar_lea.vmem %s5, 2
      %v1453 = vld [vmem:[%s1452] sm:$0x3]
      %v1455 = vlaneseq
      %v1456 = vshrl.u32 %v1455, 7
      %v1457 = vsub.s32 0, %v1456
      %v1458 = vrot.slane %v1453, %v1457
      %v1459 = vlaneseq
      %v1460 = vshrl.u32 %v1459, 7
      %v1461 = vsub.s32 1, %v1460
      %v1462 = vrot.slane %v1453, %v1461
      %v1497 = vunpack.c.l.b16 %v1420
      %v1498 = vunpack.c.h.b16 %v1420
      %v1499 = vunpack.c.l.b16 %v1421
      %v1500 = vunpack.c.h.b16 %v1421
      %v1501 = vunpack.c.l.b16 %v1422
      %v1502 = vunpack.c.h.b16 %v1422
      %v1503 = vunpack.c.l.b16 %v1423
      %v1504 = vunpack.c.h.b16 %v1423
      %v1505 = vunpack.c.l.b16 %v1424
      %v1506 = vunpack.c.h.b16 %v1424
      %v1507 = vunpack.c.l.b16 %v1425
      %v1508 = vunpack.c.h.b16 %v1425
      %v1509 = vunpack.c.l.b16 %v1426
      %v1510 = vunpack.c.h.b16 %v1426
      %v1511 = vunpack.c.l.b16 %v1427
      %v1512 = vunpack.c.h.b16 %v1427
      %v1513 = vunpack.c.l.b16 %v1428
      %v1514 = vunpack.c.h.b16 %v1428
      %v1515 = vunpack.c.l.b16 %v1429
      %v1516 = vunpack.c.h.b16 %v1429
      %v1517 = vunpack.c.l.b16 %v1430
      %v1518 = vunpack.c.h.b16 %v1430
      %v1519 = vunpack.c.l.b16 %v1431
      %v1520 = vunpack.c.h.b16 %v1431
      %v1521 = vunpack.c.l.b16 %v1432
      %v1522 = vunpack.c.h.b16 %v1432
      %v1523 = vunpack.c.l.b16 %v1433
      %v1524 = vunpack.c.h.b16 %v1433
      %v1525 = vunpack.c.l.b16 %v1434
      %v1526 = vunpack.c.h.b16 %v1434
      %v1527 = vunpack.c.l.b16 %v1435
      %v1528 = vunpack.c.h.b16 %v1435
      %v1529 = vunpack.c.l.b16 %v1436
      %v1530 = vunpack.c.h.b16 %v1436
      %v1531 = vunpack.c.l.b16 %v1437
      %v1532 = vunpack.c.h.b16 %v1437
      %v1533 = vunpack.c.l.b16 %v1438
      %v1534 = vunpack.c.h.b16 %v1438
      %v1535 = vunpack.c.l.b16 %v1439
      %v1536 = vunpack.c.h.b16 %v1439
      %v1537 = vunpack.c.l.b16 %v1440
      %v1538 = vunpack.c.h.b16 %v1440
      %v1539 = vunpack.c.l.b16 %v1441
      %v1540 = vunpack.c.h.b16 %v1441
      %v1541 = vunpack.c.l.b16 %v1442
      %v1542 = vunpack.c.h.b16 %v1442
      %v1543 = vunpack.c.l.b16 %v1443
      %v1544 = vunpack.c.h.b16 %v1443
      %v1545 = vunpack.c.l.b16 %v1444
      %v1546 = vunpack.c.h.b16 %v1444
      %v1547 = vunpack.c.l.b16 %v1445
      %v1548 = vunpack.c.h.b16 %v1445
      %v1549 = vunpack.c.l.b16 %v1446
      %v1550 = vunpack.c.h.b16 %v1446
      %v1551 = vunpack.c.l.b16 %v1447
      %v1552 = vunpack.c.h.b16 %v1447
      %v1553 = vunpack.c.l.b16 %v1448
      %v1554 = vunpack.c.h.b16 %v1448
      %v1555 = vunpack.c.l.b16 %v1449
      %v1556 = vunpack.c.h.b16 %v1449
      %v1557 = vunpack.c.l.b16 %v1450
      %v1558 = vunpack.c.h.b16 %v1450
      %v1559 = vunpack.c.l.b16 %v1451
      %v1560 = vunpack.c.h.b16 %v1451
      %v1561 = vpack.c.b16 %v1499, %v1497
      %v1562 = vpack.c.b16 %v1500, %v1498
      %v1563 = vpack.c.b16 %v1503, %v1501
      %v1564 = vpack.c.b16 %v1504, %v1502
      %v1565 = vpack.c.b16 %v1507, %v1505
      %v1566 = vpack.c.b16 %v1508, %v1506
      %v1567 = vpack.c.b16 %v1511, %v1509
      %v1568 = vpack.c.b16 %v1512, %v1510
      %v1569 = vpack.c.b16 %v1515, %v1513
      %v1570 = vpack.c.b16 %v1516, %v1514
      %v1571 = vpack.c.b16 %v1519, %v1517
      %v1572 = vpack.c.b16 %v1520, %v1518
      %v1573 = vpack.c.b16 %v1523, %v1521
      %v1574 = vpack.c.b16 %v1524, %v1522
      %v1575 = vpack.c.b16 %v1527, %v1525
      %v1576 = vpack.c.b16 %v1528, %v1526
      %v1577 = vpack.c.b16 %v1531, %v1529
      %v1578 = vpack.c.b16 %v1532, %v1530
      %v1579 = vpack.c.b16 %v1535, %v1533
      %v1580 = vpack.c.b16 %v1536, %v1534
      %v1581 = vpack.c.b16 %v1539, %v1537
      %v1582 = vpack.c.b16 %v1540, %v1538
      %v1583 = vpack.c.b16 %v1543, %v1541
      %v1584 = vpack.c.b16 %v1544, %v1542
      %v1585 = vpack.c.b16 %v1547, %v1545
      %v1586 = vpack.c.b16 %v1548, %v1546
      %v1587 = vpack.c.b16 %v1551, %v1549
      %v1588 = vpack.c.b16 %v1552, %v1550
      %v1589 = vpack.c.b16 %v1555, %v1553
      %v1590 = vpack.c.b16 %v1556, %v1554
      %v1591 = vpack.c.b16 %v1559, %v1557
      %v1592 = vpack.c.b16 %v1560, %v1558
      %1625 = vmatprep.subr.bf16.mxu0 %v1562
      %1626 = vmatpush1.bf16.msra.mxu0 %v1561
      %1627 = vmatprep.subr.bf16.mxu0 %v1564
      %1628 = vmatpush1.bf16.msra.mxu0 %v1563
      %1629 = vmatprep.subr.bf16.mxu0 %v1566
      %1630 = vmatpush1.bf16.msra.mxu0 %v1565
      %1631 = vmatprep.subr.bf16.mxu0 %v1568
      %1632 = vmatpush1.bf16.msra.mxu0 %v1567
      %1633 = vmatprep.subr.bf16.mxu0 %v1570
      %1634 = vmatpush1.bf16.msra.mxu0 %v1569
      %1635 = vmatprep.subr.bf16.mxu0 %v1572
      %1636 = vmatpush1.bf16.msra.mxu0 %v1571
      %1637 = vmatprep.subr.bf16.mxu0 %v1574
      %1638 = vmatpush1.bf16.msra.mxu0 %v1573
      %1639 = vmatprep.subr.bf16.mxu0 %v1576
      %1640 = vmatpush1.bf16.msra.mxu0 %v1575
      %1641 = vmatprep.subr.bf16.mxu0 %v1578
      %1642 = vmatpush1.bf16.msra.mxu0 %v1577
      %1643 = vmatprep.subr.bf16.mxu0 %v1580
      %1644 = vmatpush1.bf16.msra.mxu0 %v1579
      %1645 = vmatprep.subr.bf16.mxu0 %v1582
      %1646 = vmatpush1.bf16.msra.mxu0 %v1581
      %1647 = vmatprep.subr.bf16.mxu0 %v1584
      %1648 = vmatpush1.bf16.msra.mxu0 %v1583
      %1649 = vmatprep.subr.bf16.mxu0 %v1586
      %1650 = vmatpush1.bf16.msra.mxu0 %v1585
      %1651 = vmatprep.subr.bf16.mxu0 %v1588
      %1652 = vmatpush1.bf16.msra.mxu0 %v1587
      %1653 = vmatprep.subr.bf16.mxu0 %v1590
      %1654 = vmatpush1.bf16.msra.mxu0 %v1589
      %1655 = vmatprep.subr.bf16.mxu0 %v1592
      %1656 = vmatpush1.bf16.msra.mxu0 %v1591
      %1657 = vmatprep.mubr.bf16.mxu0 %v1388
      %1658 = vmatmul.mubr.bf16.gmra.mrb[0].mxu0 %v1387
      %v1659 = vpop.f32.mrb[0].mxu0
      %v1660 = vadd.f32 %v1458, %v1659
      %v1661 = vpop.f32.mrb[0].mxu0
      %v1662 = vadd.f32 %v1462, %v1661
      %v1663 = vpop.f32.mrb[0].mxu0
      %v1664 = vadd.f32 %v1458, %v1663
      %v1665 = vpop.f32.mrb[0].mxu0
      %v1666 = vadd.f32 %v1462, %v1665
      %1667 = vmatprep.mubr.bf16.mxu0 %v1390
      %1668 = vmatmul.mubr.bf16.gmra.mrb[0].mxu0 %v1389
      %v1669 = vpop.f32.mrb[0].mxu0
      %v1670 = vadd.f32 %v1458, %v1669
      %v1671 = vpop.f32.mrb[0].mxu0
      %v1672 = vadd.f32 %v1462, %v1671
      %v1673 = vpop.f32.mrb[0].mxu0
      %v1674 = vadd.f32 %v1458, %v1673
      %v1675 = vpop.f32.mrb[0].mxu0
      %v1676 = vadd.f32 %v1462, %v1675
      %1677 = vmatprep.mubr.bf16.mxu0 %v1392
      %1678 = vmatmul.mubr.bf16.gmra.mrb[0].mxu0 %v1391
      %v1679 = vpop.f32.mrb[0].mxu0
      %v1680 = vadd.f32 %v1458, %v1679
      %v1681 = vpop.f32.mrb[0].mxu0
      %v1682 = vadd.f32 %v1462, %v1681
      %v1683 = vpop.f32.mrb[0].mxu0
      %v1684 = vadd.f32 %v1458, %v1683
      %v1685 = vpop.f32.mrb[0].mxu0
      %v1686 = vadd.f32 %v1462, %v1685
      %1687 = vmatprep.mubr.bf16.mxu0 %v1394
      %1688 = vmatmul.mubr.bf16.gmra.mrb[0].mxu0 %v1393
      %v1689 = vpop.f32.mrb[0].mxu0
      %v1690 = vadd.f32 %v1458, %v1689
      %v1691 = vpop.f32.mrb[0].mxu0
      %v1692 = vadd.f32 %v1462, %v1691
      %v1693 = vpop.f32.mrb[0].mxu0
      %v1694 = vadd.f32 %v1458, %v1693
      %v1695 = vpop.f32.mrb[0].mxu0
      %v1696 = vadd.f32 %v1462, %v1695
      %1697 = vmatprep.mubr.bf16.mxu0 %v1396
      %1698 = vmatmul.mubr.bf16.gmra.mrb[0].mxu0 %v1395
      %v1699 = vpop.f32.mrb[0].mxu0
      %v1700 = vadd.f32 %v1458, %v1699
      %v1701 = vpop.f32.mrb[0].mxu0
      %v1702 = vadd.f32 %v1462, %v1701
      %v1703 = vpop.f32.mrb[0].mxu0
      %v1704 = vadd.f32 %v1458, %v1703
      %v1705 = vpop.f32.mrb[0].mxu0
      %v1706 = vadd.f32 %v1462, %v1705
      %1707 = vmatprep.mubr.bf16.mxu0 %v1398
      %1708 = vmatmul.mubr.bf16.gmra.mrb[0].mxu0 %v1397
      %v1709 = vpop.f32.mrb[0].mxu0
      %v1710 = vadd.f32 %v1458, %v1709
      %v1711 = vpop.f32.mrb[0].mxu0
      %v1712 = vadd.f32 %v1462, %v1711
      %v1713 = vpop.f32.mrb[0].mxu0
      %v1714 = vadd.f32 %v1458, %v1713
      %v1715 = vpop.f32.mrb[0].mxu0
      %v1716 = vadd.f32 %v1462, %v1715
      %1717 = vmatprep.mubr.bf16.mxu0 %v1400
      %1718 = vmatmul.mubr.bf16.gmra.mrb[0].mxu0 %v1399
      %v1719 = vpop.f32.mrb[0].mxu0
      %v1720 = vadd.f32 %v1458, %v1719
      %v1721 = vpop.f32.mrb[0].mxu0
      %v1722 = vadd.f32 %v1462, %v1721
      %v1723 = vpop.f32.mrb[0].mxu0
      %v1724 = vadd.f32 %v1458, %v1723
      %v1725 = vpop.f32.mrb[0].mxu0
      %v1726 = vadd.f32 %v1462, %v1725
      %1727 = vmatprep.mubr.bf16.mxu0 %v1402
      %1728 = vmatmul.mubr.bf16.gmra.mrb[0].mxu0 %v1401
      %v1729 = vpop.f32.mrb[0].mxu0
      %v1730 = vadd.f32 %v1458, %v1729
      %v1731 = vpop.f32.mrb[0].mxu0
      %v1732 = vadd.f32 %v1462, %v1731
      %v1733 = vpop.f32.mrb[0].mxu0
      %v1734 = vadd.f32 %v1458, %v1733
      %v1735 = vpop.f32.mrb[0].mxu0
      %v1736 = vadd.f32 %v1462, %v1735
      %1737 = vmatprep.mubr.bf16.mxu0 %v1404
      %1738 = vmatmul.mubr.bf16.gmra.mrb[0].mxu0 %v1403
      %v1739 = vpop.f32.mrb[0].mxu0
      %v1740 = vadd.f32 %v1458, %v1739
      %v1741 = vpop.f32.mrb[0].mxu0
      %v1742 = vadd.f32 %v1462, %v1741
      %v1743 = vpop.f32.mrb[0].mxu0
      %v1744 = vadd.f32 %v1458, %v1743
      %v1745 = vpop.f32.mrb[0].mxu0
      %v1746 = vadd.f32 %v1462, %v1745
      %1747 = vmatprep.mubr.bf16.mxu0 %v1406
      %1748 = vmatmul.mubr.bf16.gmra.mrb[0].mxu0 %v1405
      %v1749 = vpop.f32.mrb[0].mxu0
      %v1750 = vadd.f32 %v1458, %v1749
      %v1751 = vpop.f32.mrb[0].mxu0
      %v1752 = vadd.f32 %v1462, %v1751
      %v1753 = vpop.f32.mrb[0].mxu0
      %v1754 = vadd.f32 %v1458, %v1753
      %v1755 = vpop.f32.mrb[0].mxu0
      %v1756 = vadd.f32 %v1462, %v1755
      %1757 = vmatprep.mubr.bf16.mxu0 %v1408
      %1758 = vmatmul.mubr.bf16.gmra.mrb[0].mxu0 %v1407
      %v1759 = vpop.f32.mrb[0].mxu0
      %v1760 = vadd.f32 %v1458, %v1759
      %v1761 = vpop.f32.mrb[0].mxu0
      %v1762 = vadd.f32 %v1462, %v1761
      %v1763 = vpop.f32.mrb[0].mxu0
      %v1764 = vadd.f32 %v1458, %v1763
      %v1765 = vpop.f32.mrb[0].mxu0
      %v1766 = vadd.f32 %v1462, %v1765
      %1767 = vmatprep.mubr.bf16.mxu0 %v1410
      %1768 = vmatmul.mubr.bf16.gmra.mrb[0].mxu0 %v1409
      %v1769 = vpop.f32.mrb[0].mxu0
      %v1770 = vadd.f32 %v1458, %v1769
      %v1771 = vpop.f32.mrb[0].mxu0
      %v1772 = vadd.f32 %v1462, %v1771
      %v1773 = vpop.f32.mrb[0].mxu0
      %v1774 = vadd.f32 %v1458, %v1773
      %v1775 = vpop.f32.mrb[0].mxu0
      %v1776 = vadd.f32 %v1462, %v1775
      %1777 = vmatprep.mubr.bf16.mxu0 %v1412
      %1778 = vmatmul.mubr.bf16.gmra.mrb[0].mxu0 %v1411
      %v1779 = vpop.f32.mrb[0].mxu0
      %v1780 = vadd.f32 %v1458, %v1779
      %v1781 = vpop.f32.mrb[0].mxu0
      %v1782 = vadd.f32 %v1462, %v1781
      %v1783 = vpop.f32.mrb[0].mxu0
      %v1784 = vadd.f32 %v1458, %v1783
      %v1785 = vpop.f32.mrb[0].mxu0
      %v1786 = vadd.f32 %v1462, %v1785
      %1787 = vmatprep.mubr.bf16.mxu0 %v1414
      %1788 = vmatmul.mubr.bf16.gmra.mrb[0].mxu0 %v1413
      %v1789 = vpop.f32.mrb[0].mxu0
      %v1790 = vadd.f32 %v1458, %v1789
      %v1791 = vpop.f32.mrb[0].mxu0
      %v1792 = vadd.f32 %v1462, %v1791
      %v1793 = vpop.f32.mrb[0].mxu0
      %v1794 = vadd.f32 %v1458, %v1793
      %v1795 = vpop.f32.mrb[0].mxu0
      %v1796 = vadd.f32 %v1462, %v1795
      %1797 = vmatprep.mubr.bf16.mxu0 %v1416
      %1798 = vmatmul.mubr.bf16.gmra.mrb[0].mxu0 %v1415
      %v1799 = vpop.f32.mrb[0].mxu0
      %v1800 = vadd.f32 %v1458, %v1799
      %v1801 = vpop.f32.mrb[0].mxu0
      %v1802 = vadd.f32 %v1462, %v1801
      %v1803 = vpop.f32.mrb[0].mxu0
      %v1804 = vadd.f32 %v1458, %v1803
      %v1805 = vpop.f32.mrb[0].mxu0
      %v1806 = vadd.f32 %v1462, %v1805
      %1807 = vmatprep.mubr.bf16.mxu0 %v1418
      %1808 = vmatmul.mubr.bf16.gmra.mrb[0].mxu0 %v1417
      %v1809 = vpop.f32.mrb[0].mxu0
      %v1810 = vadd.f32 %v1458, %v1809
      %v1811 = vpop.f32.mrb[0].mxu0
      %v1812 = vadd.f32 %v1462, %v1811
      %v1813 = vpop.f32.mrb[0].mxu0
      %v1814 = vadd.f32 %v1458, %v1813
      %v1815 = vpop.f32.mrb[0].mxu0
      %v1816 = vadd.f32 %v1462, %v1815
      %1817 = vdwg.mxu0
      %v1818 = vmax.f32 %v1660, 0.0
      %v1819 = vmax.f32 %v1662, 0.0
      %v1820 = vmax.f32 %v1664, 0.0
      %v1821 = vmax.f32 %v1666, 0.0
      %v1822 = vmax.f32 %v1670, 0.0
      %v1823 = vmax.f32 %v1672, 0.0
      %v1824 = vmax.f32 %v1674, 0.0
      %v1825 = vmax.f32 %v1676, 0.0
      %v1826 = vmax.f32 %v1680, 0.0
      %v1827 = vmax.f32 %v1682, 0.0
      %v1828 = vmax.f32 %v1684, 0.0
      %v1829 = vmax.f32 %v1686, 0.0
      %v1830 = vmax.f32 %v1690, 0.0
      %v1831 = vmax.f32 %v1692, 0.0
      %v1832 = vmax.f32 %v1694, 0.0
      %v1833 = vmax.f32 %v1696, 0.0
      %v1834 = vmax.f32 %v1700, 0.0
      %v1835 = vmax.f32 %v1702, 0.0
      %v1836 = vmax.f32 %v1704, 0.0
      %v1837 = vmax.f32 %v1706, 0.0
      %v1838 = vmax.f32 %v1710, 0.0
      %v1839 = vmax.f32 %v1712, 0.0
      %v1840 = vmax.f32 %v1714, 0.0
      %v1841 = vmax.f32 %v1716, 0.0
      %v1842 = vmax.f32 %v1720, 0.0
      %v1843 = vmax.f32 %v1722, 0.0
      %v1844 = vmax.f32 %v1724, 0.0
      %v1845 = vmax.f32 %v1726, 0.0
      %v1846 = vmax.f32 %v1730, 0.0
      %v1847 = vmax.f32 %v1732, 0.0
      %v1848 = vmax.f32 %v1734, 0.0
      %v1849 = vmax.f32 %v1736, 0.0
      %v1850 = vmax.f32 %v1740, 0.0
      %v1851 = vmax.f32 %v1742, 0.0
      %v1852 = vmax.f32 %v1744, 0.0
      %v1853 = vmax.f32 %v1746, 0.0
      %v1854 = vmax.f32 %v1750, 0.0
      %v1855 = vmax.f32 %v1752, 0.0
      %v1856 = vmax.f32 %v1754, 0.0
      %v1857 = vmax.f32 %v1756, 0.0
      %v1858 = vmax.f32 %v1760, 0.0
      %v1859 = vmax.f32 %v1762, 0.0
      %v1860 = vmax.f32 %v1764, 0.0
      %v1861 = vmax.f32 %v1766, 0.0
      %v1862 = vmax.f32 %v1770, 0.0
      %v1863 = vmax.f32 %v1772, 0.0
      %v1864 = vmax.f32 %v1774, 0.0
      %v1865 = vmax.f32 %v1776, 0.0
      %v1866 = vmax.f32 %v1780, 0.0
      %v1867 = vmax.f32 %v1782, 0.0
      %v1868 = vmax.f32 %v1784, 0.0
      %v1869 = vmax.f32 %v1786, 0.0
      %v1870 = vmax.f32 %v1790, 0.0
      %v1871 = vmax.f32 %v1792, 0.0
      %v1872 = vmax.f32 %v1794, 0.0
      %v1873 = vmax.f32 %v1796, 0.0
      %v1874 = vmax.f32 %v1800, 0.0
      %v1875 = vmax.f32 %v1802, 0.0
      %v1876 = vmax.f32 %v1804, 0.0
      %v1877 = vmax.f32 %v1806, 0.0
      %v1878 = vmax.f32 %v1810, 0.0
      %v1879 = vmax.f32 %v1812, 0.0
      %v1880 = vmax.f32 %v1814, 0.0
      %v1881 = vmax.f32 %v1816, 0.0
      %v1882 = vpack.c.bf16 %v1820, %v1818
      %v1883 = vpack.c.bf16 %v1821, %v1819
      %v1884 = vpack.c.bf16 %v1824, %v1822
      %v1885 = vpack.c.bf16 %v1825, %v1823
      %v1886 = vpack.c.bf16 %v1828, %v1826
      %v1887 = vpack.c.bf16 %v1829, %v1827
      %v1888 = vpack.c.bf16 %v1832, %v1830
      %v1889 = vpack.c.bf16 %v1833, %v1831
      %v1890 = vpack.c.bf16 %v1836, %v1834
      %v1891 = vpack.c.bf16 %v1837, %v1835
      %v1892 = vpack.c.bf16 %v1840, %v1838
      %v1893 = vpack.c.bf16 %v1841, %v1839
      %v1894 = vpack.c.bf16 %v1844, %v1842
      %v1895 = vpack.c.bf16 %v1845, %v1843
      %v1896 = vpack.c.bf16 %v1848, %v1846
      %v1897 = vpack.c.bf16 %v1849, %v1847
      %v1898 = vpack.c.bf16 %v1852, %v1850
      %v1899 = vpack.c.bf16 %v1853, %v1851
      %v1900 = vpack.c.bf16 %v1856, %v1854
      %v1901 = vpack.c.bf16 %v1857, %v1855
      %v1902 = vpack.c.bf16 %v1860, %v1858
      %v1903 = vpack.c.bf16 %v1861, %v1859
      %v1904 = vpack.c.bf16 %v1864, %v1862
      %v1905 = vpack.c.bf16 %v1865, %v1863
      %v1906 = vpack.c.bf16 %v1868, %v1866
      %v1907 = vpack.c.bf16 %v1869, %v1867
      %v1908 = vpack.c.bf16 %v1872, %v1870
      %v1909 = vpack.c.bf16 %v1873, %v1871
      %v1910 = vpack.c.bf16 %v1876, %v1874
      %v1911 = vpack.c.bf16 %v1877, %v1875
      %v1912 = vpack.c.bf16 %v1880, %v1878
      %v1913 = vpack.c.bf16 %v1881, %v1879
      %s1914 = scalar_lea.vmem %s4, 512
      %v1915 = vld [vmem:[%s1914] sm:$0xff]
      %v1916 = vld [vmem:[%s1914 + $0x8] sm:$0xff]
      %v1917 = vld [vmem:[%s1914 + $0x10] sm:$0xff]
      %v1918 = vld [vmem:[%s1914 + $0x18] sm:$0xff]
      %v1919 = vld [vmem:[%s1914 + $0x20] sm:$0xff]
      %v1920 = vld [vmem:[%s1914 + $0x28] sm:$0xff]
      %v1921 = vld [vmem:[%s1914 + $0x30] sm:$0xff]
      %v1922 = vld [vmem:[%s1914 + $0x38] sm:$0xff]
      %v1923 = vld [vmem:[%s1914 + $0x40] sm:$0xff]
      %v1924 = vld [vmem:[%s1914 + $0x48] sm:$0xff]
      %v1925 = vld [vmem:[%s1914 + $0x50] sm:$0xff]
      %v1926 = vld [vmem:[%s1914 + $0x58] sm:$0xff]
      %v1927 = vld [vmem:[%s1914 + $0x60] sm:$0xff]
      %v1928 = vld [vmem:[%s1914 + $0x68] sm:$0xff]
      %v1929 = vld [vmem:[%s1914 + $0x70] sm:$0xff]
      %v1930 = vld [vmem:[%s1914 + $0x78] sm:$0xff]
      %v1931 = vld [vmem:[%s1914 + $0x80] sm:$0xff]
      %v1932 = vld [vmem:[%s1914 + $0x88] sm:$0xff]
      %v1933 = vld [vmem:[%s1914 + $0x90] sm:$0xff]
      %v1934 = vld [vmem:[%s1914 + $0x98] sm:$0xff]
      %v1935 = vld [vmem:[%s1914 + $0xa0] sm:$0xff]
      %v1936 = vld [vmem:[%s1914 + $0xa8] sm:$0xff]
      %v1937 = vld [vmem:[%s1914 + $0xb0] sm:$0xff]
      %v1938 = vld [vmem:[%s1914 + $0xb8] sm:$0xff]
      %v1939 = vld [vmem:[%s1914 + $0xc0] sm:$0xff]
      %v1940 = vld [vmem:[%s1914 + $0xc8] sm:$0xff]
      %v1941 = vld [vmem:[%s1914 + $0xd0] sm:$0xff]
      %v1942 = vld [vmem:[%s1914 + $0xd8] sm:$0xff]
      %v1943 = vld [vmem:[%s1914 + $0xe0] sm:$0xff]
      %v1944 = vld [vmem:[%s1914 + $0xe8] sm:$0xff]
      %v1945 = vld [vmem:[%s1914 + $0xf0] sm:$0xff]
      %v1946 = vld [vmem:[%s1914 + $0xf8] sm:$0xff]
      %s1947 = scalar_lea.vmem %s5, 4
      %v1948 = vld [vmem:[%s1947] sm:$0x3]
      %v1950 = vlaneseq
      %v1951 = vshrl.u32 %v1950, 7
      %v1952 = vsub.s32 0, %v1951
      %v1953 = vrot.slane %v1948, %v1952
      %v1954 = vlaneseq
      %v1955 = vshrl.u32 %v1954, 7
      %v1956 = vsub.s32 1, %v1955
      %v1957 = vrot.slane %v1948, %v1956
      %v1992 = vunpack.c.l.b16 %v1915
      %v1993 = vunpack.c.h.b16 %v1915
      %v1994 = vunpack.c.l.b16 %v1916
      %v1995 = vunpack.c.h.b16 %v1916
      %v1996 = vunpack.c.l.b16 %v1917
      %v1997 = vunpack.c.h.b16 %v1917
      %v1998 = vunpack.c.l.b16 %v1918
      %v1999 = vunpack.c.h.b16 %v1918
      %v2000 = vunpack.c.l.b16 %v1919
      %v2001 = vunpack.c.h.b16 %v1919
      %v2002 = vunpack.c.l.b16 %v1920
      %v2003 = vunpack.c.h.b16 %v1920
      %v2004 = vunpack.c.l.b16 %v1921
      %v2005 = vunpack.c.h.b16 %v1921
      %v2006 = vunpack.c.l.b16 %v1922
      %v2007 = vunpack.c.h.b16 %v1922
      %v2008 = vunpack.c.l.b16 %v1923
      %v2009 = vunpack.c.h.b16 %v1923
      %v2010 = vunpack.c.l.b16 %v1924
      %v2011 = vunpack.c.h.b16 %v1924
      %v2012 = vunpack.c.l.b16 %v1925
      %v2013 = vunpack.c.h.b16 %v1925
      %v2014 = vunpack.c.l.b16 %v1926
      %v2015 = vunpack.c.h.b16 %v1926
      %v2016 = vunpack.c.l.b16 %v1927
      %v2017 = vunpack.c.h.b16 %v1927
      %v2018 = vunpack.c.l.b16 %v1928
      %v2019 = vunpack.c.h.b16 %v1928
      %v2020 = vunpack.c.l.b16 %v1929
      %v2021 = vunpack.c.h.b16 %v1929
      %v2022 = vunpack.c.l.b16 %v1930
      %v2023 = vunpack.c.h.b16 %v1930
      %v2024 = vunpack.c.l.b16 %v1931
      %v2025 = vunpack.c.h.b16 %v1931
      %v2026 = vunpack.c.l.b16 %v1932
      %v2027 = vunpack.c.h.b16 %v1932
      %v2028 = vunpack.c.l.b16 %v1933
      %v2029 = vunpack.c.h.b16 %v1933
      %v2030 = vunpack.c.l.b16 %v1934
      %v2031 = vunpack.c.h.b16 %v1934
      %v2032 = vunpack.c.l.b16 %v1935
      %v2033 = vunpack.c.h.b16 %v1935
      %v2034 = vunpack.c.l.b16 %v1936
      %v2035 = vunpack.c.h.b16 %v1936
      %v2036 = vunpack.c.l.b16 %v1937
      %v2037 = vunpack.c.h.b16 %v1937
      %v2038 = vunpack.c.l.b16 %v1938
      %v2039 = vunpack.c.h.b16 %v1938
      %v2040 = vunpack.c.l.b16 %v1939
      %v2041 = vunpack.c.h.b16 %v1939
      %v2042 = vunpack.c.l.b16 %v1940
      %v2043 = vunpack.c.h.b16 %v1940
      %v2044 = vunpack.c.l.b16 %v1941
      %v2045 = vunpack.c.h.b16 %v1941
      %v2046 = vunpack.c.l.b16 %v1942
      %v2047 = vunpack.c.h.b16 %v1942
      %v2048 = vunpack.c.l.b16 %v1943
      %v2049 = vunpack.c.h.b16 %v1943
      %v2050 = vunpack.c.l.b16 %v1944
      %v2051 = vunpack.c.h.b16 %v1944
      %v2052 = vunpack.c.l.b16 %v1945
      %v2053 = vunpack.c.h.b16 %v1945
      %v2054 = vunpack.c.l.b16 %v1946
      %v2055 = vunpack.c.h.b16 %v1946
      %v2056 = vpack.c.b16 %v1994, %v1992
      %v2057 = vpack.c.b16 %v1995, %v1993
      %v2058 = vpack.c.b16 %v1998, %v1996
      %v2059 = vpack.c.b16 %v1999, %v1997
      %v2060 = vpack.c.b16 %v2002, %v2000
      %v2061 = vpack.c.b16 %v2003, %v2001
      %v2062 = vpack.c.b16 %v2006, %v2004
      %v2063 = vpack.c.b16 %v2007, %v2005
      %v2064 = vpack.c.b16 %v2010, %v2008
      %v2065 = vpack.c.b16 %v2011, %v2009
      %v2066 = vpack.c.b16 %v2014, %v2012
      %v2067 = vpack.c.b16 %v2015, %v2013
      %v2068 = vpack.c.b16 %v2018, %v2016
      %v2069 = vpack.c.b16 %v2019, %v2017
      %v2070 = vpack.c.b16 %v2022, %v2020
      %v2071 = vpack.c.b16 %v2023, %v2021
      %v2072 = vpack.c.b16 %v2026, %v2024
      %v2073 = vpack.c.b16 %v2027, %v2025
      %v2074 = vpack.c.b16 %v2030, %v2028
      %v2075 = vpack.c.b16 %v2031, %v2029
      %v2076 = vpack.c.b16 %v2034, %v2032
      %v2077 = vpack.c.b16 %v2035, %v2033
      %v2078 = vpack.c.b16 %v2038, %v2036
      %v2079 = vpack.c.b16 %v2039, %v2037
      %v2080 = vpack.c.b16 %v2042, %v2040
      %v2081 = vpack.c.b16 %v2043, %v2041
      %v2082 = vpack.c.b16 %v2046, %v2044
      %v2083 = vpack.c.b16 %v2047, %v2045
      %v2084 = vpack.c.b16 %v2050, %v2048
      %v2085 = vpack.c.b16 %v2051, %v2049
      %v2086 = vpack.c.b16 %v2054, %v2052
      %v2087 = vpack.c.b16 %v2055, %v2053
      %2120 = vmatprep.subr.bf16.mxu0 %v2057
      %2121 = vmatpush1.bf16.msra.mxu0 %v2056
      %2122 = vmatprep.subr.bf16.mxu0 %v2059
      %2123 = vmatpush1.bf16.msra.mxu0 %v2058
      %2124 = vmatprep.subr.bf16.mxu0 %v2061
      %2125 = vmatpush1.bf16.msra.mxu0 %v2060
      %2126 = vmatprep.subr.bf16.mxu0 %v2063
      %2127 = vmatpush1.bf16.msra.mxu0 %v2062
      %2128 = vmatprep.subr.bf16.mxu0 %v2065
      %2129 = vmatpush1.bf16.msra.mxu0 %v2064
      %2130 = vmatprep.subr.bf16.mxu0 %v2067
      %2131 = vmatpush1.bf16.msra.mxu0 %v2066
      %2132 = vmatprep.subr.bf16.mxu0 %v2069
      %2133 = vmatpush1.bf16.msra.mxu0 %v2068
      %2134 = vmatprep.subr.bf16.mxu0 %v2071
      %2135 = vmatpush1.bf16.msra.mxu0 %v2070
      %2136 = vmatprep.subr.bf16.mxu0 %v2073
      %2137 = vmatpush1.bf16.msra.mxu0 %v2072
      %2138 = vmatprep.subr.bf16.mxu0 %v2075
      %2139 = vmatpush1.bf16.msra.mxu0 %v2074
      %2140 = vmatprep.subr.bf16.mxu0 %v2077
      %2141 = vmatpush1.bf16.msra.mxu0 %v2076
      %2142 = vmatprep.subr.bf16.mxu0 %v2079
      %2143 = vmatpush1.bf16.msra.mxu0 %v2078
      %2144 = vmatprep.subr.bf16.mxu0 %v2081
      %2145 = vmatpush1.bf16.msra.mxu0 %v2080
      %2146 = vmatprep.subr.bf16.mxu0 %v2083
      %2147 = vmatpush1.bf16.msra.mxu0 %v2082
      %2148 = vmatprep.subr.bf16.mxu0 %v2085
      %2149 = vmatpush1.bf16.msra.mxu0 %v2084
      %2150 = vmatprep.subr.bf16.mxu0 %v2087
      %2151 = vmatpush1.bf16.msra.mxu0 %v2086
      %2152 = vmatprep.mubr.bf16.mxu0 %v1883
      %2153 = vmatmul.mubr.bf16.gmra.mrb[0].mxu0 %v1882
      %v2154 = vpop.f32.mrb[0].mxu0
      %v2155 = vadd.f32 %v1953, %v2154
      %v2156 = vpop.f32.mrb[0].mxu0
      %v2157 = vadd.f32 %v1957, %v2156
      %v2158 = vpop.f32.mrb[0].mxu0
      %v2159 = vadd.f32 %v1953, %v2158
      %v2160 = vpop.f32.mrb[0].mxu0
      %v2161 = vadd.f32 %v1957, %v2160
      %2162 = vmatprep.mubr.bf16.mxu0 %v1885
      %2163 = vmatmul.mubr.bf16.gmra.mrb[0].mxu0 %v1884
      %v2164 = vpop.f32.mrb[0].mxu0
      %v2165 = vadd.f32 %v1953, %v2164
      %v2166 = vpop.f32.mrb[0].mxu0
      %v2167 = vadd.f32 %v1957, %v2166
      %v2168 = vpop.f32.mrb[0].mxu0
      %v2169 = vadd.f32 %v1953, %v2168
      %v2170 = vpop.f32.mrb[0].mxu0
      %v2171 = vadd.f32 %v1957, %v2170
      %2172 = vmatprep.mubr.bf16.mxu0 %v1887
      %2173 = vmatmul.mubr.bf16.gmra.mrb[0].mxu0 %v1886
      %v2174 = vpop.f32.mrb[0].mxu0
      %v2175 = vadd.f32 %v1953, %v2174
      %v2176 = vpop.f32.mrb[0].mxu0
      %v2177 = vadd.f32 %v1957, %v2176
      %v2178 = vpop.f32.mrb[0].mxu0
      %v2179 = vadd.f32 %v1953, %v2178
      %v2180 = vpop.f32.mrb[0].mxu0
      %v2181 = vadd.f32 %v1957, %v2180
      %2182 = vmatprep.mubr.bf16.mxu0 %v1889
      %2183 = vmatmul.mubr.bf16.gmra.mrb[0].mxu0 %v1888
      %v2184 = vpop.f32.mrb[0].mxu0
      %v2185 = vadd.f32 %v1953, %v2184
      %v2186 = vpop.f32.mrb[0].mxu0
      %v2187 = vadd.f32 %v1957, %v2186
      %v2188 = vpop.f32.mrb[0].mxu0
      %v2189 = vadd.f32 %v1953, %v2188
      %v2190 = vpop.f32.mrb[0].mxu0
      %v2191 = vadd.f32 %v1957, %v2190
      %2192 = vmatprep.mubr.bf16.mxu0 %v1891
      %2193 = vmatmul.mubr.bf16.gmra.mrb[0].mxu0 %v1890
      %v2194 = vpop.f32.mrb[0].mxu0
      %v2195 = vadd.f32 %v1953, %v2194
      %v2196 = vpop.f32.mrb[0].mxu0
      %v2197 = vadd.f32 %v1957, %v2196
      %v2198 = vpop.f32.mrb[0].mxu0
      %v2199 = vadd.f32 %v1953, %v2198
      %v2200 = vpop.f32.mrb[0].mxu0
      %v2201 = vadd.f32 %v1957, %v2200
      %2202 = vmatprep.mubr.bf16.mxu0 %v1893
      %2203 = vmatmul.mubr.bf16.gmra.mrb[0].mxu0 %v1892
      %v2204 = vpop.f32.mrb[0].mxu0
      %v2205 = vadd.f32 %v1953, %v2204
      %v2206 = vpop.f32.mrb[0].mxu0
      %v2207 = vadd.f32 %v1957, %v2206
      %v2208 = vpop.f32.mrb[0].mxu0
      %v2209 = vadd.f32 %v1953, %v2208
      %v2210 = vpop.f32.mrb[0].mxu0
      %v2211 = vadd.f32 %v1957, %v2210
      %2212 = vmatprep.mubr.bf16.mxu0 %v1895
      %2213 = vmatmul.mubr.bf16.gmra.mrb[0].mxu0 %v1894
      %v2214 = vpop.f32.mrb[0].mxu0
      %v2215 = vadd.f32 %v1953, %v2214
      %v2216 = vpop.f32.mrb[0].mxu0
      %v2217 = vadd.f32 %v1957, %v2216
      %v2218 = vpop.f32.mrb[0].mxu0
      %v2219 = vadd.f32 %v1953, %v2218
      %v2220 = vpop.f32.mrb[0].mxu0
      %v2221 = vadd.f32 %v1957, %v2220
      %2222 = vmatprep.mubr.bf16.mxu0 %v1897
      %2223 = vmatmul.mubr.bf16.gmra.mrb[0].mxu0 %v1896
      %v2224 = vpop.f32.mrb[0].mxu0
      %v2225 = vadd.f32 %v1953, %v2224
      %v2226 = vpop.f32.mrb[0].mxu0
      %v2227 = vadd.f32 %v1957, %v2226
      %v2228 = vpop.f32.mrb[0].mxu0
      %v2229 = vadd.f32 %v1953, %v2228
      %v2230 = vpop.f32.mrb[0].mxu0
      %v2231 = vadd.f32 %v1957, %v2230
      %2232 = vmatprep.mubr.bf16.mxu0 %v1899
      %2233 = vmatmul.mubr.bf16.gmra.mrb[0].mxu0 %v1898
      %v2234 = vpop.f32.mrb[0].mxu0
      %v2235 = vadd.f32 %v1953, %v2234
      %v2236 = vpop.f32.mrb[0].mxu0
      %v2237 = vadd.f32 %v1957, %v2236
      %v2238 = vpop.f32.mrb[0].mxu0
      %v2239 = vadd.f32 %v1953, %v2238
      %v2240 = vpop.f32.mrb[0].mxu0
      %v2241 = vadd.f32 %v1957, %v2240
      %2242 = vmatprep.mubr.bf16.mxu0 %v1901
      %2243 = vmatmul.mubr.bf16.gmra.mrb[0].mxu0 %v1900
      %v2244 = vpop.f32.mrb[0].mxu0
      %v2245 = vadd.f32 %v1953, %v2244
      %v2246 = vpop.f32.mrb[0].mxu0
      %v2247 = vadd.f32 %v1957, %v2246
      %v2248 = vpop.f32.mrb[0].mxu0
      %v2249 = vadd.f32 %v1953, %v2248
      %v2250 = vpop.f32.mrb[0].mxu0
      %v2251 = vadd.f32 %v1957, %v2250
      %2252 = vmatprep.mubr.bf16.mxu0 %v1903
      %2253 = vmatmul.mubr.bf16.gmra.mrb[0].mxu0 %v1902
      %v2254 = vpop.f32.mrb[0].mxu0
      %v2255 = vadd.f32 %v1953, %v2254
      %v2256 = vpop.f32.mrb[0].mxu0
      %v2257 = vadd.f32 %v1957, %v2256
      %v2258 = vpop.f32.mrb[0].mxu0
      %v2259 = vadd.f32 %v1953, %v2258
      %v2260 = vpop.f32.mrb[0].mxu0
      %v2261 = vadd.f32 %v1957, %v2260
      %2262 = vmatprep.mubr.bf16.mxu0 %v1905
      %2263 = vmatmul.mubr.bf16.gmra.mrb[0].mxu0 %v1904
      %v2264 = vpop.f32.mrb[0].mxu0
      %v2265 = vadd.f32 %v1953, %v2264
      %v2266 = vpop.f32.mrb[0].mxu0
      %v2267 = vadd.f32 %v1957, %v2266
      %v2268 = vpop.f32.mrb[0].mxu0
      %v2269 = vadd.f32 %v1953, %v2268
      %v2270 = vpop.f32.mrb[0].mxu0
      %v2271 = vadd.f32 %v1957, %v2270
      %2272 = vmatprep.mubr.bf16.mxu0 %v1907
      %2273 = vmatmul.mubr.bf16.gmra.mrb[0].mxu0 %v1906
      %v2274 = vpop.f32.mrb[0].mxu0
      %v2275 = vadd.f32 %v1953, %v2274
      %v2276 = vpop.f32.mrb[0].mxu0
      %v2277 = vadd.f32 %v1957, %v2276
      %v2278 = vpop.f32.mrb[0].mxu0
      %v2279 = vadd.f32 %v1953, %v2278
      %v2280 = vpop.f32.mrb[0].mxu0
      %v2281 = vadd.f32 %v1957, %v2280
      %2282 = vmatprep.mubr.bf16.mxu0 %v1909
      %2283 = vmatmul.mubr.bf16.gmra.mrb[0].mxu0 %v1908
      %v2284 = vpop.f32.mrb[0].mxu0
      %v2285 = vadd.f32 %v1953, %v2284
      %v2286 = vpop.f32.mrb[0].mxu0
      %v2287 = vadd.f32 %v1957, %v2286
      %v2288 = vpop.f32.mrb[0].mxu0
      %v2289 = vadd.f32 %v1953, %v2288
      %v2290 = vpop.f32.mrb[0].mxu0
      %v2291 = vadd.f32 %v1957, %v2290
      %2292 = vmatprep.mubr.bf16.mxu0 %v1911
      %2293 = vmatmul.mubr.bf16.gmra.mrb[0].mxu0 %v1910
      %v2294 = vpop.f32.mrb[0].mxu0
      %v2295 = vadd.f32 %v1953, %v2294
      %v2296 = vpop.f32.mrb[0].mxu0
      %v2297 = vadd.f32 %v1957, %v2296
      %v2298 = vpop.f32.mrb[0].mxu0
      %v2299 = vadd.f32 %v1953, %v2298
      %v2300 = vpop.f32.mrb[0].mxu0
      %v2301 = vadd.f32 %v1957, %v2300
      %2302 = vmatprep.mubr.bf16.mxu0 %v1913
      %2303 = vmatmul.mubr.bf16.gmra.mrb[0].mxu0 %v1912
      %v2304 = vpop.f32.mrb[0].mxu0
      %v2305 = vadd.f32 %v1953, %v2304
      %v2306 = vpop.f32.mrb[0].mxu0
      %v2307 = vadd.f32 %v1957, %v2306
      %v2308 = vpop.f32.mrb[0].mxu0
      %v2309 = vadd.f32 %v1953, %v2308
      %v2310 = vpop.f32.mrb[0].mxu0
      %v2311 = vadd.f32 %v1957, %v2310
      %2312 = vdwg.mxu0
      %v2313 = vmax.f32 %v2155, 0.0
      %v2314 = vmax.f32 %v2157, 0.0
      %v2315 = vmax.f32 %v2159, 0.0
      %v2316 = vmax.f32 %v2161, 0.0
      %v2317 = vmax.f32 %v2165, 0.0
      %v2318 = vmax.f32 %v2167, 0.0
      %v2319 = vmax.f32 %v2169, 0.0
      %v2320 = vmax.f32 %v2171, 0.0
      %v2321 = vmax.f32 %v2175, 0.0
      %v2322 = vmax.f32 %v2177, 0.0
      %v2323 = vmax.f32 %v2179, 0.0
      %v2324 = vmax.f32 %v2181, 0.0
      %v2325 = vmax.f32 %v2185, 0.0
      %v2326 = vmax.f32 %v2187, 0.0
      %v2327 = vmax.f32 %v2189, 0.0
      %v2328 = vmax.f32 %v2191, 0.0
      %v2329 = vmax.f32 %v2195, 0.0
      %v2330 = vmax.f32 %v2197, 0.0
      %v2331 = vmax.f32 %v2199, 0.0
      %v2332 = vmax.f32 %v2201, 0.0
      %v2333 = vmax.f32 %v2205, 0.0
      %v2334 = vmax.f32 %v2207, 0.0
      %v2335 = vmax.f32 %v2209, 0.0
      %v2336 = vmax.f32 %v2211, 0.0
      %v2337 = vmax.f32 %v2215, 0.0
      %v2338 = vmax.f32 %v2217, 0.0
      %v2339 = vmax.f32 %v2219, 0.0
      %v2340 = vmax.f32 %v2221, 0.0
      %v2341 = vmax.f32 %v2225, 0.0
      %v2342 = vmax.f32 %v2227, 0.0
      %v2343 = vmax.f32 %v2229, 0.0
      %v2344 = vmax.f32 %v2231, 0.0
      %v2345 = vmax.f32 %v2235, 0.0
      %v2346 = vmax.f32 %v2237, 0.0
      %v2347 = vmax.f32 %v2239, 0.0
      %v2348 = vmax.f32 %v2241, 0.0
      %v2349 = vmax.f32 %v2245, 0.0
      %v2350 = vmax.f32 %v2247, 0.0
      %v2351 = vmax.f32 %v2249, 0.0
      %v2352 = vmax.f32 %v2251, 0.0
      %v2353 = vmax.f32 %v2255, 0.0
      %v2354 = vmax.f32 %v2257, 0.0
      %v2355 = vmax.f32 %v2259, 0.0
      %v2356 = vmax.f32 %v2261, 0.0
      %v2357 = vmax.f32 %v2265, 0.0
      %v2358 = vmax.f32 %v2267, 0.0
      %v2359 = vmax.f32 %v2269, 0.0
      %v2360 = vmax.f32 %v2271, 0.0
      %v2361 = vmax.f32 %v2275, 0.0
      %v2362 = vmax.f32 %v2277, 0.0
      %v2363 = vmax.f32 %v2279, 0.0
      %v2364 = vmax.f32 %v2281, 0.0
      %v2365 = vmax.f32 %v2285, 0.0
      %v2366 = vmax.f32 %v2287, 0.0
      %v2367 = vmax.f32 %v2289, 0.0
      %v2368 = vmax.f32 %v2291, 0.0
      %v2369 = vmax.f32 %v2295, 0.0
      %v2370 = vmax.f32 %v2297, 0.0
      %v2371 = vmax.f32 %v2299, 0.0
      %v2372 = vmax.f32 %v2301, 0.0
      %v2373 = vmax.f32 %v2305, 0.0
      %v2374 = vmax.f32 %v2307, 0.0
      %v2375 = vmax.f32 %v2309, 0.0
      %v2376 = vmax.f32 %v2311, 0.0
      %v2377 = vpack.c.bf16 %v2315, %v2313
      %v2378 = vpack.c.bf16 %v2316, %v2314
      %v2379 = vpack.c.bf16 %v2319, %v2317
      %v2380 = vpack.c.bf16 %v2320, %v2318
      %v2381 = vpack.c.bf16 %v2323, %v2321
      %v2382 = vpack.c.bf16 %v2324, %v2322
      %v2383 = vpack.c.bf16 %v2327, %v2325
      %v2384 = vpack.c.bf16 %v2328, %v2326
      %v2385 = vpack.c.bf16 %v2331, %v2329
      %v2386 = vpack.c.bf16 %v2332, %v2330
      %v2387 = vpack.c.bf16 %v2335, %v2333
      %v2388 = vpack.c.bf16 %v2336, %v2334
      %v2389 = vpack.c.bf16 %v2339, %v2337
      %v2390 = vpack.c.bf16 %v2340, %v2338
      %v2391 = vpack.c.bf16 %v2343, %v2341
      %v2392 = vpack.c.bf16 %v2344, %v2342
      %v2393 = vpack.c.bf16 %v2347, %v2345
      %v2394 = vpack.c.bf16 %v2348, %v2346
      %v2395 = vpack.c.bf16 %v2351, %v2349
      %v2396 = vpack.c.bf16 %v2352, %v2350
      %v2397 = vpack.c.bf16 %v2355, %v2353
      %v2398 = vpack.c.bf16 %v2356, %v2354
      %v2399 = vpack.c.bf16 %v2359, %v2357
      %v2400 = vpack.c.bf16 %v2360, %v2358
      %v2401 = vpack.c.bf16 %v2363, %v2361
      %v2402 = vpack.c.bf16 %v2364, %v2362
      %v2403 = vpack.c.bf16 %v2367, %v2365
      %v2404 = vpack.c.bf16 %v2368, %v2366
      %v2405 = vpack.c.bf16 %v2371, %v2369
      %v2406 = vpack.c.bf16 %v2372, %v2370
      %v2407 = vpack.c.bf16 %v2375, %v2373
      %v2408 = vpack.c.bf16 %v2376, %v2374
      %s2409 = scalar_lea.vmem %s4, 768
      %v2410 = vld [vmem:[%s2409] sm:$0xff]
      %v2411 = vld [vmem:[%s2409 + $0x8] sm:$0xff]
      %v2412 = vld [vmem:[%s2409 + $0x10] sm:$0xff]
      %v2413 = vld [vmem:[%s2409 + $0x18] sm:$0xff]
      %v2414 = vld [vmem:[%s2409 + $0x20] sm:$0xff]
      %v2415 = vld [vmem:[%s2409 + $0x28] sm:$0xff]
      %v2416 = vld [vmem:[%s2409 + $0x30] sm:$0xff]
      %v2417 = vld [vmem:[%s2409 + $0x38] sm:$0xff]
      %v2418 = vld [vmem:[%s2409 + $0x40] sm:$0xff]
      %v2419 = vld [vmem:[%s2409 + $0x48] sm:$0xff]
      %v2420 = vld [vmem:[%s2409 + $0x50] sm:$0xff]
      %v2421 = vld [vmem:[%s2409 + $0x58] sm:$0xff]
      %v2422 = vld [vmem:[%s2409 + $0x60] sm:$0xff]
      %v2423 = vld [vmem:[%s2409 + $0x68] sm:$0xff]
      %v2424 = vld [vmem:[%s2409 + $0x70] sm:$0xff]
      %v2425 = vld [vmem:[%s2409 + $0x78] sm:$0xff]
      %v2426 = vld [vmem:[%s2409 + $0x80] sm:$0xff]
      %v2427 = vld [vmem:[%s2409 + $0x88] sm:$0xff]
      %v2428 = vld [vmem:[%s2409 + $0x90] sm:$0xff]
      %v2429 = vld [vmem:[%s2409 + $0x98] sm:$0xff]
      %v2430 = vld [vmem:[%s2409 + $0xa0] sm:$0xff]
      %v2431 = vld [vmem:[%s2409 + $0xa8] sm:$0xff]
      %v2432 = vld [vmem:[%s2409 + $0xb0] sm:$0xff]
      %v2433 = vld [vmem:[%s2409 + $0xb8] sm:$0xff]
      %v2434 = vld [vmem:[%s2409 + $0xc0] sm:$0xff]
      %v2435 = vld [vmem:[%s2409 + $0xc8] sm:$0xff]
      %v2436 = vld [vmem:[%s2409 + $0xd0] sm:$0xff]
      %v2437 = vld [vmem:[%s2409 + $0xd8] sm:$0xff]
      %v2438 = vld [vmem:[%s2409 + $0xe0] sm:$0xff]
      %v2439 = vld [vmem:[%s2409 + $0xe8] sm:$0xff]
      %v2440 = vld [vmem:[%s2409 + $0xf0] sm:$0xff]
      %v2441 = vld [vmem:[%s2409 + $0xf8] sm:$0xff]
      %s2442 = scalar_lea.vmem %s5, 6
      %v2443 = vld [vmem:[%s2442] sm:$0x3]
      %v2445 = vlaneseq
      %v2446 = vshrl.u32 %v2445, 7
      %v2447 = vsub.s32 0, %v2446
      %v2448 = vrot.slane %v2443, %v2447
      %v2449 = vlaneseq
      %v2450 = vshrl.u32 %v2449, 7
      %v2451 = vsub.s32 1, %v2450
      %v2452 = vrot.slane %v2443, %v2451
      %v2487 = vunpack.c.l.b16 %v2410
      %v2488 = vunpack.c.h.b16 %v2410
      %v2489 = vunpack.c.l.b16 %v2411
      %v2490 = vunpack.c.h.b16 %v2411
      %v2491 = vunpack.c.l.b16 %v2412
      %v2492 = vunpack.c.h.b16 %v2412
      %v2493 = vunpack.c.l.b16 %v2413
      %v2494 = vunpack.c.h.b16 %v2413
      %v2495 = vunpack.c.l.b16 %v2414
      %v2496 = vunpack.c.h.b16 %v2414
      %v2497 = vunpack.c.l.b16 %v2415
      %v2498 = vunpack.c.h.b16 %v2415
      %v2499 = vunpack.c.l.b16 %v2416
      %v2500 = vunpack.c.h.b16 %v2416
      %v2501 = vunpack.c.l.b16 %v2417
      %v2502 = vunpack.c.h.b16 %v2417
      %v2503 = vunpack.c.l.b16 %v2418
      %v2504 = vunpack.c.h.b16 %v2418
      %v2505 = vunpack.c.l.b16 %v2419
      %v2506 = vunpack.c.h.b16 %v2419
      %v2507 = vunpack.c.l.b16 %v2420
      %v2508 = vunpack.c.h.b16 %v2420
      %v2509 = vunpack.c.l.b16 %v2421
      %v2510 = vunpack.c.h.b16 %v2421
      %v2511 = vunpack.c.l.b16 %v2422
      %v2512 = vunpack.c.h.b16 %v2422
      %v2513 = vunpack.c.l.b16 %v2423
      %v2514 = vunpack.c.h.b16 %v2423
      %v2515 = vunpack.c.l.b16 %v2424
      %v2516 = vunpack.c.h.b16 %v2424
      %v2517 = vunpack.c.l.b16 %v2425
      %v2518 = vunpack.c.h.b16 %v2425
      %v2519 = vunpack.c.l.b16 %v2426
      %v2520 = vunpack.c.h.b16 %v2426
      %v2521 = vunpack.c.l.b16 %v2427
      %v2522 = vunpack.c.h.b16 %v2427
      %v2523 = vunpack.c.l.b16 %v2428
      %v2524 = vunpack.c.h.b16 %v2428
      %v2525 = vunpack.c.l.b16 %v2429
      %v2526 = vunpack.c.h.b16 %v2429
      %v2527 = vunpack.c.l.b16 %v2430
      %v2528 = vunpack.c.h.b16 %v2430
      %v2529 = vunpack.c.l.b16 %v2431
      %v2530 = vunpack.c.h.b16 %v2431
      %v2531 = vunpack.c.l.b16 %v2432
      %v2532 = vunpack.c.h.b16 %v2432
      %v2533 = vunpack.c.l.b16 %v2433
      %v2534 = vunpack.c.h.b16 %v2433
      %v2535 = vunpack.c.l.b16 %v2434
      %v2536 = vunpack.c.h.b16 %v2434
      %v2537 = vunpack.c.l.b16 %v2435
      %v2538 = vunpack.c.h.b16 %v2435
      %v2539 = vunpack.c.l.b16 %v2436
      %v2540 = vunpack.c.h.b16 %v2436
      %v2541 = vunpack.c.l.b16 %v2437
      %v2542 = vunpack.c.h.b16 %v2437
      %v2543 = vunpack.c.l.b16 %v2438
      %v2544 = vunpack.c.h.b16 %v2438
      %v2545 = vunpack.c.l.b16 %v2439
      %v2546 = vunpack.c.h.b16 %v2439
      %v2547 = vunpack.c.l.b16 %v2440
      %v2548 = vunpack.c.h.b16 %v2440
      %v2549 = vunpack.c.l.b16 %v2441
      %v2550 = vunpack.c.h.b16 %v2441
      %v2551 = vpack.c.b16 %v2489, %v2487
      %v2552 = vpack.c.b16 %v2490, %v2488
      %v2553 = vpack.c.b16 %v2493, %v2491
      %v2554 = vpack.c.b16 %v2494, %v2492
      %v2555 = vpack.c.b16 %v2497, %v2495
      %v2556 = vpack.c.b16 %v2498, %v2496
      %v2557 = vpack.c.b16 %v2501, %v2499
      %v2558 = vpack.c.b16 %v2502, %v2500
      %v2559 = vpack.c.b16 %v2505, %v2503
      %v2560 = vpack.c.b16 %v2506, %v2504
      %v2561 = vpack.c.b16 %v2509, %v2507
      %v2562 = vpack.c.b16 %v2510, %v2508
      %v2563 = vpack.c.b16 %v2513, %v2511
      %v2564 = vpack.c.b16 %v2514, %v2512
      %v2565 = vpack.c.b16 %v2517, %v2515
      %v2566 = vpack.c.b16 %v2518, %v2516
      %v2567 = vpack.c.b16 %v2521, %v2519
      %v2568 = vpack.c.b16 %v2522, %v2520
      %v2569 = vpack.c.b16 %v2525, %v2523
      %v2570 = vpack.c.b16 %v2526, %v2524
      %v2571 = vpack.c.b16 %v2529, %v2527
      %v2572 = vpack.c.b16 %v2530, %v2528
      %v2573 = vpack.c.b16 %v2533, %v2531
      %v2574 = vpack.c.b16 %v2534, %v2532
      %v2575 = vpack.c.b16 %v2537, %v2535
      %v2576 = vpack.c.b16 %v2538, %v2536
      %v2577 = vpack.c.b16 %v2541, %v2539
      %v2578 = vpack.c.b16 %v2542, %v2540
      %v2579 = vpack.c.b16 %v2545, %v2543
      %v2580 = vpack.c.b16 %v2546, %v2544
      %v2581 = vpack.c.b16 %v2549, %v2547
      %v2582 = vpack.c.b16 %v2550, %v2548
      %2615 = vmatprep.subr.bf16.mxu0 %v2552
      %2616 = vmatpush1.bf16.msra.mxu0 %v2551
      %2617 = vmatprep.subr.bf16.mxu0 %v2554
      %2618 = vmatpush1.bf16.msra.mxu0 %v2553
      %2619 = vmatprep.subr.bf16.mxu0 %v2556
      %2620 = vmatpush1.bf16.msra.mxu0 %v2555
      %2621 = vmatprep.subr.bf16.mxu0 %v2558
      %2622 = vmatpush1.bf16.msra.mxu0 %v2557
      %2623 = vmatprep.subr.bf16.mxu0 %v2560
      %2624 = vmatpush1.bf16.msra.mxu0 %v2559
      %2625 = vmatprep.subr.bf16.mxu0 %v2562
      %2626 = vmatpush1.bf16.msra.mxu0 %v2561
      %2627 = vmatprep.subr.bf16.mxu0 %v2564
      %2628 = vmatpush1.bf16.msra.mxu0 %v2563
      %2629 = vmatprep.subr.bf16.mxu0 %v2566
      %2630 = vmatpush1.bf16.msra.mxu0 %v2565
      %2631 = vmatprep.subr.bf16.mxu0 %v2568
      %2632 = vmatpush1.bf16.msra.mxu0 %v2567
      %2633 = vmatprep.subr.bf16.mxu0 %v2570
      %2634 = vmatpush1.bf16.msra.mxu0 %v2569
      %2635 = vmatprep.subr.bf16.mxu0 %v2572
      %2636 = vmatpush1.bf16.msra.mxu0 %v2571
      %2637 = vmatprep.subr.bf16.mxu0 %v2574
      %2638 = vmatpush1.bf16.msra.mxu0 %v2573
      %2639 = vmatprep.subr.bf16.mxu0 %v2576
      %2640 = vmatpush1.bf16.msra.mxu0 %v2575
      %2641 = vmatprep.subr.bf16.mxu0 %v2578
      %2642 = vmatpush1.bf16.msra.mxu0 %v2577
      %2643 = vmatprep.subr.bf16.mxu0 %v2580
      %2644 = vmatpush1.bf16.msra.mxu0 %v2579
      %2645 = vmatprep.subr.bf16.mxu0 %v2582
      %2646 = vmatpush1.bf16.msra.mxu0 %v2581
      %2647 = vmatprep.mubr.bf16.mxu0 %v2378
      %2648 = vmatmul.mubr.bf16.gmra.mrb[0].mxu0 %v2377
      %v2649 = vpop.f32.mrb[0].mxu0
      %v2650 = vadd.f32 %v2448, %v2649
      %v2651 = vpop.f32.mrb[0].mxu0
      %v2652 = vadd.f32 %v2452, %v2651
      %v2653 = vpop.f32.mrb[0].mxu0
      %v2654 = vadd.f32 %v2448, %v2653
      %v2655 = vpop.f32.mrb[0].mxu0
      %v2656 = vadd.f32 %v2452, %v2655
      %2657 = vmatprep.mubr.bf16.mxu0 %v2380
      %2658 = vmatmul.mubr.bf16.gmra.mrb[0].mxu0 %v2379
      %v2659 = vpop.f32.mrb[0].mxu0
      %v2660 = vadd.f32 %v2448, %v2659
      %v2661 = vpop.f32.mrb[0].mxu0
      %v2662 = vadd.f32 %v2452, %v2661
      %v2663 = vpop.f32.mrb[0].mxu0
      %v2664 = vadd.f32 %v2448, %v2663
      %v2665 = vpop.f32.mrb[0].mxu0
      %v2666 = vadd.f32 %v2452, %v2665
      %2667 = vmatprep.mubr.bf16.mxu0 %v2382
      %2668 = vmatmul.mubr.bf16.gmra.mrb[0].mxu0 %v2381
      %v2669 = vpop.f32.mrb[0].mxu0
      %v2670 = vadd.f32 %v2448, %v2669
      %v2671 = vpop.f32.mrb[0].mxu0
      %v2672 = vadd.f32 %v2452, %v2671
      %v2673 = vpop.f32.mrb[0].mxu0
      %v2674 = vadd.f32 %v2448, %v2673
      %v2675 = vpop.f32.mrb[0].mxu0
      %v2676 = vadd.f32 %v2452, %v2675
      %2677 = vmatprep.mubr.bf16.mxu0 %v2384
      %2678 = vmatmul.mubr.bf16.gmra.mrb[0].mxu0 %v2383
      %v2679 = vpop.f32.mrb[0].mxu0
      %v2680 = vadd.f32 %v2448, %v2679
      %v2681 = vpop.f32.mrb[0].mxu0
      %v2682 = vadd.f32 %v2452, %v2681
      %v2683 = vpop.f32.mrb[0].mxu0
      %v2684 = vadd.f32 %v2448, %v2683
      %v2685 = vpop.f32.mrb[0].mxu0
      %v2686 = vadd.f32 %v2452, %v2685
      %2687 = vmatprep.mubr.bf16.mxu0 %v2386
      %2688 = vmatmul.mubr.bf16.gmra.mrb[0].mxu0 %v2385
      %v2689 = vpop.f32.mrb[0].mxu0
      %v2690 = vadd.f32 %v2448, %v2689
      %v2691 = vpop.f32.mrb[0].mxu0
      %v2692 = vadd.f32 %v2452, %v2691
      %v2693 = vpop.f32.mrb[0].mxu0
      %v2694 = vadd.f32 %v2448, %v2693
      %v2695 = vpop.f32.mrb[0].mxu0
      %v2696 = vadd.f32 %v2452, %v2695
      %2697 = vmatprep.mubr.bf16.mxu0 %v2388
      %2698 = vmatmul.mubr.bf16.gmra.mrb[0].mxu0 %v2387
      %v2699 = vpop.f32.mrb[0].mxu0
      %v2700 = vadd.f32 %v2448, %v2699
      %v2701 = vpop.f32.mrb[0].mxu0
      %v2702 = vadd.f32 %v2452, %v2701
      %v2703 = vpop.f32.mrb[0].mxu0
      %v2704 = vadd.f32 %v2448, %v2703
      %v2705 = vpop.f32.mrb[0].mxu0
      %v2706 = vadd.f32 %v2452, %v2705
      %2707 = vmatprep.mubr.bf16.mxu0 %v2390
      %2708 = vmatmul.mubr.bf16.gmra.mrb[0].mxu0 %v2389
      %v2709 = vpop.f32.mrb[0].mxu0
      %v2710 = vadd.f32 %v2448, %v2709
      %v2711 = vpop.f32.mrb[0].mxu0
      %v2712 = vadd.f32 %v2452, %v2711
      %v2713 = vpop.f32.mrb[0].mxu0
      %v2714 = vadd.f32 %v2448, %v2713
      %v2715 = vpop.f32.mrb[0].mxu0
      %v2716 = vadd.f32 %v2452, %v2715
      %2717 = vmatprep.mubr.bf16.mxu0 %v2392
      %2718 = vmatmul.mubr.bf16.gmra.mrb[0].mxu0 %v2391
      %v2719 = vpop.f32.mrb[0].mxu0
      %v2720 = vadd.f32 %v2448, %v2719
      %v2721 = vpop.f32.mrb[0].mxu0
      %v2722 = vadd.f32 %v2452, %v2721
      %v2723 = vpop.f32.mrb[0].mxu0
      %v2724 = vadd.f32 %v2448, %v2723
      %v2725 = vpop.f32.mrb[0].mxu0
      %v2726 = vadd.f32 %v2452, %v2725
      %2727 = vmatprep.mubr.bf16.mxu0 %v2394
      %2728 = vmatmul.mubr.bf16.gmra.mrb[0].mxu0 %v2393
      %v2729 = vpop.f32.mrb[0].mxu0
      %v2730 = vadd.f32 %v2448, %v2729
      %v2731 = vpop.f32.mrb[0].mxu0
      %v2732 = vadd.f32 %v2452, %v2731
      %v2733 = vpop.f32.mrb[0].mxu0
      %v2734 = vadd.f32 %v2448, %v2733
      %v2735 = vpop.f32.mrb[0].mxu0
      %v2736 = vadd.f32 %v2452, %v2735
      %2737 = vmatprep.mubr.bf16.mxu0 %v2396
      %2738 = vmatmul.mubr.bf16.gmra.mrb[0].mxu0 %v2395
      %v2739 = vpop.f32.mrb[0].mxu0
      %v2740 = vadd.f32 %v2448, %v2739
      %v2741 = vpop.f32.mrb[0].mxu0
      %v2742 = vadd.f32 %v2452, %v2741
      %v2743 = vpop.f32.mrb[0].mxu0
      %v2744 = vadd.f32 %v2448, %v2743
      %v2745 = vpop.f32.mrb[0].mxu0
      %v2746 = vadd.f32 %v2452, %v2745
      %2747 = vmatprep.mubr.bf16.mxu0 %v2398
      %2748 = vmatmul.mubr.bf16.gmra.mrb[0].mxu0 %v2397
      %v2749 = vpop.f32.mrb[0].mxu0
      %v2750 = vadd.f32 %v2448, %v2749
      %v2751 = vpop.f32.mrb[0].mxu0
      %v2752 = vadd.f32 %v2452, %v2751
      %v2753 = vpop.f32.mrb[0].mxu0
      %v2754 = vadd.f32 %v2448, %v2753
      %v2755 = vpop.f32.mrb[0].mxu0
      %v2756 = vadd.f32 %v2452, %v2755
      %2757 = vmatprep.mubr.bf16.mxu0 %v2400
      %2758 = vmatmul.mubr.bf16.gmra.mrb[0].mxu0 %v2399
      %v2759 = vpop.f32.mrb[0].mxu0
      %v2760 = vadd.f32 %v2448, %v2759
      %v2761 = vpop.f32.mrb[0].mxu0
      %v2762 = vadd.f32 %v2452, %v2761
      %v2763 = vpop.f32.mrb[0].mxu0
      %v2764 = vadd.f32 %v2448, %v2763
      %v2765 = vpop.f32.mrb[0].mxu0
      %v2766 = vadd.f32 %v2452, %v2765
      %2767 = vmatprep.mubr.bf16.mxu0 %v2402
      %2768 = vmatmul.mubr.bf16.gmra.mrb[0].mxu0 %v2401
      %v2769 = vpop.f32.mrb[0].mxu0
      %v2770 = vadd.f32 %v2448, %v2769
      %v2771 = vpop.f32.mrb[0].mxu0
      %v2772 = vadd.f32 %v2452, %v2771
      %v2773 = vpop.f32.mrb[0].mxu0
      %v2774 = vadd.f32 %v2448, %v2773
      %v2775 = vpop.f32.mrb[0].mxu0
      %v2776 = vadd.f32 %v2452, %v2775
      %2777 = vmatprep.mubr.bf16.mxu0 %v2404
      %2778 = vmatmul.mubr.bf16.gmra.mrb[0].mxu0 %v2403
      %v2779 = vpop.f32.mrb[0].mxu0
      %v2780 = vadd.f32 %v2448, %v2779
      %v2781 = vpop.f32.mrb[0].mxu0
      %v2782 = vadd.f32 %v2452, %v2781
      %v2783 = vpop.f32.mrb[0].mxu0
      %v2784 = vadd.f32 %v2448, %v2783
      %v2785 = vpop.f32.mrb[0].mxu0
      %v2786 = vadd.f32 %v2452, %v2785
      %2787 = vmatprep.mubr.bf16.mxu0 %v2406
      %2788 = vmatmul.mubr.bf16.gmra.mrb[0].mxu0 %v2405
      %v2789 = vpop.f32.mrb[0].mxu0
      %v2790 = vadd.f32 %v2448, %v2789
      %v2791 = vpop.f32.mrb[0].mxu0
      %v2792 = vadd.f32 %v2452, %v2791
      %v2793 = vpop.f32.mrb[0].mxu0
      %v2794 = vadd.f32 %v2448, %v2793
      %v2795 = vpop.f32.mrb[0].mxu0
      %v2796 = vadd.f32 %v2452, %v2795
      %2797 = vmatprep.mubr.bf16.mxu0 %v2408
      %2798 = vmatmul.mubr.bf16.gmra.mrb[0].mxu0 %v2407
      %v2799 = vpop.f32.mrb[0].mxu0
      %v2800 = vadd.f32 %v2448, %v2799
      %v2801 = vpop.f32.mrb[0].mxu0
      %v2802 = vadd.f32 %v2452, %v2801
      %v2803 = vpop.f32.mrb[0].mxu0
      %v2804 = vadd.f32 %v2448, %v2803
      %v2805 = vpop.f32.mrb[0].mxu0
      %v2806 = vadd.f32 %v2452, %v2805
      %2807 = vdwg.mxu0
      %v2808 = vmax.f32 %v2650, 0.0
      %v2809 = vmax.f32 %v2652, 0.0
      %v2810 = vmax.f32 %v2654, 0.0
      %v2811 = vmax.f32 %v2656, 0.0
      %v2812 = vmax.f32 %v2660, 0.0
      %v2813 = vmax.f32 %v2662, 0.0
      %v2814 = vmax.f32 %v2664, 0.0
      %v2815 = vmax.f32 %v2666, 0.0
      %v2816 = vmax.f32 %v2670, 0.0
      %v2817 = vmax.f32 %v2672, 0.0
      %v2818 = vmax.f32 %v2674, 0.0
      %v2819 = vmax.f32 %v2676, 0.0
      %v2820 = vmax.f32 %v2680, 0.0
      %v2821 = vmax.f32 %v2682, 0.0
      %v2822 = vmax.f32 %v2684, 0.0
      %v2823 = vmax.f32 %v2686, 0.0
      %v2824 = vmax.f32 %v2690, 0.0
      %v2825 = vmax.f32 %v2692, 0.0
      %v2826 = vmax.f32 %v2694, 0.0
      %v2827 = vmax.f32 %v2696, 0.0
      %v2828 = vmax.f32 %v2700, 0.0
      %v2829 = vmax.f32 %v2702, 0.0
      %v2830 = vmax.f32 %v2704, 0.0
      %v2831 = vmax.f32 %v2706, 0.0
      %v2832 = vmax.f32 %v2710, 0.0
      %v2833 = vmax.f32 %v2712, 0.0
      %v2834 = vmax.f32 %v2714, 0.0
      %v2835 = vmax.f32 %v2716, 0.0
      %v2836 = vmax.f32 %v2720, 0.0
      %v2837 = vmax.f32 %v2722, 0.0
      %v2838 = vmax.f32 %v2724, 0.0
      %v2839 = vmax.f32 %v2726, 0.0
      %v2840 = vmax.f32 %v2730, 0.0
      %v2841 = vmax.f32 %v2732, 0.0
      %v2842 = vmax.f32 %v2734, 0.0
      %v2843 = vmax.f32 %v2736, 0.0
      %v2844 = vmax.f32 %v2740, 0.0
      %v2845 = vmax.f32 %v2742, 0.0
      %v2846 = vmax.f32 %v2744, 0.0
      %v2847 = vmax.f32 %v2746, 0.0
      %v2848 = vmax.f32 %v2750, 0.0
      %v2849 = vmax.f32 %v2752, 0.0
      %v2850 = vmax.f32 %v2754, 0.0
      %v2851 = vmax.f32 %v2756, 0.0
      %v2852 = vmax.f32 %v2760, 0.0
      %v2853 = vmax.f32 %v2762, 0.0
      %v2854 = vmax.f32 %v2764, 0.0
      %v2855 = vmax.f32 %v2766, 0.0
      %v2856 = vmax.f32 %v2770, 0.0
      %v2857 = vmax.f32 %v2772, 0.0
      %v2858 = vmax.f32 %v2774, 0.0
      %v2859 = vmax.f32 %v2776, 0.0
      %v2860 = vmax.f32 %v2780, 0.0
      %v2861 = vmax.f32 %v2782, 0.0
      %v2862 = vmax.f32 %v2784, 0.0
      %v2863 = vmax.f32 %v2786, 0.0
      %v2864 = vmax.f32 %v2790, 0.0
      %v2865 = vmax.f32 %v2792, 0.0
      %v2866 = vmax.f32 %v2794, 0.0
      %v2867 = vmax.f32 %v2796, 0.0
      %v2868 = vmax.f32 %v2800, 0.0
      %v2869 = vmax.f32 %v2802, 0.0
      %v2870 = vmax.f32 %v2804, 0.0
      %v2871 = vmax.f32 %v2806, 0.0
      %v2872 = vpack.c.bf16 %v2810, %v2808
      %v2873 = vpack.c.bf16 %v2811, %v2809
      %v2874 = vpack.c.bf16 %v2814, %v2812
      %v2875 = vpack.c.bf16 %v2815, %v2813
      %v2876 = vpack.c.bf16 %v2818, %v2816
      %v2877 = vpack.c.bf16 %v2819, %v2817
      %v2878 = vpack.c.bf16 %v2822, %v2820
      %v2879 = vpack.c.bf16 %v2823, %v2821
      %v2880 = vpack.c.bf16 %v2826, %v2824
      %v2881 = vpack.c.bf16 %v2827, %v2825
      %v2882 = vpack.c.bf16 %v2830, %v2828
      %v2883 = vpack.c.bf16 %v2831, %v2829
      %v2884 = vpack.c.bf16 %v2834, %v2832
      %v2885 = vpack.c.bf16 %v2835, %v2833
      %v2886 = vpack.c.bf16 %v2838, %v2836
      %v2887 = vpack.c.bf16 %v2839, %v2837
      %v2888 = vpack.c.bf16 %v2842, %v2840
      %v2889 = vpack.c.bf16 %v2843, %v2841
      %v2890 = vpack.c.bf16 %v2846, %v2844
      %v2891 = vpack.c.bf16 %v2847, %v2845
      %v2892 = vpack.c.bf16 %v2850, %v2848
      %v2893 = vpack.c.bf16 %v2851, %v2849
      %v2894 = vpack.c.bf16 %v2854, %v2852
      %v2895 = vpack.c.bf16 %v2855, %v2853
      %v2896 = vpack.c.bf16 %v2858, %v2856
      %v2897 = vpack.c.bf16 %v2859, %v2857
      %v2898 = vpack.c.bf16 %v2862, %v2860
      %v2899 = vpack.c.bf16 %v2863, %v2861
      %v2900 = vpack.c.bf16 %v2866, %v2864
      %v2901 = vpack.c.bf16 %v2867, %v2865
      %v2902 = vpack.c.bf16 %v2870, %v2868
      %v2903 = vpack.c.bf16 %v2871, %v2869
      %s2904 = scalar_lea.vmem %s4, 1024
      %v2905 = vld [vmem:[%s2904] sm:$0xff]
      %v2906 = vld [vmem:[%s2904 + $0x8] sm:$0xff]
      %v2907 = vld [vmem:[%s2904 + $0x10] sm:$0xff]
      %v2908 = vld [vmem:[%s2904 + $0x18] sm:$0xff]
      %v2909 = vld [vmem:[%s2904 + $0x20] sm:$0xff]
      %v2910 = vld [vmem:[%s2904 + $0x28] sm:$0xff]
      %v2911 = vld [vmem:[%s2904 + $0x30] sm:$0xff]
      %v2912 = vld [vmem:[%s2904 + $0x38] sm:$0xff]
      %v2913 = vld [vmem:[%s2904 + $0x40] sm:$0xff]
      %v2914 = vld [vmem:[%s2904 + $0x48] sm:$0xff]
      %v2915 = vld [vmem:[%s2904 + $0x50] sm:$0xff]
      %v2916 = vld [vmem:[%s2904 + $0x58] sm:$0xff]
      %v2917 = vld [vmem:[%s2904 + $0x60] sm:$0xff]
      %v2918 = vld [vmem:[%s2904 + $0x68] sm:$0xff]
      %v2919 = vld [vmem:[%s2904 + $0x70] sm:$0xff]
      %v2920 = vld [vmem:[%s2904 + $0x78] sm:$0xff]
      %v2921 = vld [vmem:[%s2904 + $0x80] sm:$0xff]
      %v2922 = vld [vmem:[%s2904 + $0x88] sm:$0xff]
      %v2923 = vld [vmem:[%s2904 + $0x90] sm:$0xff]
      %v2924 = vld [vmem:[%s2904 + $0x98] sm:$0xff]
      %v2925 = vld [vmem:[%s2904 + $0xa0] sm:$0xff]
      %v2926 = vld [vmem:[%s2904 + $0xa8] sm:$0xff]
      %v2927 = vld [vmem:[%s2904 + $0xb0] sm:$0xff]
      %v2928 = vld [vmem:[%s2904 + $0xb8] sm:$0xff]
      %v2929 = vld [vmem:[%s2904 + $0xc0] sm:$0xff]
      %v2930 = vld [vmem:[%s2904 + $0xc8] sm:$0xff]
      %v2931 = vld [vmem:[%s2904 + $0xd0] sm:$0xff]
      %v2932 = vld [vmem:[%s2904 + $0xd8] sm:$0xff]
      %v2933 = vld [vmem:[%s2904 + $0xe0] sm:$0xff]
      %v2934 = vld [vmem:[%s2904 + $0xe8] sm:$0xff]
      %v2935 = vld [vmem:[%s2904 + $0xf0] sm:$0xff]
      %v2936 = vld [vmem:[%s2904 + $0xf8] sm:$0xff]
      %s2937 = scalar_lea.vmem %s5, 8
      %v2938 = vld [vmem:[%s2937] sm:$0x3]
      %v2940 = vlaneseq
      %v2941 = vshrl.u32 %v2940, 7
      %v2942 = vsub.s32 0, %v2941
      %v2943 = vrot.slane %v2938, %v2942
      %v2944 = vlaneseq
      %v2945 = vshrl.u32 %v2944, 7
      %v2946 = vsub.s32 1, %v2945
      %v2947 = vrot.slane %v2938, %v2946
      %v2982 = vunpack.c.l.b16 %v2905
      %v2983 = vunpack.c.h.b16 %v2905
      %v2984 = vunpack.c.l.b16 %v2906
      %v2985 = vunpack.c.h.b16 %v2906
      %v2986 = vunpack.c.l.b16 %v2907
      %v2987 = vunpack.c.h.b16 %v2907
      %v2988 = vunpack.c.l.b16 %v2908
      %v2989 = vunpack.c.h.b16 %v2908
      %v2990 = vunpack.c.l.b16 %v2909
      %v2991 = vunpack.c.h.b16 %v2909
      %v2992 = vunpack.c.l.b16 %v2910
      %v2993 = vunpack.c.h.b16 %v2910
      %v2994 = vunpack.c.l.b16 %v2911
      %v2995 = vunpack.c.h.b16 %v2911
      %v2996 = vunpack.c.l.b16 %v2912
      %v2997 = vunpack.c.h.b16 %v2912
      %v2998 = vunpack.c.l.b16 %v2913
      %v2999 = vunpack.c.h.b16 %v2913
      %v3000 = vunpack.c.l.b16 %v2914
      %v3001 = vunpack.c.h.b16 %v2914
      %v3002 = vunpack.c.l.b16 %v2915
      %v3003 = vunpack.c.h.b16 %v2915
      %v3004 = vunpack.c.l.b16 %v2916
      %v3005 = vunpack.c.h.b16 %v2916
      %v3006 = vunpack.c.l.b16 %v2917
      %v3007 = vunpack.c.h.b16 %v2917
      %v3008 = vunpack.c.l.b16 %v2918
      %v3009 = vunpack.c.h.b16 %v2918
      %v3010 = vunpack.c.l.b16 %v2919
      %v3011 = vunpack.c.h.b16 %v2919
      %v3012 = vunpack.c.l.b16 %v2920
      %v3013 = vunpack.c.h.b16 %v2920
      %v3014 = vunpack.c.l.b16 %v2921
      %v3015 = vunpack.c.h.b16 %v2921
      %v3016 = vunpack.c.l.b16 %v2922
      %v3017 = vunpack.c.h.b16 %v2922
      %v3018 = vunpack.c.l.b16 %v2923
      %v3019 = vunpack.c.h.b16 %v2923
      %v3020 = vunpack.c.l.b16 %v2924
      %v3021 = vunpack.c.h.b16 %v2924
      %v3022 = vunpack.c.l.b16 %v2925
      %v3023 = vunpack.c.h.b16 %v2925
      %v3024 = vunpack.c.l.b16 %v2926
      %v3025 = vunpack.c.h.b16 %v2926
      %v3026 = vunpack.c.l.b16 %v2927
      %v3027 = vunpack.c.h.b16 %v2927
      %v3028 = vunpack.c.l.b16 %v2928
      %v3029 = vunpack.c.h.b16 %v2928
      %v3030 = vunpack.c.l.b16 %v2929
      %v3031 = vunpack.c.h.b16 %v2929
      %v3032 = vunpack.c.l.b16 %v2930
      %v3033 = vunpack.c.h.b16 %v2930
      %v3034 = vunpack.c.l.b16 %v2931
      %v3035 = vunpack.c.h.b16 %v2931
      %v3036 = vunpack.c.l.b16 %v2932
      %v3037 = vunpack.c.h.b16 %v2932
      %v3038 = vunpack.c.l.b16 %v2933
      %v3039 = vunpack.c.h.b16 %v2933
      %v3040 = vunpack.c.l.b16 %v2934
      %v3041 = vunpack.c.h.b16 %v2934
      %v3042 = vunpack.c.l.b16 %v2935
      %v3043 = vunpack.c.h.b16 %v2935
      %v3044 = vunpack.c.l.b16 %v2936
      %v3045 = vunpack.c.h.b16 %v2936
      %v3046 = vpack.c.b16 %v2984, %v2982
      %v3047 = vpack.c.b16 %v2985, %v2983
      %v3048 = vpack.c.b16 %v2988, %v2986
      %v3049 = vpack.c.b16 %v2989, %v2987
      %v3050 = vpack.c.b16 %v2992, %v2990
      %v3051 = vpack.c.b16 %v2993, %v2991
      %v3052 = vpack.c.b16 %v2996, %v2994
      %v3053 = vpack.c.b16 %v2997, %v2995
      %v3054 = vpack.c.b16 %v3000, %v2998
      %v3055 = vpack.c.b16 %v3001, %v2999
      %v3056 = vpack.c.b16 %v3004, %v3002
      %v3057 = vpack.c.b16 %v3005, %v3003
      %v3058 = vpack.c.b16 %v3008, %v3006
      %v3059 = vpack.c.b16 %v3009, %v3007
      %v3060 = vpack.c.b16 %v3012, %v3010
      %v3061 = vpack.c.b16 %v3013, %v3011
      %v3062 = vpack.c.b16 %v3016, %v3014
      %v3063 = vpack.c.b16 %v3017, %v3015
      %v3064 = vpack.c.b16 %v3020, %v3018
      %v3065 = vpack.c.b16 %v3021, %v3019
      %v3066 = vpack.c.b16 %v3024, %v3022
      %v3067 = vpack.c.b16 %v3025, %v3023
      %v3068 = vpack.c.b16 %v3028, %v3026
      %v3069 = vpack.c.b16 %v3029, %v3027
      %v3070 = vpack.c.b16 %v3032, %v3030
      %v3071 = vpack.c.b16 %v3033, %v3031
      %v3072 = vpack.c.b16 %v3036, %v3034
      %v3073 = vpack.c.b16 %v3037, %v3035
      %v3074 = vpack.c.b16 %v3040, %v3038
      %v3075 = vpack.c.b16 %v3041, %v3039
      %v3076 = vpack.c.b16 %v3044, %v3042
      %v3077 = vpack.c.b16 %v3045, %v3043
      %3110 = vmatprep.subr.bf16.mxu0 %v3047
      %3111 = vmatpush1.bf16.msra.mxu0 %v3046
      %3112 = vmatprep.subr.bf16.mxu0 %v3049
      %3113 = vmatpush1.bf16.msra.mxu0 %v3048
      %3114 = vmatprep.subr.bf16.mxu0 %v3051
      %3115 = vmatpush1.bf16.msra.mxu0 %v3050
      %3116 = vmatprep.subr.bf16.mxu0 %v3053
      %3117 = vmatpush1.bf16.msra.mxu0 %v3052
      %3118 = vmatprep.subr.bf16.mxu0 %v3055
      %3119 = vmatpush1.bf16.msra.mxu0 %v3054
      %3120 = vmatprep.subr.bf16.mxu0 %v3057
      %3121 = vmatpush1.bf16.msra.mxu0 %v3056
      %3122 = vmatprep.subr.bf16.mxu0 %v3059
      %3123 = vmatpush1.bf16.msra.mxu0 %v3058
      %3124 = vmatprep.subr.bf16.mxu0 %v3061
      %3125 = vmatpush1.bf16.msra.mxu0 %v3060
      %3126 = vmatprep.subr.bf16.mxu0 %v3063
      %3127 = vmatpush1.bf16.msra.mxu0 %v3062
      %3128 = vmatprep.subr.bf16.mxu0 %v3065
      %3129 = vmatpush1.bf16.msra.mxu0 %v3064
      %3130 = vmatprep.subr.bf16.mxu0 %v3067
      %3131 = vmatpush1.bf16.msra.mxu0 %v3066
      %3132 = vmatprep.subr.bf16.mxu0 %v3069
      %3133 = vmatpush1.bf16.msra.mxu0 %v3068
      %3134 = vmatprep.subr.bf16.mxu0 %v3071
      %3135 = vmatpush1.bf16.msra.mxu0 %v3070
      %3136 = vmatprep.subr.bf16.mxu0 %v3073
      %3137 = vmatpush1.bf16.msra.mxu0 %v3072
      %3138 = vmatprep.subr.bf16.mxu0 %v3075
      %3139 = vmatpush1.bf16.msra.mxu0 %v3074
      %3140 = vmatprep.subr.bf16.mxu0 %v3077
      %3141 = vmatpush1.bf16.msra.mxu0 %v3076
      %3142 = vmatprep.mubr.bf16.mxu0 %v2873
      %3143 = vmatmul.mubr.bf16.gmra.mrb[0].mxu0 %v2872
      %v3144 = vpop.f32.mrb[0].mxu0
      %v3145 = vadd.f32 %v2943, %v3144
      %v3146 = vpop.f32.mrb[0].mxu0
      %v3147 = vadd.f32 %v2947, %v3146
      %v3148 = vpop.f32.mrb[0].mxu0
      %v3149 = vadd.f32 %v2943, %v3148
      %v3150 = vpop.f32.mrb[0].mxu0
      %v3151 = vadd.f32 %v2947, %v3150
      %3152 = vmatprep.mubr.bf16.mxu0 %v2875
      %3153 = vmatmul.mubr.bf16.gmra.mrb[0].mxu0 %v2874
      %v3154 = vpop.f32.mrb[0].mxu0
      %v3155 = vadd.f32 %v2943, %v3154
      %v3156 = vpop.f32.mrb[0].mxu0
      %v3157 = vadd.f32 %v2947, %v3156
      %v3158 = vpop.f32.mrb[0].mxu0
      %v3159 = vadd.f32 %v2943, %v3158
      %v3160 = vpop.f32.mrb[0].mxu0
      %v3161 = vadd.f32 %v2947, %v3160
      %3162 = vmatprep.mubr.bf16.mxu0 %v2877
      %3163 = vmatmul.mubr.bf16.gmra.mrb[0].mxu0 %v2876
      %v3164 = vpop.f32.mrb[0].mxu0
      %v3165 = vadd.f32 %v2943, %v3164
      %v3166 = vpop.f32.mrb[0].mxu0
      %v3167 = vadd.f32 %v2947, %v3166
      %v3168 = vpop.f32.mrb[0].mxu0
      %v3169 = vadd.f32 %v2943, %v3168
      %v3170 = vpop.f32.mrb[0].mxu0
      %v3171 = vadd.f32 %v2947, %v3170
      %3172 = vmatprep.mubr.bf16.mxu0 %v2879
      %3173 = vmatmul.mubr.bf16.gmra.mrb[0].mxu0 %v2878
      %v3174 = vpop.f32.mrb[0].mxu0
      %v3175 = vadd.f32 %v2943, %v3174
      %v3176 = vpop.f32.mrb[0].mxu0
      %v3177 = vadd.f32 %v2947, %v3176
      %v3178 = vpop.f32.mrb[0].mxu0
      %v3179 = vadd.f32 %v2943, %v3178
      %v3180 = vpop.f32.mrb[0].mxu0
      %v3181 = vadd.f32 %v2947, %v3180
      %3182 = vmatprep.mubr.bf16.mxu0 %v2881
      %3183 = vmatmul.mubr.bf16.gmra.mrb[0].mxu0 %v2880
      %v3184 = vpop.f32.mrb[0].mxu0
      %v3185 = vadd.f32 %v2943, %v3184
      %v3186 = vpop.f32.mrb[0].mxu0
      %v3187 = vadd.f32 %v2947, %v3186
      %v3188 = vpop.f32.mrb[0].mxu0
      %v3189 = vadd.f32 %v2943, %v3188
      %v3190 = vpop.f32.mrb[0].mxu0
      %v3191 = vadd.f32 %v2947, %v3190
      %3192 = vmatprep.mubr.bf16.mxu0 %v2883
      %3193 = vmatmul.mubr.bf16.gmra.mrb[0].mxu0 %v2882
      %v3194 = vpop.f32.mrb[0].mxu0
      %v3195 = vadd.f32 %v2943, %v3194
      %v3196 = vpop.f32.mrb[0].mxu0
      %v3197 = vadd.f32 %v2947, %v3196
      %v3198 = vpop.f32.mrb[0].mxu0
      %v3199 = vadd.f32 %v2943, %v3198
      %v3200 = vpop.f32.mrb[0].mxu0
      %v3201 = vadd.f32 %v2947, %v3200
      %3202 = vmatprep.mubr.bf16.mxu0 %v2885
      %3203 = vmatmul.mubr.bf16.gmra.mrb[0].mxu0 %v2884
      %v3204 = vpop.f32.mrb[0].mxu0
      %v3205 = vadd.f32 %v2943, %v3204
      %v3206 = vpop.f32.mrb[0].mxu0
      %v3207 = vadd.f32 %v2947, %v3206
      %v3208 = vpop.f32.mrb[0].mxu0
      %v3209 = vadd.f32 %v2943, %v3208
      %v3210 = vpop.f32.mrb[0].mxu0
      %v3211 = vadd.f32 %v2947, %v3210
      %3212 = vmatprep.mubr.bf16.mxu0 %v2887
      %3213 = vmatmul.mubr.bf16.gmra.mrb[0].mxu0 %v2886
      %v3214 = vpop.f32.mrb[0].mxu0
      %v3215 = vadd.f32 %v2943, %v3214
      %v3216 = vpop.f32.mrb[0].mxu0
      %v3217 = vadd.f32 %v2947, %v3216
      %v3218 = vpop.f32.mrb[0].mxu0
      %v3219 = vadd.f32 %v2943, %v3218
      %v3220 = vpop.f32.mrb[0].mxu0
      %v3221 = vadd.f32 %v2947, %v3220
      %3222 = vmatprep.mubr.bf16.mxu0 %v2889
      %3223 = vmatmul.mubr.bf16.gmra.mrb[0].mxu0 %v2888
      %v3224 = vpop.f32.mrb[0].mxu0
      %v3225 = vadd.f32 %v2943, %v3224
      %v3226 = vpop.f32.mrb[0].mxu0
      %v3227 = vadd.f32 %v2947, %v3226
      %v3228 = vpop.f32.mrb[0].mxu0
      %v3229 = vadd.f32 %v2943, %v3228
      %v3230 = vpop.f32.mrb[0].mxu0
      %v3231 = vadd.f32 %v2947, %v3230
      %3232 = vmatprep.mubr.bf16.mxu0 %v2891
      %3233 = vmatmul.mubr.bf16.gmra.mrb[0].mxu0 %v2890
      %v3234 = vpop.f32.mrb[0].mxu0
      %v3235 = vadd.f32 %v2943, %v3234
      %v3236 = vpop.f32.mrb[0].mxu0
      %v3237 = vadd.f32 %v2947, %v3236
      %v3238 = vpop.f32.mrb[0].mxu0
      %v3239 = vadd.f32 %v2943, %v3238
      %v3240 = vpop.f32.mrb[0].mxu0
      %v3241 = vadd.f32 %v2947, %v3240
      %3242 = vmatprep.mubr.bf16.mxu0 %v2893
      %3243 = vmatmul.mubr.bf16.gmra.mrb[0].mxu0 %v2892
      %v3244 = vpop.f32.mrb[0].mxu0
      %v3245 = vadd.f32 %v2943, %v3244
      %v3246 = vpop.f32.mrb[0].mxu0
      %v3247 = vadd.f32 %v2947, %v3246
      %v3248 = vpop.f32.mrb[0].mxu0
      %v3249 = vadd.f32 %v2943, %v3248
      %v3250 = vpop.f32.mrb[0].mxu0
      %v3251 = vadd.f32 %v2947, %v3250
      %3252 = vmatprep.mubr.bf16.mxu0 %v2895
      %3253 = vmatmul.mubr.bf16.gmra.mrb[0].mxu0 %v2894
      %v3254 = vpop.f32.mrb[0].mxu0
      %v3255 = vadd.f32 %v2943, %v3254
      %v3256 = vpop.f32.mrb[0].mxu0
      %v3257 = vadd.f32 %v2947, %v3256
      %v3258 = vpop.f32.mrb[0].mxu0
      %v3259 = vadd.f32 %v2943, %v3258
      %v3260 = vpop.f32.mrb[0].mxu0
      %v3261 = vadd.f32 %v2947, %v3260
      %3262 = vmatprep.mubr.bf16.mxu0 %v2897
      %3263 = vmatmul.mubr.bf16.gmra.mrb[0].mxu0 %v2896
      %v3264 = vpop.f32.mrb[0].mxu0
      %v3265 = vadd.f32 %v2943, %v3264
      %v3266 = vpop.f32.mrb[0].mxu0
      %v3267 = vadd.f32 %v2947, %v3266
      %v3268 = vpop.f32.mrb[0].mxu0
      %v3269 = vadd.f32 %v2943, %v3268
      %v3270 = vpop.f32.mrb[0].mxu0
      %v3271 = vadd.f32 %v2947, %v3270
      %3272 = vmatprep.mubr.bf16.mxu0 %v2899
      %3273 = vmatmul.mubr.bf16.gmra.mrb[0].mxu0 %v2898
      %v3274 = vpop.f32.mrb[0].mxu0
      %v3275 = vadd.f32 %v2943, %v3274
      %v3276 = vpop.f32.mrb[0].mxu0
      %v3277 = vadd.f32 %v2947, %v3276
      %v3278 = vpop.f32.mrb[0].mxu0
      %v3279 = vadd.f32 %v2943, %v3278
      %v3280 = vpop.f32.mrb[0].mxu0
      %v3281 = vadd.f32 %v2947, %v3280
      %3282 = vmatprep.mubr.bf16.mxu0 %v2901
      %3283 = vmatmul.mubr.bf16.gmra.mrb[0].mxu0 %v2900
      %v3284 = vpop.f32.mrb[0].mxu0
      %v3285 = vadd.f32 %v2943, %v3284
      %v3286 = vpop.f32.mrb[0].mxu0
      %v3287 = vadd.f32 %v2947, %v3286
      %v3288 = vpop.f32.mrb[0].mxu0
      %v3289 = vadd.f32 %v2943, %v3288
      %v3290 = vpop.f32.mrb[0].mxu0
      %v3291 = vadd.f32 %v2947, %v3290
      %3292 = vmatprep.mubr.bf16.mxu0 %v2903
      %3293 = vmatmul.mubr.bf16.gmra.mrb[0].mxu0 %v2902
      %v3294 = vpop.f32.mrb[0].mxu0
      %v3295 = vadd.f32 %v2943, %v3294
      %v3296 = vpop.f32.mrb[0].mxu0
      %v3297 = vadd.f32 %v2947, %v3296
      %v3298 = vpop.f32.mrb[0].mxu0
      %v3299 = vadd.f32 %v2943, %v3298
      %v3300 = vpop.f32.mrb[0].mxu0
      %v3301 = vadd.f32 %v2947, %v3300
      %3302 = vdwg.mxu0
      %v3303 = vmax.f32 %v3145, 0.0
      %v3304 = vmax.f32 %v3147, 0.0
      %v3305 = vmax.f32 %v3149, 0.0
      %v3306 = vmax.f32 %v3151, 0.0
      %v3307 = vmax.f32 %v3155, 0.0
      %v3308 = vmax.f32 %v3157, 0.0
      %v3309 = vmax.f32 %v3159, 0.0
      %v3310 = vmax.f32 %v3161, 0.0
      %v3311 = vmax.f32 %v3165, 0.0
      %v3312 = vmax.f32 %v3167, 0.0
      %v3313 = vmax.f32 %v3169, 0.0
      %v3314 = vmax.f32 %v3171, 0.0
      %v3315 = vmax.f32 %v3175, 0.0
      %v3316 = vmax.f32 %v3177, 0.0
      %v3317 = vmax.f32 %v3179, 0.0
      %v3318 = vmax.f32 %v3181, 0.0
      %v3319 = vmax.f32 %v3185, 0.0
      %v3320 = vmax.f32 %v3187, 0.0
      %v3321 = vmax.f32 %v3189, 0.0
      %v3322 = vmax.f32 %v3191, 0.0
      %v3323 = vmax.f32 %v3195, 0.0
      %v3324 = vmax.f32 %v3197, 0.0
      %v3325 = vmax.f32 %v3199, 0.0
      %v3326 = vmax.f32 %v3201, 0.0
      %v3327 = vmax.f32 %v3205, 0.0
      %v3328 = vmax.f32 %v3207, 0.0
      %v3329 = vmax.f32 %v3209, 0.0
      %v3330 = vmax.f32 %v3211, 0.0
      %v3331 = vmax.f32 %v3215, 0.0
      %v3332 = vmax.f32 %v3217, 0.0
      %v3333 = vmax.f32 %v3219, 0.0
      %v3334 = vmax.f32 %v3221, 0.0
      %v3335 = vmax.f32 %v3225, 0.0
      %v3336 = vmax.f32 %v3227, 0.0
      %v3337 = vmax.f32 %v3229, 0.0
      %v3338 = vmax.f32 %v3231, 0.0
      %v3339 = vmax.f32 %v3235, 0.0
      %v3340 = vmax.f32 %v3237, 0.0
      %v3341 = vmax.f32 %v3239, 0.0
      %v3342 = vmax.f32 %v3241, 0.0
      %v3343 = vmax.f32 %v3245, 0.0
      %v3344 = vmax.f32 %v3247, 0.0
      %v3345 = vmax.f32 %v3249, 0.0
      %v3346 = vmax.f32 %v3251, 0.0
      %v3347 = vmax.f32 %v3255, 0.0
      %v3348 = vmax.f32 %v3257, 0.0
      %v3349 = vmax.f32 %v3259, 0.0
      %v3350 = vmax.f32 %v3261, 0.0
      %v3351 = vmax.f32 %v3265, 0.0
      %v3352 = vmax.f32 %v3267, 0.0
      %v3353 = vmax.f32 %v3269, 0.0
      %v3354 = vmax.f32 %v3271, 0.0
      %v3355 = vmax.f32 %v3275, 0.0
      %v3356 = vmax.f32 %v3277, 0.0
      %v3357 = vmax.f32 %v3279, 0.0
      %v3358 = vmax.f32 %v3281, 0.0
      %v3359 = vmax.f32 %v3285, 0.0
      %v3360 = vmax.f32 %v3287, 0.0
      %v3361 = vmax.f32 %v3289, 0.0
      %v3362 = vmax.f32 %v3291, 0.0
      %v3363 = vmax.f32 %v3295, 0.0
      %v3364 = vmax.f32 %v3297, 0.0
      %v3365 = vmax.f32 %v3299, 0.0
      %v3366 = vmax.f32 %v3301, 0.0
      %v3367 = vpack.c.bf16 %v3305, %v3303
      %v3368 = vpack.c.bf16 %v3306, %v3304
      %v3369 = vpack.c.bf16 %v3309, %v3307
      %v3370 = vpack.c.bf16 %v3310, %v3308
      %v3371 = vpack.c.bf16 %v3313, %v3311
      %v3372 = vpack.c.bf16 %v3314, %v3312
      %v3373 = vpack.c.bf16 %v3317, %v3315
      %v3374 = vpack.c.bf16 %v3318, %v3316
      %v3375 = vpack.c.bf16 %v3321, %v3319
      %v3376 = vpack.c.bf16 %v3322, %v3320
      %v3377 = vpack.c.bf16 %v3325, %v3323
      %v3378 = vpack.c.bf16 %v3326, %v3324
      %v3379 = vpack.c.bf16 %v3329, %v3327
      %v3380 = vpack.c.bf16 %v3330, %v3328
      %v3381 = vpack.c.bf16 %v3333, %v3331
      %v3382 = vpack.c.bf16 %v3334, %v3332
      %v3383 = vpack.c.bf16 %v3337, %v3335
      %v3384 = vpack.c.bf16 %v3338, %v3336
      %v3385 = vpack.c.bf16 %v3341, %v3339
      %v3386 = vpack.c.bf16 %v3342, %v3340
      %v3387 = vpack.c.bf16 %v3345, %v3343
      %v3388 = vpack.c.bf16 %v3346, %v3344
      %v3389 = vpack.c.bf16 %v3349, %v3347
      %v3390 = vpack.c.bf16 %v3350, %v3348
      %v3391 = vpack.c.bf16 %v3353, %v3351
      %v3392 = vpack.c.bf16 %v3354, %v3352
      %v3393 = vpack.c.bf16 %v3357, %v3355
      %v3394 = vpack.c.bf16 %v3358, %v3356
      %v3395 = vpack.c.bf16 %v3361, %v3359
      %v3396 = vpack.c.bf16 %v3362, %v3360
      %v3397 = vpack.c.bf16 %v3365, %v3363
      %v3398 = vpack.c.bf16 %v3366, %v3364
      %s3399 = scalar_lea.vmem %s4, 1280
      %v3400 = vld [vmem:[%s3399] sm:$0xff]
      %v3401 = vld [vmem:[%s3399 + $0x8] sm:$0xff]
      %v3402 = vld [vmem:[%s3399 + $0x10] sm:$0xff]
      %v3403 = vld [vmem:[%s3399 + $0x18] sm:$0xff]
      %v3404 = vld [vmem:[%s3399 + $0x20] sm:$0xff]
      %v3405 = vld [vmem:[%s3399 + $0x28] sm:$0xff]
      %v3406 = vld [vmem:[%s3399 + $0x30] sm:$0xff]
      %v3407 = vld [vmem:[%s3399 + $0x38] sm:$0xff]
      %v3408 = vld [vmem:[%s3399 + $0x40] sm:$0xff]
      %v3409 = vld [vmem:[%s3399 + $0x48] sm:$0xff]
      %v3410 = vld [vmem:[%s3399 + $0x50] sm:$0xff]
      %v3411 = vld [vmem:[%s3399 + $0x58] sm:$0xff]
      %v3412 = vld [vmem:[%s3399 + $0x60] sm:$0xff]
      %v3413 = vld [vmem:[%s3399 + $0x68] sm:$0xff]
      %v3414 = vld [vmem:[%s3399 + $0x70] sm:$0xff]
      %v3415 = vld [vmem:[%s3399 + $0x78] sm:$0xff]
      %v3416 = vld [vmem:[%s3399 + $0x80] sm:$0xff]
      %v3417 = vld [vmem:[%s3399 + $0x88] sm:$0xff]
      %v3418 = vld [vmem:[%s3399 + $0x90] sm:$0xff]
      %v3419 = vld [vmem:[%s3399 + $0x98] sm:$0xff]
      %v3420 = vld [vmem:[%s3399 + $0xa0] sm:$0xff]
      %v3421 = vld [vmem:[%s3399 + $0xa8] sm:$0xff]
      %v3422 = vld [vmem:[%s3399 + $0xb0] sm:$0xff]
      %v3423 = vld [vmem:[%s3399 + $0xb8] sm:$0xff]
      %v3424 = vld [vmem:[%s3399 + $0xc0] sm:$0xff]
      %v3425 = vld [vmem:[%s3399 + $0xc8] sm:$0xff]
      %v3426 = vld [vmem:[%s3399 + $0xd0] sm:$0xff]
      %v3427 = vld [vmem:[%s3399 + $0xd8] sm:$0xff]
      %v3428 = vld [vmem:[%s3399 + $0xe0] sm:$0xff]
      %v3429 = vld [vmem:[%s3399 + $0xe8] sm:$0xff]
      %v3430 = vld [vmem:[%s3399 + $0xf0] sm:$0xff]
      %v3431 = vld [vmem:[%s3399 + $0xf8] sm:$0xff]
      %s3432 = scalar_lea.vmem %s5, 10
      %v3433 = vld [vmem:[%s3432] sm:$0x3]
      %v3435 = vlaneseq
      %v3436 = vshrl.u32 %v3435, 7
      %v3437 = vsub.s32 0, %v3436
      %v3438 = vrot.slane %v3433, %v3437
      %v3439 = vlaneseq
      %v3440 = vshrl.u32 %v3439, 7
      %v3441 = vsub.s32 1, %v3440
      %v3442 = vrot.slane %v3433, %v3441
      %v3477 = vunpack.c.l.b16 %v3400
      %v3478 = vunpack.c.h.b16 %v3400
      %v3479 = vunpack.c.l.b16 %v3401
      %v3480 = vunpack.c.h.b16 %v3401
      %v3481 = vunpack.c.l.b16 %v3402
      %v3482 = vunpack.c.h.b16 %v3402
      %v3483 = vunpack.c.l.b16 %v3403
      %v3484 = vunpack.c.h.b16 %v3403
      %v3485 = vunpack.c.l.b16 %v3404
      %v3486 = vunpack.c.h.b16 %v3404
      %v3487 = vunpack.c.l.b16 %v3405
      %v3488 = vunpack.c.h.b16 %v3405
      %v3489 = vunpack.c.l.b16 %v3406
      %v3490 = vunpack.c.h.b16 %v3406
      %v3491 = vunpack.c.l.b16 %v3407
      %v3492 = vunpack.c.h.b16 %v3407
      %v3493 = vunpack.c.l.b16 %v3408
      %v3494 = vunpack.c.h.b16 %v3408
      %v3495 = vunpack.c.l.b16 %v3409
      %v3496 = vunpack.c.h.b16 %v3409
      %v3497 = vunpack.c.l.b16 %v3410
      %v3498 = vunpack.c.h.b16 %v3410
      %v3499 = vunpack.c.l.b16 %v3411
      %v3500 = vunpack.c.h.b16 %v3411
      %v3501 = vunpack.c.l.b16 %v3412
      %v3502 = vunpack.c.h.b16 %v3412
      %v3503 = vunpack.c.l.b16 %v3413
      %v3504 = vunpack.c.h.b16 %v3413
      %v3505 = vunpack.c.l.b16 %v3414
      %v3506 = vunpack.c.h.b16 %v3414
      %v3507 = vunpack.c.l.b16 %v3415
      %v3508 = vunpack.c.h.b16 %v3415
      %v3509 = vunpack.c.l.b16 %v3416
      %v3510 = vunpack.c.h.b16 %v3416
      %v3511 = vunpack.c.l.b16 %v3417
      %v3512 = vunpack.c.h.b16 %v3417
      %v3513 = vunpack.c.l.b16 %v3418
      %v3514 = vunpack.c.h.b16 %v3418
      %v3515 = vunpack.c.l.b16 %v3419
      %v3516 = vunpack.c.h.b16 %v3419
      %v3517 = vunpack.c.l.b16 %v3420
      %v3518 = vunpack.c.h.b16 %v3420
      %v3519 = vunpack.c.l.b16 %v3421
      %v3520 = vunpack.c.h.b16 %v3421
      %v3521 = vunpack.c.l.b16 %v3422
      %v3522 = vunpack.c.h.b16 %v3422
      %v3523 = vunpack.c.l.b16 %v3423
      %v3524 = vunpack.c.h.b16 %v3423
      %v3525 = vunpack.c.l.b16 %v3424
      %v3526 = vunpack.c.h.b16 %v3424
      %v3527 = vunpack.c.l.b16 %v3425
      %v3528 = vunpack.c.h.b16 %v3425
      %v3529 = vunpack.c.l.b16 %v3426
      %v3530 = vunpack.c.h.b16 %v3426
      %v3531 = vunpack.c.l.b16 %v3427
      %v3532 = vunpack.c.h.b16 %v3427
      %v3533 = vunpack.c.l.b16 %v3428
      %v3534 = vunpack.c.h.b16 %v3428
      %v3535 = vunpack.c.l.b16 %v3429
      %v3536 = vunpack.c.h.b16 %v3429
      %v3537 = vunpack.c.l.b16 %v3430
      %v3538 = vunpack.c.h.b16 %v3430
      %v3539 = vunpack.c.l.b16 %v3431
      %v3540 = vunpack.c.h.b16 %v3431
      %v3541 = vpack.c.b16 %v3479, %v3477
      %v3542 = vpack.c.b16 %v3480, %v3478
      %v3543 = vpack.c.b16 %v3483, %v3481
      %v3544 = vpack.c.b16 %v3484, %v3482
      %v3545 = vpack.c.b16 %v3487, %v3485
      %v3546 = vpack.c.b16 %v3488, %v3486
      %v3547 = vpack.c.b16 %v3491, %v3489
      %v3548 = vpack.c.b16 %v3492, %v3490
      %v3549 = vpack.c.b16 %v3495, %v3493
      %v3550 = vpack.c.b16 %v3496, %v3494
      %v3551 = vpack.c.b16 %v3499, %v3497
      %v3552 = vpack.c.b16 %v3500, %v3498
      %v3553 = vpack.c.b16 %v3503, %v3501
      %v3554 = vpack.c.b16 %v3504, %v3502
      %v3555 = vpack.c.b16 %v3507, %v3505
      %v3556 = vpack.c.b16 %v3508, %v3506
      %v3557 = vpack.c.b16 %v3511, %v3509
      %v3558 = vpack.c.b16 %v3512, %v3510
      %v3559 = vpack.c.b16 %v3515, %v3513
      %v3560 = vpack.c.b16 %v3516, %v3514
      %v3561 = vpack.c.b16 %v3519, %v3517
      %v3562 = vpack.c.b16 %v3520, %v3518
      %v3563 = vpack.c.b16 %v3523, %v3521
      %v3564 = vpack.c.b16 %v3524, %v3522
      %v3565 = vpack.c.b16 %v3527, %v3525
      %v3566 = vpack.c.b16 %v3528, %v3526
      %v3567 = vpack.c.b16 %v3531, %v3529
      %v3568 = vpack.c.b16 %v3532, %v3530
      %v3569 = vpack.c.b16 %v3535, %v3533
      %v3570 = vpack.c.b16 %v3536, %v3534
      %v3571 = vpack.c.b16 %v3539, %v3537
      %v3572 = vpack.c.b16 %v3540, %v3538
      %3605 = vmatprep.subr.bf16.mxu0 %v3542
      %3606 = vmatpush1.bf16.msra.mxu0 %v3541
      %3607 = vmatprep.subr.bf16.mxu0 %v3544
      %3608 = vmatpush1.bf16.msra.mxu0 %v3543
      %3609 = vmatprep.subr.bf16.mxu0 %v3546
      %3610 = vmatpush1.bf16.msra.mxu0 %v3545
      %3611 = vmatprep.subr.bf16.mxu0 %v3548
      %3612 = vmatpush1.bf16.msra.mxu0 %v3547
      %3613 = vmatprep.subr.bf16.mxu0 %v3550
      %3614 = vmatpush1.bf16.msra.mxu0 %v3549
      %3615 = vmatprep.subr.bf16.mxu0 %v3552
      %3616 = vmatpush1.bf16.msra.mxu0 %v3551
      %3617 = vmatprep.subr.bf16.mxu0 %v3554
      %3618 = vmatpush1.bf16.msra.mxu0 %v3553
      %3619 = vmatprep.subr.bf16.mxu0 %v3556
      %3620 = vmatpush1.bf16.msra.mxu0 %v3555
      %3621 = vmatprep.subr.bf16.mxu0 %v3558
      %3622 = vmatpush1.bf16.msra.mxu0 %v3557
      %3623 = vmatprep.subr.bf16.mxu0 %v3560
      %3624 = vmatpush1.bf16.msra.mxu0 %v3559
      %3625 = vmatprep.subr.bf16.mxu0 %v3562
      %3626 = vmatpush1.bf16.msra.mxu0 %v3561
      %3627 = vmatprep.subr.bf16.mxu0 %v3564
      %3628 = vmatpush1.bf16.msra.mxu0 %v3563
      %3629 = vmatprep.subr.bf16.mxu0 %v3566
      %3630 = vmatpush1.bf16.msra.mxu0 %v3565
      %3631 = vmatprep.subr.bf16.mxu0 %v3568
      %3632 = vmatpush1.bf16.msra.mxu0 %v3567
      %3633 = vmatprep.subr.bf16.mxu0 %v3570
      %3634 = vmatpush1.bf16.msra.mxu0 %v3569
      %3635 = vmatprep.subr.bf16.mxu0 %v3572
      %3636 = vmatpush1.bf16.msra.mxu0 %v3571
      %3637 = vmatprep.mubr.bf16.mxu0 %v3368
      %3638 = vmatmul.mubr.bf16.gmra.mrb[0].mxu0 %v3367
      %v3639 = vpop.f32.mrb[0].mxu0
      %v3640 = vadd.f32 %v3438, %v3639
      %v3641 = vpop.f32.mrb[0].mxu0
      %v3642 = vadd.f32 %v3442, %v3641
      %v3643 = vpop.f32.mrb[0].mxu0
      %v3644 = vadd.f32 %v3438, %v3643
      %v3645 = vpop.f32.mrb[0].mxu0
      %v3646 = vadd.f32 %v3442, %v3645
      %3647 = vmatprep.mubr.bf16.mxu0 %v3370
      %3648 = vmatmul.mubr.bf16.gmra.mrb[0].mxu0 %v3369
      %v3649 = vpop.f32.mrb[0].mxu0
      %v3650 = vadd.f32 %v3438, %v3649
      %v3651 = vpop.f32.mrb[0].mxu0
      %v3652 = vadd.f32 %v3442, %v3651
      %v3653 = vpop.f32.mrb[0].mxu0
      %v3654 = vadd.f32 %v3438, %v3653
      %v3655 = vpop.f32.mrb[0].mxu0
      %v3656 = vadd.f32 %v3442, %v3655
      %3657 = vmatprep.mubr.bf16.mxu0 %v3372
      %3658 = vmatmul.mubr.bf16.gmra.mrb[0].mxu0 %v3371
      %v3659 = vpop.f32.mrb[0].mxu0
      %v3660 = vadd.f32 %v3438, %v3659
      %v3661 = vpop.f32.mrb[0].mxu0
      %v3662 = vadd.f32 %v3442, %v3661
      %v3663 = vpop.f32.mrb[0].mxu0
      %v3664 = vadd.f32 %v3438, %v3663
      %v3665 = vpop.f32.mrb[0].mxu0
      %v3666 = vadd.f32 %v3442, %v3665
      %3667 = vmatprep.mubr.bf16.mxu0 %v3374
      %3668 = vmatmul.mubr.bf16.gmra.mrb[0].mxu0 %v3373
      %v3669 = vpop.f32.mrb[0].mxu0
      %v3670 = vadd.f32 %v3438, %v3669
      %v3671 = vpop.f32.mrb[0].mxu0
      %v3672 = vadd.f32 %v3442, %v3671
      %v3673 = vpop.f32.mrb[0].mxu0
      %v3674 = vadd.f32 %v3438, %v3673
      %v3675 = vpop.f32.mrb[0].mxu0
      %v3676 = vadd.f32 %v3442, %v3675
      %3677 = vmatprep.mubr.bf16.mxu0 %v3376
      %3678 = vmatmul.mubr.bf16.gmra.mrb[0].mxu0 %v3375
      %v3679 = vpop.f32.mrb[0].mxu0
      %v3680 = vadd.f32 %v3438, %v3679
      %v3681 = vpop.f32.mrb[0].mxu0
      %v3682 = vadd.f32 %v3442, %v3681
      %v3683 = vpop.f32.mrb[0].mxu0
      %v3684 = vadd.f32 %v3438, %v3683
      %v3685 = vpop.f32.mrb[0].mxu0
      %v3686 = vadd.f32 %v3442, %v3685
      %3687 = vmatprep.mubr.bf16.mxu0 %v3378
      %3688 = vmatmul.mubr.bf16.gmra.mrb[0].mxu0 %v3377
      %v3689 = vpop.f32.mrb[0].mxu0
      %v3690 = vadd.f32 %v3438, %v3689
      %v3691 = vpop.f32.mrb[0].mxu0
      %v3692 = vadd.f32 %v3442, %v3691
      %v3693 = vpop.f32.mrb[0].mxu0
      %v3694 = vadd.f32 %v3438, %v3693
      %v3695 = vpop.f32.mrb[0].mxu0
      %v3696 = vadd.f32 %v3442, %v3695
      %3697 = vmatprep.mubr.bf16.mxu0 %v3380
      %3698 = vmatmul.mubr.bf16.gmra.mrb[0].mxu0 %v3379
      %v3699 = vpop.f32.mrb[0].mxu0
      %v3700 = vadd.f32 %v3438, %v3699
      %v3701 = vpop.f32.mrb[0].mxu0
      %v3702 = vadd.f32 %v3442, %v3701
      %v3703 = vpop.f32.mrb[0].mxu0
      %v3704 = vadd.f32 %v3438, %v3703
      %v3705 = vpop.f32.mrb[0].mxu0
      %v3706 = vadd.f32 %v3442, %v3705
      %3707 = vmatprep.mubr.bf16.mxu0 %v3382
      %3708 = vmatmul.mubr.bf16.gmra.mrb[0].mxu0 %v3381
      %v3709 = vpop.f32.mrb[0].mxu0
      %v3710 = vadd.f32 %v3438, %v3709
      %v3711 = vpop.f32.mrb[0].mxu0
      %v3712 = vadd.f32 %v3442, %v3711
      %v3713 = vpop.f32.mrb[0].mxu0
      %v3714 = vadd.f32 %v3438, %v3713
      %v3715 = vpop.f32.mrb[0].mxu0
      %v3716 = vadd.f32 %v3442, %v3715
      %3717 = vmatprep.mubr.bf16.mxu0 %v3384
      %3718 = vmatmul.mubr.bf16.gmra.mrb[0].mxu0 %v3383
      %v3719 = vpop.f32.mrb[0].mxu0
      %v3720 = vadd.f32 %v3438, %v3719
      %v3721 = vpop.f32.mrb[0].mxu0
      %v3722 = vadd.f32 %v3442, %v3721
      %v3723 = vpop.f32.mrb[0].mxu0
      %v3724 = vadd.f32 %v3438, %v3723
      %v3725 = vpop.f32.mrb[0].mxu0
      %v3726 = vadd.f32 %v3442, %v3725
      %3727 = vmatprep.mubr.bf16.mxu0 %v3386
      %3728 = vmatmul.mubr.bf16.gmra.mrb[0].mxu0 %v3385
      %v3729 = vpop.f32.mrb[0].mxu0
      %v3730 = vadd.f32 %v3438, %v3729
      %v3731 = vpop.f32.mrb[0].mxu0
      %v3732 = vadd.f32 %v3442, %v3731
      %v3733 = vpop.f32.mrb[0].mxu0
      %v3734 = vadd.f32 %v3438, %v3733
      %v3735 = vpop.f32.mrb[0].mxu0
      %v3736 = vadd.f32 %v3442, %v3735
      %3737 = vmatprep.mubr.bf16.mxu0 %v3388
      %3738 = vmatmul.mubr.bf16.gmra.mrb[0].mxu0 %v3387
      %v3739 = vpop.f32.mrb[0].mxu0
      %v3740 = vadd.f32 %v3438, %v3739
      %v3741 = vpop.f32.mrb[0].mxu0
      %v3742 = vadd.f32 %v3442, %v3741
      %v3743 = vpop.f32.mrb[0].mxu0
      %v3744 = vadd.f32 %v3438, %v3743
      %v3745 = vpop.f32.mrb[0].mxu0
      %v3746 = vadd.f32 %v3442, %v3745
      %3747 = vmatprep.mubr.bf16.mxu0 %v3390
      %3748 = vmatmul.mubr.bf16.gmra.mrb[0].mxu0 %v3389
      %v3749 = vpop.f32.mrb[0].mxu0
      %v3750 = vadd.f32 %v3438, %v3749
      %v3751 = vpop.f32.mrb[0].mxu0
      %v3752 = vadd.f32 %v3442, %v3751
      %v3753 = vpop.f32.mrb[0].mxu0
      %v3754 = vadd.f32 %v3438, %v3753
      %v3755 = vpop.f32.mrb[0].mxu0
      %v3756 = vadd.f32 %v3442, %v3755
      %3757 = vmatprep.mubr.bf16.mxu0 %v3392
      %3758 = vmatmul.mubr.bf16.gmra.mrb[0].mxu0 %v3391
      %v3759 = vpop.f32.mrb[0].mxu0
      %v3760 = vadd.f32 %v3438, %v3759
      %v3761 = vpop.f32.mrb[0].mxu0
      %v3762 = vadd.f32 %v3442, %v3761
      %v3763 = vpop.f32.mrb[0].mxu0
      %v3764 = vadd.f32 %v3438, %v3763
      %v3765 = vpop.f32.mrb[0].mxu0
      %v3766 = vadd.f32 %v3442, %v3765
      %3767 = vmatprep.mubr.bf16.mxu0 %v3394
      %3768 = vmatmul.mubr.bf16.gmra.mrb[0].mxu0 %v3393
      %v3769 = vpop.f32.mrb[0].mxu0
      %v3770 = vadd.f32 %v3438, %v3769
      %v3771 = vpop.f32.mrb[0].mxu0
      %v3772 = vadd.f32 %v3442, %v3771
      %v3773 = vpop.f32.mrb[0].mxu0
      %v3774 = vadd.f32 %v3438, %v3773
      %v3775 = vpop.f32.mrb[0].mxu0
      %v3776 = vadd.f32 %v3442, %v3775
      %3777 = vmatprep.mubr.bf16.mxu0 %v3396
      %3778 = vmatmul.mubr.bf16.gmra.mrb[0].mxu0 %v3395
      %v3779 = vpop.f32.mrb[0].mxu0
      %v3780 = vadd.f32 %v3438, %v3779
      %v3781 = vpop.f32.mrb[0].mxu0
      %v3782 = vadd.f32 %v3442, %v3781
      %v3783 = vpop.f32.mrb[0].mxu0
      %v3784 = vadd.f32 %v3438, %v3783
      %v3785 = vpop.f32.mrb[0].mxu0
      %v3786 = vadd.f32 %v3442, %v3785
      %3787 = vmatprep.mubr.bf16.mxu0 %v3398
      %3788 = vmatmul.mubr.bf16.gmra.mrb[0].mxu0 %v3397
      %v3789 = vpop.f32.mrb[0].mxu0
      %v3790 = vadd.f32 %v3438, %v3789
      %v3791 = vpop.f32.mrb[0].mxu0
      %v3792 = vadd.f32 %v3442, %v3791
      %v3793 = vpop.f32.mrb[0].mxu0
      %v3794 = vadd.f32 %v3438, %v3793
      %v3795 = vpop.f32.mrb[0].mxu0
      %v3796 = vadd.f32 %v3442, %v3795
      %3797 = vdwg.mxu0
      %v3798 = vmax.f32 %v3640, 0.0
      %v3799 = vmax.f32 %v3642, 0.0
      %v3800 = vmax.f32 %v3644, 0.0
      %v3801 = vmax.f32 %v3646, 0.0
      %v3802 = vmax.f32 %v3650, 0.0
      %v3803 = vmax.f32 %v3652, 0.0
      %v3804 = vmax.f32 %v3654, 0.0
      %v3805 = vmax.f32 %v3656, 0.0
      %v3806 = vmax.f32 %v3660, 0.0
      %v3807 = vmax.f32 %v3662, 0.0
      %v3808 = vmax.f32 %v3664, 0.0
      %v3809 = vmax.f32 %v3666, 0.0
      %v3810 = vmax.f32 %v3670, 0.0
      %v3811 = vmax.f32 %v3672, 0.0
      %v3812 = vmax.f32 %v3674, 0.0
      %v3813 = vmax.f32 %v3676, 0.0
      %v3814 = vmax.f32 %v3680, 0.0
      %v3815 = vmax.f32 %v3682, 0.0
      %v3816 = vmax.f32 %v3684, 0.0
      %v3817 = vmax.f32 %v3686, 0.0
      %v3818 = vmax.f32 %v3690, 0.0
      %v3819 = vmax.f32 %v3692, 0.0
      %v3820 = vmax.f32 %v3694, 0.0
      %v3821 = vmax.f32 %v3696, 0.0
      %v3822 = vmax.f32 %v3700, 0.0
      %v3823 = vmax.f32 %v3702, 0.0
      %v3824 = vmax.f32 %v3704, 0.0
      %v3825 = vmax.f32 %v3706, 0.0
      %v3826 = vmax.f32 %v3710, 0.0
      %v3827 = vmax.f32 %v3712, 0.0
      %v3828 = vmax.f32 %v3714, 0.0
      %v3829 = vmax.f32 %v3716, 0.0
      %v3830 = vmax.f32 %v3720, 0.0
      %v3831 = vmax.f32 %v3722, 0.0
      %v3832 = vmax.f32 %v3724, 0.0
      %v3833 = vmax.f32 %v3726, 0.0
      %v3834 = vmax.f32 %v3730, 0.0
      %v3835 = vmax.f32 %v3732, 0.0
      %v3836 = vmax.f32 %v3734, 0.0
      %v3837 = vmax.f32 %v3736, 0.0
      %v3838 = vmax.f32 %v3740, 0.0
      %v3839 = vmax.f32 %v3742, 0.0
      %v3840 = vmax.f32 %v3744, 0.0
      %v3841 = vmax.f32 %v3746, 0.0
      %v3842 = vmax.f32 %v3750, 0.0
      %v3843 = vmax.f32 %v3752, 0.0
      %v3844 = vmax.f32 %v3754, 0.0
      %v3845 = vmax.f32 %v3756, 0.0
      %v3846 = vmax.f32 %v3760, 0.0
      %v3847 = vmax.f32 %v3762, 0.0
      %v3848 = vmax.f32 %v3764, 0.0
      %v3849 = vmax.f32 %v3766, 0.0
      %v3850 = vmax.f32 %v3770, 0.0
      %v3851 = vmax.f32 %v3772, 0.0
      %v3852 = vmax.f32 %v3774, 0.0
      %v3853 = vmax.f32 %v3776, 0.0
      %v3854 = vmax.f32 %v3780, 0.0
      %v3855 = vmax.f32 %v3782, 0.0
      %v3856 = vmax.f32 %v3784, 0.0
      %v3857 = vmax.f32 %v3786, 0.0
      %v3858 = vmax.f32 %v3790, 0.0
      %v3859 = vmax.f32 %v3792, 0.0
      %v3860 = vmax.f32 %v3794, 0.0
      %v3861 = vmax.f32 %v3796, 0.0
      %v3862 = vpack.c.bf16 %v3800, %v3798
      %v3863 = vpack.c.bf16 %v3801, %v3799
      %v3864 = vpack.c.bf16 %v3804, %v3802
      %v3865 = vpack.c.bf16 %v3805, %v3803
      %v3866 = vpack.c.bf16 %v3808, %v3806
      %v3867 = vpack.c.bf16 %v3809, %v3807
      %v3868 = vpack.c.bf16 %v3812, %v3810
      %v3869 = vpack.c.bf16 %v3813, %v3811
      %v3870 = vpack.c.bf16 %v3816, %v3814
      %v3871 = vpack.c.bf16 %v3817, %v3815
      %v3872 = vpack.c.bf16 %v3820, %v3818
      %v3873 = vpack.c.bf16 %v3821, %v3819
      %v3874 = vpack.c.bf16 %v3824, %v3822
      %v3875 = vpack.c.bf16 %v3825, %v3823
      %v3876 = vpack.c.bf16 %v3828, %v3826
      %v3877 = vpack.c.bf16 %v3829, %v3827
      %v3878 = vpack.c.bf16 %v3832, %v3830
      %v3879 = vpack.c.bf16 %v3833, %v3831
      %v3880 = vpack.c.bf16 %v3836, %v3834
      %v3881 = vpack.c.bf16 %v3837, %v3835
      %v3882 = vpack.c.bf16 %v3840, %v3838
      %v3883 = vpack.c.bf16 %v3841, %v3839
      %v3884 = vpack.c.bf16 %v3844, %v3842
      %v3885 = vpack.c.bf16 %v3845, %v3843
      %v3886 = vpack.c.bf16 %v3848, %v3846
      %v3887 = vpack.c.bf16 %v3849, %v3847
      %v3888 = vpack.c.bf16 %v3852, %v3850
      %v3889 = vpack.c.bf16 %v3853, %v3851
      %v3890 = vpack.c.bf16 %v3856, %v3854
      %v3891 = vpack.c.bf16 %v3857, %v3855
      %v3892 = vpack.c.bf16 %v3860, %v3858
      %v3893 = vpack.c.bf16 %v3861, %v3859
      %s3894 = scalar_lea.vmem %s4, 1536
      %v3895 = vld [vmem:[%s3894] sm:$0xff]
      %v3896 = vld [vmem:[%s3894 + $0x8] sm:$0xff]
      %v3897 = vld [vmem:[%s3894 + $0x10] sm:$0xff]
      %v3898 = vld [vmem:[%s3894 + $0x18] sm:$0xff]
      %v3899 = vld [vmem:[%s3894 + $0x20] sm:$0xff]
      %v3900 = vld [vmem:[%s3894 + $0x28] sm:$0xff]
      %v3901 = vld [vmem:[%s3894 + $0x30] sm:$0xff]
      %v3902 = vld [vmem:[%s3894 + $0x38] sm:$0xff]
      %v3903 = vld [vmem:[%s3894 + $0x40] sm:$0xff]
      %v3904 = vld [vmem:[%s3894 + $0x48] sm:$0xff]
      %v3905 = vld [vmem:[%s3894 + $0x50] sm:$0xff]
      %v3906 = vld [vmem:[%s3894 + $0x58] sm:$0xff]
      %v3907 = vld [vmem:[%s3894 + $0x60] sm:$0xff]
      %v3908 = vld [vmem:[%s3894 + $0x68] sm:$0xff]
      %v3909 = vld [vmem:[%s3894 + $0x70] sm:$0xff]
      %v3910 = vld [vmem:[%s3894 + $0x78] sm:$0xff]
      %v3911 = vld [vmem:[%s3894 + $0x80] sm:$0xff]
      %v3912 = vld [vmem:[%s3894 + $0x88] sm:$0xff]
      %v3913 = vld [vmem:[%s3894 + $0x90] sm:$0xff]
      %v3914 = vld [vmem:[%s3894 + $0x98] sm:$0xff]
      %v3915 = vld [vmem:[%s3894 + $0xa0] sm:$0xff]
      %v3916 = vld [vmem:[%s3894 + $0xa8] sm:$0xff]
      %v3917 = vld [vmem:[%s3894 + $0xb0] sm:$0xff]
      %v3918 = vld [vmem:[%s3894 + $0xb8] sm:$0xff]
      %v3919 = vld [vmem:[%s3894 + $0xc0] sm:$0xff]
      %v3920 = vld [vmem:[%s3894 + $0xc8] sm:$0xff]
      %v3921 = vld [vmem:[%s3894 + $0xd0] sm:$0xff]
      %v3922 = vld [vmem:[%s3894 + $0xd8] sm:$0xff]
      %v3923 = vld [vmem:[%s3894 + $0xe0] sm:$0xff]
      %v3924 = vld [vmem:[%s3894 + $0xe8] sm:$0xff]
      %v3925 = vld [vmem:[%s3894 + $0xf0] sm:$0xff]
      %v3926 = vld [vmem:[%s3894 + $0xf8] sm:$0xff]
      %s3927 = scalar_lea.vmem %s5, 12
      %v3928 = vld [vmem:[%s3927] sm:$0x3]
      %v3930 = vlaneseq
      %v3931 = vshrl.u32 %v3930, 7
      %v3932 = vsub.s32 0, %v3931
      %v3933 = vrot.slane %v3928, %v3932
      %v3934 = vlaneseq
      %v3935 = vshrl.u32 %v3934, 7
      %v3936 = vsub.s32 1, %v3935
      %v3937 = vrot.slane %v3928, %v3936
      %v3972 = vunpack.c.l.b16 %v3895
      %v3973 = vunpack.c.h.b16 %v3895
      %v3974 = vunpack.c.l.b16 %v3896
      %v3975 = vunpack.c.h.b16 %v3896
      %v3976 = vunpack.c.l.b16 %v3897
      %v3977 = vunpack.c.h.b16 %v3897
      %v3978 = vunpack.c.l.b16 %v3898
      %v3979 = vunpack.c.h.b16 %v3898
      %v3980 = vunpack.c.l.b16 %v3899
      %v3981 = vunpack.c.h.b16 %v3899
      %v3982 = vunpack.c.l.b16 %v3900
      %v3983 = vunpack.c.h.b16 %v3900
      %v3984 = vunpack.c.l.b16 %v3901
      %v3985 = vunpack.c.h.b16 %v3901
      %v3986 = vunpack.c.l.b16 %v3902
      %v3987 = vunpack.c.h.b16 %v3902
      %v3988 = vunpack.c.l.b16 %v3903
      %v3989 = vunpack.c.h.b16 %v3903
      %v3990 = vunpack.c.l.b16 %v3904
      %v3991 = vunpack.c.h.b16 %v3904
      %v3992 = vunpack.c.l.b16 %v3905
      %v3993 = vunpack.c.h.b16 %v3905
      %v3994 = vunpack.c.l.b16 %v3906
      %v3995 = vunpack.c.h.b16 %v3906
      %v3996 = vunpack.c.l.b16 %v3907
      %v3997 = vunpack.c.h.b16 %v3907
      %v3998 = vunpack.c.l.b16 %v3908
      %v3999 = vunpack.c.h.b16 %v3908
      %v4000 = vunpack.c.l.b16 %v3909
      %v4001 = vunpack.c.h.b16 %v3909
      %v4002 = vunpack.c.l.b16 %v3910
      %v4003 = vunpack.c.h.b16 %v3910
      %v4004 = vunpack.c.l.b16 %v3911
      %v4005 = vunpack.c.h.b16 %v3911
      %v4006 = vunpack.c.l.b16 %v3912
      %v4007 = vunpack.c.h.b16 %v3912
      %v4008 = vunpack.c.l.b16 %v3913
      %v4009 = vunpack.c.h.b16 %v3913
      %v4010 = vunpack.c.l.b16 %v3914
      %v4011 = vunpack.c.h.b16 %v3914
      %v4012 = vunpack.c.l.b16 %v3915
      %v4013 = vunpack.c.h.b16 %v3915
      %v4014 = vunpack.c.l.b16 %v3916
      %v4015 = vunpack.c.h.b16 %v3916
      %v4016 = vunpack.c.l.b16 %v3917
      %v4017 = vunpack.c.h.b16 %v3917
      %v4018 = vunpack.c.l.b16 %v3918
      %v4019 = vunpack.c.h.b16 %v3918
      %v4020 = vunpack.c.l.b16 %v3919
      %v4021 = vunpack.c.h.b16 %v3919
      %v4022 = vunpack.c.l.b16 %v3920
      %v4023 = vunpack.c.h.b16 %v3920
      %v4024 = vunpack.c.l.b16 %v3921
      %v4025 = vunpack.c.h.b16 %v3921
      %v4026 = vunpack.c.l.b16 %v3922
      %v4027 = vunpack.c.h.b16 %v3922
      %v4028 = vunpack.c.l.b16 %v3923
      %v4029 = vunpack.c.h.b16 %v3923
      %v4030 = vunpack.c.l.b16 %v3924
      %v4031 = vunpack.c.h.b16 %v3924
      %v4032 = vunpack.c.l.b16 %v3925
      %v4033 = vunpack.c.h.b16 %v3925
      %v4034 = vunpack.c.l.b16 %v3926
      %v4035 = vunpack.c.h.b16 %v3926
      %v4036 = vpack.c.b16 %v3974, %v3972
      %v4037 = vpack.c.b16 %v3975, %v3973
      %v4038 = vpack.c.b16 %v3978, %v3976
      %v4039 = vpack.c.b16 %v3979, %v3977
      %v4040 = vpack.c.b16 %v3982, %v3980
      %v4041 = vpack.c.b16 %v3983, %v3981
      %v4042 = vpack.c.b16 %v3986, %v3984
      %v4043 = vpack.c.b16 %v3987, %v3985
      %v4044 = vpack.c.b16 %v3990, %v3988
      %v4045 = vpack.c.b16 %v3991, %v3989
      %v4046 = vpack.c.b16 %v3994, %v3992
      %v4047 = vpack.c.b16 %v3995, %v3993
      %v4048 = vpack.c.b16 %v3998, %v3996
      %v4049 = vpack.c.b16 %v3999, %v3997
      %v4050 = vpack.c.b16 %v4002, %v4000
      %v4051 = vpack.c.b16 %v4003, %v4001
      %v4052 = vpack.c.b16 %v4006, %v4004
      %v4053 = vpack.c.b16 %v4007, %v4005
      %v4054 = vpack.c.b16 %v4010, %v4008
      %v4055 = vpack.c.b16 %v4011, %v4009
      %v4056 = vpack.c.b16 %v4014, %v4012
      %v4057 = vpack.c.b16 %v4015, %v4013
      %v4058 = vpack.c.b16 %v4018, %v4016
      %v4059 = vpack.c.b16 %v4019, %v4017
      %v4060 = vpack.c.b16 %v4022, %v4020
      %v4061 = vpack.c.b16 %v4023, %v4021
      %v4062 = vpack.c.b16 %v4026, %v4024
      %v4063 = vpack.c.b16 %v4027, %v4025
      %v4064 = vpack.c.b16 %v4030, %v4028
      %v4065 = vpack.c.b16 %v4031, %v4029
      %v4066 = vpack.c.b16 %v4034, %v4032
      %v4067 = vpack.c.b16 %v4035, %v4033
      %4100 = vmatprep.subr.bf16.mxu0 %v4037
      %4101 = vmatpush1.bf16.msra.mxu0 %v4036
      %4102 = vmatprep.subr.bf16.mxu0 %v4039
      %4103 = vmatpush1.bf16.msra.mxu0 %v4038
      %4104 = vmatprep.subr.bf16.mxu0 %v4041
      %4105 = vmatpush1.bf16.msra.mxu0 %v4040
      %4106 = vmatprep.subr.bf16.mxu0 %v4043
      %4107 = vmatpush1.bf16.msra.mxu0 %v4042
      %4108 = vmatprep.subr.bf16.mxu0 %v4045
      %4109 = vmatpush1.bf16.msra.mxu0 %v4044
      %4110 = vmatprep.subr.bf16.mxu0 %v4047
      %4111 = vmatpush1.bf16.msra.mxu0 %v4046
      %4112 = vmatprep.subr.bf16.mxu0 %v4049
      %4113 = vmatpush1.bf16.msra.mxu0 %v4048
      %4114 = vmatprep.subr.bf16.mxu0 %v4051
      %4115 = vmatpush1.bf16.msra.mxu0 %v4050
      %4116 = vmatprep.subr.bf16.mxu0 %v4053
      %4117 = vmatpush1.bf16.msra.mxu0 %v4052
      %4118 = vmatprep.subr.bf16.mxu0 %v4055
      %4119 = vmatpush1.bf16.msra.mxu0 %v4054
      %4120 = vmatprep.subr.bf16.mxu0 %v4057
      %4121 = vmatpush1.bf16.msra.mxu0 %v4056
      %4122 = vmatprep.subr.bf16.mxu0 %v4059
      %4123 = vmatpush1.bf16.msra.mxu0 %v4058
      %4124 = vmatprep.subr.bf16.mxu0 %v4061
      %4125 = vmatpush1.bf16.msra.mxu0 %v4060
      %4126 = vmatprep.subr.bf16.mxu0 %v4063
      %4127 = vmatpush1.bf16.msra.mxu0 %v4062
      %4128 = vmatprep.subr.bf16.mxu0 %v4065
      %4129 = vmatpush1.bf16.msra.mxu0 %v4064
      %4130 = vmatprep.subr.bf16.mxu0 %v4067
      %4131 = vmatpush1.bf16.msra.mxu0 %v4066
      %4132 = vmatprep.mubr.bf16.mxu0 %v3863
      %4133 = vmatmul.mubr.bf16.gmra.mrb[0].mxu0 %v3862
      %v4134 = vpop.f32.mrb[0].mxu0
      %v4135 = vadd.f32 %v3933, %v4134
      %v4136 = vpop.f32.mrb[0].mxu0
      %v4137 = vadd.f32 %v3937, %v4136
      %v4138 = vpop.f32.mrb[0].mxu0
      %v4139 = vadd.f32 %v3933, %v4138
      %v4140 = vpop.f32.mrb[0].mxu0
      %v4141 = vadd.f32 %v3937, %v4140
      %4142 = vmatprep.mubr.bf16.mxu0 %v3865
      %4143 = vmatmul.mubr.bf16.gmra.mrb[0].mxu0 %v3864
      %v4144 = vpop.f32.mrb[0].mxu0
      %v4145 = vadd.f32 %v3933, %v4144
      %v4146 = vpop.f32.mrb[0].mxu0
      %v4147 = vadd.f32 %v3937, %v4146
      %v4148 = vpop.f32.mrb[0].mxu0
      %v4149 = vadd.f32 %v3933, %v4148
      %v4150 = vpop.f32.mrb[0].mxu0
      %v4151 = vadd.f32 %v3937, %v4150
      %4152 = vmatprep.mubr.bf16.mxu0 %v3867
      %4153 = vmatmul.mubr.bf16.gmra.mrb[0].mxu0 %v3866
      %v4154 = vpop.f32.mrb[0].mxu0
      %v4155 = vadd.f32 %v3933, %v4154
      %v4156 = vpop.f32.mrb[0].mxu0
      %v4157 = vadd.f32 %v3937, %v4156
      %v4158 = vpop.f32.mrb[0].mxu0
      %v4159 = vadd.f32 %v3933, %v4158
      %v4160 = vpop.f32.mrb[0].mxu0
      %v4161 = vadd.f32 %v3937, %v4160
      %4162 = vmatprep.mubr.bf16.mxu0 %v3869
      %4163 = vmatmul.mubr.bf16.gmra.mrb[0].mxu0 %v3868
      %v4164 = vpop.f32.mrb[0].mxu0
      %v4165 = vadd.f32 %v3933, %v4164
      %v4166 = vpop.f32.mrb[0].mxu0
      %v4167 = vadd.f32 %v3937, %v4166
      %v4168 = vpop.f32.mrb[0].mxu0
      %v4169 = vadd.f32 %v3933, %v4168
      %v4170 = vpop.f32.mrb[0].mxu0
      %v4171 = vadd.f32 %v3937, %v4170
      %4172 = vmatprep.mubr.bf16.mxu0 %v3871
      %4173 = vmatmul.mubr.bf16.gmra.mrb[0].mxu0 %v3870
      %v4174 = vpop.f32.mrb[0].mxu0
      %v4175 = vadd.f32 %v3933, %v4174
      %v4176 = vpop.f32.mrb[0].mxu0
      %v4177 = vadd.f32 %v3937, %v4176
      %v4178 = vpop.f32.mrb[0].mxu0
      %v4179 = vadd.f32 %v3933, %v4178
      %v4180 = vpop.f32.mrb[0].mxu0
      %v4181 = vadd.f32 %v3937, %v4180
      %4182 = vmatprep.mubr.bf16.mxu0 %v3873
      %4183 = vmatmul.mubr.bf16.gmra.mrb[0].mxu0 %v3872
      %v4184 = vpop.f32.mrb[0].mxu0
      %v4185 = vadd.f32 %v3933, %v4184
      %v4186 = vpop.f32.mrb[0].mxu0
      %v4187 = vadd.f32 %v3937, %v4186
      %v4188 = vpop.f32.mrb[0].mxu0
      %v4189 = vadd.f32 %v3933, %v4188
      %v4190 = vpop.f32.mrb[0].mxu0
      %v4191 = vadd.f32 %v3937, %v4190
      %4192 = vmatprep.mubr.bf16.mxu0 %v3875
      %4193 = vmatmul.mubr.bf16.gmra.mrb[0].mxu0 %v3874
      %v4194 = vpop.f32.mrb[0].mxu0
      %v4195 = vadd.f32 %v3933, %v4194
      %v4196 = vpop.f32.mrb[0].mxu0
      %v4197 = vadd.f32 %v3937, %v4196
      %v4198 = vpop.f32.mrb[0].mxu0
      %v4199 = vadd.f32 %v3933, %v4198
      %v4200 = vpop.f32.mrb[0].mxu0
      %v4201 = vadd.f32 %v3937, %v4200
      %4202 = vmatprep.mubr.bf16.mxu0 %v3877
      %4203 = vmatmul.mubr.bf16.gmra.mrb[0].mxu0 %v3876
      %v4204 = vpop.f32.mrb[0].mxu0
      %v4205 = vadd.f32 %v3933, %v4204
      %v4206 = vpop.f32.mrb[0].mxu0
      %v4207 = vadd.f32 %v3937, %v4206
      %v4208 = vpop.f32.mrb[0].mxu0
      %v4209 = vadd.f32 %v3933, %v4208
      %v4210 = vpop.f32.mrb[0].mxu0
      %v4211 = vadd.f32 %v3937, %v4210
      %4212 = vmatprep.mubr.bf16.mxu0 %v3879
      %4213 = vmatmul.mubr.bf16.gmra.mrb[0].mxu0 %v3878
      %v4214 = vpop.f32.mrb[0].mxu0
      %v4215 = vadd.f32 %v3933, %v4214
      %v4216 = vpop.f32.mrb[0].mxu0
      %v4217 = vadd.f32 %v3937, %v4216
      %v4218 = vpop.f32.mrb[0].mxu0
      %v4219 = vadd.f32 %v3933, %v4218
      %v4220 = vpop.f32.mrb[0].mxu0
      %v4221 = vadd.f32 %v3937, %v4220
      %4222 = vmatprep.mubr.bf16.mxu0 %v3881
      %4223 = vmatmul.mubr.bf16.gmra.mrb[0].mxu0 %v3880
      %v4224 = vpop.f32.mrb[0].mxu0
      %v4225 = vadd.f32 %v3933, %v4224
      %v4226 = vpop.f32.mrb[0].mxu0
      %v4227 = vadd.f32 %v3937, %v4226
      %v4228 = vpop.f32.mrb[0].mxu0
      %v4229 = vadd.f32 %v3933, %v4228
      %v4230 = vpop.f32.mrb[0].mxu0
      %v4231 = vadd.f32 %v3937, %v4230
      %4232 = vmatprep.mubr.bf16.mxu0 %v3883
      %4233 = vmatmul.mubr.bf16.gmra.mrb[0].mxu0 %v3882
      %v4234 = vpop.f32.mrb[0].mxu0
      %v4235 = vadd.f32 %v3933, %v4234
      %v4236 = vpop.f32.mrb[0].mxu0
      %v4237 = vadd.f32 %v3937, %v4236
      %v4238 = vpop.f32.mrb[0].mxu0
      %v4239 = vadd.f32 %v3933, %v4238
      %v4240 = vpop.f32.mrb[0].mxu0
      %v4241 = vadd.f32 %v3937, %v4240
      %4242 = vmatprep.mubr.bf16.mxu0 %v3885
      %4243 = vmatmul.mubr.bf16.gmra.mrb[0].mxu0 %v3884
      %v4244 = vpop.f32.mrb[0].mxu0
      %v4245 = vadd.f32 %v3933, %v4244
      %v4246 = vpop.f32.mrb[0].mxu0
      %v4247 = vadd.f32 %v3937, %v4246
      %v4248 = vpop.f32.mrb[0].mxu0
      %v4249 = vadd.f32 %v3933, %v4248
      %v4250 = vpop.f32.mrb[0].mxu0
      %v4251 = vadd.f32 %v3937, %v4250
      %4252 = vmatprep.mubr.bf16.mxu0 %v3887
      %4253 = vmatmul.mubr.bf16.gmra.mrb[0].mxu0 %v3886
      %v4254 = vpop.f32.mrb[0].mxu0
      %v4255 = vadd.f32 %v3933, %v4254
      %v4256 = vpop.f32.mrb[0].mxu0
      %v4257 = vadd.f32 %v3937, %v4256
      %v4258 = vpop.f32.mrb[0].mxu0
      %v4259 = vadd.f32 %v3933, %v4258
      %v4260 = vpop.f32.mrb[0].mxu0
      %v4261 = vadd.f32 %v3937, %v4260
      %4262 = vmatprep.mubr.bf16.mxu0 %v3889
      %4263 = vmatmul.mubr.bf16.gmra.mrb[0].mxu0 %v3888
      %v4264 = vpop.f32.mrb[0].mxu0
      %v4265 = vadd.f32 %v3933, %v4264
      %v4266 = vpop.f32.mrb[0].mxu0
      %v4267 = vadd.f32 %v3937, %v4266
      %v4268 = vpop.f32.mrb[0].mxu0
      %v4269 = vadd.f32 %v3933, %v4268
      %v4270 = vpop.f32.mrb[0].mxu0
      %v4271 = vadd.f32 %v3937, %v4270
      %4272 = vmatprep.mubr.bf16.mxu0 %v3891
      %4273 = vmatmul.mubr.bf16.gmra.mrb[0].mxu0 %v3890
      %v4274 = vpop.f32.mrb[0].mxu0
      %v4275 = vadd.f32 %v3933, %v4274
      %v4276 = vpop.f32.mrb[0].mxu0
      %v4277 = vadd.f32 %v3937, %v4276
      %v4278 = vpop.f32.mrb[0].mxu0
      %v4279 = vadd.f32 %v3933, %v4278
      %v4280 = vpop.f32.mrb[0].mxu0
      %v4281 = vadd.f32 %v3937, %v4280
      %4282 = vmatprep.mubr.bf16.mxu0 %v3893
      %4283 = vmatmul.mubr.bf16.gmra.mrb[0].mxu0 %v3892
      %v4284 = vpop.f32.mrb[0].mxu0
      %v4285 = vadd.f32 %v3933, %v4284
      %v4286 = vpop.f32.mrb[0].mxu0
      %v4287 = vadd.f32 %v3937, %v4286
      %v4288 = vpop.f32.mrb[0].mxu0
      %v4289 = vadd.f32 %v3933, %v4288
      %v4290 = vpop.f32.mrb[0].mxu0
      %v4291 = vadd.f32 %v3937, %v4290
      %4292 = vdwg.mxu0
      %v4293 = vmax.f32 %v4135, 0.0
      %v4294 = vmax.f32 %v4137, 0.0
      %v4295 = vmax.f32 %v4139, 0.0
      %v4296 = vmax.f32 %v4141, 0.0
      %v4297 = vmax.f32 %v4145, 0.0
      %v4298 = vmax.f32 %v4147, 0.0
      %v4299 = vmax.f32 %v4149, 0.0
      %v4300 = vmax.f32 %v4151, 0.0
      %v4301 = vmax.f32 %v4155, 0.0
      %v4302 = vmax.f32 %v4157, 0.0
      %v4303 = vmax.f32 %v4159, 0.0
      %v4304 = vmax.f32 %v4161, 0.0
      %v4305 = vmax.f32 %v4165, 0.0
      %v4306 = vmax.f32 %v4167, 0.0
      %v4307 = vmax.f32 %v4169, 0.0
      %v4308 = vmax.f32 %v4171, 0.0
      %v4309 = vmax.f32 %v4175, 0.0
      %v4310 = vmax.f32 %v4177, 0.0
      %v4311 = vmax.f32 %v4179, 0.0
      %v4312 = vmax.f32 %v4181, 0.0
      %v4313 = vmax.f32 %v4185, 0.0
      %v4314 = vmax.f32 %v4187, 0.0
      %v4315 = vmax.f32 %v4189, 0.0
      %v4316 = vmax.f32 %v4191, 0.0
      %v4317 = vmax.f32 %v4195, 0.0
      %v4318 = vmax.f32 %v4197, 0.0
      %v4319 = vmax.f32 %v4199, 0.0
      %v4320 = vmax.f32 %v4201, 0.0
      %v4321 = vmax.f32 %v4205, 0.0
      %v4322 = vmax.f32 %v4207, 0.0
      %v4323 = vmax.f32 %v4209, 0.0
      %v4324 = vmax.f32 %v4211, 0.0
      %v4325 = vmax.f32 %v4215, 0.0
      %v4326 = vmax.f32 %v4217, 0.0
      %v4327 = vmax.f32 %v4219, 0.0
      %v4328 = vmax.f32 %v4221, 0.0
      %v4329 = vmax.f32 %v4225, 0.0
      %v4330 = vmax.f32 %v4227, 0.0
      %v4331 = vmax.f32 %v4229, 0.0
      %v4332 = vmax.f32 %v4231, 0.0
      %v4333 = vmax.f32 %v4235, 0.0
      %v4334 = vmax.f32 %v4237, 0.0
      %v4335 = vmax.f32 %v4239, 0.0
      %v4336 = vmax.f32 %v4241, 0.0
      %v4337 = vmax.f32 %v4245, 0.0
      %v4338 = vmax.f32 %v4247, 0.0
      %v4339 = vmax.f32 %v4249, 0.0
      %v4340 = vmax.f32 %v4251, 0.0
      %v4341 = vmax.f32 %v4255, 0.0
      %v4342 = vmax.f32 %v4257, 0.0
      %v4343 = vmax.f32 %v4259, 0.0
      %v4344 = vmax.f32 %v4261, 0.0
      %v4345 = vmax.f32 %v4265, 0.0
      %v4346 = vmax.f32 %v4267, 0.0
      %v4347 = vmax.f32 %v4269, 0.0
      %v4348 = vmax.f32 %v4271, 0.0
      %v4349 = vmax.f32 %v4275, 0.0
      %v4350 = vmax.f32 %v4277, 0.0
      %v4351 = vmax.f32 %v4279, 0.0
      %v4352 = vmax.f32 %v4281, 0.0
      %v4353 = vmax.f32 %v4285, 0.0
      %v4354 = vmax.f32 %v4287, 0.0
      %v4355 = vmax.f32 %v4289, 0.0
      %v4356 = vmax.f32 %v4291, 0.0
      %v4357 = vpack.c.bf16 %v4295, %v4293
      %v4358 = vpack.c.bf16 %v4296, %v4294
      %v4359 = vpack.c.bf16 %v4299, %v4297
      %v4360 = vpack.c.bf16 %v4300, %v4298
      %v4361 = vpack.c.bf16 %v4303, %v4301
      %v4362 = vpack.c.bf16 %v4304, %v4302
      %v4363 = vpack.c.bf16 %v4307, %v4305
      %v4364 = vpack.c.bf16 %v4308, %v4306
      %v4365 = vpack.c.bf16 %v4311, %v4309
      %v4366 = vpack.c.bf16 %v4312, %v4310
      %v4367 = vpack.c.bf16 %v4315, %v4313
      %v4368 = vpack.c.bf16 %v4316, %v4314
      %v4369 = vpack.c.bf16 %v4319, %v4317
      %v4370 = vpack.c.bf16 %v4320, %v4318
      %v4371 = vpack.c.bf16 %v4323, %v4321
      %v4372 = vpack.c.bf16 %v4324, %v4322
      %v4373 = vpack.c.bf16 %v4327, %v4325
      %v4374 = vpack.c.bf16 %v4328, %v4326
      %v4375 = vpack.c.bf16 %v4331, %v4329
      %v4376 = vpack.c.bf16 %v4332, %v4330
      %v4377 = vpack.c.bf16 %v4335, %v4333
      %v4378 = vpack.c.bf16 %v4336, %v4334
      %v4379 = vpack.c.bf16 %v4339, %v4337
      %v4380 = vpack.c.bf16 %v4340, %v4338
      %v4381 = vpack.c.bf16 %v4343, %v4341
      %v4382 = vpack.c.bf16 %v4344, %v4342
      %v4383 = vpack.c.bf16 %v4347, %v4345
      %v4384 = vpack.c.bf16 %v4348, %v4346
      %v4385 = vpack.c.bf16 %v4351, %v4349
      %v4386 = vpack.c.bf16 %v4352, %v4350
      %v4387 = vpack.c.bf16 %v4355, %v4353
      %v4388 = vpack.c.bf16 %v4356, %v4354
      %v4389 = vld [vmem:[%s6] sm:$0xff]
      %v4390 = vld [vmem:[%s6 + $0x8] sm:$0xff]
      %v4391 = vld [vmem:[%s6 + $0x10] sm:$0xff]
      %v4392 = vld [vmem:[%s6 + $0x18] sm:$0xff]
      %v4393 = vld [vmem:[%s6 + $0x20] sm:$0xf]
      %v4394 = vld [vmem:[%s6 + $0x24] sm:$0xff]
      %v4395 = vld [vmem:[%s6 + $0x2c] sm:$0xff]
      %v4396 = vld [vmem:[%s6 + $0x34] sm:$0xff]
      %v4397 = vld [vmem:[%s6 + $0x3c] sm:$0xff]
      %v4398 = vld [vmem:[%s6 + $0x44] sm:$0xf]
      %v4399 = vld [vmem:[%s6 + $0x48] sm:$0xff]
      %v4400 = vld [vmem:[%s6 + $0x50] sm:$0xff]
      %v4401 = vld [vmem:[%s6 + $0x58] sm:$0xff]
      %v4402 = vld [vmem:[%s6 + $0x60] sm:$0xff]
      %v4403 = vld [vmem:[%s6 + $0x68] sm:$0xf]
      %v4404 = vld [vmem:[%s6 + $0x6c] sm:$0xff]
      %v4405 = vld [vmem:[%s6 + $0x74] sm:$0xff]
      %v4406 = vld [vmem:[%s6 + $0x7c] sm:$0xff]
      %v4407 = vld [vmem:[%s6 + $0x84] sm:$0xff]
      %v4408 = vld [vmem:[%s6 + $0x8c] sm:$0xf]
      %v4409 = vld [vmem:[%s6 + $0x90] sm:$0xff]
      %v4410 = vld [vmem:[%s6 + $0x98] sm:$0xff]
      %v4411 = vld [vmem:[%s6 + $0xa0] sm:$0xff]
      %v4412 = vld [vmem:[%s6 + $0xa8] sm:$0xff]
      %v4413 = vld [vmem:[%s6 + $0xb0] sm:$0xf]
      %v4414 = vld [vmem:[%s6 + $0xb4] sm:$0xff]
      %v4415 = vld [vmem:[%s6 + $0xbc] sm:$0xff]
      %v4416 = vld [vmem:[%s6 + $0xc4] sm:$0xff]
      %v4417 = vld [vmem:[%s6 + $0xcc] sm:$0xff]
      %v4418 = vld [vmem:[%s6 + $0xd4] sm:$0xf]
      %v4419 = vld [vmem:[%s6 + $0xd8] sm:$0xff]
      %v4420 = vld [vmem:[%s6 + $0xe0] sm:$0xff]
      %v4421 = vld [vmem:[%s6 + $0xe8] sm:$0xff]
      %v4422 = vld [vmem:[%s6 + $0xf0] sm:$0xff]
      %v4423 = vld [vmem:[%s6 + $0xf8] sm:$0xf]
      %v4424 = vld [vmem:[%s6 + $0xfc] sm:$0xff]
      %v4425 = vld [vmem:[%s6 + $0x104] sm:$0xff]
      %v4426 = vld [vmem:[%s6 + $0x10c] sm:$0xff]
      %v4427 = vld [vmem:[%s6 + $0x114] sm:$0xff]
      %v4428 = vld [vmem:[%s6 + $0x11c] sm:$0xf]
      %v4429 = vld [vmem:[%s6 + $0x120] sm:$0xff]
      %v4430 = vld [vmem:[%s6 + $0x128] sm:$0xff]
      %v4431 = vld [vmem:[%s6 + $0x130] sm:$0xff]
      %v4432 = vld [vmem:[%s6 + $0x138] sm:$0xff]
      %v4433 = vld [vmem:[%s6 + $0x140] sm:$0xf]
      %v4434 = vld [vmem:[%s6 + $0x144] sm:$0xff]
      %v4435 = vld [vmem:[%s6 + $0x14c] sm:$0xff]
      %v4436 = vld [vmem:[%s6 + $0x154] sm:$0xff]
      %v4437 = vld [vmem:[%s6 + $0x15c] sm:$0xff]
      %v4438 = vld [vmem:[%s6 + $0x164] sm:$0xf]
      %v4439 = vld [vmem:[%s6 + $0x168] sm:$0xff]
      %v4440 = vld [vmem:[%s6 + $0x170] sm:$0xff]
      %v4441 = vld [vmem:[%s6 + $0x178] sm:$0xff]
      %v4442 = vld [vmem:[%s6 + $0x180] sm:$0xff]
      %v4443 = vld [vmem:[%s6 + $0x188] sm:$0xf]
      %v4444 = vld [vmem:[%s6 + $0x18c] sm:$0xff]
      %v4445 = vld [vmem:[%s6 + $0x194] sm:$0xff]
      %v4446 = vld [vmem:[%s6 + $0x19c] sm:$0xff]
      %v4447 = vld [vmem:[%s6 + $0x1a4] sm:$0xff]
      %v4448 = vld [vmem:[%s6 + $0x1ac] sm:$0xf]
      %v4449 = vld [vmem:[%s6 + $0x1b0] sm:$0xff]
      %v4450 = vld [vmem:[%s6 + $0x1b8] sm:$0xff]
      %v4451 = vld [vmem:[%s6 + $0x1c0] sm:$0xff]
      %v4452 = vld [vmem:[%s6 + $0x1c8] sm:$0xff]
      %v4453 = vld [vmem:[%s6 + $0x1d0] sm:$0xf]
      %v4454 = vld [vmem:[%s6 + $0x1d4] sm:$0xff]
      %v4455 = vld [vmem:[%s6 + $0x1dc] sm:$0xff]
      %v4456 = vld [vmem:[%s6 + $0x1e4] sm:$0xff]
      %v4457 = vld [vmem:[%s6 + $0x1ec] sm:$0xff]
      %v4458 = vld [vmem:[%s6 + $0x1f4] sm:$0xf]
      %v4459 = vld [vmem:[%s6 + $0x1f8] sm:$0xff]
      %v4460 = vld [vmem:[%s6 + $0x200] sm:$0xff]
      %v4461 = vld [vmem:[%s6 + $0x208] sm:$0xff]
      %v4462 = vld [vmem:[%s6 + $0x210] sm:$0xff]
      %v4463 = vld [vmem:[%s6 + $0x218] sm:$0xf]
      %v4464 = vld [vmem:[%s6 + $0x21c] sm:$0xff]
      %v4465 = vld [vmem:[%s6 + $0x224] sm:$0xff]
      %v4466 = vld [vmem:[%s6 + $0x22c] sm:$0xff]
      %v4467 = vld [vmem:[%s6 + $0x234] sm:$0xff]
      %v4468 = vld [vmem:[%s6 + $0x23c] sm:$0xf]
      %v4469 = vld [vmem:[%s6 + $0x240] sm:$0xff]
      %v4470 = vld [vmem:[%s6 + $0x248] sm:$0xff]
      %v4471 = vld [vmem:[%s6 + $0x250] sm:$0xff]
      %v4472 = vld [vmem:[%s6 + $0x258] sm:$0xff]
      %v4473 = vld [vmem:[%s6 + $0x260] sm:$0xf]
      %v4474 = vld [vmem:[%s6 + $0x264] sm:$0xff]
      %v4475 = vld [vmem:[%s6 + $0x26c] sm:$0xff]
      %v4476 = vld [vmem:[%s6 + $0x274] sm:$0xff]
      %v4477 = vld [vmem:[%s6 + $0x27c] sm:$0xff]
      %v4478 = vld [vmem:[%s6 + $0x284] sm:$0xf]
      %v4479 = vld [vmem:[%s6 + $0x288] sm:$0xff]
      %v4480 = vld [vmem:[%s6 + $0x290] sm:$0xff]
      %v4481 = vld [vmem:[%s6 + $0x298] sm:$0xff]
      %v4482 = vld [vmem:[%s6 + $0x2a0] sm:$0xff]
      %v4483 = vld [vmem:[%s6 + $0x2a8] sm:$0xf]
      %v4484 = vld [vmem:[%s6 + $0x2ac] sm:$0xff]
      %v4485 = vld [vmem:[%s6 + $0x2b4] sm:$0xff]
      %v4486 = vld [vmem:[%s6 + $0x2bc] sm:$0xff]
      %v4487 = vld [vmem:[%s6 + $0x2c4] sm:$0xff]
      %v4488 = vld [vmem:[%s6 + $0x2cc] sm:$0xf]
      %v4489 = vld [vmem:[%s6 + $0x2d0] sm:$0xff]
      %v4490 = vld [vmem:[%s6 + $0x2d8] sm:$0xff]
      %v4491 = vld [vmem:[%s6 + $0x2e0] sm:$0xff]
      %v4492 = vld [vmem:[%s6 + $0x2e8] sm:$0xff]
      %v4493 = vld [vmem:[%s6 + $0x2f0] sm:$0xf]
      %v4494 = vld [vmem:[%s6 + $0x2f4] sm:$0xff]
      %v4495 = vld [vmem:[%s6 + $0x2fc] sm:$0xff]
      %v4496 = vld [vmem:[%s6 + $0x304] sm:$0xff]
      %v4497 = vld [vmem:[%s6 + $0x30c] sm:$0xff]
      %v4498 = vld [vmem:[%s6 + $0x314] sm:$0xf]
      %v4499 = vld [vmem:[%s6 + $0x318] sm:$0xff]
      %v4500 = vld [vmem:[%s6 + $0x320] sm:$0xff]
      %v4501 = vld [vmem:[%s6 + $0x328] sm:$0xff]
      %v4502 = vld [vmem:[%s6 + $0x330] sm:$0xff]
      %v4503 = vld [vmem:[%s6 + $0x338] sm:$0xf]
      %v4504 = vld [vmem:[%s6 + $0x33c] sm:$0xff]
      %v4505 = vld [vmem:[%s6 + $0x344] sm:$0xff]
      %v4506 = vld [vmem:[%s6 + $0x34c] sm:$0xff]
      %v4507 = vld [vmem:[%s6 + $0x354] sm:$0xff]
      %v4508 = vld [vmem:[%s6 + $0x35c] sm:$0xf]
      %v4509 = vld [vmem:[%s6 + $0x360] sm:$0xff]
      %v4510 = vld [vmem:[%s6 + $0x368] sm:$0xff]
      %v4511 = vld [vmem:[%s6 + $0x370] sm:$0xff]
      %v4512 = vld [vmem:[%s6 + $0x378] sm:$0xff]
      %v4513 = vld [vmem:[%s6 + $0x380] sm:$0xf]
      %v4514 = vld [vmem:[%s6 + $0x384] sm:$0xff]
      %v4515 = vld [vmem:[%s6 + $0x38c] sm:$0xff]
      %v4516 = vld [vmem:[%s6 + $0x394] sm:$0xff]
      %v4517 = vld [vmem:[%s6 + $0x39c] sm:$0xff]
      %v4518 = vld [vmem:[%s6 + $0x3a4] sm:$0xf]
      %v4519 = vld [vmem:[%s6 + $0x3a8] sm:$0xff]
      %v4520 = vld [vmem:[%s6 + $0x3b0] sm:$0xff]
      %v4521 = vld [vmem:[%s6 + $0x3b8] sm:$0xff]
      %v4522 = vld [vmem:[%s6 + $0x3c0] sm:$0xff]
      %v4523 = vld [vmem:[%s6 + $0x3c8] sm:$0xf]
      %v4524 = vld [vmem:[%s6 + $0x3cc] sm:$0xff]
      %v4525 = vld [vmem:[%s6 + $0x3d4] sm:$0xff]
      %v4526 = vld [vmem:[%s6 + $0x3dc] sm:$0xff]
      %v4527 = vld [vmem:[%s6 + $0x3e4] sm:$0xff]
      %v4528 = vld [vmem:[%s6 + $0x3ec] sm:$0xf]
      %v4529 = vld [vmem:[%s6 + $0x3f0] sm:$0xff]
      %v4530 = vld [vmem:[%s6 + $0x3f8] sm:$0xff]
      %v4531 = vld [vmem:[%s6 + $0x400] sm:$0xff]
      %v4532 = vld [vmem:[%s6 + $0x408] sm:$0xff]
      %v4533 = vld [vmem:[%s6 + $0x410] sm:$0xf]
      %v4534 = vld [vmem:[%s6 + $0x414] sm:$0xff]
      %v4535 = vld [vmem:[%s6 + $0x41c] sm:$0xff]
      %v4536 = vld [vmem:[%s6 + $0x424] sm:$0xff]
      %v4537 = vld [vmem:[%s6 + $0x42c] sm:$0xff]
      %v4538 = vld [vmem:[%s6 + $0x434] sm:$0xf]
      %v4539 = vld [vmem:[%s6 + $0x438] sm:$0xff]
      %v4540 = vld [vmem:[%s6 + $0x440] sm:$0xff]
      %v4541 = vld [vmem:[%s6 + $0x448] sm:$0xff]
      %v4542 = vld [vmem:[%s6 + $0x450] sm:$0xff]
      %v4543 = vld [vmem:[%s6 + $0x458] sm:$0xf]
      %v4544 = vld [vmem:[%s6 + $0x45c] sm:$0xff]
      %v4545 = vld [vmem:[%s6 + $0x464] sm:$0xff]
      %v4546 = vld [vmem:[%s6 + $0x46c] sm:$0xff]
      %v4547 = vld [vmem:[%s6 + $0x474] sm:$0xff]
      %v4548 = vld [vmem:[%s6 + $0x47c] sm:$0xf]
      %v4549 = vld [vmem:[%s7] sm:$0xff]
      %v4550 = vld [vmem:[%s7 + $0x8] sm:$0x1]
      %v4553 = vlaneseq
      %v4554 = vshrl.u32 %v4553, 7
      %v4555 = vsub.s32 0, %v4554
      %v4556 = vrot.slane %v4549, %v4555
      %v4557 = vlaneseq
      %v4558 = vshrl.u32 %v4557, 7
      %v4559 = vsub.s32 1, %v4558
      %v4560 = vrot.slane %v4549, %v4559
      %v4561 = vlaneseq
      %v4562 = vshrl.u32 %v4561, 7
      %v4563 = vsub.s32 2, %v4562
      %v4564 = vrot.slane %v4549, %v4563
      %v4565 = vlaneseq
      %v4566 = vshrl.u32 %v4565, 7
      %v4567 = vsub.s32 3, %v4566
      %v4568 = vrot.slane %v4549, %v4567
      %v4569 = vlaneseq
      %v4570 = vshrl.u32 %v4569, 7
      %v4571 = vsub.s32 4, %v4570
      %v4572 = vrot.slane %v4549, %v4571
      %v4573 = vlaneseq
      %v4574 = vshrl.u32 %v4573, 7
      %v4575 = vsub.s32 5, %v4574
      %v4576 = vrot.slane %v4549, %v4575
      %v4577 = vlaneseq
      %v4578 = vshrl.u32 %v4577, 7
      %v4579 = vsub.s32 6, %v4578
      %v4580 = vrot.slane %v4549, %v4579
      %v4581 = vlaneseq
      %v4582 = vshrl.u32 %v4581, 7
      %v4583 = vsub.s32 7, %v4582
      %v4584 = vrot.slane %v4549, %v4583
      %v4585 = vlaneseq
      %v4586 = vshrl.u32 %v4585, 7
      %v4587 = vsub.s32 0, %v4586
      %v4588 = vrot.slane %v4550, %v4587
      %v4758 = vunpack.c.l.b16 %v4389
      %v4759 = vunpack.c.h.b16 %v4389
      %v4760 = vunpack.c.l.b16 %v4390
      %v4761 = vunpack.c.h.b16 %v4390
      %v4762 = vunpack.c.l.b16 %v4391
      %v4763 = vunpack.c.h.b16 %v4391
      %v4764 = vunpack.c.l.b16 %v4392
      %v4765 = vunpack.c.h.b16 %v4392
      %v4766 = vunpack.c.l.b16 %v4393
      %v4767 = vunpack.c.l.b16 %v4394
      %v4768 = vunpack.c.h.b16 %v4394
      %v4769 = vunpack.c.l.b16 %v4395
      %v4770 = vunpack.c.h.b16 %v4395
      %v4771 = vunpack.c.l.b16 %v4396
      %v4772 = vunpack.c.h.b16 %v4396
      %v4773 = vunpack.c.l.b16 %v4397
      %v4774 = vunpack.c.h.b16 %v4397
      %v4775 = vunpack.c.l.b16 %v4398
      %v4776 = vunpack.c.l.b16 %v4399
      %v4777 = vunpack.c.h.b16 %v4399
      %v4778 = vunpack.c.l.b16 %v4400
      %v4779 = vunpack.c.h.b16 %v4400
      %v4780 = vunpack.c.l.b16 %v4401
      %v4781 = vunpack.c.h.b16 %v4401
      %v4782 = vunpack.c.l.b16 %v4402
      %v4783 = vunpack.c.h.b16 %v4402
      %v4784 = vunpack.c.l.b16 %v4403
      %v4785 = vunpack.c.l.b16 %v4404
      %v4786 = vunpack.c.h.b16 %v4404
      %v4787 = vunpack.c.l.b16 %v4405
      %v4788 = vunpack.c.h.b16 %v4405
      %v4789 = vunpack.c.l.b16 %v4406
      %v4790 = vunpack.c.h.b16 %v4406
      %v4791 = vunpack.c.l.b16 %v4407
      %v4792 = vunpack.c.h.b16 %v4407
      %v4793 = vunpack.c.l.b16 %v4408
      %v4794 = vunpack.c.l.b16 %v4409
      %v4795 = vunpack.c.h.b16 %v4409
      %v4796 = vunpack.c.l.b16 %v4410
      %v4797 = vunpack.c.h.b16 %v4410
      %v4798 = vunpack.c.l.b16 %v4411
      %v4799 = vunpack.c.h.b16 %v4411
      %v4800 = vunpack.c.l.b16 %v4412
      %v4801 = vunpack.c.h.b16 %v4412
      %v4802 = vunpack.c.l.b16 %v4413
      %v4803 = vunpack.c.l.b16 %v4414
      %v4804 = vunpack.c.h.b16 %v4414
      %v4805 = vunpack.c.l.b16 %v4415
      %v4806 = vunpack.c.h.b16 %v4415
      %v4807 = vunpack.c.l.b16 %v4416
      %v4808 = vunpack.c.h.b16 %v4416
      %v4809 = vunpack.c.l.b16 %v4417
      %v4810 = vunpack.c.h.b16 %v4417
      %v4811 = vunpack.c.l.b16 %v4418
      %v4812 = vunpack.c.l.b16 %v4419
      %v4813 = vunpack.c.h.b16 %v4419
      %v4814 = vunpack.c.l.b16 %v4420
      %v4815 = vunpack.c.h.b16 %v4420
      %v4816 = vunpack.c.l.b16 %v4421
      %v4817 = vunpack.c.h.b16 %v4421
      %v4818 = vunpack.c.l.b16 %v4422
      %v4819 = vunpack.c.h.b16 %v4422
      %v4820 = vunpack.c.l.b16 %v4423
      %v4821 = vunpack.c.l.b16 %v4424
      %v4822 = vunpack.c.h.b16 %v4424
      %v4823 = vunpack.c.l.b16 %v4425
      %v4824 = vunpack.c.h.b16 %v4425
      %v4825 = vunpack.c.l.b16 %v4426
      %v4826 = vunpack.c.h.b16 %v4426
      %v4827 = vunpack.c.l.b16 %v4427
      %v4828 = vunpack.c.h.b16 %v4427
      %v4829 = vunpack.c.l.b16 %v4428
      %v4830 = vunpack.c.l.b16 %v4429
      %v4831 = vunpack.c.h.b16 %v4429
      %v4832 = vunpack.c.l.b16 %v4430
      %v4833 = vunpack.c.h.b16 %v4430
      %v4834 = vunpack.c.l.b16 %v4431
      %v4835 = vunpack.c.h.b16 %v4431
      %v4836 = vunpack.c.l.b16 %v4432
      %v4837 = vunpack.c.h.b16 %v4432
      %v4838 = vunpack.c.l.b16 %v4433
      %v4839 = vunpack.c.l.b16 %v4434
      %v4840 = vunpack.c.h.b16 %v4434
      %v4841 = vunpack.c.l.b16 %v4435
      %v4842 = vunpack.c.h.b16 %v4435
      %v4843 = vunpack.c.l.b16 %v4436
      %v4844 = vunpack.c.h.b16 %v4436
      %v4845 = vunpack.c.l.b16 %v4437
      %v4846 = vunpack.c.h.b16 %v4437
      %v4847 = vunpack.c.l.b16 %v4438
      %v4848 = vunpack.c.l.b16 %v4439
      %v4849 = vunpack.c.h.b16 %v4439
      %v4850 = vunpack.c.l.b16 %v4440
      %v4851 = vunpack.c.h.b16 %v4440
      %v4852 = vunpack.c.l.b16 %v4441
      %v4853 = vunpack.c.h.b16 %v4441
      %v4854 = vunpack.c.l.b16 %v4442
      %v4855 = vunpack.c.h.b16 %v4442
      %v4856 = vunpack.c.l.b16 %v4443
      %v4857 = vunpack.c.l.b16 %v4444
      %v4858 = vunpack.c.h.b16 %v4444
      %v4859 = vunpack.c.l.b16 %v4445
      %v4860 = vunpack.c.h.b16 %v4445
      %v4861 = vunpack.c.l.b16 %v4446
      %v4862 = vunpack.c.h.b16 %v4446
      %v4863 = vunpack.c.l.b16 %v4447
      %v4864 = vunpack.c.h.b16 %v4447
      %v4865 = vunpack.c.l.b16 %v4448
      %v4866 = vunpack.c.l.b16 %v4449
      %v4867 = vunpack.c.h.b16 %v4449
      %v4868 = vunpack.c.l.b16 %v4450
      %v4869 = vunpack.c.h.b16 %v4450
      %v4870 = vunpack.c.l.b16 %v4451
      %v4871 = vunpack.c.h.b16 %v4451
      %v4872 = vunpack.c.l.b16 %v4452
      %v4873 = vunpack.c.h.b16 %v4452
      %v4874 = vunpack.c.l.b16 %v4453
      %v4875 = vunpack.c.l.b16 %v4454
      %v4876 = vunpack.c.h.b16 %v4454
      %v4877 = vunpack.c.l.b16 %v4455
      %v4878 = vunpack.c.h.b16 %v4455
      %v4879 = vunpack.c.l.b16 %v4456
      %v4880 = vunpack.c.h.b16 %v4456
      %v4881 = vunpack.c.l.b16 %v4457
      %v4882 = vunpack.c.h.b16 %v4457
      %v4883 = vunpack.c.l.b16 %v4458
      %v4884 = vunpack.c.l.b16 %v4459
      %v4885 = vunpack.c.h.b16 %v4459
      %v4886 = vunpack.c.l.b16 %v4460
      %v4887 = vunpack.c.h.b16 %v4460
      %v4888 = vunpack.c.l.b16 %v4461
      %v4889 = vunpack.c.h.b16 %v4461
      %v4890 = vunpack.c.l.b16 %v4462
      %v4891 = vunpack.c.h.b16 %v4462
      %v4892 = vunpack.c.l.b16 %v4463
      %v4893 = vunpack.c.l.b16 %v4464
      %v4894 = vunpack.c.h.b16 %v4464
      %v4895 = vunpack.c.l.b16 %v4465
      %v4896 = vunpack.c.h.b16 %v4465
      %v4897 = vunpack.c.l.b16 %v4466
      %v4898 = vunpack.c.h.b16 %v4466
      %v4899 = vunpack.c.l.b16 %v4467
      %v4900 = vunpack.c.h.b16 %v4467
      %v4901 = vunpack.c.l.b16 %v4468
      %v4902 = vunpack.c.l.b16 %v4469
      %v4903 = vunpack.c.h.b16 %v4469
      %v4904 = vunpack.c.l.b16 %v4470
      %v4905 = vunpack.c.h.b16 %v4470
      %v4906 = vunpack.c.l.b16 %v4471
      %v4907 = vunpack.c.h.b16 %v4471
      %v4908 = vunpack.c.l.b16 %v4472
      %v4909 = vunpack.c.h.b16 %v4472
      %v4910 = vunpack.c.l.b16 %v4473
      %v4911 = vunpack.c.l.b16 %v4474
      %v4912 = vunpack.c.h.b16 %v4474
      %v4913 = vunpack.c.l.b16 %v4475
      %v4914 = vunpack.c.h.b16 %v4475
      %v4915 = vunpack.c.l.b16 %v4476
      %v4916 = vunpack.c.h.b16 %v4476
      %v4917 = vunpack.c.l.b16 %v4477
      %v4918 = vunpack.c.h.b16 %v4477
      %v4919 = vunpack.c.l.b16 %v4478
      %v4920 = vunpack.c.l.b16 %v4479
      %v4921 = vunpack.c.h.b16 %v4479
      %v4922 = vunpack.c.l.b16 %v4480
      %v4923 = vunpack.c.h.b16 %v4480
      %v4924 = vunpack.c.l.b16 %v4481
      %v4925 = vunpack.c.h.b16 %v4481
      %v4926 = vunpack.c.l.b16 %v4482
      %v4927 = vunpack.c.h.b16 %v4482
      %v4928 = vunpack.c.l.b16 %v4483
      %v4929 = vunpack.c.l.b16 %v4484
      %v4930 = vunpack.c.h.b16 %v4484
      %v4931 = vunpack.c.l.b16 %v4485
      %v4932 = vunpack.c.h.b16 %v4485
      %v4933 = vunpack.c.l.b16 %v4486
      %v4934 = vunpack.c.h.b16 %v4486
      %v4935 = vunpack.c.l.b16 %v4487
      %v4936 = vunpack.c.h.b16 %v4487
      %v4937 = vunpack.c.l.b16 %v4488
      %v4938 = vunpack.c.l.b16 %v4489
      %v4939 = vunpack.c.h.b16 %v4489
      %v4940 = vunpack.c.l.b16 %v4490
      %v4941 = vunpack.c.h.b16 %v4490
      %v4942 = vunpack.c.l.b16 %v4491
      %v4943 = vunpack.c.h.b16 %v4491
      %v4944 = vunpack.c.l.b16 %v4492
      %v4945 = vunpack.c.h.b16 %v4492
      %v4946 = vunpack.c.l.b16 %v4493
      %v4947 = vunpack.c.l.b16 %v4494
      %v4948 = vunpack.c.h.b16 %v4494
      %v4949 = vunpack.c.l.b16 %v4495
      %v4950 = vunpack.c.h.b16 %v4495
      %v4951 = vunpack.c.l.b16 %v4496
      %v4952 = vunpack.c.h.b16 %v4496
      %v4953 = vunpack.c.l.b16 %v4497
      %v4954 = vunpack.c.h.b16 %v4497
      %v4955 = vunpack.c.l.b16 %v4498
      %v4956 = vunpack.c.l.b16 %v4499
      %v4957 = vunpack.c.h.b16 %v4499
      %v4958 = vunpack.c.l.b16 %v4500
      %v4959 = vunpack.c.h.b16 %v4500
      %v4960 = vunpack.c.l.b16 %v4501
      %v4961 = vunpack.c.h.b16 %v4501
      %v4962 = vunpack.c.l.b16 %v4502
      %v4963 = vunpack.c.h.b16 %v4502
      %v4964 = vunpack.c.l.b16 %v4503
      %v4965 = vunpack.c.l.b16 %v4504
      %v4966 = vunpack.c.h.b16 %v4504
      %v4967 = vunpack.c.l.b16 %v4505
      %v4968 = vunpack.c.h.b16 %v4505
      %v4969 = vunpack.c.l.b16 %v4506
      %v4970 = vunpack.c.h.b16 %v4506
      %v4971 = vunpack.c.l.b16 %v4507
      %v4972 = vunpack.c.h.b16 %v4507
      %v4973 = vunpack.c.l.b16 %v4508
      %v4974 = vunpack.c.l.b16 %v4509
      %v4975 = vunpack.c.h.b16 %v4509
      %v4976 = vunpack.c.l.b16 %v4510
      %v4977 = vunpack.c.h.b16 %v4510
      %v4978 = vunpack.c.l.b16 %v4511
      %v4979 = vunpack.c.h.b16 %v4511
      %v4980 = vunpack.c.l.b16 %v4512
      %v4981 = vunpack.c.h.b16 %v4512
      %v4982 = vunpack.c.l.b16 %v4513
      %v4983 = vunpack.c.l.b16 %v4514
      %v4984 = vunpack.c.h.b16 %v4514
      %v4985 = vunpack.c.l.b16 %v4515
      %v4986 = vunpack.c.h.b16 %v4515
      %v4987 = vunpack.c.l.b16 %v4516
      %v4988 = vunpack.c.h.b16 %v4516
      %v4989 = vunpack.c.l.b16 %v4517
      %v4990 = vunpack.c.h.b16 %v4517
      %v4991 = vunpack.c.l.b16 %v4518
      %v4992 = vunpack.c.l.b16 %v4519
      %v4993 = vunpack.c.h.b16 %v4519
      %v4994 = vunpack.c.l.b16 %v4520
      %v4995 = vunpack.c.h.b16 %v4520
      %v4996 = vunpack.c.l.b16 %v4521
      %v4997 = vunpack.c.h.b16 %v4521
      %v4998 = vunpack.c.l.b16 %v4522
      %v4999 = vunpack.c.h.b16 %v4522
      %v5000 = vunpack.c.l.b16 %v4523
      %v5001 = vunpack.c.l.b16 %v4524
      %v5002 = vunpack.c.h.b16 %v4524
      %v5003 = vunpack.c.l.b16 %v4525
      %v5004 = vunpack.c.h.b16 %v4525
      %v5005 = vunpack.c.l.b16 %v4526
      %v5006 = vunpack.c.h.b16 %v4526
      %v5007 = vunpack.c.l.b16 %v4527
      %v5008 = vunpack.c.h.b16 %v4527
      %v5009 = vunpack.c.l.b16 %v4528
      %v5010 = vunpack.c.l.b16 %v4529
      %v5011 = vunpack.c.h.b16 %v4529
      %v5012 = vunpack.c.l.b16 %v4530
      %v5013 = vunpack.c.h.b16 %v4530
      %v5014 = vunpack.c.l.b16 %v4531
      %v5015 = vunpack.c.h.b16 %v4531
      %v5016 = vunpack.c.l.b16 %v4532
      %v5017 = vunpack.c.h.b16 %v4532
      %v5018 = vunpack.c.l.b16 %v4533
      %v5019 = vunpack.c.l.b16 %v4534
      %v5020 = vunpack.c.h.b16 %v4534
      %v5021 = vunpack.c.l.b16 %v4535
      %v5022 = vunpack.c.h.b16 %v4535
      %v5023 = vunpack.c.l.b16 %v4536
      %v5024 = vunpack.c.h.b16 %v4536
      %v5025 = vunpack.c.l.b16 %v4537
      %v5026 = vunpack.c.h.b16 %v4537
      %v5027 = vunpack.c.l.b16 %v4538
      %v5028 = vunpack.c.l.b16 %v4539
      %v5029 = vunpack.c.h.b16 %v4539
      %v5030 = vunpack.c.l.b16 %v4540
      %v5031 = vunpack.c.h.b16 %v4540
      %v5032 = vunpack.c.l.b16 %v4541
      %v5033 = vunpack.c.h.b16 %v4541
      %v5034 = vunpack.c.l.b16 %v4542
      %v5035 = vunpack.c.h.b16 %v4542
      %v5036 = vunpack.c.l.b16 %v4543
      %v5037 = vunpack.c.l.b16 %v4544
      %v5038 = vunpack.c.h.b16 %v4544
      %v5039 = vunpack.c.l.b16 %v4545
      %v5040 = vunpack.c.h.b16 %v4545
      %v5041 = vunpack.c.l.b16 %v4546
      %v5042 = vunpack.c.h.b16 %v4546
      %v5043 = vunpack.c.l.b16 %v4547
      %v5044 = vunpack.c.h.b16 %v4547
      %v5045 = vunpack.c.l.b16 %v4548
      %v5046 = vpack.c.b16 %v4767, %v4758
      %v5047 = vpack.c.b16 %v4768, %v4759
      %v5048 = vpack.c.b16 %v4769, %v4760
      %v5049 = vpack.c.b16 %v4770, %v4761
      %v5050 = vpack.c.b16 %v4771, %v4762
      %v5051 = vpack.c.b16 %v4772, %v4763
      %v5052 = vpack.c.b16 %v4773, %v4764
      %v5053 = vpack.c.b16 %v4774, %v4765
      %v5054 = vpack.c.b16 %v4775, %v4766
      %v5055 = vpack.c.b16 %v4785, %v4776
      %v5056 = vpack.c.b16 %v4786, %v4777
      %v5057 = vpack.c.b16 %v4787, %v4778
      %v5058 = vpack.c.b16 %v4788, %v4779
      %v5059 = vpack.c.b16 %v4789, %v4780
      %v5060 = vpack.c.b16 %v4790, %v4781
      %v5061 = vpack.c.b16 %v4791, %v4782
      %v5062 = vpack.c.b16 %v4792, %v4783
      %v5063 = vpack.c.b16 %v4793, %v4784
      %v5064 = vpack.c.b16 %v4803, %v4794
      %v5065 = vpack.c.b16 %v4804, %v4795
      %v5066 = vpack.c.b16 %v4805, %v4796
      %v5067 = vpack.c.b16 %v4806, %v4797
      %v5068 = vpack.c.b16 %v4807, %v4798
      %v5069 = vpack.c.b16 %v4808, %v4799
      %v5070 = vpack.c.b16 %v4809, %v4800
      %v5071 = vpack.c.b16 %v4810, %v4801
      %v5072 = vpack.c.b16 %v4811, %v4802
      %v5073 = vpack.c.b16 %v4821, %v4812
      %v5074 = vpack.c.b16 %v4822, %v4813
      %v5075 = vpack.c.b16 %v4823, %v4814
      %v5076 = vpack.c.b16 %v4824, %v4815
      %v5077 = vpack.c.b16 %v4825, %v4816
      %v5078 = vpack.c.b16 %v4826, %v4817
      %v5079 = vpack.c.b16 %v4827, %v4818
      %v5080 = vpack.c.b16 %v4828, %v4819
      %v5081 = vpack.c.b16 %v4829, %v4820
      %v5082 = vpack.c.b16 %v4839, %v4830
      %v5083 = vpack.c.b16 %v4840, %v4831
      %v5084 = vpack.c.b16 %v4841, %v4832
      %v5085 = vpack.c.b16 %v4842, %v4833
      %v5086 = vpack.c.b16 %v4843, %v4834
      %v5087 = vpack.c.b16 %v4844, %v4835
      %v5088 = vpack.c.b16 %v4845, %v4836
      %v5089 = vpack.c.b16 %v4846, %v4837
      %v5090 = vpack.c.b16 %v4847, %v4838
      %v5091 = vpack.c.b16 %v4857, %v4848
      %v5092 = vpack.c.b16 %v4858, %v4849
      %v5093 = vpack.c.b16 %v4859, %v4850
      %v5094 = vpack.c.b16 %v4860, %v4851
      %v5095 = vpack.c.b16 %v4861, %v4852
      %v5096 = vpack.c.b16 %v4862, %v4853
      %v5097 = vpack.c.b16 %v4863, %v4854
      %v5098 = vpack.c.b16 %v4864, %v4855
      %v5099 = vpack.c.b16 %v4865, %v4856
      %v5100 = vpack.c.b16 %v4875, %v4866
      %v5101 = vpack.c.b16 %v4876, %v4867
      %v5102 = vpack.c.b16 %v4877, %v4868
      %v5103 = vpack.c.b16 %v4878, %v4869
      %v5104 = vpack.c.b16 %v4879, %v4870
      %v5105 = vpack.c.b16 %v4880, %v4871
      %v5106 = vpack.c.b16 %v4881, %v4872
      %v5107 = vpack.c.b16 %v4882, %v4873
      %v5108 = vpack.c.b16 %v4883, %v4874
      %v5109 = vpack.c.b16 %v4893, %v4884
      %v5110 = vpack.c.b16 %v4894, %v4885
      %v5111 = vpack.c.b16 %v4895, %v4886
      %v5112 = vpack.c.b16 %v4896, %v4887
      %v5113 = vpack.c.b16 %v4897, %v4888
      %v5114 = vpack.c.b16 %v4898, %v4889
      %v5115 = vpack.c.b16 %v4899, %v4890
      %v5116 = vpack.c.b16 %v4900, %v4891
      %v5117 = vpack.c.b16 %v4901, %v4892
      %v5118 = vpack.c.b16 %v4911, %v4902
      %v5119 = vpack.c.b16 %v4912, %v4903
      %v5120 = vpack.c.b16 %v4913, %v4904
      %v5121 = vpack.c.b16 %v4914, %v4905
      %v5122 = vpack.c.b16 %v4915, %v4906
      %v5123 = vpack.c.b16 %v4916, %v4907
      %v5124 = vpack.c.b16 %v4917, %v4908
      %v5125 = vpack.c.b16 %v4918, %v4909
      %v5126 = vpack.c.b16 %v4919, %v4910
      %v5127 = vpack.c.b16 %v4929, %v4920
      %v5128 = vpack.c.b16 %v4930, %v4921
      %v5129 = vpack.c.b16 %v4931, %v4922
      %v5130 = vpack.c.b16 %v4932, %v4923
      %v5131 = vpack.c.b16 %v4933, %v4924
      %v5132 = vpack.c.b16 %v4934, %v4925
      %v5133 = vpack.c.b16 %v4935, %v4926
      %v5134 = vpack.c.b16 %v4936, %v4927
      %v5135 = vpack.c.b16 %v4937, %v4928
      %v5136 = vpack.c.b16 %v4947, %v4938
      %v5137 = vpack.c.b16 %v4948, %v4939
      %v5138 = vpack.c.b16 %v4949, %v4940
      %v5139 = vpack.c.b16 %v4950, %v4941
      %v5140 = vpack.c.b16 %v4951, %v4942
      %v5141 = vpack.c.b16 %v4952, %v4943
      %v5142 = vpack.c.b16 %v4953, %v4944
      %v5143 = vpack.c.b16 %v4954, %v4945
      %v5144 = vpack.c.b16 %v4955, %v4946
      %v5145 = vpack.c.b16 %v4965, %v4956
      %v5146 = vpack.c.b16 %v4966, %v4957
      %v5147 = vpack.c.b16 %v4967, %v4958
      %v5148 = vpack.c.b16 %v4968, %v4959
      %v5149 = vpack.c.b16 %v4969, %v4960
      %v5150 = vpack.c.b16 %v4970, %v4961
      %v5151 = vpack.c.b16 %v4971, %v4962
      %v5152 = vpack.c.b16 %v4972, %v4963
      %v5153 = vpack.c.b16 %v4973, %v4964
      %v5154 = vpack.c.b16 %v4983, %v4974
      %v5155 = vpack.c.b16 %v4984, %v4975
      %v5156 = vpack.c.b16 %v4985, %v4976
      %v5157 = vpack.c.b16 %v4986, %v4977
      %v5158 = vpack.c.b16 %v4987, %v4978
      %v5159 = vpack.c.b16 %v4988, %v4979
      %v5160 = vpack.c.b16 %v4989, %v4980
      %v5161 = vpack.c.b16 %v4990, %v4981
      %v5162 = vpack.c.b16 %v4991, %v4982
      %v5163 = vpack.c.b16 %v5001, %v4992
      %v5164 = vpack.c.b16 %v5002, %v4993
      %v5165 = vpack.c.b16 %v5003, %v4994
      %v5166 = vpack.c.b16 %v5004, %v4995
      %v5167 = vpack.c.b16 %v5005, %v4996
      %v5168 = vpack.c.b16 %v5006, %v4997
      %v5169 = vpack.c.b16 %v5007, %v4998
      %v5170 = vpack.c.b16 %v5008, %v4999
      %v5171 = vpack.c.b16 %v5009, %v5000
      %v5172 = vpack.c.b16 %v5019, %v5010
      %v5173 = vpack.c.b16 %v5020, %v5011
      %v5174 = vpack.c.b16 %v5021, %v5012
      %v5175 = vpack.c.b16 %v5022, %v5013
      %v5176 = vpack.c.b16 %v5023, %v5014
      %v5177 = vpack.c.b16 %v5024, %v5015
      %v5178 = vpack.c.b16 %v5025, %v5016
      %v5179 = vpack.c.b16 %v5026, %v5017
      %v5180 = vpack.c.b16 %v5027, %v5018
      %v5181 = vpack.c.b16 %v5037, %v5028
      %v5182 = vpack.c.b16 %v5038, %v5029
      %v5183 = vpack.c.b16 %v5039, %v5030
      %v5184 = vpack.c.b16 %v5040, %v5031
      %v5185 = vpack.c.b16 %v5041, %v5032
      %v5186 = vpack.c.b16 %v5042, %v5033
      %v5187 = vpack.c.b16 %v5043, %v5034
      %v5188 = vpack.c.b16 %v5044, %v5035
      %v5189 = vpack.c.b16 %v5045, %v5036
      %5334 = vmatprep.subr.bf16.mxu0 %v5047
      %5335 = vmatpush1.bf16.msra.mxu0 %v5046
      %5336 = vmatprep.subr.bf16.mxu0 %v5056
      %5337 = vmatpush1.bf16.msra.mxu0 %v5055
      %5338 = vmatprep.subr.bf16.mxu0 %v5065
      %5339 = vmatpush1.bf16.msra.mxu0 %v5064
      %5340 = vmatprep.subr.bf16.mxu0 %v5074
      %5341 = vmatpush1.bf16.msra.mxu0 %v5073
      %5342 = vmatprep.subr.bf16.mxu0 %v5083
      %5343 = vmatpush1.bf16.msra.mxu0 %v5082
      %5344 = vmatprep.subr.bf16.mxu0 %v5092
      %5345 = vmatpush1.bf16.msra.mxu0 %v5091
      %5346 = vmatprep.subr.bf16.mxu0 %v5101
      %5347 = vmatpush1.bf16.msra.mxu0 %v5100
      %5348 = vmatprep.subr.bf16.mxu0 %v5110
      %5349 = vmatpush1.bf16.msra.mxu0 %v5109
      %5350 = vmatprep.subr.bf16.mxu0 %v5119
      %5351 = vmatpush1.bf16.msra.mxu0 %v5118
      %5352 = vmatprep.subr.bf16.mxu0 %v5128
      %5353 = vmatpush1.bf16.msra.mxu0 %v5127
      %5354 = vmatprep.subr.bf16.mxu0 %v5137
      %5355 = vmatpush1.bf16.msra.mxu0 %v5136
      %5356 = vmatprep.subr.bf16.mxu0 %v5146
      %5357 = vmatpush1.bf16.msra.mxu0 %v5145
      %5358 = vmatprep.subr.bf16.mxu0 %v5155
      %5359 = vmatpush1.bf16.msra.mxu0 %v5154
      %5360 = vmatprep.subr.bf16.mxu0 %v5164
      %5361 = vmatpush1.bf16.msra.mxu0 %v5163
      %5362 = vmatprep.subr.bf16.mxu0 %v5173
      %5363 = vmatpush1.bf16.msra.mxu0 %v5172
      %5364 = vmatprep.subr.bf16.mxu0 %v5182
      %5365 = vmatpush1.bf16.msra.mxu0 %v5181
      %5366 = vmatprep.mubr.bf16.mxu0 %v4358
      %5367 = vmatmul.mubr.bf16.gmra.mrb[0].mxu0 %v4357
      %v5368 = vpop.f32.mrb[0].mxu0
      %v5369 = vadd.f32 %v4556, %v5368
      %v5370 = vpop.f32.mrb[0].mxu0
      %v5371 = vadd.f32 %v4560, %v5370
      %v5372 = vpop.f32.mrb[0].mxu0
      %v5373 = vadd.f32 %v4556, %v5372
      %v5374 = vpop.f32.mrb[0].mxu0
      %v5375 = vadd.f32 %v4560, %v5374
      %5376 = vmatprep.mubr.bf16.mxu0 %v4360
      %5377 = vmatmul.mubr.bf16.gmra.mrb[0].mxu0 %v4359
      %v5378 = vpop.f32.mrb[0].mxu0
      %v5379 = vadd.f32 %v4556, %v5378
      %v5380 = vpop.f32.mrb[0].mxu0
      %v5381 = vadd.f32 %v4560, %v5380
      %v5382 = vpop.f32.mrb[0].mxu0
      %v5383 = vadd.f32 %v4556, %v5382
      %v5384 = vpop.f32.mrb[0].mxu0
      %v5385 = vadd.f32 %v4560, %v5384
      %5386 = vmatprep.mubr.bf16.mxu0 %v4362
      %5387 = vmatmul.mubr.bf16.gmra.mrb[0].mxu0 %v4361
      %v5388 = vpop.f32.mrb[0].mxu0
      %v5389 = vadd.f32 %v4556, %v5388
      %v5390 = vpop.f32.mrb[0].mxu0
      %v5391 = vadd.f32 %v4560, %v5390
      %v5392 = vpop.f32.mrb[0].mxu0
      %v5393 = vadd.f32 %v4556, %v5392
      %v5394 = vpop.f32.mrb[0].mxu0
      %v5395 = vadd.f32 %v4560, %v5394
      %5396 = vmatprep.mubr.bf16.mxu0 %v4364
      %5397 = vmatmul.mubr.bf16.gmra.mrb[0].mxu0 %v4363
      %v5398 = vpop.f32.mrb[0].mxu0
      %v5399 = vadd.f32 %v4556, %v5398
      %v5400 = vpop.f32.mrb[0].mxu0
      %v5401 = vadd.f32 %v4560, %v5400
      %v5402 = vpop.f32.mrb[0].mxu0
      %v5403 = vadd.f32 %v4556, %v5402
      %v5404 = vpop.f32.mrb[0].mxu0
      %v5405 = vadd.f32 %v4560, %v5404
      %5406 = vmatprep.mubr.bf16.mxu0 %v4366
      %5407 = vmatmul.mubr.bf16.gmra.mrb[0].mxu0 %v4365
      %v5408 = vpop.f32.mrb[0].mxu0
      %v5409 = vadd.f32 %v4556, %v5408
      %v5410 = vpop.f32.mrb[0].mxu0
      %v5411 = vadd.f32 %v4560, %v5410
      %v5412 = vpop.f32.mrb[0].mxu0
      %v5413 = vadd.f32 %v4556, %v5412
      %v5414 = vpop.f32.mrb[0].mxu0
      %v5415 = vadd.f32 %v4560, %v5414
      %5416 = vmatprep.mubr.bf16.mxu0 %v4368
      %5417 = vmatmul.mubr.bf16.gmra.mrb[0].mxu0 %v4367
      %v5418 = vpop.f32.mrb[0].mxu0
      %v5419 = vadd.f32 %v4556, %v5418
      %v5420 = vpop.f32.mrb[0].mxu0
      %v5421 = vadd.f32 %v4560, %v5420
      %v5422 = vpop.f32.mrb[0].mxu0
      %v5423 = vadd.f32 %v4556, %v5422
      %v5424 = vpop.f32.mrb[0].mxu0
      %v5425 = vadd.f32 %v4560, %v5424
      %5426 = vmatprep.mubr.bf16.mxu0 %v4370
      %5427 = vmatmul.mubr.bf16.gmra.mrb[0].mxu0 %v4369
      %v5428 = vpop.f32.mrb[0].mxu0
      %v5429 = vadd.f32 %v4556, %v5428
      %v5430 = vpop.f32.mrb[0].mxu0
      %v5431 = vadd.f32 %v4560, %v5430
      %v5432 = vpop.f32.mrb[0].mxu0
      %v5433 = vadd.f32 %v4556, %v5432
      %v5434 = vpop.f32.mrb[0].mxu0
      %v5435 = vadd.f32 %v4560, %v5434
      %5436 = vmatprep.mubr.bf16.mxu0 %v4372
      %5437 = vmatmul.mubr.bf16.gmra.mrb[0].mxu0 %v4371
      %v5438 = vpop.f32.mrb[0].mxu0
      %v5439 = vadd.f32 %v4556, %v5438
      %v5440 = vpop.f32.mrb[0].mxu0
      %v5441 = vadd.f32 %v4560, %v5440
      %v5442 = vpop.f32.mrb[0].mxu0
      %v5443 = vadd.f32 %v4556, %v5442
      %v5444 = vpop.f32.mrb[0].mxu0
      %v5445 = vadd.f32 %v4560, %v5444
      %5446 = vmatprep.mubr.bf16.mxu0 %v4374
      %5447 = vmatmul.mubr.bf16.gmra.mrb[0].mxu0 %v4373
      %v5448 = vpop.f32.mrb[0].mxu0
      %v5449 = vadd.f32 %v4556, %v5448
      %v5450 = vpop.f32.mrb[0].mxu0
      %v5451 = vadd.f32 %v4560, %v5450
      %v5452 = vpop.f32.mrb[0].mxu0
      %v5453 = vadd.f32 %v4556, %v5452
      %v5454 = vpop.f32.mrb[0].mxu0
      %v5455 = vadd.f32 %v4560, %v5454
      %5456 = vmatprep.mubr.bf16.mxu0 %v4376
      %5457 = vmatmul.mubr.bf16.gmra.mrb[0].mxu0 %v4375
      %v5458 = vpop.f32.mrb[0].mxu0
      %v5459 = vadd.f32 %v4556, %v5458
      %v5460 = vpop.f32.mrb[0].mxu0
      %v5461 = vadd.f32 %v4560, %v5460
      %v5462 = vpop.f32.mrb[0].mxu0
      %v5463 = vadd.f32 %v4556, %v5462
      %v5464 = vpop.f32.mrb[0].mxu0
      %v5465 = vadd.f32 %v4560, %v5464
      %5466 = vmatprep.mubr.bf16.mxu0 %v4378
      %5467 = vmatmul.mubr.bf16.gmra.mrb[0].mxu0 %v4377
      %v5468 = vpop.f32.mrb[0].mxu0
      %v5469 = vadd.f32 %v4556, %v5468
      %v5470 = vpop.f32.mrb[0].mxu0
      %v5471 = vadd.f32 %v4560, %v5470
      %v5472 = vpop.f32.mrb[0].mxu0
      %v5473 = vadd.f32 %v4556, %v5472
      %v5474 = vpop.f32.mrb[0].mxu0
      %v5475 = vadd.f32 %v4560, %v5474
      %5476 = vmatprep.mubr.bf16.mxu0 %v4380
      %5477 = vmatmul.mubr.bf16.gmra.mrb[0].mxu0 %v4379
      %v5478 = vpop.f32.mrb[0].mxu0
      %v5479 = vadd.f32 %v4556, %v5478
      %v5480 = vpop.f32.mrb[0].mxu0
      %v5481 = vadd.f32 %v4560, %v5480
      %v5482 = vpop.f32.mrb[0].mxu0
      %v5483 = vadd.f32 %v4556, %v5482
      %v5484 = vpop.f32.mrb[0].mxu0
      %v5485 = vadd.f32 %v4560, %v5484
      %5486 = vmatprep.mubr.bf16.mxu0 %v4382
      %5487 = vmatmul.mubr.bf16.gmra.mrb[0].mxu0 %v4381
      %v5488 = vpop.f32.mrb[0].mxu0
      %v5489 = vadd.f32 %v4556, %v5488
      %v5490 = vpop.f32.mrb[0].mxu0
      %v5491 = vadd.f32 %v4560, %v5490
      %v5492 = vpop.f32.mrb[0].mxu0
      %v5493 = vadd.f32 %v4556, %v5492
      %v5494 = vpop.f32.mrb[0].mxu0
      %v5495 = vadd.f32 %v4560, %v5494
      %5496 = vmatprep.mubr.bf16.mxu0 %v4384
      %5497 = vmatmul.mubr.bf16.gmra.mrb[0].mxu0 %v4383
      %v5498 = vpop.f32.mrb[0].mxu0
      %v5499 = vadd.f32 %v4556, %v5498
      %v5500 = vpop.f32.mrb[0].mxu0
      %v5501 = vadd.f32 %v4560, %v5500
      %v5502 = vpop.f32.mrb[0].mxu0
      %v5503 = vadd.f32 %v4556, %v5502
      %v5504 = vpop.f32.mrb[0].mxu0
      %v5505 = vadd.f32 %v4560, %v5504
      %5506 = vmatprep.mubr.bf16.mxu0 %v4386
      %5507 = vmatmul.mubr.bf16.gmra.mrb[0].mxu0 %v4385
      %v5508 = vpop.f32.mrb[0].mxu0
      %v5509 = vadd.f32 %v4556, %v5508
      %v5510 = vpop.f32.mrb[0].mxu0
      %v5511 = vadd.f32 %v4560, %v5510
      %v5512 = vpop.f32.mrb[0].mxu0
      %v5513 = vadd.f32 %v4556, %v5512
      %v5514 = vpop.f32.mrb[0].mxu0
      %v5515 = vadd.f32 %v4560, %v5514
      %5516 = vmatprep.mubr.bf16.mxu0 %v4388
      %5517 = vmatmul.mubr.bf16.gmra.mrb[0].mxu0 %v4387
      %v5518 = vpop.f32.mrb[0].mxu0
      %v5519 = vadd.f32 %v4556, %v5518
      %v5520 = vpop.f32.mrb[0].mxu0
      %v5521 = vadd.f32 %v4560, %v5520
      %v5522 = vpop.f32.mrb[0].mxu0
      %v5523 = vadd.f32 %v4556, %v5522
      %v5524 = vpop.f32.mrb[0].mxu0
      %v5525 = vadd.f32 %v4560, %v5524
      %5526 = vdwg.mxu0
      %5527 = vmatprep.subr.bf16.mxu0 %v5049
      %5528 = vmatpush1.bf16.msra.mxu0 %v5048
      %5529 = vmatprep.subr.bf16.mxu0 %v5058
      %5530 = vmatpush1.bf16.msra.mxu0 %v5057
      %5531 = vmatprep.subr.bf16.mxu0 %v5067
      %5532 = vmatpush1.bf16.msra.mxu0 %v5066
      %5533 = vmatprep.subr.bf16.mxu0 %v5076
      %5534 = vmatpush1.bf16.msra.mxu0 %v5075
      %5535 = vmatprep.subr.bf16.mxu0 %v5085
      %5536 = vmatpush1.bf16.msra.mxu0 %v5084
      %5537 = vmatprep.subr.bf16.mxu0 %v5094
      %5538 = vmatpush1.bf16.msra.mxu0 %v5093
      %5539 = vmatprep.subr.bf16.mxu0 %v5103
      %5540 = vmatpush1.bf16.msra.mxu0 %v5102
      %5541 = vmatprep.subr.bf16.mxu0 %v5112
      %5542 = vmatpush1.bf16.msra.mxu0 %v5111
      %5543 = vmatprep.subr.bf16.mxu0 %v5121
      %5544 = vmatpush1.bf16.msra.mxu0 %v5120
      %5545 = vmatprep.subr.bf16.mxu0 %v5130
      %5546 = vmatpush1.bf16.msra.mxu0 %v5129
      %5547 = vmatprep.subr.bf16.mxu0 %v5139
      %5548 = vmatpush1.bf16.msra.mxu0 %v5138
      %5549 = vmatprep.subr.bf16.mxu0 %v5148
      %5550 = vmatpush1.bf16.msra.mxu0 %v5147
      %5551 = vmatprep.subr.bf16.mxu0 %v5157
      %5552 = vmatpush1.bf16.msra.mxu0 %v5156
      %5553 = vmatprep.subr.bf16.mxu0 %v5166
      %5554 = vmatpush1.bf16.msra.mxu0 %v5165
      %5555 = vmatprep.subr.bf16.mxu0 %v5175
      %5556 = vmatpush1.bf16.msra.mxu0 %v5174
      %5557 = vmatprep.subr.bf16.mxu0 %v5184
      %5558 = vmatpush1.bf16.msra.mxu0 %v5183
      %5559 = vmatprep.mubr.bf16.mxu0 %v4358
      %5560 = vmatmul.mubr.bf16.gmra.mrb[0].mxu0 %v4357
      %v5561 = vpop.f32.mrb[0].mxu0
      %v5562 = vadd.f32 %v4564, %v5561
      %v5563 = vpop.f32.mrb[0].mxu0
      %v5564 = vadd.f32 %v4568, %v5563
      %v5565 = vpop.f32.mrb[0].mxu0
      %v5566 = vadd.f32 %v4564, %v5565
      %v5567 = vpop.f32.mrb[0].mxu0
      %v5568 = vadd.f32 %v4568, %v5567
      %5569 = vmatprep.mubr.bf16.mxu0 %v4360
      %5570 = vmatmul.mubr.bf16.gmra.mrb[0].mxu0 %v4359
      %v5571 = vpop.f32.mrb[0].mxu0
      %v5572 = vadd.f32 %v4564, %v5571
      %v5573 = vpop.f32.mrb[0].mxu0
      %v5574 = vadd.f32 %v4568, %v5573
      %v5575 = vpop.f32.mrb[0].mxu0
      %v5576 = vadd.f32 %v4564, %v5575
      %v5577 = vpop.f32.mrb[0].mxu0
      %v5578 = vadd.f32 %v4568, %v5577
      %5579 = vmatprep.mubr.bf16.mxu0 %v4362
      %5580 = vmatmul.mubr.bf16.gmra.mrb[0].mxu0 %v4361
      %v5581 = vpop.f32.mrb[0].mxu0
      %v5582 = vadd.f32 %v4564, %v5581
      %v5583 = vpop.f32.mrb[0].mxu0
      %v5584 = vadd.f32 %v4568, %v5583
      %v5585 = vpop.f32.mrb[0].mxu0
      %v5586 = vadd.f32 %v4564, %v5585
      %v5587 = vpop.f32.mrb[0].mxu0
      %v5588 = vadd.f32 %v4568, %v5587
      %5589 = vmatprep.mubr.bf16.mxu0 %v4364
      %5590 = vmatmul.mubr.bf16.gmra.mrb[0].mxu0 %v4363
      %v5591 = vpop.f32.mrb[0].mxu0
      %v5592 = vadd.f32 %v4564, %v5591
      %v5593 = vpop.f32.mrb[0].mxu0
      %v5594 = vadd.f32 %v4568, %v5593
      %v5595 = vpop.f32.mrb[0].mxu0
      %v5596 = vadd.f32 %v4564, %v5595
      %v5597 = vpop.f32.mrb[0].mxu0
      %v5598 = vadd.f32 %v4568, %v5597
      %5599 = vmatprep.mubr.bf16.mxu0 %v4366
      %5600 = vmatmul.mubr.bf16.gmra.mrb[0].mxu0 %v4365
      %v5601 = vpop.f32.mrb[0].mxu0
      %v5602 = vadd.f32 %v4564, %v5601
      %v5603 = vpop.f32.mrb[0].mxu0
      %v5604 = vadd.f32 %v4568, %v5603
      %v5605 = vpop.f32.mrb[0].mxu0
      %v5606 = vadd.f32 %v4564, %v5605
      %v5607 = vpop.f32.mrb[0].mxu0
      %v5608 = vadd.f32 %v4568, %v5607
      %5609 = vmatprep.mubr.bf16.mxu0 %v4368
      %5610 = vmatmul.mubr.bf16.gmra.mrb[0].mxu0 %v4367
      %v5611 = vpop.f32.mrb[0].mxu0
      %v5612 = vadd.f32 %v4564, %v5611
      %v5613 = vpop.f32.mrb[0].mxu0
      %v5614 = vadd.f32 %v4568, %v5613
      %v5615 = vpop.f32.mrb[0].mxu0
      %v5616 = vadd.f32 %v4564, %v5615
      %v5617 = vpop.f32.mrb[0].mxu0
      %v5618 = vadd.f32 %v4568, %v5617
      %5619 = vmatprep.mubr.bf16.mxu0 %v4370
      %5620 = vmatmul.mubr.bf16.gmra.mrb[0].mxu0 %v4369
      %v5621 = vpop.f32.mrb[0].mxu0
      %v5622 = vadd.f32 %v4564, %v5621
      %v5623 = vpop.f32.mrb[0].mxu0
      %v5624 = vadd.f32 %v4568, %v5623
      %v5625 = vpop.f32.mrb[0].mxu0
      %v5626 = vadd.f32 %v4564, %v5625
      %v5627 = vpop.f32.mrb[0].mxu0
      %v5628 = vadd.f32 %v4568, %v5627
      %5629 = vmatprep.mubr.bf16.mxu0 %v4372
      %5630 = vmatmul.mubr.bf16.gmra.mrb[0].mxu0 %v4371
      %v5631 = vpop.f32.mrb[0].mxu0
      %v5632 = vadd.f32 %v4564, %v5631
      %v5633 = vpop.f32.mrb[0].mxu0
      %v5634 = vadd.f32 %v4568, %v5633
      %v5635 = vpop.f32.mrb[0].mxu0
      %v5636 = vadd.f32 %v4564, %v5635
      %v5637 = vpop.f32.mrb[0].mxu0
      %v5638 = vadd.f32 %v4568, %v5637
      %5639 = vmatprep.mubr.bf16.mxu0 %v4374
      %5640 = vmatmul.mubr.bf16.gmra.mrb[0].mxu0 %v4373
      %v5641 = vpop.f32.mrb[0].mxu0
      %v5642 = vadd.f32 %v4564, %v5641
      %v5643 = vpop.f32.mrb[0].mxu0
      %v5644 = vadd.f32 %v4568, %v5643
      %v5645 = vpop.f32.mrb[0].mxu0
      %v5646 = vadd.f32 %v4564, %v5645
      %v5647 = vpop.f32.mrb[0].mxu0
      %v5648 = vadd.f32 %v4568, %v5647
      %5649 = vmatprep.mubr.bf16.mxu0 %v4376
      %5650 = vmatmul.mubr.bf16.gmra.mrb[0].mxu0 %v4375
      %v5651 = vpop.f32.mrb[0].mxu0
      %v5652 = vadd.f32 %v4564, %v5651
      %v5653 = vpop.f32.mrb[0].mxu0
      %v5654 = vadd.f32 %v4568, %v5653
      %v5655 = vpop.f32.mrb[0].mxu0
      %v5656 = vadd.f32 %v4564, %v5655
      %v5657 = vpop.f32.mrb[0].mxu0
      %v5658 = vadd.f32 %v4568, %v5657
      %5659 = vmatprep.mubr.bf16.mxu0 %v4378
      %5660 = vmatmul.mubr.bf16.gmra.mrb[0].mxu0 %v4377
      %v5661 = vpop.f32.mrb[0].mxu0
      %v5662 = vadd.f32 %v4564, %v5661
      %v5663 = vpop.f32.mrb[0].mxu0
      %v5664 = vadd.f32 %v4568, %v5663
      %v5665 = vpop.f32.mrb[0].mxu0
      %v5666 = vadd.f32 %v4564, %v5665
      %v5667 = vpop.f32.mrb[0].mxu0
      %v5668 = vadd.f32 %v4568, %v5667
      %5669 = vmatprep.mubr.bf16.mxu0 %v4380
      %5670 = vmatmul.mubr.bf16.gmra.mrb[0].mxu0 %v4379
      %v5671 = vpop.f32.mrb[0].mxu0
      %v5672 = vadd.f32 %v4564, %v5671
      %v5673 = vpop.f32.mrb[0].mxu0
      %v5674 = vadd.f32 %v4568, %v5673
      %v5675 = vpop.f32.mrb[0].mxu0
      %v5676 = vadd.f32 %v4564, %v5675
      %v5677 = vpop.f32.mrb[0].mxu0
      %v5678 = vadd.f32 %v4568, %v5677
      %5679 = vmatprep.mubr.bf16.mxu0 %v4382
      %5680 = vmatmul.mubr.bf16.gmra.mrb[0].mxu0 %v4381
      %v5681 = vpop.f32.mrb[0].mxu0
      %v5682 = vadd.f32 %v4564, %v5681
      %v5683 = vpop.f32.mrb[0].mxu0
      %v5684 = vadd.f32 %v4568, %v5683
      %v5685 = vpop.f32.mrb[0].mxu0
      %v5686 = vadd.f32 %v4564, %v5685
      %v5687 = vpop.f32.mrb[0].mxu0
      %v5688 = vadd.f32 %v4568, %v5687
      %5689 = vmatprep.mubr.bf16.mxu0 %v4384
      %5690 = vmatmul.mubr.bf16.gmra.mrb[0].mxu0 %v4383
      %v5691 = vpop.f32.mrb[0].mxu0
      %v5692 = vadd.f32 %v4564, %v5691
      %v5693 = vpop.f32.mrb[0].mxu0
      %v5694 = vadd.f32 %v4568, %v5693
      %v5695 = vpop.f32.mrb[0].mxu0
      %v5696 = vadd.f32 %v4564, %v5695
      %v5697 = vpop.f32.mrb[0].mxu0
      %v5698 = vadd.f32 %v4568, %v5697
      %5699 = vmatprep.mubr.bf16.mxu0 %v4386
      %5700 = vmatmul.mubr.bf16.gmra.mrb[0].mxu0 %v4385
      %v5701 = vpop.f32.mrb[0].mxu0
      %v5702 = vadd.f32 %v4564, %v5701
      %v5703 = vpop.f32.mrb[0].mxu0
      %v5704 = vadd.f32 %v4568, %v5703
      %v5705 = vpop.f32.mrb[0].mxu0
      %v5706 = vadd.f32 %v4564, %v5705
      %v5707 = vpop.f32.mrb[0].mxu0
      %v5708 = vadd.f32 %v4568, %v5707
      %5709 = vmatprep.mubr.bf16.mxu0 %v4388
      %5710 = vmatmul.mubr.bf16.gmra.mrb[0].mxu0 %v4387
      %v5711 = vpop.f32.mrb[0].mxu0
      %v5712 = vadd.f32 %v4564, %v5711
      %v5713 = vpop.f32.mrb[0].mxu0
      %v5714 = vadd.f32 %v4568, %v5713
      %v5715 = vpop.f32.mrb[0].mxu0
      %v5716 = vadd.f32 %v4564, %v5715
      %v5717 = vpop.f32.mrb[0].mxu0
      %v5718 = vadd.f32 %v4568, %v5717
      %5719 = vdwg.mxu0
      %5720 = vmatprep.subr.bf16.mxu0 %v5051
      %5721 = vmatpush1.bf16.msra.mxu0 %v5050
      %5722 = vmatprep.subr.bf16.mxu0 %v5060
      %5723 = vmatpush1.bf16.msra.mxu0 %v5059
      %5724 = vmatprep.subr.bf16.mxu0 %v5069
      %5725 = vmatpush1.bf16.msra.mxu0 %v5068
      %5726 = vmatprep.subr.bf16.mxu0 %v5078
      %5727 = vmatpush1.bf16.msra.mxu0 %v5077
      %5728 = vmatprep.subr.bf16.mxu0 %v5087
      %5729 = vmatpush1.bf16.msra.mxu0 %v5086
      %5730 = vmatprep.subr.bf16.mxu0 %v5096
      %5731 = vmatpush1.bf16.msra.mxu0 %v5095
      %5732 = vmatprep.subr.bf16.mxu0 %v5105
      %5733 = vmatpush1.bf16.msra.mxu0 %v5104
      %5734 = vmatprep.subr.bf16.mxu0 %v5114
      %5735 = vmatpush1.bf16.msra.mxu0 %v5113
      %5736 = vmatprep.subr.bf16.mxu0 %v5123
      %5737 = vmatpush1.bf16.msra.mxu0 %v5122
      %5738 = vmatprep.subr.bf16.mxu0 %v5132
      %5739 = vmatpush1.bf16.msra.mxu0 %v5131
      %5740 = vmatprep.subr.bf16.mxu0 %v5141
      %5741 = vmatpush1.bf16.msra.mxu0 %v5140
      %5742 = vmatprep.subr.bf16.mxu0 %v5150
      %5743 = vmatpush1.bf16.msra.mxu0 %v5149
      %5744 = vmatprep.subr.bf16.mxu0 %v5159
      %5745 = vmatpush1.bf16.msra.mxu0 %v5158
      %5746 = vmatprep.subr.bf16.mxu0 %v5168
      %5747 = vmatpush1.bf16.msra.mxu0 %v5167
      %5748 = vmatprep.subr.bf16.mxu0 %v5177
      %5749 = vmatpush1.bf16.msra.mxu0 %v5176
      %5750 = vmatprep.subr.bf16.mxu0 %v5186
      %5751 = vmatpush1.bf16.msra.mxu0 %v5185
      %5752 = vmatprep.mubr.bf16.mxu0 %v4358
      %5753 = vmatmul.mubr.bf16.gmra.mrb[0].mxu0 %v4357
      %v5754 = vpop.f32.mrb[0].mxu0
      %v5755 = vadd.f32 %v4572, %v5754
      %v5756 = vpop.f32.mrb[0].mxu0
      %v5757 = vadd.f32 %v4576, %v5756
      %v5758 = vpop.f32.mrb[0].mxu0
      %v5759 = vadd.f32 %v4572, %v5758
      %v5760 = vpop.f32.mrb[0].mxu0
      %v5761 = vadd.f32 %v4576, %v5760
      %5762 = vmatprep.mubr.bf16.mxu0 %v4360
      %5763 = vmatmul.mubr.bf16.gmra.mrb[0].mxu0 %v4359
      %v5764 = vpop.f32.mrb[0].mxu0
      %v5765 = vadd.f32 %v4572, %v5764
      %v5766 = vpop.f32.mrb[0].mxu0
      %v5767 = vadd.f32 %v4576, %v5766
      %v5768 = vpop.f32.mrb[0].mxu0
      %v5769 = vadd.f32 %v4572, %v5768
      %v5770 = vpop.f32.mrb[0].mxu0
      %v5771 = vadd.f32 %v4576, %v5770
      %5772 = vmatprep.mubr.bf16.mxu0 %v4362
      %5773 = vmatmul.mubr.bf16.gmra.mrb[0].mxu0 %v4361
      %v5774 = vpop.f32.mrb[0].mxu0
      %v5775 = vadd.f32 %v4572, %v5774
      %v5776 = vpop.f32.mrb[0].mxu0
      %v5777 = vadd.f32 %v4576, %v5776
      %v5778 = vpop.f32.mrb[0].mxu0
      %v5779 = vadd.f32 %v4572, %v5778
      %v5780 = vpop.f32.mrb[0].mxu0
      %v5781 = vadd.f32 %v4576, %v5780
      %5782 = vmatprep.mubr.bf16.mxu0 %v4364
      %5783 = vmatmul.mubr.bf16.gmra.mrb[0].mxu0 %v4363
      %v5784 = vpop.f32.mrb[0].mxu0
      %v5785 = vadd.f32 %v4572, %v5784
      %v5786 = vpop.f32.mrb[0].mxu0
      %v5787 = vadd.f32 %v4576, %v5786
      %v5788 = vpop.f32.mrb[0].mxu0
      %v5789 = vadd.f32 %v4572, %v5788
      %v5790 = vpop.f32.mrb[0].mxu0
      %v5791 = vadd.f32 %v4576, %v5790
      %5792 = vmatprep.mubr.bf16.mxu0 %v4366
      %5793 = vmatmul.mubr.bf16.gmra.mrb[0].mxu0 %v4365
      %v5794 = vpop.f32.mrb[0].mxu0
      %v5795 = vadd.f32 %v4572, %v5794
      %v5796 = vpop.f32.mrb[0].mxu0
      %v5797 = vadd.f32 %v4576, %v5796
      %v5798 = vpop.f32.mrb[0].mxu0
      %v5799 = vadd.f32 %v4572, %v5798
      %v5800 = vpop.f32.mrb[0].mxu0
      %v5801 = vadd.f32 %v4576, %v5800
      %5802 = vmatprep.mubr.bf16.mxu0 %v4368
      %5803 = vmatmul.mubr.bf16.gmra.mrb[0].mxu0 %v4367
      %v5804 = vpop.f32.mrb[0].mxu0
      %v5805 = vadd.f32 %v4572, %v5804
      %v5806 = vpop.f32.mrb[0].mxu0
      %v5807 = vadd.f32 %v4576, %v5806
      %v5808 = vpop.f32.mrb[0].mxu0
      %v5809 = vadd.f32 %v4572, %v5808
      %v5810 = vpop.f32.mrb[0].mxu0
      %v5811 = vadd.f32 %v4576, %v5810
      %5812 = vmatprep.mubr.bf16.mxu0 %v4370
      %5813 = vmatmul.mubr.bf16.gmra.mrb[0].mxu0 %v4369
      %v5814 = vpop.f32.mrb[0].mxu0
      %v5815 = vadd.f32 %v4572, %v5814
      %v5816 = vpop.f32.mrb[0].mxu0
      %v5817 = vadd.f32 %v4576, %v5816
      %v5818 = vpop.f32.mrb[0].mxu0
      %v5819 = vadd.f32 %v4572, %v5818
      %v5820 = vpop.f32.mrb[0].mxu0
      %v5821 = vadd.f32 %v4576, %v5820
      %5822 = vmatprep.mubr.bf16.mxu0 %v4372
      %5823 = vmatmul.mubr.bf16.gmra.mrb[0].mxu0 %v4371
      %v5824 = vpop.f32.mrb[0].mxu0
      %v5825 = vadd.f32 %v4572, %v5824
      %v5826 = vpop.f32.mrb[0].mxu0
      %v5827 = vadd.f32 %v4576, %v5826
      %v5828 = vpop.f32.mrb[0].mxu0
      %v5829 = vadd.f32 %v4572, %v5828
      %v5830 = vpop.f32.mrb[0].mxu0
      %v5831 = vadd.f32 %v4576, %v5830
      %5832 = vmatprep.mubr.bf16.mxu0 %v4374
      %5833 = vmatmul.mubr.bf16.gmra.mrb[0].mxu0 %v4373
      %v5834 = vpop.f32.mrb[0].mxu0
      %v5835 = vadd.f32 %v4572, %v5834
      %v5836 = vpop.f32.mrb[0].mxu0
      %v5837 = vadd.f32 %v4576, %v5836
      %v5838 = vpop.f32.mrb[0].mxu0
      %v5839 = vadd.f32 %v4572, %v5838
      %v5840 = vpop.f32.mrb[0].mxu0
      %v5841 = vadd.f32 %v4576, %v5840
      %5842 = vmatprep.mubr.bf16.mxu0 %v4376
      %5843 = vmatmul.mubr.bf16.gmra.mrb[0].mxu0 %v4375
      %v5844 = vpop.f32.mrb[0].mxu0
      %v5845 = vadd.f32 %v4572, %v5844
      %v5846 = vpop.f32.mrb[0].mxu0
      %v5847 = vadd.f32 %v4576, %v5846
      %v5848 = vpop.f32.mrb[0].mxu0
      %v5849 = vadd.f32 %v4572, %v5848
      %v5850 = vpop.f32.mrb[0].mxu0
      %v5851 = vadd.f32 %v4576, %v5850
      %5852 = vmatprep.mubr.bf16.mxu0 %v4378
      %5853 = vmatmul.mubr.bf16.gmra.mrb[0].mxu0 %v4377
      %v5854 = vpop.f32.mrb[0].mxu0
      %v5855 = vadd.f32 %v4572, %v5854
      %v5856 = vpop.f32.mrb[0].mxu0
      %v5857 = vadd.f32 %v4576, %v5856
      %v5858 = vpop.f32.mrb[0].mxu0
      %v5859 = vadd.f32 %v4572, %v5858
      %v5860 = vpop.f32.mrb[0].mxu0
      %v5861 = vadd.f32 %v4576, %v5860
      %5862 = vmatprep.mubr.bf16.mxu0 %v4380
      %5863 = vmatmul.mubr.bf16.gmra.mrb[0].mxu0 %v4379
      %v5864 = vpop.f32.mrb[0].mxu0
      %v5865 = vadd.f32 %v4572, %v5864
      %v5866 = vpop.f32.mrb[0].mxu0
      %v5867 = vadd.f32 %v4576, %v5866
      %v5868 = vpop.f32.mrb[0].mxu0
      %v5869 = vadd.f32 %v4572, %v5868
      %v5870 = vpop.f32.mrb[0].mxu0
      %v5871 = vadd.f32 %v4576, %v5870
      %5872 = vmatprep.mubr.bf16.mxu0 %v4382
      %5873 = vmatmul.mubr.bf16.gmra.mrb[0].mxu0 %v4381
      %v5874 = vpop.f32.mrb[0].mxu0
      %v5875 = vadd.f32 %v4572, %v5874
      %v5876 = vpop.f32.mrb[0].mxu0
      %v5877 = vadd.f32 %v4576, %v5876
      %v5878 = vpop.f32.mrb[0].mxu0
      %v5879 = vadd.f32 %v4572, %v5878
      %v5880 = vpop.f32.mrb[0].mxu0
      %v5881 = vadd.f32 %v4576, %v5880
      %5882 = vmatprep.mubr.bf16.mxu0 %v4384
      %5883 = vmatmul.mubr.bf16.gmra.mrb[0].mxu0 %v4383
      %v5884 = vpop.f32.mrb[0].mxu0
      %v5885 = vadd.f32 %v4572, %v5884
      %v5886 = vpop.f32.mrb[0].mxu0
      %v5887 = vadd.f32 %v4576, %v5886
      %v5888 = vpop.f32.mrb[0].mxu0
      %v5889 = vadd.f32 %v4572, %v5888
      %v5890 = vpop.f32.mrb[0].mxu0
      %v5891 = vadd.f32 %v4576, %v5890
      %5892 = vmatprep.mubr.bf16.mxu0 %v4386
      %5893 = vmatmul.mubr.bf16.gmra.mrb[0].mxu0 %v4385
      %v5894 = vpop.f32.mrb[0].mxu0
      %v5895 = vadd.f32 %v4572, %v5894
      %v5896 = vpop.f32.mrb[0].mxu0
      %v5897 = vadd.f32 %v4576, %v5896
      %v5898 = vpop.f32.mrb[0].mxu0
      %v5899 = vadd.f32 %v4572, %v5898
      %v5900 = vpop.f32.mrb[0].mxu0
      %v5901 = vadd.f32 %v4576, %v5900
      %5902 = vmatprep.mubr.bf16.mxu0 %v4388
      %5903 = vmatmul.mubr.bf16.gmra.mrb[0].mxu0 %v4387
      %v5904 = vpop.f32.mrb[0].mxu0
      %v5905 = vadd.f32 %v4572, %v5904
      %v5906 = vpop.f32.mrb[0].mxu0
      %v5907 = vadd.f32 %v4576, %v5906
      %v5908 = vpop.f32.mrb[0].mxu0
      %v5909 = vadd.f32 %v4572, %v5908
      %v5910 = vpop.f32.mrb[0].mxu0
      %v5911 = vadd.f32 %v4576, %v5910
      %5912 = vdwg.mxu0
      %5913 = vmatprep.subr.bf16.mxu0 %v5053
      %5914 = vmatpush1.bf16.msra.mxu0 %v5052
      %5915 = vmatprep.subr.bf16.mxu0 %v5062
      %5916 = vmatpush1.bf16.msra.mxu0 %v5061
      %5917 = vmatprep.subr.bf16.mxu0 %v5071
      %5918 = vmatpush1.bf16.msra.mxu0 %v5070
      %5919 = vmatprep.subr.bf16.mxu0 %v5080
      %5920 = vmatpush1.bf16.msra.mxu0 %v5079
      %5921 = vmatprep.subr.bf16.mxu0 %v5089
      %5922 = vmatpush1.bf16.msra.mxu0 %v5088
      %5923 = vmatprep.subr.bf16.mxu0 %v5098
      %5924 = vmatpush1.bf16.msra.mxu0 %v5097
      %5925 = vmatprep.subr.bf16.mxu0 %v5107
      %5926 = vmatpush1.bf16.msra.mxu0 %v5106
      %5927 = vmatprep.subr.bf16.mxu0 %v5116
      %5928 = vmatpush1.bf16.msra.mxu0 %v5115
      %5929 = vmatprep.subr.bf16.mxu0 %v5125
      %5930 = vmatpush1.bf16.msra.mxu0 %v5124
      %5931 = vmatprep.subr.bf16.mxu0 %v5134
      %5932 = vmatpush1.bf16.msra.mxu0 %v5133
      %5933 = vmatprep.subr.bf16.mxu0 %v5143
      %5934 = vmatpush1.bf16.msra.mxu0 %v5142
      %5935 = vmatprep.subr.bf16.mxu0 %v5152
      %5936 = vmatpush1.bf16.msra.mxu0 %v5151
      %5937 = vmatprep.subr.bf16.mxu0 %v5161
      %5938 = vmatpush1.bf16.msra.mxu0 %v5160
      %5939 = vmatprep.subr.bf16.mxu0 %v5170
      %5940 = vmatpush1.bf16.msra.mxu0 %v5169
      %5941 = vmatprep.subr.bf16.mxu0 %v5179
      %5942 = vmatpush1.bf16.msra.mxu0 %v5178
      %5943 = vmatprep.subr.bf16.mxu0 %v5188
      %5944 = vmatpush1.bf16.msra.mxu0 %v5187
      %5945 = vmatprep.mubr.bf16.mxu0 %v4358
      %5946 = vmatmul.mubr.bf16.gmra.mrb[0].mxu0 %v4357
      %v5947 = vpop.f32.mrb[0].mxu0
      %v5948 = vadd.f32 %v4580, %v5947
      %v5949 = vpop.f32.mrb[0].mxu0
      %v5950 = vadd.f32 %v4584, %v5949
      %v5951 = vpop.f32.mrb[0].mxu0
      %v5952 = vadd.f32 %v4580, %v5951
      %v5953 = vpop.f32.mrb[0].mxu0
      %v5954 = vadd.f32 %v4584, %v5953
      %5955 = vmatprep.mubr.bf16.mxu0 %v4360
      %5956 = vmatmul.mubr.bf16.gmra.mrb[0].mxu0 %v4359
      %v5957 = vpop.f32.mrb[0].mxu0
      %v5958 = vadd.f32 %v4580, %v5957
      %v5959 = vpop.f32.mrb[0].mxu0
      %v5960 = vadd.f32 %v4584, %v5959
      %v5961 = vpop.f32.mrb[0].mxu0
      %v5962 = vadd.f32 %v4580, %v5961
      %v5963 = vpop.f32.mrb[0].mxu0
      %v5964 = vadd.f32 %v4584, %v5963
      %5965 = vmatprep.mubr.bf16.mxu0 %v4362
      %5966 = vmatmul.mubr.bf16.gmra.mrb[0].mxu0 %v4361
      %v5967 = vpop.f32.mrb[0].mxu0
      %v5968 = vadd.f32 %v4580, %v5967
      %v5969 = vpop.f32.mrb[0].mxu0
      %v5970 = vadd.f32 %v4584, %v5969
      %v5971 = vpop.f32.mrb[0].mxu0
      %v5972 = vadd.f32 %v4580, %v5971
      %v5973 = vpop.f32.mrb[0].mxu0
      %v5974 = vadd.f32 %v4584, %v5973
      %5975 = vmatprep.mubr.bf16.mxu0 %v4364
      %5976 = vmatmul.mubr.bf16.gmra.mrb[0].mxu0 %v4363
      %v5977 = vpop.f32.mrb[0].mxu0
      %v5978 = vadd.f32 %v4580, %v5977
      %v5979 = vpop.f32.mrb[0].mxu0
      %v5980 = vadd.f32 %v4584, %v5979
      %v5981 = vpop.f32.mrb[0].mxu0
      %v5982 = vadd.f32 %v4580, %v5981
      %v5983 = vpop.f32.mrb[0].mxu0
      %v5984 = vadd.f32 %v4584, %v5983
      %5985 = vmatprep.mubr.bf16.mxu0 %v4366
      %5986 = vmatmul.mubr.bf16.gmra.mrb[0].mxu0 %v4365
      %v5987 = vpop.f32.mrb[0].mxu0
      %v5988 = vadd.f32 %v4580, %v5987
      %v5989 = vpop.f32.mrb[0].mxu0
      %v5990 = vadd.f32 %v4584, %v5989
      %v5991 = vpop.f32.mrb[0].mxu0
      %v5992 = vadd.f32 %v4580, %v5991
      %v5993 = vpop.f32.mrb[0].mxu0
      %v5994 = vadd.f32 %v4584, %v5993
      %5995 = vmatprep.mubr.bf16.mxu0 %v4368
      %5996 = vmatmul.mubr.bf16.gmra.mrb[0].mxu0 %v4367
      %v5997 = vpop.f32.mrb[0].mxu0
      %v5998 = vadd.f32 %v4580, %v5997
      %v5999 = vpop.f32.mrb[0].mxu0
      %v6000 = vadd.f32 %v4584, %v5999
      %v6001 = vpop.f32.mrb[0].mxu0
      %v6002 = vadd.f32 %v4580, %v6001
      %v6003 = vpop.f32.mrb[0].mxu0
      %v6004 = vadd.f32 %v4584, %v6003
      %6005 = vmatprep.mubr.bf16.mxu0 %v4370
      %6006 = vmatmul.mubr.bf16.gmra.mrb[0].mxu0 %v4369
      %v6007 = vpop.f32.mrb[0].mxu0
      %v6008 = vadd.f32 %v4580, %v6007
      %v6009 = vpop.f32.mrb[0].mxu0
      %v6010 = vadd.f32 %v4584, %v6009
      %v6011 = vpop.f32.mrb[0].mxu0
      %v6012 = vadd.f32 %v4580, %v6011
      %v6013 = vpop.f32.mrb[0].mxu0
      %v6014 = vadd.f32 %v4584, %v6013
      %6015 = vmatprep.mubr.bf16.mxu0 %v4372
      %6016 = vmatmul.mubr.bf16.gmra.mrb[0].mxu0 %v4371
      %v6017 = vpop.f32.mrb[0].mxu0
      %v6018 = vadd.f32 %v4580, %v6017
      %v6019 = vpop.f32.mrb[0].mxu0
      %v6020 = vadd.f32 %v4584, %v6019
      %v6021 = vpop.f32.mrb[0].mxu0
      %v6022 = vadd.f32 %v4580, %v6021
      %v6023 = vpop.f32.mrb[0].mxu0
      %v6024 = vadd.f32 %v4584, %v6023
      %6025 = vmatprep.mubr.bf16.mxu0 %v4374
      %6026 = vmatmul.mubr.bf16.gmra.mrb[0].mxu0 %v4373
      %v6027 = vpop.f32.mrb[0].mxu0
      %v6028 = vadd.f32 %v4580, %v6027
      %v6029 = vpop.f32.mrb[0].mxu0
      %v6030 = vadd.f32 %v4584, %v6029
      %v6031 = vpop.f32.mrb[0].mxu0
      %v6032 = vadd.f32 %v4580, %v6031
      %v6033 = vpop.f32.mrb[0].mxu0
      %v6034 = vadd.f32 %v4584, %v6033
      %6035 = vmatprep.mubr.bf16.mxu0 %v4376
      %6036 = vmatmul.mubr.bf16.gmra.mrb[0].mxu0 %v4375
      %v6037 = vpop.f32.mrb[0].mxu0
      %v6038 = vadd.f32 %v4580, %v6037
      %v6039 = vpop.f32.mrb[0].mxu0
      %v6040 = vadd.f32 %v4584, %v6039
      %v6041 = vpop.f32.mrb[0].mxu0
      %v6042 = vadd.f32 %v4580, %v6041
      %v6043 = vpop.f32.mrb[0].mxu0
      %v6044 = vadd.f32 %v4584, %v6043
      %6045 = vmatprep.mubr.bf16.mxu0 %v4378
      %6046 = vmatmul.mubr.bf16.gmra.mrb[0].mxu0 %v4377
      %v6047 = vpop.f32.mrb[0].mxu0
      %v6048 = vadd.f32 %v4580, %v6047
      %v6049 = vpop.f32.mrb[0].mxu0
      %v6050 = vadd.f32 %v4584, %v6049
      %v6051 = vpop.f32.mrb[0].mxu0
      %v6052 = vadd.f32 %v4580, %v6051
      %v6053 = vpop.f32.mrb[0].mxu0
      %v6054 = vadd.f32 %v4584, %v6053
      %6055 = vmatprep.mubr.bf16.mxu0 %v4380
      %6056 = vmatmul.mubr.bf16.gmra.mrb[0].mxu0 %v4379
      %v6057 = vpop.f32.mrb[0].mxu0
      %v6058 = vadd.f32 %v4580, %v6057
      %v6059 = vpop.f32.mrb[0].mxu0
      %v6060 = vadd.f32 %v4584, %v6059
      %v6061 = vpop.f32.mrb[0].mxu0
      %v6062 = vadd.f32 %v4580, %v6061
      %v6063 = vpop.f32.mrb[0].mxu0
      %v6064 = vadd.f32 %v4584, %v6063
      %6065 = vmatprep.mubr.bf16.mxu0 %v4382
      %6066 = vmatmul.mubr.bf16.gmra.mrb[0].mxu0 %v4381
      %v6067 = vpop.f32.mrb[0].mxu0
      %v6068 = vadd.f32 %v4580, %v6067
      %v6069 = vpop.f32.mrb[0].mxu0
      %v6070 = vadd.f32 %v4584, %v6069
      %v6071 = vpop.f32.mrb[0].mxu0
      %v6072 = vadd.f32 %v4580, %v6071
      %v6073 = vpop.f32.mrb[0].mxu0
      %v6074 = vadd.f32 %v4584, %v6073
      %6075 = vmatprep.mubr.bf16.mxu0 %v4384
      %6076 = vmatmul.mubr.bf16.gmra.mrb[0].mxu0 %v4383
      %v6077 = vpop.f32.mrb[0].mxu0
      %v6078 = vadd.f32 %v4580, %v6077
      %v6079 = vpop.f32.mrb[0].mxu0
      %v6080 = vadd.f32 %v4584, %v6079
      %v6081 = vpop.f32.mrb[0].mxu0
      %v6082 = vadd.f32 %v4580, %v6081
      %v6083 = vpop.f32.mrb[0].mxu0
      %v6084 = vadd.f32 %v4584, %v6083
      %6085 = vmatprep.mubr.bf16.mxu0 %v4386
      %6086 = vmatmul.mubr.bf16.gmra.mrb[0].mxu0 %v4385
      %v6087 = vpop.f32.mrb[0].mxu0
      %v6088 = vadd.f32 %v4580, %v6087
      %v6089 = vpop.f32.mrb[0].mxu0
      %v6090 = vadd.f32 %v4584, %v6089
      %v6091 = vpop.f32.mrb[0].mxu0
      %v6092 = vadd.f32 %v4580, %v6091
      %v6093 = vpop.f32.mrb[0].mxu0
      %v6094 = vadd.f32 %v4584, %v6093
      %6095 = vmatprep.mubr.bf16.mxu0 %v4388
      %6096 = vmatmul.mubr.bf16.gmra.mrb[0].mxu0 %v4387
      %v6097 = vpop.f32.mrb[0].mxu0
      %v6098 = vadd.f32 %v4580, %v6097
      %v6099 = vpop.f32.mrb[0].mxu0
      %v6100 = vadd.f32 %v4584, %v6099
      %v6101 = vpop.f32.mrb[0].mxu0
      %v6102 = vadd.f32 %v4580, %v6101
      %v6103 = vpop.f32.mrb[0].mxu0
      %v6104 = vadd.f32 %v4584, %v6103
      %6105 = vdwg.mxu0
      %6106 = vmatprep.subr.bf16.mxu0 0
      %6107 = vmatpush1.bf16.msra.mxu0 %v5054
      %6108 = vmatprep.subr.bf16.mxu0 0
      %6109 = vmatpush1.bf16.msra.mxu0 %v5063
      %6110 = vmatprep.subr.bf16.mxu0 0
      %6111 = vmatpush1.bf16.msra.mxu0 %v5072
      %6112 = vmatprep.subr.bf16.mxu0 0
      %6113 = vmatpush1.bf16.msra.mxu0 %v5081
      %6114 = vmatprep.subr.bf16.mxu0 0
      %6115 = vmatpush1.bf16.msra.mxu0 %v5090
      %6116 = vmatprep.subr.bf16.mxu0 0
      %6117 = vmatpush1.bf16.msra.mxu0 %v5099
      %6118 = vmatprep.subr.bf16.mxu0 0
      %6119 = vmatpush1.bf16.msra.mxu0 %v5108
      %6120 = vmatprep.subr.bf16.mxu0 0
      %6121 = vmatpush1.bf16.msra.mxu0 %v5117
      %6122 = vmatprep.subr.bf16.mxu0 0
      %6123 = vmatpush1.bf16.msra.mxu0 %v5126
      %6124 = vmatprep.subr.bf16.mxu0 0
      %6125 = vmatpush1.bf16.msra.mxu0 %v5135
      %6126 = vmatprep.subr.bf16.mxu0 0
      %6127 = vmatpush1.bf16.msra.mxu0 %v5144
      %6128 = vmatprep.subr.bf16.mxu0 0
      %6129 = vmatpush1.bf16.msra.mxu0 %v5153
      %6130 = vmatprep.subr.bf16.mxu0 0
      %6131 = vmatpush1.bf16.msra.mxu0 %v5162
      %6132 = vmatprep.subr.bf16.mxu0 0
      %6133 = vmatpush1.bf16.msra.mxu0 %v5171
      %6134 = vmatprep.subr.bf16.mxu0 0
      %6135 = vmatpush1.bf16.msra.mxu0 %v5180
      %6136 = vmatprep.subr.bf16.mxu0 0
      %6137 = vmatpush1.bf16.msra.mxu0 %v5189
      %6138 = vmatprep.mubr.bf16.mxu0 %v4358
      %6139 = vmatmul.mubr.bf16.gmra.mrb[0].mxu0 %v4357
      %v6140 = vpop.f32.mrb[0].mxu0
      %v6141 = vadd.f32 %v4588, %v6140
      %v6142 = vpop.f32.mrb[0].mxu0
      %v6143 = vpop.f32.mrb[0].mxu0
      %v6144 = vadd.f32 %v4588, %v6143
      %v6145 = vpop.f32.mrb[0].mxu0
      %6146 = vmatprep.mubr.bf16.mxu0 %v4360
      %6147 = vmatmul.mubr.bf16.gmra.mrb[0].mxu0 %v4359
      %v6148 = vpop.f32.mrb[0].mxu0
      %v6149 = vadd.f32 %v4588, %v6148
      %v6150 = vpop.f32.mrb[0].mxu0
      %v6151 = vpop.f32.mrb[0].mxu0
      %v6152 = vadd.f32 %v4588, %v6151
      %v6153 = vpop.f32.mrb[0].mxu0
      %6154 = vmatprep.mubr.bf16.mxu0 %v4362
      %6155 = vmatmul.mubr.bf16.gmra.mrb[0].mxu0 %v4361
      %v6156 = vpop.f32.mrb[0].mxu0
      %v6157 = vadd.f32 %v4588, %v6156
      %v6158 = vpop.f32.mrb[0].mxu0
      %v6159 = vpop.f32.mrb[0].mxu0
      %v6160 = vadd.f32 %v4588, %v6159
      %v6161 = vpop.f32.mrb[0].mxu0
      %6162 = vmatprep.mubr.bf16.mxu0 %v4364
      %6163 = vmatmul.mubr.bf16.gmra.mrb[0].mxu0 %v4363
      %v6164 = vpop.f32.mrb[0].mxu0
      %v6165 = vadd.f32 %v4588, %v6164
      %v6166 = vpop.f32.mrb[0].mxu0
      %v6167 = vpop.f32.mrb[0].mxu0
      %v6168 = vadd.f32 %v4588, %v6167
      %v6169 = vpop.f32.mrb[0].mxu0
      %6170 = vmatprep.mubr.bf16.mxu0 %v4366
      %6171 = vmatmul.mubr.bf16.gmra.mrb[0].mxu0 %v4365
      %v6172 = vpop.f32.mrb[0].mxu0
      %v6173 = vadd.f32 %v4588, %v6172
      %v6174 = vpop.f32.mrb[0].mxu0
      %v6175 = vpop.f32.mrb[0].mxu0
      %v6176 = vadd.f32 %v4588, %v6175
      %v6177 = vpop.f32.mrb[0].mxu0
      %6178 = vmatprep.mubr.bf16.mxu0 %v4368
      %6179 = vmatmul.mubr.bf16.gmra.mrb[0].mxu0 %v4367
      %v6180 = vpop.f32.mrb[0].mxu0
      %v6181 = vadd.f32 %v4588, %v6180
      %v6182 = vpop.f32.mrb[0].mxu0
      %v6183 = vpop.f32.mrb[0].mxu0
      %v6184 = vadd.f32 %v4588, %v6183
      %v6185 = vpop.f32.mrb[0].mxu0
      %6186 = vmatprep.mubr.bf16.mxu0 %v4370
      %6187 = vmatmul.mubr.bf16.gmra.mrb[0].mxu0 %v4369
      %v6188 = vpop.f32.mrb[0].mxu0
      %v6189 = vadd.f32 %v4588, %v6188
      %v6190 = vpop.f32.mrb[0].mxu0
      %v6191 = vpop.f32.mrb[0].mxu0
      %v6192 = vadd.f32 %v4588, %v6191
      %v6193 = vpop.f32.mrb[0].mxu0
      %6194 = vmatprep.mubr.bf16.mxu0 %v4372
      %6195 = vmatmul.mubr.bf16.gmra.mrb[0].mxu0 %v4371
      %v6196 = vpop.f32.mrb[0].mxu0
      %v6197 = vadd.f32 %v4588, %v6196
      %v6198 = vpop.f32.mrb[0].mxu0
      %v6199 = vpop.f32.mrb[0].mxu0
      %v6200 = vadd.f32 %v4588, %v6199
      %v6201 = vpop.f32.mrb[0].mxu0
      %6202 = vmatprep.mubr.bf16.mxu0 %v4374
      %6203 = vmatmul.mubr.bf16.gmra.mrb[0].mxu0 %v4373
      %v6204 = vpop.f32.mrb[0].mxu0
      %v6205 = vadd.f32 %v4588, %v6204
      %v6206 = vpop.f32.mrb[0].mxu0
      %v6207 = vpop.f32.mrb[0].mxu0
      %v6208 = vadd.f32 %v4588, %v6207
      %v6209 = vpop.f32.mrb[0].mxu0
      %6210 = vmatprep.mubr.bf16.mxu0 %v4376
      %6211 = vmatmul.mubr.bf16.gmra.mrb[0].mxu0 %v4375
      %v6212 = vpop.f32.mrb[0].mxu0
      %v6213 = vadd.f32 %v4588, %v6212
      %v6214 = vpop.f32.mrb[0].mxu0
      %v6215 = vpop.f32.mrb[0].mxu0
      %v6216 = vadd.f32 %v4588, %v6215
      %v6217 = vpop.f32.mrb[0].mxu0
      %6218 = vmatprep.mubr.bf16.mxu0 %v4378
      %6219 = vmatmul.mubr.bf16.gmra.mrb[0].mxu0 %v4377
      %v6220 = vpop.f32.mrb[0].mxu0
      %v6221 = vadd.f32 %v4588, %v6220
      %v6222 = vpop.f32.mrb[0].mxu0
      %v6223 = vpop.f32.mrb[0].mxu0
      %v6224 = vadd.f32 %v4588, %v6223
      %v6225 = vpop.f32.mrb[0].mxu0
      %6226 = vmatprep.mubr.bf16.mxu0 %v4380
      %6227 = vmatmul.mubr.bf16.gmra.mrb[0].mxu0 %v4379
      %v6228 = vpop.f32.mrb[0].mxu0
      %v6229 = vadd.f32 %v4588, %v6228
      %v6230 = vpop.f32.mrb[0].mxu0
      %v6231 = vpop.f32.mrb[0].mxu0
      %v6232 = vadd.f32 %v4588, %v6231
      %v6233 = vpop.f32.mrb[0].mxu0
      %6234 = vmatprep.mubr.bf16.mxu0 %v4382
      %6235 = vmatmul.mubr.bf16.gmra.mrb[0].mxu0 %v4381
      %v6236 = vpop.f32.mrb[0].mxu0
      %v6237 = vadd.f32 %v4588, %v6236
      %v6238 = vpop.f32.mrb[0].mxu0
      %v6239 = vpop.f32.mrb[0].mxu0
      %v6240 = vadd.f32 %v4588, %v6239
      %v6241 = vpop.f32.mrb[0].mxu0
      %6242 = vmatprep.mubr.bf16.mxu0 %v4384
      %6243 = vmatmul.mubr.bf16.gmra.mrb[0].mxu0 %v4383
      %v6244 = vpop.f32.mrb[0].mxu0
      %v6245 = vadd.f32 %v4588, %v6244
      %v6246 = vpop.f32.mrb[0].mxu0
      %v6247 = vpop.f32.mrb[0].mxu0
      %v6248 = vadd.f32 %v4588, %v6247
      %v6249 = vpop.f32.mrb[0].mxu0
      %6250 = vmatprep.mubr.bf16.mxu0 %v4386
      %6251 = vmatmul.mubr.bf16.gmra.mrb[0].mxu0 %v4385
      %v6252 = vpop.f32.mrb[0].mxu0
      %v6253 = vadd.f32 %v4588, %v6252
      %v6254 = vpop.f32.mrb[0].mxu0
      %v6255 = vpop.f32.mrb[0].mxu0
      %v6256 = vadd.f32 %v4588, %v6255
      %v6257 = vpop.f32.mrb[0].mxu0
      %6258 = vmatprep.mubr.bf16.mxu0 %v4388
      %6259 = vmatmul.mubr.bf16.gmra.mrb[0].mxu0 %v4387
      %v6260 = vpop.f32.mrb[0].mxu0
      %v6261 = vadd.f32 %v4588, %v6260
      %v6262 = vpop.f32.mrb[0].mxu0
      %v6263 = vpop.f32.mrb[0].mxu0
      %v6264 = vadd.f32 %v4588, %v6263
      %v6265 = vpop.f32.mrb[0].mxu0
      %6266 = vdwg.mxu0
      %v6267 = vmax.f32 %v5369, 0.0
      %v6268 = vmax.f32 %v5371, 0.0
      %v6269 = vmax.f32 %v5562, 0.0
      %v6270 = vmax.f32 %v5564, 0.0
      %v6271 = vmax.f32 %v5755, 0.0
      %v6272 = vmax.f32 %v5757, 0.0
      %v6273 = vmax.f32 %v5948, 0.0
      %v6274 = vmax.f32 %v5950, 0.0
      %v6275 = vmax.f32 %v6141, 0.0
      %v6276 = vmax.f32 %v5373, 0.0
      %v6277 = vmax.f32 %v5375, 0.0
      %v6278 = vmax.f32 %v5566, 0.0
      %v6279 = vmax.f32 %v5568, 0.0
      %v6280 = vmax.f32 %v5759, 0.0
      %v6281 = vmax.f32 %v5761, 0.0
      %v6282 = vmax.f32 %v5952, 0.0
      %v6283 = vmax.f32 %v5954, 0.0
      %v6284 = vmax.f32 %v6144, 0.0
      %v6285 = vmax.f32 %v5379, 0.0
      %v6286 = vmax.f32 %v5381, 0.0
      %v6287 = vmax.f32 %v5572, 0.0
      %v6288 = vmax.f32 %v5574, 0.0
      %v6289 = vmax.f32 %v5765, 0.0
      %v6290 = vmax.f32 %v5767, 0.0
      %v6291 = vmax.f32 %v5958, 0.0
      %v6292 = vmax.f32 %v5960, 0.0
      %v6293 = vmax.f32 %v6149, 0.0
      %v6294 = vmax.f32 %v5383, 0.0
      %v6295 = vmax.f32 %v5385, 0.0
      %v6296 = vmax.f32 %v5576, 0.0
      %v6297 = vmax.f32 %v5578, 0.0
      %v6298 = vmax.f32 %v5769, 0.0
      %v6299 = vmax.f32 %v5771, 0.0
      %v6300 = vmax.f32 %v5962, 0.0
      %v6301 = vmax.f32 %v5964, 0.0
      %v6302 = vmax.f32 %v6152, 0.0
      %v6303 = vmax.f32 %v5389, 0.0
      %v6304 = vmax.f32 %v5391, 0.0
      %v6305 = vmax.f32 %v5582, 0.0
      %v6306 = vmax.f32 %v5584, 0.0
      %v6307 = vmax.f32 %v5775, 0.0
      %v6308 = vmax.f32 %v5777, 0.0
      %v6309 = vmax.f32 %v5968, 0.0
      %v6310 = vmax.f32 %v5970, 0.0
      %v6311 = vmax.f32 %v6157, 0.0
      %v6312 = vmax.f32 %v5393, 0.0
      %v6313 = vmax.f32 %v5395, 0.0
      %v6314 = vmax.f32 %v5586, 0.0
      %v6315 = vmax.f32 %v5588, 0.0
      %v6316 = vmax.f32 %v5779, 0.0
      %v6317 = vmax.f32 %v5781, 0.0
      %v6318 = vmax.f32 %v5972, 0.0
      %v6319 = vmax.f32 %v5974, 0.0
      %v6320 = vmax.f32 %v6160, 0.0
      %v6321 = vmax.f32 %v5399, 0.0
      %v6322 = vmax.f32 %v5401, 0.0
      %v6323 = vmax.f32 %v5592, 0.0
      %v6324 = vmax.f32 %v5594, 0.0
      %v6325 = vmax.f32 %v5785, 0.0
      %v6326 = vmax.f32 %v5787, 0.0
      %v6327 = vmax.f32 %v5978, 0.0
      %v6328 = vmax.f32 %v5980, 0.0
      %v6329 = vmax.f32 %v6165, 0.0
      %v6330 = vmax.f32 %v5403, 0.0
      %v6331 = vmax.f32 %v5405, 0.0
      %v6332 = vmax.f32 %v5596, 0.0
      %v6333 = vmax.f32 %v5598, 0.0
      %v6334 = vmax.f32 %v5789, 0.0
      %v6335 = vmax.f32 %v5791, 0.0
      %v6336 = vmax.f32 %v5982, 0.0
      %v6337 = vmax.f32 %v5984, 0.0
      %v6338 = vmax.f32 %v6168, 0.0
      %v6339 = vmax.f32 %v5409, 0.0
      %v6340 = vmax.f32 %v5411, 0.0
      %v6341 = vmax.f32 %v5602, 0.0
      %v6342 = vmax.f32 %v5604, 0.0
      %v6343 = vmax.f32 %v5795, 0.0
      %v6344 = vmax.f32 %v5797, 0.0
      %v6345 = vmax.f32 %v5988, 0.0
      %v6346 = vmax.f32 %v5990, 0.0
      %v6347 = vmax.f32 %v6173, 0.0
      %v6348 = vmax.f32 %v5413, 0.0
      %v6349 = vmax.f32 %v5415, 0.0
      %v6350 = vmax.f32 %v5606, 0.0
      %v6351 = vmax.f32 %v5608, 0.0
      %v6352 = vmax.f32 %v5799, 0.0
      %v6353 = vmax.f32 %v5801, 0.0
      %v6354 = vmax.f32 %v5992, 0.0
      %v6355 = vmax.f32 %v5994, 0.0
      %v6356 = vmax.f32 %v6176, 0.0
      %v6357 = vmax.f32 %v5419, 0.0
      %v6358 = vmax.f32 %v5421, 0.0
      %v6359 = vmax.f32 %v5612, 0.0
      %v6360 = vmax.f32 %v5614, 0.0
      %v6361 = vmax.f32 %v5805, 0.0
      %v6362 = vmax.f32 %v5807, 0.0
      %v6363 = vmax.f32 %v5998, 0.0
      %v6364 = vmax.f32 %v6000, 0.0
      %v6365 = vmax.f32 %v6181, 0.0
      %v6366 = vmax.f32 %v5423, 0.0
      %v6367 = vmax.f32 %v5425, 0.0
      %v6368 = vmax.f32 %v5616, 0.0
      %v6369 = vmax.f32 %v5618, 0.0
      %v6370 = vmax.f32 %v5809, 0.0
      %v6371 = vmax.f32 %v5811, 0.0
      %v6372 = vmax.f32 %v6002, 0.0
      %v6373 = vmax.f32 %v6004, 0.0
      %v6374 = vmax.f32 %v6184, 0.0
      %v6375 = vmax.f32 %v5429, 0.0
      %v6376 = vmax.f32 %v5431, 0.0
      %v6377 = vmax.f32 %v5622, 0.0
      %v6378 = vmax.f32 %v5624, 0.0
      %v6379 = vmax.f32 %v5815, 0.0
      %v6380 = vmax.f32 %v5817, 0.0
      %v6381 = vmax.f32 %v6008, 0.0
      %v6382 = vmax.f32 %v6010, 0.0
      %v6383 = vmax.f32 %v6189, 0.0
      %v6384 = vmax.f32 %v5433, 0.0
      %v6385 = vmax.f32 %v5435, 0.0
      %v6386 = vmax.f32 %v5626, 0.0
      %v6387 = vmax.f32 %v5628, 0.0
      %v6388 = vmax.f32 %v5819, 0.0
      %v6389 = vmax.f32 %v5821, 0.0
      %v6390 = vmax.f32 %v6012, 0.0
      %v6391 = vmax.f32 %v6014, 0.0
      %v6392 = vmax.f32 %v6192, 0.0
      %v6393 = vmax.f32 %v5439, 0.0
      %v6394 = vmax.f32 %v5441, 0.0
      %v6395 = vmax.f32 %v5632, 0.0
      %v6396 = vmax.f32 %v5634, 0.0
      %v6397 = vmax.f32 %v5825, 0.0
      %v6398 = vmax.f32 %v5827, 0.0
      %v6399 = vmax.f32 %v6018, 0.0
      %v6400 = vmax.f32 %v6020, 0.0
      %v6401 = vmax.f32 %v6197, 0.0
      %v6402 = vmax.f32 %v5443, 0.0
      %v6403 = vmax.f32 %v5445, 0.0
      %v6404 = vmax.f32 %v5636, 0.0
      %v6405 = vmax.f32 %v5638, 0.0
      %v6406 = vmax.f32 %v5829, 0.0
      %v6407 = vmax.f32 %v5831, 0.0
      %v6408 = vmax.f32 %v6022, 0.0
      %v6409 = vmax.f32 %v6024, 0.0
      %v6410 = vmax.f32 %v6200, 0.0
      %v6411 = vmax.f32 %v5449, 0.0
      %v6412 = vmax.f32 %v5451, 0.0
      %v6413 = vmax.f32 %v5642, 0.0
      %v6414 = vmax.f32 %v5644, 0.0
      %v6415 = vmax.f32 %v5835, 0.0
      %v6416 = vmax.f32 %v5837, 0.0
      %v6417 = vmax.f32 %v6028, 0.0
      %v6418 = vmax.f32 %v6030, 0.0
      %v6419 = vmax.f32 %v6205, 0.0
      %v6420 = vmax.f32 %v5453, 0.0
      %v6421 = vmax.f32 %v5455, 0.0
      %v6422 = vmax.f32 %v5646, 0.0
      %v6423 = vmax.f32 %v5648, 0.0
      %v6424 = vmax.f32 %v5839, 0.0
      %v6425 = vmax.f32 %v5841, 0.0
      %v6426 = vmax.f32 %v6032, 0.0
      %v6427 = vmax.f32 %v6034, 0.0
      %v6428 = vmax.f32 %v6208, 0.0
      %v6429 = vmax.f32 %v5459, 0.0
      %v6430 = vmax.f32 %v5461, 0.0
      %v6431 = vmax.f32 %v5652, 0.0
      %v6432 = vmax.f32 %v5654, 0.0
      %v6433 = vmax.f32 %v5845, 0.0
      %v6434 = vmax.f32 %v5847, 0.0
      %v6435 = vmax.f32 %v6038, 0.0
      %v6436 = vmax.f32 %v6040, 0.0
      %v6437 = vmax.f32 %v6213, 0.0
      %v6438 = vmax.f32 %v5463, 0.0
      %v6439 = vmax.f32 %v5465, 0.0
      %v6440 = vmax.f32 %v5656, 0.0
      %v6441 = vmax.f32 %v5658, 0.0
      %v6442 = vmax.f32 %v5849, 0.0
      %v6443 = vmax.f32 %v5851, 0.0
      %v6444 = vmax.f32 %v6042, 0.0
      %v6445 = vmax.f32 %v6044, 0.0
      %v6446 = vmax.f32 %v6216, 0.0
      %v6447 = vmax.f32 %v5469, 0.0
      %v6448 = vmax.f32 %v5471, 0.0
      %v6449 = vmax.f32 %v5662, 0.0
      %v6450 = vmax.f32 %v5664, 0.0
      %v6451 = vmax.f32 %v5855, 0.0
      %v6452 = vmax.f32 %v5857, 0.0
      %v6453 = vmax.f32 %v6048, 0.0
      %v6454 = vmax.f32 %v6050, 0.0
      %v6455 = vmax.f32 %v6221, 0.0
      %v6456 = vmax.f32 %v5473, 0.0
      %v6457 = vmax.f32 %v5475, 0.0
      %v6458 = vmax.f32 %v5666, 0.0
      %v6459 = vmax.f32 %v5668, 0.0
      %v6460 = vmax.f32 %v5859, 0.0
      %v6461 = vmax.f32 %v5861, 0.0
      %v6462 = vmax.f32 %v6052, 0.0
      %v6463 = vmax.f32 %v6054, 0.0
      %v6464 = vmax.f32 %v6224, 0.0
      %v6465 = vmax.f32 %v5479, 0.0
      %v6466 = vmax.f32 %v5481, 0.0
      %v6467 = vmax.f32 %v5672, 0.0
      %v6468 = vmax.f32 %v5674, 0.0
      %v6469 = vmax.f32 %v5865, 0.0
      %v6470 = vmax.f32 %v5867, 0.0
      %v6471 = vmax.f32 %v6058, 0.0
      %v6472 = vmax.f32 %v6060, 0.0
      %v6473 = vmax.f32 %v6229, 0.0
      %v6474 = vmax.f32 %v5483, 0.0
      %v6475 = vmax.f32 %v5485, 0.0
      %v6476 = vmax.f32 %v5676, 0.0
      %v6477 = vmax.f32 %v5678, 0.0
      %v6478 = vmax.f32 %v5869, 0.0
      %v6479 = vmax.f32 %v5871, 0.0
      %v6480 = vmax.f32 %v6062, 0.0
      %v6481 = vmax.f32 %v6064, 0.0
      %v6482 = vmax.f32 %v6232, 0.0
      %v6483 = vmax.f32 %v5489, 0.0
      %v6484 = vmax.f32 %v5491, 0.0
      %v6485 = vmax.f32 %v5682, 0.0
      %v6486 = vmax.f32 %v5684, 0.0
      %v6487 = vmax.f32 %v5875, 0.0
      %v6488 = vmax.f32 %v5877, 0.0
      %v6489 = vmax.f32 %v6068, 0.0
      %v6490 = vmax.f32 %v6070, 0.0
      %v6491 = vmax.f32 %v6237, 0.0
      %v6492 = vmax.f32 %v5493, 0.0
      %v6493 = vmax.f32 %v5495, 0.0
      %v6494 = vmax.f32 %v5686, 0.0
      %v6495 = vmax.f32 %v5688, 0.0
      %v6496 = vmax.f32 %v5879, 0.0
      %v6497 = vmax.f32 %v5881, 0.0
      %v6498 = vmax.f32 %v6072, 0.0
      %v6499 = vmax.f32 %v6074, 0.0
      %v6500 = vmax.f32 %v6240, 0.0
      %v6501 = vmax.f32 %v5499, 0.0
      %v6502 = vmax.f32 %v5501, 0.0
      %v6503 = vmax.f32 %v5692, 0.0
      %v6504 = vmax.f32 %v5694, 0.0
      %v6505 = vmax.f32 %v5885, 0.0
      %v6506 = vmax.f32 %v5887, 0.0
      %v6507 = vmax.f32 %v6078, 0.0
      %v6508 = vmax.f32 %v6080, 0.0
      %v6509 = vmax.f32 %v6245, 0.0
      %v6510 = vmax.f32 %v5503, 0.0
      %v6511 = vmax.f32 %v5505, 0.0
      %v6512 = vmax.f32 %v5696, 0.0
      %v6513 = vmax.f32 %v5698, 0.0
      %v6514 = vmax.f32 %v5889, 0.0
      %v6515 = vmax.f32 %v5891, 0.0
      %v6516 = vmax.f32 %v6082, 0.0
      %v6517 = vmax.f32 %v6084, 0.0
      %v6518 = vmax.f32 %v6248, 0.0
      %v6519 = vmax.f32 %v5509, 0.0
      %v6520 = vmax.f32 %v5511, 0.0
      %v6521 = vmax.f32 %v5702, 0.0
      %v6522 = vmax.f32 %v5704, 0.0
      %v6523 = vmax.f32 %v5895, 0.0
      %v6524 = vmax.f32 %v5897, 0.0
      %v6525 = vmax.f32 %v6088, 0.0
      %v6526 = vmax.f32 %v6090, 0.0
      %v6527 = vmax.f32 %v6253, 0.0
      %v6528 = vmax.f32 %v5513, 0.0
      %v6529 = vmax.f32 %v5515, 0.0
      %v6530 = vmax.f32 %v5706, 0.0
      %v6531 = vmax.f32 %v5708, 0.0
      %v6532 = vmax.f32 %v5899, 0.0
      %v6533 = vmax.f32 %v5901, 0.0
      %v6534 = vmax.f32 %v6092, 0.0
      %v6535 = vmax.f32 %v6094, 0.0
      %v6536 = vmax.f32 %v6256, 0.0
      %v6537 = vmax.f32 %v5519, 0.0
      %v6538 = vmax.f32 %v5521, 0.0
      %v6539 = vmax.f32 %v5712, 0.0
      %v6540 = vmax.f32 %v5714, 0.0
      %v6541 = vmax.f32 %v5905, 0.0
      %v6542 = vmax.f32 %v5907, 0.0
      %v6543 = vmax.f32 %v6098, 0.0
      %v6544 = vmax.f32 %v6100, 0.0
      %v6545 = vmax.f32 %v6261, 0.0
      %v6546 = vmax.f32 %v5523, 0.0
      %v6547 = vmax.f32 %v5525, 0.0
      %v6548 = vmax.f32 %v5716, 0.0
      %v6549 = vmax.f32 %v5718, 0.0
      %v6550 = vmax.f32 %v5909, 0.0
      %v6551 = vmax.f32 %v5911, 0.0
      %v6552 = vmax.f32 %v6102, 0.0
      %v6553 = vmax.f32 %v6104, 0.0
      %v6554 = vmax.f32 %v6264, 0.0
      %v6555 = vpack.c.bf16 %v6276, %v6267
      %v6556 = vpack.c.bf16 %v6277, %v6268
      %v6557 = vpack.c.bf16 %v6278, %v6269
      %v6558 = vpack.c.bf16 %v6279, %v6270
      %v6559 = vpack.c.bf16 %v6280, %v6271
      %v6560 = vpack.c.bf16 %v6281, %v6272
      %v6561 = vpack.c.bf16 %v6282, %v6273
      %v6562 = vpack.c.bf16 %v6283, %v6274
      %v6563 = vpack.c.bf16 %v6284, %v6275
      %v6564 = vpack.c.bf16 %v6294, %v6285
      %v6565 = vpack.c.bf16 %v6295, %v6286
      %v6566 = vpack.c.bf16 %v6296, %v6287
      %v6567 = vpack.c.bf16 %v6297, %v6288
      %v6568 = vpack.c.bf16 %v6298, %v6289
      %v6569 = vpack.c.bf16 %v6299, %v6290
      %v6570 = vpack.c.bf16 %v6300, %v6291
      %v6571 = vpack.c.bf16 %v6301, %v6292
      %v6572 = vpack.c.bf16 %v6302, %v6293
      %v6573 = vpack.c.bf16 %v6312, %v6303
      %v6574 = vpack.c.bf16 %v6313, %v6304
      %v6575 = vpack.c.bf16 %v6314, %v6305
      %v6576 = vpack.c.bf16 %v6315, %v6306
      %v6577 = vpack.c.bf16 %v6316, %v6307
      %v6578 = vpack.c.bf16 %v6317, %v6308
      %v6579 = vpack.c.bf16 %v6318, %v6309
      %v6580 = vpack.c.bf16 %v6319, %v6310
      %v6581 = vpack.c.bf16 %v6320, %v6311
      %v6582 = vpack.c.bf16 %v6330, %v6321
      %v6583 = vpack.c.bf16 %v6331, %v6322
      %v6584 = vpack.c.bf16 %v6332, %v6323
      %v6585 = vpack.c.bf16 %v6333, %v6324
      %v6586 = vpack.c.bf16 %v6334, %v6325
      %v6587 = vpack.c.bf16 %v6335, %v6326
      %v6588 = vpack.c.bf16 %v6336, %v6327
      %v6589 = vpack.c.bf16 %v6337, %v6328
      %v6590 = vpack.c.bf16 %v6338, %v6329
      %v6591 = vpack.c.bf16 %v6348, %v6339
      %v6592 = vpack.c.bf16 %v6349, %v6340
      %v6593 = vpack.c.bf16 %v6350, %v6341
      %v6594 = vpack.c.bf16 %v6351, %v6342
      %v6595 = vpack.c.bf16 %v6352, %v6343
      %v6596 = vpack.c.bf16 %v6353, %v6344
      %v6597 = vpack.c.bf16 %v6354, %v6345
      %v6598 = vpack.c.bf16 %v6355, %v6346
      %v6599 = vpack.c.bf16 %v6356, %v6347
      %v6600 = vpack.c.bf16 %v6366, %v6357
      %v6601 = vpack.c.bf16 %v6367, %v6358
      %v6602 = vpack.c.bf16 %v6368, %v6359
      %v6603 = vpack.c.bf16 %v6369, %v6360
      %v6604 = vpack.c.bf16 %v6370, %v6361
      %v6605 = vpack.c.bf16 %v6371, %v6362
      %v6606 = vpack.c.bf16 %v6372, %v6363
      %v6607 = vpack.c.bf16 %v6373, %v6364
      %v6608 = vpack.c.bf16 %v6374, %v6365
      %v6609 = vpack.c.bf16 %v6384, %v6375
      %v6610 = vpack.c.bf16 %v6385, %v6376
      %v6611 = vpack.c.bf16 %v6386, %v6377
      %v6612 = vpack.c.bf16 %v6387, %v6378
      %v6613 = vpack.c.bf16 %v6388, %v6379
      %v6614 = vpack.c.bf16 %v6389, %v6380
      %v6615 = vpack.c.bf16 %v6390, %v6381
      %v6616 = vpack.c.bf16 %v6391, %v6382
      %v6617 = vpack.c.bf16 %v6392, %v6383
      %v6618 = vpack.c.bf16 %v6402, %v6393
      %v6619 = vpack.c.bf16 %v6403, %v6394
      %v6620 = vpack.c.bf16 %v6404, %v6395
      %v6621 = vpack.c.bf16 %v6405, %v6396
      %v6622 = vpack.c.bf16 %v6406, %v6397
      %v6623 = vpack.c.bf16 %v6407, %v6398
      %v6624 = vpack.c.bf16 %v6408, %v6399
      %v6625 = vpack.c.bf16 %v6409, %v6400
      %v6626 = vpack.c.bf16 %v6410, %v6401
      %v6627 = vpack.c.bf16 %v6420, %v6411
      %v6628 = vpack.c.bf16 %v6421, %v6412
      %v6629 = vpack.c.bf16 %v6422, %v6413
      %v6630 = vpack.c.bf16 %v6423, %v6414
      %v6631 = vpack.c.bf16 %v6424, %v6415
      %v6632 = vpack.c.bf16 %v6425, %v6416
      %v6633 = vpack.c.bf16 %v6426, %v6417
      %v6634 = vpack.c.bf16 %v6427, %v6418
      %v6635 = vpack.c.bf16 %v6428, %v6419
      %v6636 = vpack.c.bf16 %v6438, %v6429
      %v6637 = vpack.c.bf16 %v6439, %v6430
      %v6638 = vpack.c.bf16 %v6440, %v6431
      %v6639 = vpack.c.bf16 %v6441, %v6432
      %v6640 = vpack.c.bf16 %v6442, %v6433
      %v6641 = vpack.c.bf16 %v6443, %v6434
      %v6642 = vpack.c.bf16 %v6444, %v6435
      %v6643 = vpack.c.bf16 %v6445, %v6436
      %v6644 = vpack.c.bf16 %v6446, %v6437
      %v6645 = vpack.c.bf16 %v6456, %v6447
      %v6646 = vpack.c.bf16 %v6457, %v6448
      %v6647 = vpack.c.bf16 %v6458, %v6449
      %v6648 = vpack.c.bf16 %v6459, %v6450
      %v6649 = vpack.c.bf16 %v6460, %v6451
      %v6650 = vpack.c.bf16 %v6461, %v6452
      %v6651 = vpack.c.bf16 %v6462, %v6453
      %v6652 = vpack.c.bf16 %v6463, %v6454
      %v6653 = vpack.c.bf16 %v6464, %v6455
      %v6654 = vpack.c.bf16 %v6474, %v6465
      %v6655 = vpack.c.bf16 %v6475, %v6466
      %v6656 = vpack.c.bf16 %v6476, %v6467
      %v6657 = vpack.c.bf16 %v6477, %v6468
      %v6658 = vpack.c.bf16 %v6478, %v6469
      %v6659 = vpack.c.bf16 %v6479, %v6470
      %v6660 = vpack.c.bf16 %v6480, %v6471
      %v6661 = vpack.c.bf16 %v6481, %v6472
      %v6662 = vpack.c.bf16 %v6482, %v6473
      %v6663 = vpack.c.bf16 %v6492, %v6483
      %v6664 = vpack.c.bf16 %v6493, %v6484
      %v6665 = vpack.c.bf16 %v6494, %v6485
      %v6666 = vpack.c.bf16 %v6495, %v6486
      %v6667 = vpack.c.bf16 %v6496, %v6487
      %v6668 = vpack.c.bf16 %v6497, %v6488
      %v6669 = vpack.c.bf16 %v6498, %v6489
      %v6670 = vpack.c.bf16 %v6499, %v6490
      %v6671 = vpack.c.bf16 %v6500, %v6491
      %v6672 = vpack.c.bf16 %v6510, %v6501
      %v6673 = vpack.c.bf16 %v6511, %v6502
      %v6674 = vpack.c.bf16 %v6512, %v6503
      %v6675 = vpack.c.bf16 %v6513, %v6504
      %v6676 = vpack.c.bf16 %v6514, %v6505
      %v6677 = vpack.c.bf16 %v6515, %v6506
      %v6678 = vpack.c.bf16 %v6516, %v6507
      %v6679 = vpack.c.bf16 %v6517, %v6508
      %v6680 = vpack.c.bf16 %v6518, %v6509
      %v6681 = vpack.c.bf16 %v6528, %v6519
      %v6682 = vpack.c.bf16 %v6529, %v6520
      %v6683 = vpack.c.bf16 %v6530, %v6521
      %v6684 = vpack.c.bf16 %v6531, %v6522
      %v6685 = vpack.c.bf16 %v6532, %v6523
      %v6686 = vpack.c.bf16 %v6533, %v6524
      %v6687 = vpack.c.bf16 %v6534, %v6525
      %v6688 = vpack.c.bf16 %v6535, %v6526
      %v6689 = vpack.c.bf16 %v6536, %v6527
      %v6690 = vpack.c.bf16 %v6546, %v6537
      %v6691 = vpack.c.bf16 %v6547, %v6538
      %v6692 = vpack.c.bf16 %v6548, %v6539
      %v6693 = vpack.c.bf16 %v6549, %v6540
      %v6694 = vpack.c.bf16 %v6550, %v6541
      %v6695 = vpack.c.bf16 %v6551, %v6542
      %v6696 = vpack.c.bf16 %v6552, %v6543
      %v6697 = vpack.c.bf16 %v6553, %v6544
      %v6698 = vpack.c.bf16 %v6554, %v6545
      %v6699 = vld [vmem:[%s8] sm:$0xf]
      %v6700 = vld [vmem:[%s8 + $0x4] sm:$0xf]
      %v6701 = vld [vmem:[%s8 + $0x8] sm:$0xf]
      %v6702 = vld [vmem:[%s8 + $0xc] sm:$0xf]
      %v6703 = vld [vmem:[%s8 + $0x10] sm:$0xf]
      %v6704 = vld [vmem:[%s8 + $0x14] sm:$0xf]
      %v6705 = vld [vmem:[%s8 + $0x18] sm:$0xf]
      %v6706 = vld [vmem:[%s8 + $0x1c] sm:$0xf]
      %v6707 = vld [vmem:[%s8 + $0x20] sm:$0xf]
      %v6708 = vld [vmem:[%s8 + $0x24] sm:$0xf]
      %v6709 = vld [vmem:[%s8 + $0x28] sm:$0xf]
      %v6710 = vld [vmem:[%s8 + $0x2c] sm:$0xf]
      %v6711 = vld [vmem:[%s8 + $0x30] sm:$0xf]
      %v6712 = vld [vmem:[%s8 + $0x34] sm:$0xf]
      %v6713 = vld [vmem:[%s8 + $0x38] sm:$0xf]
      %v6714 = vld [vmem:[%s8 + $0x3c] sm:$0xf]
      %v6715 = vld [vmem:[%s8 + $0x40] sm:$0xf]
      %v6716 = vld [vmem:[%s8 + $0x44] sm:$0xf]
      %v6717 = vld [vmem:[%s8 + $0x48] sm:$0xf]
      %v6718 = vld [vmem:[%s8 + $0x4c] sm:$0xf]
      %v6719 = vld [vmem:[%s8 + $0x50] sm:$0xf]
      %v6720 = vld [vmem:[%s8 + $0x54] sm:$0xf]
      %v6721 = vld [vmem:[%s8 + $0x58] sm:$0xf]
      %v6722 = vld [vmem:[%s8 + $0x5c] sm:$0xf]
      %v6723 = vld [vmem:[%s8 + $0x60] sm:$0xf]
      %v6724 = vld [vmem:[%s8 + $0x64] sm:$0xf]
      %v6725 = vld [vmem:[%s8 + $0x68] sm:$0xf]
      %v6726 = vld [vmem:[%s8 + $0x6c] sm:$0xf]
      %v6727 = vld [vmem:[%s8 + $0x70] sm:$0xf]
      %v6728 = vld [vmem:[%s8 + $0x74] sm:$0xf]
      %v6729 = vld [vmem:[%s8 + $0x78] sm:$0xf]
      %v6730 = vld [vmem:[%s8 + $0x7c] sm:$0xf]
      %v6731 = vld [vmem:[%s8 + $0x80] sm:$0xf]
      %v6732 = vld [vmem:[%s8 + $0x84] sm:$0xf]
      %v6733 = vld [vmem:[%s8 + $0x88] sm:$0xf]
      %v6734 = vld [vmem:[%s8 + $0x8c] sm:$0xf]
      %v6735 = vld [vmem:[%s8 + $0x90] sm:$0xf]
      %v6736 = vld [vmem:[%s8 + $0x94] sm:$0xf]
      %v6737 = vld [vmem:[%s8 + $0x98] sm:$0xf]
      %v6738 = vld [vmem:[%s8 + $0x9c] sm:$0xf]
      %v6739 = vld [vmem:[%s8 + $0xa0] sm:$0xf]
      %v6740 = vld [vmem:[%s8 + $0xa4] sm:$0xf]
      %v6741 = vld [vmem:[%s8 + $0xa8] sm:$0xf]
      %v6742 = vld [vmem:[%s8 + $0xac] sm:$0xf]
      %v6743 = vld [vmem:[%s8 + $0xb0] sm:$0xf]
      %v6744 = vld [vmem:[%s8 + $0xb4] sm:$0xf]
      %v6745 = vld [vmem:[%s8 + $0xb8] sm:$0xf]
      %v6746 = vld [vmem:[%s8 + $0xbc] sm:$0xf]
      %v6747 = vld [vmem:[%s8 + $0xc0] sm:$0xf]
      %v6748 = vld [vmem:[%s8 + $0xc4] sm:$0xf]
      %v6749 = vld [vmem:[%s8 + $0xc8] sm:$0xf]
      %v6750 = vld [vmem:[%s8 + $0xcc] sm:$0xf]
      %v6751 = vld [vmem:[%s8 + $0xd0] sm:$0xf]
      %v6752 = vld [vmem:[%s8 + $0xd4] sm:$0xf]
      %v6753 = vld [vmem:[%s8 + $0xd8] sm:$0xf]
      %v6754 = vld [vmem:[%s8 + $0xdc] sm:$0xf]
      %v6755 = vld [vmem:[%s8 + $0xe0] sm:$0xf]
      %v6756 = vld [vmem:[%s8 + $0xe4] sm:$0xf]
      %v6757 = vld [vmem:[%s8 + $0xe8] sm:$0xf]
      %v6758 = vld [vmem:[%s8 + $0xec] sm:$0xf]
      %v6759 = vld [vmem:[%s8 + $0xf0] sm:$0xf]
      %v6760 = vld [vmem:[%s8 + $0xf4] sm:$0xf]
      %v6761 = vld [vmem:[%s8 + $0xf8] sm:$0xf]
      %v6762 = vld [vmem:[%s8 + $0xfc] sm:$0xf]
      %v6763 = vld [vmem:[%s8 + $0x100] sm:$0xf]
      %v6764 = vld [vmem:[%s8 + $0x104] sm:$0xf]
      %v6765 = vld [vmem:[%s8 + $0x108] sm:$0xf]
      %v6766 = vld [vmem:[%s8 + $0x10c] sm:$0xf]
      %v6767 = vld [vmem:[%s8 + $0x110] sm:$0xf]
      %v6768 = vld [vmem:[%s8 + $0x114] sm:$0xf]
      %v6769 = vld [vmem:[%s8 + $0x118] sm:$0xf]
      %v6770 = vld [vmem:[%s8 + $0x11c] sm:$0xf]
      %v6771 = vld [vmem:[%s8 + $0x120] sm:$0xf]
      %v6772 = vld [vmem:[%s8 + $0x124] sm:$0xf]
      %v6773 = vld [vmem:[%s8 + $0x128] sm:$0xf]
      %v6774 = vld [vmem:[%s8 + $0x12c] sm:$0xf]
      %v6775 = vld [vmem:[%s8 + $0x130] sm:$0xf]
      %v6776 = vld [vmem:[%s8 + $0x134] sm:$0xf]
      %v6777 = vld [vmem:[%s8 + $0x138] sm:$0xf]
      %v6778 = vld [vmem:[%s8 + $0x13c] sm:$0xf]
      %v6779 = vld [vmem:[%s8 + $0x140] sm:$0xf]
      %v6780 = vld [vmem:[%s8 + $0x144] sm:$0xf]
      %v6781 = vld [vmem:[%s8 + $0x148] sm:$0xf]
      %v6782 = vld [vmem:[%s8 + $0x14c] sm:$0xf]
      %v6783 = vld [vmem:[%s8 + $0x150] sm:$0xf]
      %v6784 = vld [vmem:[%s8 + $0x154] sm:$0xf]
      %v6785 = vld [vmem:[%s8 + $0x158] sm:$0xf]
      %v6786 = vld [vmem:[%s8 + $0x15c] sm:$0xf]
      %v6787 = vld [vmem:[%s8 + $0x160] sm:$0xf]
      %v6788 = vld [vmem:[%s8 + $0x164] sm:$0xf]
      %v6789 = vld [vmem:[%s8 + $0x168] sm:$0xf]
      %v6790 = vld [vmem:[%s8 + $0x16c] sm:$0xf]
      %v6791 = vld [vmem:[%s8 + $0x170] sm:$0xf]
      %v6792 = vld [vmem:[%s8 + $0x174] sm:$0xf]
      %v6793 = vld [vmem:[%s8 + $0x178] sm:$0xf]
      %v6794 = vld [vmem:[%s8 + $0x17c] sm:$0xf]
      %v6795 = vld [vmem:[%s8 + $0x180] sm:$0xf]
      %v6796 = vld [vmem:[%s8 + $0x184] sm:$0xf]
      %v6797 = vld [vmem:[%s8 + $0x188] sm:$0xf]
      %v6798 = vld [vmem:[%s8 + $0x18c] sm:$0xf]
      %v6799 = vld [vmem:[%s8 + $0x190] sm:$0xf]
      %v6800 = vld [vmem:[%s8 + $0x194] sm:$0xf]
      %v6801 = vld [vmem:[%s8 + $0x198] sm:$0xf]
      %v6802 = vld [vmem:[%s8 + $0x19c] sm:$0xf]
      %v6803 = vld [vmem:[%s8 + $0x1a0] sm:$0xf]
      %v6804 = vld [vmem:[%s8 + $0x1a4] sm:$0xf]
      %v6805 = vld [vmem:[%s8 + $0x1a8] sm:$0xf]
      %v6806 = vld [vmem:[%s8 + $0x1ac] sm:$0xf]
      %v6807 = vld [vmem:[%s8 + $0x1b0] sm:$0xf]
      %v6808 = vld [vmem:[%s8 + $0x1b4] sm:$0xf]
      %v6809 = vld [vmem:[%s8 + $0x1b8] sm:$0xf]
      %v6810 = vld [vmem:[%s8 + $0x1bc] sm:$0xf]
      %v6811 = vld [vmem:[%s8 + $0x1c0] sm:$0xf]
      %v6812 = vld [vmem:[%s8 + $0x1c4] sm:$0xf]
      %v6813 = vld [vmem:[%s8 + $0x1c8] sm:$0xf]
      %v6814 = vld [vmem:[%s8 + $0x1cc] sm:$0xf]
      %v6815 = vld [vmem:[%s8 + $0x1d0] sm:$0xf]
      %v6816 = vld [vmem:[%s8 + $0x1d4] sm:$0xf]
      %v6817 = vld [vmem:[%s8 + $0x1d8] sm:$0xf]
      %v6818 = vld [vmem:[%s8 + $0x1dc] sm:$0xf]
      %v6819 = vld [vmem:[%s8 + $0x1e0] sm:$0xf]
      %v6820 = vld [vmem:[%s8 + $0x1e4] sm:$0xf]
      %v6821 = vld [vmem:[%s8 + $0x1e8] sm:$0xf]
      %v6822 = vld [vmem:[%s8 + $0x1ec] sm:$0xf]
      %v6823 = vld [vmem:[%s8 + $0x1f0] sm:$0xf]
      %v6824 = vld [vmem:[%s8 + $0x1f4] sm:$0xf]
      %v6825 = vld [vmem:[%s8 + $0x1f8] sm:$0xf]
      %v6826 = vld [vmem:[%s8 + $0x1fc] sm:$0xf]
      %v6827 = vld [vmem:[%s9] sm:$0x1]
      %v6829 = vlaneseq
      %v6830 = vshrl.u32 %v6829, 7
      %v6831 = vsub.s32 0, %v6830
      %v6832 = vrot.slane %v6827, %v6831
      %v6962 = vunpack.c.l.b16 %v6699
      %v6963 = vunpack.c.l.b16 %v6700
      %v6964 = vunpack.c.l.b16 %v6701
      %v6965 = vunpack.c.l.b16 %v6702
      %v6966 = vunpack.c.l.b16 %v6703
      %v6967 = vunpack.c.l.b16 %v6704
      %v6968 = vunpack.c.l.b16 %v6705
      %v6969 = vunpack.c.l.b16 %v6706
      %v6970 = vunpack.c.l.b16 %v6707
      %v6971 = vunpack.c.l.b16 %v6708
      %v6972 = vunpack.c.l.b16 %v6709
      %v6973 = vunpack.c.l.b16 %v6710
      %v6974 = vunpack.c.l.b16 %v6711
      %v6975 = vunpack.c.l.b16 %v6712
      %v6976 = vunpack.c.l.b16 %v6713
      %v6977 = vunpack.c.l.b16 %v6714
      %v6978 = vunpack.c.l.b16 %v6715
      %v6979 = vunpack.c.l.b16 %v6716
      %v6980 = vunpack.c.l.b16 %v6717
      %v6981 = vunpack.c.l.b16 %v6718
      %v6982 = vunpack.c.l.b16 %v6719
      %v6983 = vunpack.c.l.b16 %v6720
      %v6984 = vunpack.c.l.b16 %v6721
      %v6985 = vunpack.c.l.b16 %v6722
      %v6986 = vunpack.c.l.b16 %v6723
      %v6987 = vunpack.c.l.b16 %v6724
      %v6988 = vunpack.c.l.b16 %v6725
      %v6989 = vunpack.c.l.b16 %v6726
      %v6990 = vunpack.c.l.b16 %v6727
      %v6991 = vunpack.c.l.b16 %v6728
      %v6992 = vunpack.c.l.b16 %v6729
      %v6993 = vunpack.c.l.b16 %v6730
      %v6994 = vunpack.c.l.b16 %v6731
      %v6995 = vunpack.c.l.b16 %v6732
      %v6996 = vunpack.c.l.b16 %v6733
      %v6997 = vunpack.c.l.b16 %v6734
      %v6998 = vunpack.c.l.b16 %v6735
      %v6999 = vunpack.c.l.b16 %v6736
      %v7000 = vunpack.c.l.b16 %v6737
      %v7001 = vunpack.c.l.b16 %v6738
      %v7002 = vunpack.c.l.b16 %v6739
      %v7003 = vunpack.c.l.b16 %v6740
      %v7004 = vunpack.c.l.b16 %v6741
      %v7005 = vunpack.c.l.b16 %v6742
      %v7006 = vunpack.c.l.b16 %v6743
      %v7007 = vunpack.c.l.b16 %v6744
      %v7008 = vunpack.c.l.b16 %v6745
      %v7009 = vunpack.c.l.b16 %v6746
      %v7010 = vunpack.c.l.b16 %v6747
      %v7011 = vunpack.c.l.b16 %v6748
      %v7012 = vunpack.c.l.b16 %v6749
      %v7013 = vunpack.c.l.b16 %v6750
      %v7014 = vunpack.c.l.b16 %v6751
      %v7015 = vunpack.c.l.b16 %v6752
      %v7016 = vunpack.c.l.b16 %v6753
      %v7017 = vunpack.c.l.b16 %v6754
      %v7018 = vunpack.c.l.b16 %v6755
      %v7019 = vunpack.c.l.b16 %v6756
      %v7020 = vunpack.c.l.b16 %v6757
      %v7021 = vunpack.c.l.b16 %v6758
      %v7022 = vunpack.c.l.b16 %v6759
      %v7023 = vunpack.c.l.b16 %v6760
      %v7024 = vunpack.c.l.b16 %v6761
      %v7025 = vunpack.c.l.b16 %v6762
      %v7026 = vunpack.c.l.b16 %v6763
      %v7027 = vunpack.c.l.b16 %v6764
      %v7028 = vunpack.c.l.b16 %v6765
      %v7029 = vunpack.c.l.b16 %v6766
      %v7030 = vunpack.c.l.b16 %v6767
      %v7031 = vunpack.c.l.b16 %v6768
      %v7032 = vunpack.c.l.b16 %v6769
      %v7033 = vunpack.c.l.b16 %v6770
      %v7034 = vunpack.c.l.b16 %v6771
      %v7035 = vunpack.c.l.b16 %v6772
      %v7036 = vunpack.c.l.b16 %v6773
      %v7037 = vunpack.c.l.b16 %v6774
      %v7038 = vunpack.c.l.b16 %v6775
      %v7039 = vunpack.c.l.b16 %v6776
      %v7040 = vunpack.c.l.b16 %v6777
      %v7041 = vunpack.c.l.b16 %v6778
      %v7042 = vunpack.c.l.b16 %v6779
      %v7043 = vunpack.c.l.b16 %v6780
      %v7044 = vunpack.c.l.b16 %v6781
      %v7045 = vunpack.c.l.b16 %v6782
      %v7046 = vunpack.c.l.b16 %v6783
      %v7047 = vunpack.c.l.b16 %v6784
      %v7048 = vunpack.c.l.b16 %v6785
      %v7049 = vunpack.c.l.b16 %v6786
      %v7050 = vunpack.c.l.b16 %v6787
      %v7051 = vunpack.c.l.b16 %v6788
      %v7052 = vunpack.c.l.b16 %v6789
      %v7053 = vunpack.c.l.b16 %v6790
      %v7054 = vunpack.c.l.b16 %v6791
      %v7055 = vunpack.c.l.b16 %v6792
      %v7056 = vunpack.c.l.b16 %v6793
      %v7057 = vunpack.c.l.b16 %v6794
      %v7058 = vunpack.c.l.b16 %v6795
      %v7059 = vunpack.c.l.b16 %v6796
      %v7060 = vunpack.c.l.b16 %v6797
      %v7061 = vunpack.c.l.b16 %v6798
      %v7062 = vunpack.c.l.b16 %v6799
      %v7063 = vunpack.c.l.b16 %v6800
      %v7064 = vunpack.c.l.b16 %v6801
      %v7065 = vunpack.c.l.b16 %v6802
      %v7066 = vunpack.c.l.b16 %v6803
      %v7067 = vunpack.c.l.b16 %v6804
      %v7068 = vunpack.c.l.b16 %v6805
      %v7069 = vunpack.c.l.b16 %v6806
      %v7070 = vunpack.c.l.b16 %v6807
      %v7071 = vunpack.c.l.b16 %v6808
      %v7072 = vunpack.c.l.b16 %v6809
      %v7073 = vunpack.c.l.b16 %v6810
      %v7074 = vunpack.c.l.b16 %v6811
      %v7075 = vunpack.c.l.b16 %v6812
      %v7076 = vunpack.c.l.b16 %v6813
      %v7077 = vunpack.c.l.b16 %v6814
      %v7078 = vunpack.c.l.b16 %v6815
      %v7079 = vunpack.c.l.b16 %v6816
      %v7080 = vunpack.c.l.b16 %v6817
      %v7081 = vunpack.c.l.b16 %v6818
      %v7082 = vunpack.c.l.b16 %v6819
      %v7083 = vunpack.c.l.b16 %v6820
      %v7084 = vunpack.c.l.b16 %v6821
      %v7085 = vunpack.c.l.b16 %v6822
      %v7086 = vunpack.c.l.b16 %v6823
      %v7087 = vunpack.c.l.b16 %v6824
      %v7088 = vunpack.c.l.b16 %v6825
      %v7089 = vunpack.c.l.b16 %v6826
      %v7090 = vpack.c.b16 %v6963, %v6962
      %v7091 = vpack.c.b16 %v6965, %v6964
      %v7092 = vpack.c.b16 %v6967, %v6966
      %v7093 = vpack.c.b16 %v6969, %v6968
      %v7094 = vpack.c.b16 %v6971, %v6970
      %v7095 = vpack.c.b16 %v6973, %v6972
      %v7096 = vpack.c.b16 %v6975, %v6974
      %v7097 = vpack.c.b16 %v6977, %v6976
      %v7098 = vpack.c.b16 %v6979, %v6978
      %v7099 = vpack.c.b16 %v6981, %v6980
      %v7100 = vpack.c.b16 %v6983, %v6982
      %v7101 = vpack.c.b16 %v6985, %v6984
      %v7102 = vpack.c.b16 %v6987, %v6986
      %v7103 = vpack.c.b16 %v6989, %v6988
      %v7104 = vpack.c.b16 %v6991, %v6990
      %v7105 = vpack.c.b16 %v6993, %v6992
      %v7106 = vpack.c.b16 %v6995, %v6994
      %v7107 = vpack.c.b16 %v6997, %v6996
      %v7108 = vpack.c.b16 %v6999, %v6998
      %v7109 = vpack.c.b16 %v7001, %v7000
      %v7110 = vpack.c.b16 %v7003, %v7002
      %v7111 = vpack.c.b16 %v7005, %v7004
      %v7112 = vpack.c.b16 %v7007, %v7006
      %v7113 = vpack.c.b16 %v7009, %v7008
      %v7114 = vpack.c.b16 %v7011, %v7010
      %v7115 = vpack.c.b16 %v7013, %v7012
      %v7116 = vpack.c.b16 %v7015, %v7014
      %v7117 = vpack.c.b16 %v7017, %v7016
      %v7118 = vpack.c.b16 %v7019, %v7018
      %v7119 = vpack.c.b16 %v7021, %v7020
      %v7120 = vpack.c.b16 %v7023, %v7022
      %v7121 = vpack.c.b16 %v7025, %v7024
      %v7122 = vpack.c.b16 %v7027, %v7026
      %v7123 = vpack.c.b16 %v7029, %v7028
      %v7124 = vpack.c.b16 %v7031, %v7030
      %v7125 = vpack.c.b16 %v7033, %v7032
      %v7126 = vpack.c.b16 %v7035, %v7034
      %v7127 = vpack.c.b16 %v7037, %v7036
      %v7128 = vpack.c.b16 %v7039, %v7038
      %v7129 = vpack.c.b16 %v7041, %v7040
      %v7130 = vpack.c.b16 %v7043, %v7042
      %v7131 = vpack.c.b16 %v7045, %v7044
      %v7132 = vpack.c.b16 %v7047, %v7046
      %v7133 = vpack.c.b16 %v7049, %v7048
      %v7134 = vpack.c.b16 %v7051, %v7050
      %v7135 = vpack.c.b16 %v7053, %v7052
      %v7136 = vpack.c.b16 %v7055, %v7054
      %v7137 = vpack.c.b16 %v7057, %v7056
      %v7138 = vpack.c.b16 %v7059, %v7058
      %v7139 = vpack.c.b16 %v7061, %v7060
      %v7140 = vpack.c.b16 %v7063, %v7062
      %v7141 = vpack.c.b16 %v7065, %v7064
      %v7142 = vpack.c.b16 %v7067, %v7066
      %v7143 = vpack.c.b16 %v7069, %v7068
      %v7144 = vpack.c.b16 %v7071, %v7070
      %v7145 = vpack.c.b16 %v7073, %v7072
      %v7146 = vpack.c.b16 %v7075, %v7074
      %v7147 = vpack.c.b16 %v7077, %v7076
      %v7148 = vpack.c.b16 %v7079, %v7078
      %v7149 = vpack.c.b16 %v7081, %v7080
      %v7150 = vpack.c.b16 %v7083, %v7082
      %v7151 = vpack.c.b16 %v7085, %v7084
      %v7152 = vpack.c.b16 %v7087, %v7086
      %v7153 = vpack.c.b16 %v7089, %v7088
      %7218 = vmatprep.subr.bf16.mxu0 0
      %7219 = vmatpush1.bf16.msra.mxu0 %v7090
      %7220 = vmatprep.subr.bf16.mxu0 0
      %7221 = vmatpush1.bf16.msra.mxu0 %v7091
      %7222 = vmatprep.subr.bf16.mxu0 0
      %7223 = vmatpush1.bf16.msra.mxu0 %v7092
      %7224 = vmatprep.subr.bf16.mxu0 0
      %7225 = vmatpush1.bf16.msra.mxu0 %v7093
      %7226 = vmatprep.subr.bf16.mxu0 0
      %7227 = vmatpush1.bf16.msra.mxu0 %v7094
      %7228 = vmatprep.subr.bf16.mxu0 0
      %7229 = vmatpush1.bf16.msra.mxu0 %v7095
      %7230 = vmatprep.subr.bf16.mxu0 0
      %7231 = vmatpush1.bf16.msra.mxu0 %v7096
      %7232 = vmatprep.subr.bf16.mxu0 0
      %7233 = vmatpush1.bf16.msra.mxu0 %v7097
      %7234 = vmatprep.subr.bf16.mxu0 0
      %7235 = vmatpush1.bf16.msra.mxu0 %v7098
      %7236 = vmatprep.subr.bf16.mxu0 0
      %7237 = vmatpush1.bf16.msra.mxu0 %v7099
      %7238 = vmatprep.subr.bf16.mxu0 0
      %7239 = vmatpush1.bf16.msra.mxu0 %v7100
      %7240 = vmatprep.subr.bf16.mxu0 0
      %7241 = vmatpush1.bf16.msra.mxu0 %v7101
      %7242 = vmatprep.subr.bf16.mxu0 0
      %7243 = vmatpush1.bf16.msra.mxu0 %v7102
      %7244 = vmatprep.subr.bf16.mxu0 0
      %7245 = vmatpush1.bf16.msra.mxu0 %v7103
      %7246 = vmatprep.subr.bf16.mxu0 0
      %7247 = vmatpush1.bf16.msra.mxu0 %v7104
      %7248 = vmatprep.subr.bf16.mxu0 0
      %7249 = vmatpush1.bf16.msra.mxu0 %v7105
      %7250 = vmatprep.mubr.bf16.mxu0 %v6556
      %7251 = vmatmul.mubr.bf16.gmra.mrb[0].mxu0 %v6555
      %v7252 = vpop.f32.mrb[0].mxu0
      %v7253 = vadd.f32 %v6832, %v7252
      %v7254 = vpop.f32.mrb[0].mxu0
      %v7255 = vpop.f32.mrb[0].mxu0
      %v7256 = vadd.f32 %v6832, %v7255
      %v7257 = vpop.f32.mrb[0].mxu0
      %7258 = vmatprep.mubr.bf16.mxu0 %v6565
      %7259 = vmatmul.mubr.bf16.gmra.mrb[0].mxu0 %v6564
      %v7260 = vpop.f32.mrb[0].mxu0
      %v7261 = vadd.f32 %v6832, %v7260
      %v7262 = vpop.f32.mrb[0].mxu0
      %v7263 = vpop.f32.mrb[0].mxu0
      %v7264 = vadd.f32 %v6832, %v7263
      %v7265 = vpop.f32.mrb[0].mxu0
      %7266 = vmatprep.mubr.bf16.mxu0 %v6574
      %7267 = vmatmul.mubr.bf16.gmra.mrb[0].mxu0 %v6573
      %v7268 = vpop.f32.mrb[0].mxu0
      %v7269 = vadd.f32 %v6832, %v7268
      %v7270 = vpop.f32.mrb[0].mxu0
      %v7271 = vpop.f32.mrb[0].mxu0
      %v7272 = vadd.f32 %v6832, %v7271
      %v7273 = vpop.f32.mrb[0].mxu0
      %7274 = vmatprep.mubr.bf16.mxu0 %v6583
      %7275 = vmatmul.mubr.bf16.gmra.mrb[0].mxu0 %v6582
      %v7276 = vpop.f32.mrb[0].mxu0
      %v7277 = vadd.f32 %v6832, %v7276
      %v7278 = vpop.f32.mrb[0].mxu0
      %v7279 = vpop.f32.mrb[0].mxu0
      %v7280 = vadd.f32 %v6832, %v7279
      %v7281 = vpop.f32.mrb[0].mxu0
      %7282 = vmatprep.mubr.bf16.mxu0 %v6592
      %7283 = vmatmul.mubr.bf16.gmra.mrb[0].mxu0 %v6591
      %v7284 = vpop.f32.mrb[0].mxu0
      %v7285 = vadd.f32 %v6832, %v7284
      %v7286 = vpop.f32.mrb[0].mxu0
      %v7287 = vpop.f32.mrb[0].mxu0
      %v7288 = vadd.f32 %v6832, %v7287
      %v7289 = vpop.f32.mrb[0].mxu0
      %7290 = vmatprep.mubr.bf16.mxu0 %v6601
      %7291 = vmatmul.mubr.bf16.gmra.mrb[0].mxu0 %v6600
      %v7292 = vpop.f32.mrb[0].mxu0
      %v7293 = vadd.f32 %v6832, %v7292
      %v7294 = vpop.f32.mrb[0].mxu0
      %v7295 = vpop.f32.mrb[0].mxu0
      %v7296 = vadd.f32 %v6832, %v7295
      %v7297 = vpop.f32.mrb[0].mxu0
      %7298 = vmatprep.mubr.bf16.mxu0 %v6610
      %7299 = vmatmul.mubr.bf16.gmra.mrb[0].mxu0 %v6609
      %v7300 = vpop.f32.mrb[0].mxu0
      %v7301 = vadd.f32 %v6832, %v7300
      %v7302 = vpop.f32.mrb[0].mxu0
      %v7303 = vpop.f32.mrb[0].mxu0
      %v7304 = vadd.f32 %v6832, %v7303
      %v7305 = vpop.f32.mrb[0].mxu0
      %7306 = vmatprep.mubr.bf16.mxu0 %v6619
      %7307 = vmatmul.mubr.bf16.gmra.mrb[0].mxu0 %v6618
      %v7308 = vpop.f32.mrb[0].mxu0
      %v7309 = vadd.f32 %v6832, %v7308
      %v7310 = vpop.f32.mrb[0].mxu0
      %v7311 = vpop.f32.mrb[0].mxu0
      %v7312 = vadd.f32 %v6832, %v7311
      %v7313 = vpop.f32.mrb[0].mxu0
      %7314 = vmatprep.mubr.bf16.mxu0 %v6628
      %7315 = vmatmul.mubr.bf16.gmra.mrb[0].mxu0 %v6627
      %v7316 = vpop.f32.mrb[0].mxu0
      %v7317 = vadd.f32 %v6832, %v7316
      %v7318 = vpop.f32.mrb[0].mxu0
      %v7319 = vpop.f32.mrb[0].mxu0
      %v7320 = vadd.f32 %v6832, %v7319
      %v7321 = vpop.f32.mrb[0].mxu0
      %7322 = vmatprep.mubr.bf16.mxu0 %v6637
      %7323 = vmatmul.mubr.bf16.gmra.mrb[0].mxu0 %v6636
      %v7324 = vpop.f32.mrb[0].mxu0
      %v7325 = vadd.f32 %v6832, %v7324
      %v7326 = vpop.f32.mrb[0].mxu0
      %v7327 = vpop.f32.mrb[0].mxu0
      %v7328 = vadd.f32 %v6832, %v7327
      %v7329 = vpop.f32.mrb[0].mxu0
      %7330 = vmatprep.mubr.bf16.mxu0 %v6646
      %7331 = vmatmul.mubr.bf16.gmra.mrb[0].mxu0 %v6645
      %v7332 = vpop.f32.mrb[0].mxu0
      %v7333 = vadd.f32 %v6832, %v7332
      %v7334 = vpop.f32.mrb[0].mxu0
      %v7335 = vpop.f32.mrb[0].mxu0
      %v7336 = vadd.f32 %v6832, %v7335
      %v7337 = vpop.f32.mrb[0].mxu0
      %7338 = vmatprep.mubr.bf16.mxu0 %v6655
      %7339 = vmatmul.mubr.bf16.gmra.mrb[0].mxu0 %v6654
      %v7340 = vpop.f32.mrb[0].mxu0
      %v7341 = vadd.f32 %v6832, %v7340
      %v7342 = vpop.f32.mrb[0].mxu0
      %v7343 = vpop.f32.mrb[0].mxu0
      %v7344 = vadd.f32 %v6832, %v7343
      %v7345 = vpop.f32.mrb[0].mxu0
      %7346 = vmatprep.mubr.bf16.mxu0 %v6664
      %7347 = vmatmul.mubr.bf16.gmra.mrb[0].mxu0 %v6663
      %v7348 = vpop.f32.mrb[0].mxu0
      %v7349 = vadd.f32 %v6832, %v7348
      %v7350 = vpop.f32.mrb[0].mxu0
      %v7351 = vpop.f32.mrb[0].mxu0
      %v7352 = vadd.f32 %v6832, %v7351
      %v7353 = vpop.f32.mrb[0].mxu0
      %7354 = vmatprep.mubr.bf16.mxu0 %v6673
      %7355 = vmatmul.mubr.bf16.gmra.mrb[0].mxu0 %v6672
      %v7356 = vpop.f32.mrb[0].mxu0
      %v7357 = vadd.f32 %v6832, %v7356
      %v7358 = vpop.f32.mrb[0].mxu0
      %v7359 = vpop.f32.mrb[0].mxu0
      %v7360 = vadd.f32 %v6832, %v7359
      %v7361 = vpop.f32.mrb[0].mxu0
      %7362 = vmatprep.mubr.bf16.mxu0 %v6682
      %7363 = vmatmul.mubr.bf16.gmra.mrb[0].mxu0 %v6681
      %v7364 = vpop.f32.mrb[0].mxu0
      %v7365 = vadd.f32 %v6832, %v7364
      %v7366 = vpop.f32.mrb[0].mxu0
      %v7367 = vpop.f32.mrb[0].mxu0
      %v7368 = vadd.f32 %v6832, %v7367
      %v7369 = vpop.f32.mrb[0].mxu0
      %7370 = vmatprep.mubr.bf16.mxu0 %v6691
      %7371 = vmatmul.mubr.bf16.gmra.mrb[0].mxu0 %v6690
      %v7372 = vpop.f32.mrb[0].mxu0
      %v7373 = vadd.f32 %v6832, %v7372
      %v7374 = vpop.f32.mrb[0].mxu0
      %v7375 = vpop.f32.mrb[0].mxu0
      %v7376 = vadd.f32 %v6832, %v7375
      %v7377 = vpop.f32.mrb[0].mxu0
      %7378 = vdwg.mxu0
      %7379 = vmatprep.subr.bf16.mxu0 0
      %7380 = vmatpush1.bf16.msra.mxu0 %v7106
      %7381 = vmatprep.subr.bf16.mxu0 0
      %7382 = vmatpush1.bf16.msra.mxu0 %v7107
      %7383 = vmatprep.subr.bf16.mxu0 0
      %7384 = vmatpush1.bf16.msra.mxu0 %v7108
      %7385 = vmatprep.subr.bf16.mxu0 0
      %7386 = vmatpush1.bf16.msra.mxu0 %v7109
      %7387 = vmatprep.subr.bf16.mxu0 0
      %7388 = vmatpush1.bf16.msra.mxu0 %v7110
      %7389 = vmatprep.subr.bf16.mxu0 0
      %7390 = vmatpush1.bf16.msra.mxu0 %v7111
      %7391 = vmatprep.subr.bf16.mxu0 0
      %7392 = vmatpush1.bf16.msra.mxu0 %v7112
      %7393 = vmatprep.subr.bf16.mxu0 0
      %7394 = vmatpush1.bf16.msra.mxu0 %v7113
      %7395 = vmatprep.subr.bf16.mxu0 0
      %7396 = vmatpush1.bf16.msra.mxu0 %v7114
      %7397 = vmatprep.subr.bf16.mxu0 0
      %7398 = vmatpush1.bf16.msra.mxu0 %v7115
      %7399 = vmatprep.subr.bf16.mxu0 0
      %7400 = vmatpush1.bf16.msra.mxu0 %v7116
      %7401 = vmatprep.subr.bf16.mxu0 0
      %7402 = vmatpush1.bf16.msra.mxu0 %v7117
      %7403 = vmatprep.subr.bf16.mxu0 0
      %7404 = vmatpush1.bf16.msra.mxu0 %v7118
      %7405 = vmatprep.subr.bf16.mxu0 0
      %7406 = vmatpush1.bf16.msra.mxu0 %v7119
      %7407 = vmatprep.subr.bf16.mxu0 0
      %7408 = vmatpush1.bf16.msra.mxu0 %v7120
      %7409 = vmatprep.subr.bf16.mxu0 0
      %7410 = vmatpush1.bf16.msra.mxu0 %v7121
      %7411 = vmatprep.mubr.bf16.mxu0 %v6558
      %7412 = vmatmul.mubr.bf16.gmra.mrb[0].mxu0 %v6557
      %v7413 = vpop.f32.mrb[0].mxu0
      %v7414 = vadd.f32 %v7253, %v7413
      %v7415 = vpop.f32.mrb[0].mxu0
      %v7416 = vpop.f32.mrb[0].mxu0
      %v7417 = vadd.f32 %v7256, %v7416
      %v7418 = vpop.f32.mrb[0].mxu0
      %7419 = vmatprep.mubr.bf16.mxu0 %v6567
      %7420 = vmatmul.mubr.bf16.gmra.mrb[0].mxu0 %v6566
      %v7421 = vpop.f32.mrb[0].mxu0
      %v7422 = vadd.f32 %v7261, %v7421
      %v7423 = vpop.f32.mrb[0].mxu0
      %v7424 = vpop.f32.mrb[0].mxu0
      %v7425 = vadd.f32 %v7264, %v7424
      %v7426 = vpop.f32.mrb[0].mxu0
      %7427 = vmatprep.mubr.bf16.mxu0 %v6576
      %7428 = vmatmul.mubr.bf16.gmra.mrb[0].mxu0 %v6575
      %v7429 = vpop.f32.mrb[0].mxu0
      %v7430 = vadd.f32 %v7269, %v7429
      %v7431 = vpop.f32.mrb[0].mxu0
      %v7432 = vpop.f32.mrb[0].mxu0
      %v7433 = vadd.f32 %v7272, %v7432
      %v7434 = vpop.f32.mrb[0].mxu0
      %7435 = vmatprep.mubr.bf16.mxu0 %v6585
      %7436 = vmatmul.mubr.bf16.gmra.mrb[0].mxu0 %v6584
      %v7437 = vpop.f32.mrb[0].mxu0
      %v7438 = vadd.f32 %v7277, %v7437
      %v7439 = vpop.f32.mrb[0].mxu0
      %v7440 = vpop.f32.mrb[0].mxu0
      %v7441 = vadd.f32 %v7280, %v7440
      %v7442 = vpop.f32.mrb[0].mxu0
      %7443 = vmatprep.mubr.bf16.mxu0 %v6594
      %7444 = vmatmul.mubr.bf16.gmra.mrb[0].mxu0 %v6593
      %v7445 = vpop.f32.mrb[0].mxu0
      %v7446 = vadd.f32 %v7285, %v7445
      %v7447 = vpop.f32.mrb[0].mxu0
      %v7448 = vpop.f32.mrb[0].mxu0
      %v7449 = vadd.f32 %v7288, %v7448
      %v7450 = vpop.f32.mrb[0].mxu0
      %7451 = vmatprep.mubr.bf16.mxu0 %v6603
      %7452 = vmatmul.mubr.bf16.gmra.mrb[0].mxu0 %v6602
      %v7453 = vpop.f32.mrb[0].mxu0
      %v7454 = vadd.f32 %v7293, %v7453
      %v7455 = vpop.f32.mrb[0].mxu0
      %v7456 = vpop.f32.mrb[0].mxu0
      %v7457 = vadd.f32 %v7296, %v7456
      %v7458 = vpop.f32.mrb[0].mxu0
      %7459 = vmatprep.mubr.bf16.mxu0 %v6612
      %7460 = vmatmul.mubr.bf16.gmra.mrb[0].mxu0 %v6611
      %v7461 = vpop.f32.mrb[0].mxu0
      %v7462 = vadd.f32 %v7301, %v7461
      %v7463 = vpop.f32.mrb[0].mxu0
      %v7464 = vpop.f32.mrb[0].mxu0
      %v7465 = vadd.f32 %v7304, %v7464
      %v7466 = vpop.f32.mrb[0].mxu0
      %7467 = vmatprep.mubr.bf16.mxu0 %v6621
      %7468 = vmatmul.mubr.bf16.gmra.mrb[0].mxu0 %v6620
      %v7469 = vpop.f32.mrb[0].mxu0
      %v7470 = vadd.f32 %v7309, %v7469
      %v7471 = vpop.f32.mrb[0].mxu0
      %v7472 = vpop.f32.mrb[0].mxu0
      %v7473 = vadd.f32 %v7312, %v7472
      %v7474 = vpop.f32.mrb[0].mxu0
      %7475 = vmatprep.mubr.bf16.mxu0 %v6630
      %7476 = vmatmul.mubr.bf16.gmra.mrb[0].mxu0 %v6629
      %v7477 = vpop.f32.mrb[0].mxu0
      %v7478 = vadd.f32 %v7317, %v7477
      %v7479 = vpop.f32.mrb[0].mxu0
      %v7480 = vpop.f32.mrb[0].mxu0
      %v7481 = vadd.f32 %v7320, %v7480
      %v7482 = vpop.f32.mrb[0].mxu0
      %7483 = vmatprep.mubr.bf16.mxu0 %v6639
      %7484 = vmatmul.mubr.bf16.gmra.mrb[0].mxu0 %v6638
      %v7485 = vpop.f32.mrb[0].mxu0
      %v7486 = vadd.f32 %v7325, %v7485
      %v7487 = vpop.f32.mrb[0].mxu0
      %v7488 = vpop.f32.mrb[0].mxu0
      %v7489 = vadd.f32 %v7328, %v7488
      %v7490 = vpop.f32.mrb[0].mxu0
      %7491 = vmatprep.mubr.bf16.mxu0 %v6648
      %7492 = vmatmul.mubr.bf16.gmra.mrb[0].mxu0 %v6647
      %v7493 = vpop.f32.mrb[0].mxu0
      %v7494 = vadd.f32 %v7333, %v7493
      %v7495 = vpop.f32.mrb[0].mxu0
      %v7496 = vpop.f32.mrb[0].mxu0
      %v7497 = vadd.f32 %v7336, %v7496
      %v7498 = vpop.f32.mrb[0].mxu0
      %7499 = vmatprep.mubr.bf16.mxu0 %v6657
      %7500 = vmatmul.mubr.bf16.gmra.mrb[0].mxu0 %v6656
      %v7501 = vpop.f32.mrb[0].mxu0
      %v7502 = vadd.f32 %v7341, %v7501
      %v7503 = vpop.f32.mrb[0].mxu0
      %v7504 = vpop.f32.mrb[0].mxu0
      %v7505 = vadd.f32 %v7344, %v7504
      %v7506 = vpop.f32.mrb[0].mxu0
      %7507 = vmatprep.mubr.bf16.mxu0 %v6666
      %7508 = vmatmul.mubr.bf16.gmra.mrb[0].mxu0 %v6665
      %v7509 = vpop.f32.mrb[0].mxu0
      %v7510 = vadd.f32 %v7349, %v7509
      %v7511 = vpop.f32.mrb[0].mxu0
      %v7512 = vpop.f32.mrb[0].mxu0
      %v7513 = vadd.f32 %v7352, %v7512
      %v7514 = vpop.f32.mrb[0].mxu0
      %7515 = vmatprep.mubr.bf16.mxu0 %v6675
      %7516 = vmatmul.mubr.bf16.gmra.mrb[0].mxu0 %v6674
      %v7517 = vpop.f32.mrb[0].mxu0
      %v7518 = vadd.f32 %v7357, %v7517
      %v7519 = vpop.f32.mrb[0].mxu0
      %v7520 = vpop.f32.mrb[0].mxu0
      %v7521 = vadd.f32 %v7360, %v7520
      %v7522 = vpop.f32.mrb[0].mxu0
      %7523 = vmatprep.mubr.bf16.mxu0 %v6684
      %7524 = vmatmul.mubr.bf16.gmra.mrb[0].mxu0 %v6683
      %v7525 = vpop.f32.mrb[0].mxu0
      %v7526 = vadd.f32 %v7365, %v7525
      %v7527 = vpop.f32.mrb[0].mxu0
      %v7528 = vpop.f32.mrb[0].mxu0
      %v7529 = vadd.f32 %v7368, %v7528
      %v7530 = vpop.f32.mrb[0].mxu0
      %7531 = vmatprep.mubr.bf16.mxu0 %v6693
      %7532 = vmatmul.mubr.bf16.gmra.mrb[0].mxu0 %v6692
      %v7533 = vpop.f32.mrb[0].mxu0
      %v7534 = vadd.f32 %v7373, %v7533
      %v7535 = vpop.f32.mrb[0].mxu0
      %v7536 = vpop.f32.mrb[0].mxu0
      %v7537 = vadd.f32 %v7376, %v7536
      %v7538 = vpop.f32.mrb[0].mxu0
      %7539 = vdwg.mxu0
      %7540 = vmatprep.subr.bf16.mxu0 0
      %7541 = vmatpush1.bf16.msra.mxu0 %v7122
      %7542 = vmatprep.subr.bf16.mxu0 0
      %7543 = vmatpush1.bf16.msra.mxu0 %v7123
      %7544 = vmatprep.subr.bf16.mxu0 0
      %7545 = vmatpush1.bf16.msra.mxu0 %v7124
      %7546 = vmatprep.subr.bf16.mxu0 0
      %7547 = vmatpush1.bf16.msra.mxu0 %v7125
      %7548 = vmatprep.subr.bf16.mxu0 0
      %7549 = vmatpush1.bf16.msra.mxu0 %v7126
      %7550 = vmatprep.subr.bf16.mxu0 0
      %7551 = vmatpush1.bf16.msra.mxu0 %v7127
      %7552 = vmatprep.subr.bf16.mxu0 0
      %7553 = vmatpush1.bf16.msra.mxu0 %v7128
      %7554 = vmatprep.subr.bf16.mxu0 0
      %7555 = vmatpush1.bf16.msra.mxu0 %v7129
      %7556 = vmatprep.subr.bf16.mxu0 0
      %7557 = vmatpush1.bf16.msra.mxu0 %v7130
      %7558 = vmatprep.subr.bf16.mxu0 0
      %7559 = vmatpush1.bf16.msra.mxu0 %v7131
      %7560 = vmatprep.subr.bf16.mxu0 0
      %7561 = vmatpush1.bf16.msra.mxu0 %v7132
      %7562 = vmatprep.subr.bf16.mxu0 0
      %7563 = vmatpush1.bf16.msra.mxu0 %v7133
      %7564 = vmatprep.subr.bf16.mxu0 0
      %7565 = vmatpush1.bf16.msra.mxu0 %v7134
      %7566 = vmatprep.subr.bf16.mxu0 0
      %7567 = vmatpush1.bf16.msra.mxu0 %v7135
      %7568 = vmatprep.subr.bf16.mxu0 0
      %7569 = vmatpush1.bf16.msra.mxu0 %v7136
      %7570 = vmatprep.subr.bf16.mxu0 0
      %7571 = vmatpush1.bf16.msra.mxu0 %v7137
      %7572 = vmatprep.mubr.bf16.mxu0 %v6560
      %7573 = vmatmul.mubr.bf16.gmra.mrb[0].mxu0 %v6559
      %v7574 = vpop.f32.mrb[0].mxu0
      %v7575 = vadd.f32 %v7414, %v7574
      %v7576 = vpop.f32.mrb[0].mxu0
      %v7577 = vpop.f32.mrb[0].mxu0
      %v7578 = vadd.f32 %v7417, %v7577
      %v7579 = vpop.f32.mrb[0].mxu0
      %7580 = vmatprep.mubr.bf16.mxu0 %v6569
      %7581 = vmatmul.mubr.bf16.gmra.mrb[0].mxu0 %v6568
      %v7582 = vpop.f32.mrb[0].mxu0
      %v7583 = vadd.f32 %v7422, %v7582
      %v7584 = vpop.f32.mrb[0].mxu0
      %v7585 = vpop.f32.mrb[0].mxu0
      %v7586 = vadd.f32 %v7425, %v7585
      %v7587 = vpop.f32.mrb[0].mxu0
      %7588 = vmatprep.mubr.bf16.mxu0 %v6578
      %7589 = vmatmul.mubr.bf16.gmra.mrb[0].mxu0 %v6577
      %v7590 = vpop.f32.mrb[0].mxu0
      %v7591 = vadd.f32 %v7430, %v7590
      %v7592 = vpop.f32.mrb[0].mxu0
      %v7593 = vpop.f32.mrb[0].mxu0
      %v7594 = vadd.f32 %v7433, %v7593
      %v7595 = vpop.f32.mrb[0].mxu0
      %7596 = vmatprep.mubr.bf16.mxu0 %v6587
      %7597 = vmatmul.mubr.bf16.gmra.mrb[0].mxu0 %v6586
      %v7598 = vpop.f32.mrb[0].mxu0
      %v7599 = vadd.f32 %v7438, %v7598
      %v7600 = vpop.f32.mrb[0].mxu0
      %v7601 = vpop.f32.mrb[0].mxu0
      %v7602 = vadd.f32 %v7441, %v7601
      %v7603 = vpop.f32.mrb[0].mxu0
      %7604 = vmatprep.mubr.bf16.mxu0 %v6596
      %7605 = vmatmul.mubr.bf16.gmra.mrb[0].mxu0 %v6595
      %v7606 = vpop.f32.mrb[0].mxu0
      %v7607 = vadd.f32 %v7446, %v7606
      %v7608 = vpop.f32.mrb[0].mxu0
      %v7609 = vpop.f32.mrb[0].mxu0
      %v7610 = vadd.f32 %v7449, %v7609
      %v7611 = vpop.f32.mrb[0].mxu0
      %7612 = vmatprep.mubr.bf16.mxu0 %v6605
      %7613 = vmatmul.mubr.bf16.gmra.mrb[0].mxu0 %v6604
      %v7614 = vpop.f32.mrb[0].mxu0
      %v7615 = vadd.f32 %v7454, %v7614
      %v7616 = vpop.f32.mrb[0].mxu0
      %v7617 = vpop.f32.mrb[0].mxu0
      %v7618 = vadd.f32 %v7457, %v7617
      %v7619 = vpop.f32.mrb[0].mxu0
      %7620 = vmatprep.mubr.bf16.mxu0 %v6614
      %7621 = vmatmul.mubr.bf16.gmra.mrb[0].mxu0 %v6613
      %v7622 = vpop.f32.mrb[0].mxu0
      %v7623 = vadd.f32 %v7462, %v7622
      %v7624 = vpop.f32.mrb[0].mxu0
      %v7625 = vpop.f32.mrb[0].mxu0
      %v7626 = vadd.f32 %v7465, %v7625
      %v7627 = vpop.f32.mrb[0].mxu0
      %7628 = vmatprep.mubr.bf16.mxu0 %v6623
      %7629 = vmatmul.mubr.bf16.gmra.mrb[0].mxu0 %v6622
      %v7630 = vpop.f32.mrb[0].mxu0
      %v7631 = vadd.f32 %v7470, %v7630
      %v7632 = vpop.f32.mrb[0].mxu0
      %v7633 = vpop.f32.mrb[0].mxu0
      %v7634 = vadd.f32 %v7473, %v7633
      %v7635 = vpop.f32.mrb[0].mxu0
      %7636 = vmatprep.mubr.bf16.mxu0 %v6632
      %7637 = vmatmul.mubr.bf16.gmra.mrb[0].mxu0 %v6631
      %v7638 = vpop.f32.mrb[0].mxu0
      %v7639 = vadd.f32 %v7478, %v7638
      %v7640 = vpop.f32.mrb[0].mxu0
      %v7641 = vpop.f32.mrb[0].mxu0
      %v7642 = vadd.f32 %v7481, %v7641
      %v7643 = vpop.f32.mrb[0].mxu0
      %7644 = vmatprep.mubr.bf16.mxu0 %v6641
      %7645 = vmatmul.mubr.bf16.gmra.mrb[0].mxu0 %v6640
      %v7646 = vpop.f32.mrb[0].mxu0
      %v7647 = vadd.f32 %v7486, %v7646
      %v7648 = vpop.f32.mrb[0].mxu0
      %v7649 = vpop.f32.mrb[0].mxu0
      %v7650 = vadd.f32 %v7489, %v7649
      %v7651 = vpop.f32.mrb[0].mxu0
      %7652 = vmatprep.mubr.bf16.mxu0 %v6650
      %7653 = vmatmul.mubr.bf16.gmra.mrb[0].mxu0 %v6649
      %v7654 = vpop.f32.mrb[0].mxu0
      %v7655 = vadd.f32 %v7494, %v7654
      %v7656 = vpop.f32.mrb[0].mxu0
      %v7657 = vpop.f32.mrb[0].mxu0
      %v7658 = vadd.f32 %v7497, %v7657
      %v7659 = vpop.f32.mrb[0].mxu0
      %7660 = vmatprep.mubr.bf16.mxu0 %v6659
      %7661 = vmatmul.mubr.bf16.gmra.mrb[0].mxu0 %v6658
      %v7662 = vpop.f32.mrb[0].mxu0
      %v7663 = vadd.f32 %v7502, %v7662
      %v7664 = vpop.f32.mrb[0].mxu0
      %v7665 = vpop.f32.mrb[0].mxu0
      %v7666 = vadd.f32 %v7505, %v7665
      %v7667 = vpop.f32.mrb[0].mxu0
      %7668 = vmatprep.mubr.bf16.mxu0 %v6668
      %7669 = vmatmul.mubr.bf16.gmra.mrb[0].mxu0 %v6667
      %v7670 = vpop.f32.mrb[0].mxu0
      %v7671 = vadd.f32 %v7510, %v7670
      %v7672 = vpop.f32.mrb[0].mxu0
      %v7673 = vpop.f32.mrb[0].mxu0
      %v7674 = vadd.f32 %v7513, %v7673
      %v7675 = vpop.f32.mrb[0].mxu0
      %7676 = vmatprep.mubr.bf16.mxu0 %v6677
      %7677 = vmatmul.mubr.bf16.gmra.mrb[0].mxu0 %v6676
      %v7678 = vpop.f32.mrb[0].mxu0
      %v7679 = vadd.f32 %v7518, %v7678
      %v7680 = vpop.f32.mrb[0].mxu0
      %v7681 = vpop.f32.mrb[0].mxu0
      %v7682 = vadd.f32 %v7521, %v7681
      %v7683 = vpop.f32.mrb[0].mxu0
      %7684 = vmatprep.mubr.bf16.mxu0 %v6686
      %7685 = vmatmul.mubr.bf16.gmra.mrb[0].mxu0 %v6685
      %v7686 = vpop.f32.mrb[0].mxu0
      %v7687 = vadd.f32 %v7526, %v7686
      %v7688 = vpop.f32.mrb[0].mxu0
      %v7689 = vpop.f32.mrb[0].mxu0
      %v7690 = vadd.f32 %v7529, %v7689
      %v7691 = vpop.f32.mrb[0].mxu0
      %7692 = vmatprep.mubr.bf16.mxu0 %v6695
      %7693 = vmatmul.mubr.bf16.gmra.mrb[0].mxu0 %v6694
      %v7694 = vpop.f32.mrb[0].mxu0
      %v7695 = vadd.f32 %v7534, %v7694
      %v7696 = vpop.f32.mrb[0].mxu0
      %v7697 = vpop.f32.mrb[0].mxu0
      %v7698 = vadd.f32 %v7537, %v7697
      %v7699 = vpop.f32.mrb[0].mxu0
      %7700 = vdwg.mxu0
      %7701 = vmatprep.subr.bf16.mxu0 0
      %7702 = vmatpush1.bf16.msra.mxu0 %v7138
      %7703 = vmatprep.subr.bf16.mxu0 0
      %7704 = vmatpush1.bf16.msra.mxu0 %v7139
      %7705 = vmatprep.subr.bf16.mxu0 0
      %7706 = vmatpush1.bf16.msra.mxu0 %v7140
      %7707 = vmatprep.subr.bf16.mxu0 0
      %7708 = vmatpush1.bf16.msra.mxu0 %v7141
      %7709 = vmatprep.subr.bf16.mxu0 0
      %7710 = vmatpush1.bf16.msra.mxu0 %v7142
      %7711 = vmatprep.subr.bf16.mxu0 0
      %7712 = vmatpush1.bf16.msra.mxu0 %v7143
      %7713 = vmatprep.subr.bf16.mxu0 0
      %7714 = vmatpush1.bf16.msra.mxu0 %v7144
      %7715 = vmatprep.subr.bf16.mxu0 0
      %7716 = vmatpush1.bf16.msra.mxu0 %v7145
      %7717 = vmatprep.subr.bf16.mxu0 0
      %7718 = vmatpush1.bf16.msra.mxu0 %v7146
      %7719 = vmatprep.subr.bf16.mxu0 0
      %7720 = vmatpush1.bf16.msra.mxu0 %v7147
      %7721 = vmatprep.subr.bf16.mxu0 0
      %7722 = vmatpush1.bf16.msra.mxu0 %v7148
      %7723 = vmatprep.subr.bf16.mxu0 0
      %7724 = vmatpush1.bf16.msra.mxu0 %v7149
      %7725 = vmatprep.subr.bf16.mxu0 0
      %7726 = vmatpush1.bf16.msra.mxu0 %v7150
      %7727 = vmatprep.subr.bf16.mxu0 0
      %7728 = vmatpush1.bf16.msra.mxu0 %v7151
      %7729 = vmatprep.subr.bf16.mxu0 0
      %7730 = vmatpush1.bf16.msra.mxu0 %v7152
      %7731 = vmatprep.subr.bf16.mxu0 0
      %7732 = vmatpush1.bf16.msra.mxu0 %v7153
      %7733 = vmatprep.mubr.bf16.mxu0 %v6562
      %7734 = vmatmul.mubr.bf16.gmra.mrb[0].mxu0 %v6561
      %v7735 = vpop.f32.mrb[0].mxu0
      %v7736 = vadd.f32 %v7575, %v7735
      %v7737 = vpop.f32.mrb[0].mxu0
      %v7738 = vpop.f32.mrb[0].mxu0
      %v7739 = vadd.f32 %v7578, %v7738
      %v7740 = vpop.f32.mrb[0].mxu0
      %7741 = vmatprep.mubr.bf16.mxu0 %v6571
      %7742 = vmatmul.mubr.bf16.gmra.mrb[0].mxu0 %v6570
      %v7743 = vpop.f32.mrb[0].mxu0
      %v7744 = vadd.f32 %v7583, %v7743
      %v7745 = vpop.f32.mrb[0].mxu0
      %v7746 = vpop.f32.mrb[0].mxu0
      %v7747 = vadd.f32 %v7586, %v7746
      %v7748 = vpop.f32.mrb[0].mxu0
      %7749 = vmatprep.mubr.bf16.mxu0 %v6580
      %7750 = vmatmul.mubr.bf16.gmra.mrb[0].mxu0 %v6579
      %v7751 = vpop.f32.mrb[0].mxu0
      %v7752 = vadd.f32 %v7591, %v7751
      %v7753 = vpop.f32.mrb[0].mxu0
      %v7754 = vpop.f32.mrb[0].mxu0
      %v7755 = vadd.f32 %v7594, %v7754
      %v7756 = vpop.f32.mrb[0].mxu0
      %7757 = vmatprep.mubr.bf16.mxu0 %v6589
      %7758 = vmatmul.mubr.bf16.gmra.mrb[0].mxu0 %v6588
      %v7759 = vpop.f32.mrb[0].mxu0
      %v7760 = vadd.f32 %v7599, %v7759
      %v7761 = vpop.f32.mrb[0].mxu0
      %v7762 = vpop.f32.mrb[0].mxu0
      %v7763 = vadd.f32 %v7602, %v7762
      %v7764 = vpop.f32.mrb[0].mxu0
      %7765 = vmatprep.mubr.bf16.mxu0 %v6598
      %7766 = vmatmul.mubr.bf16.gmra.mrb[0].mxu0 %v6597
      %v7767 = vpop.f32.mrb[0].mxu0
      %v7768 = vadd.f32 %v7607, %v7767
      %v7769 = vpop.f32.mrb[0].mxu0
      %v7770 = vpop.f32.mrb[0].mxu0
      %v7771 = vadd.f32 %v7610, %v7770
      %v7772 = vpop.f32.mrb[0].mxu0
      %7773 = vmatprep.mubr.bf16.mxu0 %v6607
      %7774 = vmatmul.mubr.bf16.gmra.mrb[0].mxu0 %v6606
      %v7775 = vpop.f32.mrb[0].mxu0
      %v7776 = vadd.f32 %v7615, %v7775
      %v7777 = vpop.f32.mrb[0].mxu0
      %v7778 = vpop.f32.mrb[0].mxu0
      %v7779 = vadd.f32 %v7618, %v7778
      %v7780 = vpop.f32.mrb[0].mxu0
      %7781 = vmatprep.mubr.bf16.mxu0 %v6616
      %7782 = vmatmul.mubr.bf16.gmra.mrb[0].mxu0 %v6615
      %v7783 = vpop.f32.mrb[0].mxu0
      %v7784 = vadd.f32 %v7623, %v7783
      %v7785 = vpop.f32.mrb[0].mxu0
      %v7786 = vpop.f32.mrb[0].mxu0
      %v7787 = vadd.f32 %v7626, %v7786
      %v7788 = vpop.f32.mrb[0].mxu0
      %7789 = vmatprep.mubr.bf16.mxu0 %v6625
      %7790 = vmatmul.mubr.bf16.gmra.mrb[0].mxu0 %v6624
      %v7791 = vpop.f32.mrb[0].mxu0
      %v7792 = vadd.f32 %v7631, %v7791
      %v7793 = vpop.f32.mrb[0].mxu0
      %v7794 = vpop.f32.mrb[0].mxu0
      %v7795 = vadd.f32 %v7634, %v7794
      %v7796 = vpop.f32.mrb[0].mxu0
      %7797 = vmatprep.mubr.bf16.mxu0 %v6634
      %7798 = vmatmul.mubr.bf16.gmra.mrb[0].mxu0 %v6633
      %v7799 = vpop.f32.mrb[0].mxu0
      %v7800 = vadd.f32 %v7639, %v7799
      %v7801 = vpop.f32.mrb[0].mxu0
      %v7802 = vpop.f32.mrb[0].mxu0
      %v7803 = vadd.f32 %v7642, %v7802
      %v7804 = vpop.f32.mrb[0].mxu0
      %7805 = vmatprep.mubr.bf16.mxu0 %v6643
      %7806 = vmatmul.mubr.bf16.gmra.mrb[0].mxu0 %v6642
      %v7807 = vpop.f32.mrb[0].mxu0
      %v7808 = vadd.f32 %v7647, %v7807
      %v7809 = vpop.f32.mrb[0].mxu0
      %v7810 = vpop.f32.mrb[0].mxu0
      %v7811 = vadd.f32 %v7650, %v7810
      %v7812 = vpop.f32.mrb[0].mxu0
      %7813 = vmatprep.mubr.bf16.mxu0 %v6652
      %7814 = vmatmul.mubr.bf16.gmra.mrb[0].mxu0 %v6651
      %v7815 = vpop.f32.mrb[0].mxu0
      %v7816 = vadd.f32 %v7655, %v7815
      %v7817 = vpop.f32.mrb[0].mxu0
      %v7818 = vpop.f32.mrb[0].mxu0
      %v7819 = vadd.f32 %v7658, %v7818
      %v7820 = vpop.f32.mrb[0].mxu0
      %7821 = vmatprep.mubr.bf16.mxu0 %v6661
      %7822 = vmatmul.mubr.bf16.gmra.mrb[0].mxu0 %v6660
      %v7823 = vpop.f32.mrb[0].mxu0
      %v7824 = vadd.f32 %v7663, %v7823
      %v7825 = vpop.f32.mrb[0].mxu0
      %v7826 = vpop.f32.mrb[0].mxu0
      %v7827 = vadd.f32 %v7666, %v7826
      %v7828 = vpop.f32.mrb[0].mxu0
      %7829 = vmatprep.mubr.bf16.mxu0 %v6670
      %7830 = vmatmul.mubr.bf16.gmra.mrb[0].mxu0 %v6669
      %v7831 = vpop.f32.mrb[0].mxu0
      %v7832 = vadd.f32 %v7671, %v7831
      %v7833 = vpop.f32.mrb[0].mxu0
      %v7834 = vpop.f32.mrb[0].mxu0
      %v7835 = vadd.f32 %v7674, %v7834
      %v7836 = vpop.f32.mrb[0].mxu0
      %7837 = vmatprep.mubr.bf16.mxu0 %v6679
      %7838 = vmatmul.mubr.bf16.gmra.mrb[0].mxu0 %v6678
      %v7839 = vpop.f32.mrb[0].mxu0
      %v7840 = vadd.f32 %v7679, %v7839
      %v7841 = vpop.f32.mrb[0].mxu0
      %v7842 = vpop.f32.mrb[0].mxu0
      %v7843 = vadd.f32 %v7682, %v7842
      %v7844 = vpop.f32.mrb[0].mxu0
      %7845 = vmatprep.mubr.bf16.mxu0 %v6688
      %7846 = vmatmul.mubr.bf16.gmra.mrb[0].mxu0 %v6687
      %v7847 = vpop.f32.mrb[0].mxu0
      %v7848 = vadd.f32 %v7687, %v7847
      %v7849 = vpop.f32.mrb[0].mxu0
      %v7850 = vpop.f32.mrb[0].mxu0
      %v7851 = vadd.f32 %v7690, %v7850
      %v7852 = vpop.f32.mrb[0].mxu0
      %7853 = vmatprep.mubr.bf16.mxu0 %v6697
      %7854 = vmatmul.mubr.bf16.gmra.mrb[0].mxu0 %v6696
      %v7855 = vpop.f32.mrb[0].mxu0
      %v7856 = vadd.f32 %v7695, %v7855
      %v7857 = vpop.f32.mrb[0].mxu0
      %v7858 = vpop.f32.mrb[0].mxu0
      %v7859 = vadd.f32 %v7698, %v7858
      %v7860 = vpop.f32.mrb[0].mxu0
      %7861 = vdwg.mxu0
      %v7862 = vld [vmem:[%s10] sm:$0xf]
      %v7863 = vld [vmem:[%s10 + $0x4] sm:$0xf]
      %v7864 = vld [vmem:[%s10 + $0x8] sm:$0xf]
      %v7865 = vld [vmem:[%s10 + $0xc] sm:$0xf]
      %v7866 = vld [vmem:[%s10 + $0x10] sm:$0xf]
      %v7867 = vld [vmem:[%s10 + $0x14] sm:$0xf]
      %v7868 = vld [vmem:[%s10 + $0x18] sm:$0xf]
      %v7869 = vld [vmem:[%s10 + $0x1c] sm:$0xf]
      %v7870 = vld [vmem:[%s10 + $0x20] sm:$0xf]
      %v7871 = vld [vmem:[%s10 + $0x24] sm:$0xf]
      %v7872 = vld [vmem:[%s10 + $0x28] sm:$0xf]
      %v7873 = vld [vmem:[%s10 + $0x2c] sm:$0xf]
      %v7874 = vld [vmem:[%s10 + $0x30] sm:$0xf]
      %v7875 = vld [vmem:[%s10 + $0x34] sm:$0xf]
      %v7876 = vld [vmem:[%s10 + $0x38] sm:$0xf]
      %v7877 = vld [vmem:[%s10 + $0x3c] sm:$0xf]
      %v7878 = vld [vmem:[%s11] sm:$0x1]
      %v7880 = vlaneseq
      %v7881 = vshrl.u32 %v7880, 7
      %v7882 = vsub.s32 0, %v7881
      %v7883 = vrot.slane %v7878, %v7882
      %v7901 = vunpack.c.l.b16 %v7862
      %v7902 = vunpack.c.l.b16 %v7863
      %v7903 = vunpack.c.l.b16 %v7864
      %v7904 = vunpack.c.l.b16 %v7865
      %v7905 = vunpack.c.l.b16 %v7866
      %v7906 = vunpack.c.l.b16 %v7867
      %v7907 = vunpack.c.l.b16 %v7868
      %v7908 = vunpack.c.l.b16 %v7869
      %v7909 = vunpack.c.l.b16 %v7870
      %v7910 = vunpack.c.l.b16 %v7871
      %v7911 = vunpack.c.l.b16 %v7872
      %v7912 = vunpack.c.l.b16 %v7873
      %v7913 = vunpack.c.l.b16 %v7874
      %v7914 = vunpack.c.l.b16 %v7875
      %v7915 = vunpack.c.l.b16 %v7876
      %v7916 = vunpack.c.l.b16 %v7877
      %v7917 = vpack.c.b16 %v7902, %v7901
      %v7918 = vpack.c.b16 %v7904, %v7903
      %v7919 = vpack.c.b16 %v7906, %v7905
      %v7920 = vpack.c.b16 %v7908, %v7907
      %v7921 = vpack.c.b16 %v7910, %v7909
      %v7922 = vpack.c.b16 %v7912, %v7911
      %v7923 = vpack.c.b16 %v7914, %v7913
      %v7924 = vpack.c.b16 %v7916, %v7915
      %7933 = vmatprep.subr.bf16.mxu0 0
      %7934 = vmatpush1.bf16.msra.mxu0 %v7917
      %7935 = vmatprep.subr.bf16.mxu0 0
      %7936 = vmatpush1.bf16.msra.mxu0 %v7918
      %7937 = vmatprep.subr.bf16.mxu0 0
      %7938 = vmatpush1.bf16.msra.mxu0 %v7919
      %7939 = vmatprep.subr.bf16.mxu0 0
      %7940 = vmatpush1.bf16.msra.mxu0 %v7920
      %7941 = vmatprep.subr.bf16.mxu0 0
      %7942 = vmatpush1.bf16.msra.mxu0 %v7921
      %7943 = vmatprep.subr.bf16.mxu0 0
      %7944 = vmatpush1.bf16.msra.mxu0 %v7922
      %7945 = vmatprep.subr.bf16.mxu0 0
      %7946 = vmatpush1.bf16.msra.mxu0 %v7923
      %7947 = vmatprep.subr.bf16.mxu0 0
      %7948 = vmatpush1.bf16.msra.mxu0 %v7924
      %7949 = vmatprep.subr.bf16.mxu0 0
      %7950 = vmatpush1.bf16.msra.mxu0 0
      %7951 = vmatprep.subr.bf16.mxu0 0
      %7952 = vmatpush1.bf16.msra.mxu0 0
      %7953 = vmatprep.subr.bf16.mxu0 0
      %7954 = vmatpush1.bf16.msra.mxu0 0
      %7955 = vmatprep.subr.bf16.mxu0 0
      %7956 = vmatpush1.bf16.msra.mxu0 0
      %7957 = vmatprep.subr.bf16.mxu0 0
      %7958 = vmatpush1.bf16.msra.mxu0 0
      %7959 = vmatprep.subr.bf16.mxu0 0
      %7960 = vmatpush1.bf16.msra.mxu0 0
      %7961 = vmatprep.subr.bf16.mxu0 0
      %7962 = vmatpush1.bf16.msra.mxu0 0
      %7963 = vmatprep.subr.bf16.mxu0 0
      %7964 = vmatpush1.bf16.msra.mxu0 0
      %7965 = vmatprep.mubr.bf16.mxu0 0
      %7966 = vmatmul.mubr.bf16.gmra.mrb[0].mxu0 %v6563
      %v7967 = vpop.f32.mrb[0].mxu0
      %v7968 = vadd.f32 %v7883, %v7967
      %v7969 = vpop.f32.mrb[0].mxu0
      %v7970 = vpop.f32.mrb[0].mxu0
      %v7971 = vadd.f32 %v7883, %v7970
      %v7972 = vpop.f32.mrb[0].mxu0
      %7973 = vmatprep.mubr.bf16.mxu0 0
      %7974 = vmatmul.mubr.bf16.gmra.mrb[0].mxu0 %v6572
      %v7975 = vpop.f32.mrb[0].mxu0
      %v7976 = vadd.f32 %v7883, %v7975
      %v7977 = vpop.f32.mrb[0].mxu0
      %v7978 = vpop.f32.mrb[0].mxu0
      %v7979 = vadd.f32 %v7883, %v7978
      %v7980 = vpop.f32.mrb[0].mxu0
      %7981 = vmatprep.mubr.bf16.mxu0 0
      %7982 = vmatmul.mubr.bf16.gmra.mrb[0].mxu0 %v6581
      %v7983 = vpop.f32.mrb[0].mxu0
      %v7984 = vadd.f32 %v7883, %v7983
      %v7985 = vpop.f32.mrb[0].mxu0
      %v7986 = vpop.f32.mrb[0].mxu0
      %v7987 = vadd.f32 %v7883, %v7986
      %v7988 = vpop.f32.mrb[0].mxu0
      %7989 = vmatprep.mubr.bf16.mxu0 0
      %7990 = vmatmul.mubr.bf16.gmra.mrb[0].mxu0 %v6590
      %v7991 = vpop.f32.mrb[0].mxu0
      %v7992 = vadd.f32 %v7883, %v7991
      %v7993 = vpop.f32.mrb[0].mxu0
      %v7994 = vpop.f32.mrb[0].mxu0
      %v7995 = vadd.f32 %v7883, %v7994
      %v7996 = vpop.f32.mrb[0].mxu0
      %7997 = vmatprep.mubr.bf16.mxu0 0
      %7998 = vmatmul.mubr.bf16.gmra.mrb[0].mxu0 %v6599
      %v7999 = vpop.f32.mrb[0].mxu0
      %v8000 = vadd.f32 %v7883, %v7999
      %v8001 = vpop.f32.mrb[0].mxu0
      %v8002 = vpop.f32.mrb[0].mxu0
      %v8003 = vadd.f32 %v7883, %v8002
      %v8004 = vpop.f32.mrb[0].mxu0
      %8005 = vmatprep.mubr.bf16.mxu0 0
      %8006 = vmatmul.mubr.bf16.gmra.mrb[0].mxu0 %v6608
      %v8007 = vpop.f32.mrb[0].mxu0
      %v8008 = vadd.f32 %v7883, %v8007
      %v8009 = vpop.f32.mrb[0].mxu0
      %v8010 = vpop.f32.mrb[0].mxu0
      %v8011 = vadd.f32 %v7883, %v8010
      %v8012 = vpop.f32.mrb[0].mxu0
      %8013 = vmatprep.mubr.bf16.mxu0 0
      %8014 = vmatmul.mubr.bf16.gmra.mrb[0].mxu0 %v6617
      %v8015 = vpop.f32.mrb[0].mxu0
      %v8016 = vadd.f32 %v7883, %v8015
      %v8017 = vpop.f32.mrb[0].mxu0
      %v8018 = vpop.f32.mrb[0].mxu0
      %v8019 = vadd.f32 %v7883, %v8018
      %v8020 = vpop.f32.mrb[0].mxu0
      %8021 = vmatprep.mubr.bf16.mxu0 0
      %8022 = vmatmul.mubr.bf16.gmra.mrb[0].mxu0 %v6626
      %v8023 = vpop.f32.mrb[0].mxu0
      %v8024 = vadd.f32 %v7883, %v8023
      %v8025 = vpop.f32.mrb[0].mxu0
      %v8026 = vpop.f32.mrb[0].mxu0
      %v8027 = vadd.f32 %v7883, %v8026
      %v8028 = vpop.f32.mrb[0].mxu0
      %8029 = vmatprep.mubr.bf16.mxu0 0
      %8030 = vmatmul.mubr.bf16.gmra.mrb[0].mxu0 %v6635
      %v8031 = vpop.f32.mrb[0].mxu0
      %v8032 = vadd.f32 %v7883, %v8031
      %v8033 = vpop.f32.mrb[0].mxu0
      %v8034 = vpop.f32.mrb[0].mxu0
      %v8035 = vadd.f32 %v7883, %v8034
      %v8036 = vpop.f32.mrb[0].mxu0
      %8037 = vmatprep.mubr.bf16.mxu0 0
      %8038 = vmatmul.mubr.bf16.gmra.mrb[0].mxu0 %v6644
      %v8039 = vpop.f32.mrb[0].mxu0
      %v8040 = vadd.f32 %v7883, %v8039
      %v8041 = vpop.f32.mrb[0].mxu0
      %v8042 = vpop.f32.mrb[0].mxu0
      %v8043 = vadd.f32 %v7883, %v8042
      %v8044 = vpop.f32.mrb[0].mxu0
      %8045 = vmatprep.mubr.bf16.mxu0 0
      %8046 = vmatmul.mubr.bf16.gmra.mrb[0].mxu0 %v6653
      %v8047 = vpop.f32.mrb[0].mxu0
      %v8048 = vadd.f32 %v7883, %v8047
      %v8049 = vpop.f32.mrb[0].mxu0
      %v8050 = vpop.f32.mrb[0].mxu0
      %v8051 = vadd.f32 %v7883, %v8050
      %v8052 = vpop.f32.mrb[0].mxu0
      %8053 = vmatprep.mubr.bf16.mxu0 0
      %8054 = vmatmul.mubr.bf16.gmra.mrb[0].mxu0 %v6662
      %v8055 = vpop.f32.mrb[0].mxu0
      %v8056 = vadd.f32 %v7883, %v8055
      %v8057 = vpop.f32.mrb[0].mxu0
      %v8058 = vpop.f32.mrb[0].mxu0
      %v8059 = vadd.f32 %v7883, %v8058
      %v8060 = vpop.f32.mrb[0].mxu0
      %8061 = vmatprep.mubr.bf16.mxu0 0
      %8062 = vmatmul.mubr.bf16.gmra.mrb[0].mxu0 %v6671
      %v8063 = vpop.f32.mrb[0].mxu0
      %v8064 = vadd.f32 %v7883, %v8063
      %v8065 = vpop.f32.mrb[0].mxu0
      %v8066 = vpop.f32.mrb[0].mxu0
      %v8067 = vadd.f32 %v7883, %v8066
      %v8068 = vpop.f32.mrb[0].mxu0
      %8069 = vmatprep.mubr.bf16.mxu0 0
      %8070 = vmatmul.mubr.bf16.gmra.mrb[0].mxu0 %v6680
      %v8071 = vpop.f32.mrb[0].mxu0
      %v8072 = vadd.f32 %v7883, %v8071
      %v8073 = vpop.f32.mrb[0].mxu0
      %v8074 = vpop.f32.mrb[0].mxu0
      %v8075 = vadd.f32 %v7883, %v8074
      %v8076 = vpop.f32.mrb[0].mxu0
      %8077 = vmatprep.mubr.bf16.mxu0 0
      %8078 = vmatmul.mubr.bf16.gmra.mrb[0].mxu0 %v6689
      %v8079 = vpop.f32.mrb[0].mxu0
      %v8080 = vadd.f32 %v7883, %v8079
      %v8081 = vpop.f32.mrb[0].mxu0
      %v8082 = vpop.f32.mrb[0].mxu0
      %v8083 = vadd.f32 %v7883, %v8082
      %v8084 = vpop.f32.mrb[0].mxu0
      %8085 = vmatprep.mubr.bf16.mxu0 0
      %8086 = vmatmul.mubr.bf16.gmra.mrb[0].mxu0 %v6698
      %v8087 = vpop.f32.mrb[0].mxu0
      %v8088 = vadd.f32 %v7883, %v8087
      %v8089 = vpop.f32.mrb[0].mxu0
      %v8090 = vpop.f32.mrb[0].mxu0
      %v8091 = vadd.f32 %v7883, %v8090
      %v8092 = vpop.f32.mrb[0].mxu0
      %8093 = vdwg.mxu0
      %v8094 = vadd.f32 %v481, %v7736
      %v8095 = vadd.f32 %v482, %v7739
      %v8096 = vadd.f32 %v483, %v7744
      %v8097 = vadd.f32 %v484, %v7747
      %v8098 = vadd.f32 %v485, %v7752
      %v8099 = vadd.f32 %v486, %v7755
      %v8100 = vadd.f32 %v487, %v7760
      %v8101 = vadd.f32 %v488, %v7763
      %v8102 = vadd.f32 %v489, %v7768
      %v8103 = vadd.f32 %v490, %v7771
      %v8104 = vadd.f32 %v491, %v7776
      %v8105 = vadd.f32 %v492, %v7779
      %v8106 = vadd.f32 %v493, %v7784
      %v8107 = vadd.f32 %v494, %v7787
      %v8108 = vadd.f32 %v495, %v7792
      %v8109 = vadd.f32 %v496, %v7795
      %v8110 = vadd.f32 %v497, %v7800
      %v8111 = vadd.f32 %v498, %v7803
      %v8112 = vadd.f32 %v499, %v7808
      %v8113 = vadd.f32 %v500, %v7811
      %v8114 = vadd.f32 %v501, %v7816
      %v8115 = vadd.f32 %v502, %v7819
      %v8116 = vadd.f32 %v503, %v7824
      %v8117 = vadd.f32 %v504, %v7827
      %v8118 = vadd.f32 %v505, %v7832
      %v8119 = vadd.f32 %v506, %v7835
      %v8120 = vadd.f32 %v507, %v7840
      %v8121 = vadd.f32 %v508, %v7843
      %v8122 = vadd.f32 %v509, %v7848
      %v8123 = vadd.f32 %v510, %v7851
      %v8124 = vadd.f32 %v511, %v7856
      %v8125 = vadd.f32 %v512, %v7859
      %8126 = vst [vmem:[%s472] sm:$0xff] %v8094
      %8127 = vst [vmem:[%s472 + $0x8] sm:$0xff] %v8095
      %8128 = vst [vmem:[%s472 + $0x10] sm:$0xff] %v8096
      %8129 = vst [vmem:[%s472 + $0x18] sm:$0xff] %v8097
      %8130 = vst [vmem:[%s472 + $0x20] sm:$0xff] %v8098
      %8131 = vst [vmem:[%s472 + $0x28] sm:$0xff] %v8099
      %8132 = vst [vmem:[%s472 + $0x30] sm:$0xff] %v8100
      %8133 = vst [vmem:[%s472 + $0x38] sm:$0xff] %v8101
      %8134 = vst [vmem:[%s472 + $0x40] sm:$0xff] %v8102
      %8135 = vst [vmem:[%s472 + $0x48] sm:$0xff] %v8103
      %8136 = vst [vmem:[%s472 + $0x50] sm:$0xff] %v8104
      %8137 = vst [vmem:[%s472 + $0x58] sm:$0xff] %v8105
      %8138 = vst [vmem:[%s472 + $0x60] sm:$0xff] %v8106
      %8139 = vst [vmem:[%s472 + $0x68] sm:$0xff] %v8107
      %8140 = vst [vmem:[%s472 + $0x70] sm:$0xff] %v8108
      %8141 = vst [vmem:[%s472 + $0x78] sm:$0xff] %v8109
      %8142 = vst [vmem:[%s472 + $0x80] sm:$0xff] %v8110
      %8143 = vst [vmem:[%s472 + $0x88] sm:$0xff] %v8111
      %8144 = vst [vmem:[%s472 + $0x90] sm:$0xff] %v8112
      %8145 = vst [vmem:[%s472 + $0x98] sm:$0xff] %v8113
      %8146 = vst [vmem:[%s472 + $0xa0] sm:$0xff] %v8114
      %8147 = vst [vmem:[%s472 + $0xa8] sm:$0xff] %v8115
      %8148 = vst [vmem:[%s472 + $0xb0] sm:$0xff] %v8116
      %8149 = vst [vmem:[%s472 + $0xb8] sm:$0xff] %v8117
      %8150 = vst [vmem:[%s472 + $0xc0] sm:$0xff] %v8118
      %8151 = vst [vmem:[%s472 + $0xc8] sm:$0xff] %v8119
      %8152 = vst [vmem:[%s472 + $0xd0] sm:$0xff] %v8120
      %8153 = vst [vmem:[%s472 + $0xd8] sm:$0xff] %v8121
      %8154 = vst [vmem:[%s472 + $0xe0] sm:$0xff] %v8122
      %8155 = vst [vmem:[%s472 + $0xe8] sm:$0xff] %v8123
      %8156 = vst [vmem:[%s472 + $0xf0] sm:$0xff] %v8124
      %8157 = vst [vmem:[%s472 + $0xf8] sm:$0xff] %v8125
      %v8158 = vld [vmem:[%s466] sm:$0xff]
      %v8159 = vld [vmem:[%s466 + $0x8] sm:$0xff]
      %v8160 = vld [vmem:[%s466 + $0x10] sm:$0xff]
      %v8161 = vld [vmem:[%s466 + $0x18] sm:$0xff]
      %v8162 = vld [vmem:[%s466 + $0x20] sm:$0xff]
      %v8163 = vld [vmem:[%s466 + $0x28] sm:$0xff]
      %v8164 = vld [vmem:[%s466 + $0x30] sm:$0xff]
      %v8165 = vld [vmem:[%s466 + $0x38] sm:$0xff]
      %v8166 = vld [vmem:[%s466 + $0x40] sm:$0xff]
      %v8167 = vld [vmem:[%s466 + $0x48] sm:$0xff]
      %v8168 = vld [vmem:[%s466 + $0x50] sm:$0xff]
      %v8169 = vld [vmem:[%s466 + $0x58] sm:$0xff]
      %v8170 = vld [vmem:[%s466 + $0x60] sm:$0xff]
      %v8171 = vld [vmem:[%s466 + $0x68] sm:$0xff]
      %v8172 = vld [vmem:[%s466 + $0x70] sm:$0xff]
      %v8173 = vld [vmem:[%s466 + $0x78] sm:$0xff]
      %v8174 = vld [vmem:[%s466 + $0x80] sm:$0xff]
      %v8175 = vld [vmem:[%s466 + $0x88] sm:$0xff]
      %v8176 = vld [vmem:[%s466 + $0x90] sm:$0xff]
      %v8177 = vld [vmem:[%s466 + $0x98] sm:$0xff]
      %v8178 = vld [vmem:[%s466 + $0xa0] sm:$0xff]
      %v8179 = vld [vmem:[%s466 + $0xa8] sm:$0xff]
      %v8180 = vld [vmem:[%s466 + $0xb0] sm:$0xff]
      %v8181 = vld [vmem:[%s466 + $0xb8] sm:$0xff]
      %v8182 = vld [vmem:[%s466 + $0xc0] sm:$0xff]
      %v8183 = vld [vmem:[%s466 + $0xc8] sm:$0xff]
      %v8184 = vld [vmem:[%s466 + $0xd0] sm:$0xff]
      %v8185 = vld [vmem:[%s466 + $0xd8] sm:$0xff]
      %v8186 = vld [vmem:[%s466 + $0xe0] sm:$0xff]
      %v8187 = vld [vmem:[%s466 + $0xe8] sm:$0xff]
      %v8188 = vld [vmem:[%s466 + $0xf0] sm:$0xff]
      %v8189 = vld [vmem:[%s466 + $0xf8] sm:$0xff]
      %v8190 = vadd.f32 %v8158, %v7968
      %v8191 = vadd.f32 %v8159, %v7971
      %v8192 = vadd.f32 %v8160, %v7976
      %v8193 = vadd.f32 %v8161, %v7979
      %v8194 = vadd.f32 %v8162, %v7984
      %v8195 = vadd.f32 %v8163, %v7987
      %v8196 = vadd.f32 %v8164, %v7992
      %v8197 = vadd.f32 %v8165, %v7995
      %v8198 = vadd.f32 %v8166, %v8000
      %v8199 = vadd.f32 %v8167, %v8003
      %v8200 = vadd.f32 %v8168, %v8008
      %v8201 = vadd.f32 %v8169, %v8011
      %v8202 = vadd.f32 %v8170, %v8016
      %v8203 = vadd.f32 %v8171, %v8019
      %v8204 = vadd.f32 %v8172, %v8024
      %v8205 = vadd.f32 %v8173, %v8027
      %v8206 = vadd.f32 %v8174, %v8032
      %v8207 = vadd.f32 %v8175, %v8035
      %v8208 = vadd.f32 %v8176, %v8040
      %v8209 = vadd.f32 %v8177, %v8043
      %v8210 = vadd.f32 %v8178, %v8048
      %v8211 = vadd.f32 %v8179, %v8051
      %v8212 = vadd.f32 %v8180, %v8056
      %v8213 = vadd.f32 %v8181, %v8059
      %v8214 = vadd.f32 %v8182, %v8064
      %v8215 = vadd.f32 %v8183, %v8067
      %v8216 = vadd.f32 %v8184, %v8072
      %v8217 = vadd.f32 %v8185, %v8075
      %v8218 = vadd.f32 %v8186, %v8080
      %v8219 = vadd.f32 %v8187, %v8083
      %v8220 = vadd.f32 %v8188, %v8088
      %v8221 = vadd.f32 %v8189, %v8091
      %8222 = vst [vmem:[%s478] sm:$0xff] %v8190
      %8223 = vst [vmem:[%s478 + $0x8] sm:$0xff] %v8191
      %8224 = vst [vmem:[%s478 + $0x10] sm:$0xff] %v8192
      %8225 = vst [vmem:[%s478 + $0x18] sm:$0xff] %v8193
      %8226 = vst [vmem:[%s478 + $0x20] sm:$0xff] %v8194
      %8227 = vst [vmem:[%s478 + $0x28] sm:$0xff] %v8195
      %8228 = vst [vmem:[%s478 + $0x30] sm:$0xff] %v8196
      %8229 = vst [vmem:[%s478 + $0x38] sm:$0xff] %v8197
      %8230 = vst [vmem:[%s478 + $0x40] sm:$0xff] %v8198
      %8231 = vst [vmem:[%s478 + $0x48] sm:$0xff] %v8199
      %8232 = vst [vmem:[%s478 + $0x50] sm:$0xff] %v8200
      %8233 = vst [vmem:[%s478 + $0x58] sm:$0xff] %v8201
      %8234 = vst [vmem:[%s478 + $0x60] sm:$0xff] %v8202
      %8235 = vst [vmem:[%s478 + $0x68] sm:$0xff] %v8203
      %8236 = vst [vmem:[%s478 + $0x70] sm:$0xff] %v8204
      %8237 = vst [vmem:[%s478 + $0x78] sm:$0xff] %v8205
      %8238 = vst [vmem:[%s478 + $0x80] sm:$0xff] %v8206
      %8239 = vst [vmem:[%s478 + $0x88] sm:$0xff] %v8207
      %8240 = vst [vmem:[%s478 + $0x90] sm:$0xff] %v8208
      %8241 = vst [vmem:[%s478 + $0x98] sm:$0xff] %v8209
      %8242 = vst [vmem:[%s478 + $0xa0] sm:$0xff] %v8210
      %8243 = vst [vmem:[%s478 + $0xa8] sm:$0xff] %v8211
      %8244 = vst [vmem:[%s478 + $0xb0] sm:$0xff] %v8212
      %8245 = vst [vmem:[%s478 + $0xb8] sm:$0xff] %v8213
      %8246 = vst [vmem:[%s478 + $0xc0] sm:$0xff] %v8214
      %8247 = vst [vmem:[%s478 + $0xc8] sm:$0xff] %v8215
      %8248 = vst [vmem:[%s478 + $0xd0] sm:$0xff] %v8216
      %8249 = vst [vmem:[%s478 + $0xd8] sm:$0xff] %v8217
      %8250 = vst [vmem:[%s478 + $0xe0] sm:$0xff] %v8218
      %8251 = vst [vmem:[%s478 + $0xe8] sm:$0xff] %v8219
      %8252 = vst [vmem:[%s478 + $0xf0] sm:$0xff] %v8220
      %8253 = vst [vmem:[%s478 + $0xf8] sm:$0xff] %v8221
      %s8254 = smul.u32 32, %s25
      %p8255 = scmp.lt.s32.totalorder %s8254, 95
      %s8256 = scalar_select %p8255, %s8254, 95
      %s8257 = smul.addr %s8256, 8
      %s8258 = scalar_lea.vmem %s12, %s8257
      %s8259 = smul.u32 32, %s25
      %p8260 = scmp.lt.s32.totalorder %s8259, 95
      %s8261 = scalar_select %p8260, %s8259, 95
      %s8262 = smul.addr %s8261, 8
      %s8263 = scalar_lea.vmem %s13, %s8262
      // Predicated region
      $region69: #{deformation_forward.1} parent=67 // pred_check
        %p8264 = pneg %p305
      $region70: #{deformation_forward.1} parent=67 // pred_check_branch
        %8266 = sbr.rel (%p8264) target = $region72
      $region71: #{deformation_forward.1} parent=67 // pred_region
        %s8267 = smul.u32 32, %s25
      $region72: #{deformation_forward.1} parent=67 // pred_fallthru
        _
      // Predicated region
      $region73: #{deformation_forward.1} parent=67 // pred_check
        %p8268 = pneg %p331
      $region74: #{deformation_forward.1} parent=67 // pred_check_branch
        %8270 = sbr.rel (%p8268) target = $region76
      $region75: #{deformation_forward.1} parent=67 // pred_region
        %s8271 = smul.u32 32, %s25
      $region76: #{deformation_forward.1} parent=67 // pred_fallthru
        _
    $region68: #{deformation_forward.1} parent=5 // pred_fallthru
      _
    %p8272 = scmp.le.s32.totalorder 2, %s20
    // Predicated region
    $region77: #{deformation_forward.1} parent=5 // pred_check
      %p8273 = pneg %p8272
    $region78: #{deformation_forward.1} parent=5 // pred_check_branch
      %8275 = sbr.rel (%p8273) target = $region80
    $region79: #{deformation_forward.1} parent=5 // pred_region
      %s8276 = ssub.s32 %s20, 2
      // Predicated region
      $region81: #{deformation_forward.1} parent=79 // pred_check
        %p8277 = pneg %p311
      $region82: #{deformation_forward.1} parent=79 // pred_check_branch
        %8279 = sbr.rel (%p8277) target = $region84
      $region83: #{deformation_forward.1} parent=79 // pred_region
        %s8280 = smul.u32 32, %s26
        %p8281 = scmp.lt.s32.totalorder %s8280, 95
        %s8282 = scalar_select %p8281, %s8280, 95
        %s8283 = smul.addr %s8282, 8
        %s8284 = scalar_lea.vmem %s12, %s8283
      $region84: #{deformation_forward.1} parent=79 // pred_fallthru
        _
      // Predicated region
      $region85: #{deformation_forward.1} parent=79 // pred_check
        %p8285 = pneg %p337
      $region86: #{deformation_forward.1} parent=79 // pred_check_branch
        %8287 = sbr.rel (%p8285) target = $region88
      $region87: #{deformation_forward.1} parent=79 // pred_region
        %s8288 = smul.u32 32, %s26
        %p8289 = scmp.lt.s32.totalorder %s8288, 95
        %s8290 = scalar_select %p8289, %s8288, 95
        %s8291 = smul.addr %s8290, 8
        %s8292 = scalar_lea.vmem %s13, %s8291
      $region88: #{deformation_forward.1} parent=79 // pred_fallthru
        _
    $region80: #{deformation_forward.1} parent=5 // pred_fallthru
      _
  $region6: #{deformation_forward.1} parent=0 // loop_footer
    %s24 = sadd.s32 1, %s20
  $region7: #{deformation_forward.1} parent=0 // loop_footer_branch
    %19 = sbr.rel target = $region3
  $region8: #{deformation_forward.1} parent=0 // loop_exit
    _

</llo_original>
